<compile_context>
chip_gen: v6e
topology: v6e:2x2x1
jax: 0.10.0
libtpu: 0.0.40
codegen_flags: <defaults>
</compile_context>

<pallas_src>
import functools

import numpy as np
import jax
import jax.numpy as jnp
from jax.experimental import pallas as pl
from jax.experimental.pallas import tpu as pltpu

_KH = _KW = 5          # conv kernel size
_C1, _C1P = 6, 8       # conv1 out channels (padded to 8 lanes per pixel)
_C2 = 16               # conv2 out channels
_P1 = 14               # pool1 output spatial size
_P2 = 5                # pool2 output spatial size
_LANE = 128
_TB = 8                # batch tile per grid step


# ------------------------------ Pallas kernel -------------------------------

def _lenet_kernel(x_ref, band1_ref, band2_ref, b1_ref, b2_ref,
                  g_ref, bf1_ref, wf2_ref, bf2_ref, wf3_ref, bf3_ref,
                  out_ref):
    """Whole LeNet forward for one batch tile; everything stays on-chip."""
    tb = x_ref.shape[0]
    kin = x_ref.shape[-1]                        # 36 * nc
    x = x_ref[...]                               # (TB, 4, 9, 36*nc)

    # conv1 evaluated directly on the pool-phase grid:
    #   c1[(ri, dv)][b*8+u, v*8+co] = conv1(x)[b, co, 4u+ri, 2v+dv]  (no bias)
    c1 = {}
    for ri in range(4):
        for ki in range(_KH):
            t = ri + ki
            lhs = x[:, t % 4, (t // 4):(t // 4) + 8, :].reshape(tb * 8, kin)
            for dv in range(2):
                acc = jnp.dot(lhs, band1_ref[ki, dv],
                              preferred_element_type=jnp.float32)
                c1[(ri, dv)] = acc if ki == 0 else c1[(ri, dv)] + acc

    # bias + ReLU + 2x2 maxpool == elementwise max over the 4 phases.
    p = []
    for q in range(2):                           # q = row parity of pool1 rows
        m = jnp.maximum(jnp.maximum(c1[(2 * q, 0)], c1[(2 * q, 1)]),
                        jnp.maximum(c1[(2 * q + 1, 0)], c1[(2 * q + 1, 1)]))
        pq = jnp.maximum(m + b1_ref[...], 0.0)              # (TB*8, 112)
        pq = pq.reshape(tb, 8, _P1 * _C1P)
        # Pad to 16 rows; rows >= 8 only feed discarded (garbage) outputs.
        p.append(jnp.concatenate([pq, jnp.zeros_like(pq)], axis=1))

    # conv2 on the pool2-phase grid:
    #   c2[(du, dv)][b*8+i, j*16+co] = conv2(pool1)[b, co, 2i+du, 2j+dv]
    c2 = {}
    for du in range(2):
        for ki in range(_KH):
            t = du + ki
            lhs = p[t % 2][:, (t // 2):(t // 2) + 8, :].reshape(tb * 8,
                                                                _P1 * _C1P)
            for dv in range(2):
                acc = jnp.dot(lhs, band2_ref[ki, dv],
                              preferred_element_type=jnp.float32)
                c2[(du, dv)] = acc if ki == 0 else c2[(du, dv)] + acc

    m = jnp.maximum(jnp.maximum(c2[(0, 0)], c2[(0, 1)]),
                    jnp.maximum(c2[(1, 0)], c2[(1, 1)]))
    pl2 = jnp.maximum(m + b2_ref[...], 0.0)                  # (TB*8, 80)
    pl2 = pl2.reshape(tb, 8, _P2 * _C2)

    # fc1: PyTorch channel-major flatten is baked into g_ref's column order.
    h = None
    for u in range(_P2):
        t = jnp.dot(pl2[:, u, :], g_ref[u], preferred_element_type=jnp.float32)
        h = t if u == 0 else h + t
    h = jnp.maximum(h + bf1_ref[...], 0.0)                   # (TB, 128)
    h = jnp.maximum(jnp.dot(h, wf2_ref[...],
                            preferred_element_type=jnp.float32) + bf2_ref[...],
                    0.0)
    out_ref[...] = jnp.dot(h, wf3_ref[...],
                           preferred_element_type=jnp.float32) + bf3_ref[...]


# --------------------------- host-side data prep ----------------------------

def _prep_input(x_nchw, tb):
    """NCHW -> conv1-padded, row space-to-depth(4) layout (B, 4, 9, 36*nc)."""
    B, nc, H, W = x_nchw.shape
    assert H == 28 and W == 28, "fc1 = Linear(5*5*16, 120) forces 28x28 inputs"
    x = jnp.transpose(x_nchw, (0, 2, 3, 1)).astype(jnp.float32)   # (B,28,28,nc)
    x = jnp.pad(x, ((0, 0), (2, 6), (2, 6), (0, 0)))              # (B,36,36,nc)
    x = x.reshape(B, 9, 4, 36, nc)                                # row = 4m + r
    x = jnp.transpose(x, (0, 2, 1, 3, 4)).reshape(B, 4, 9, 36 * nc)
    bp = ((B + tb - 1) // tb) * tb
    if bp != B:
        x = jnp.pad(x, ((0, bp - B), (0, 0), (0, 0), (0, 0)))
    return x, bp


def _conv1_bands(w1):
    """band1[ki, dv, jj*nc+ci, v*8+co] = w1[co, ci, ki, jj-(2v+dv)], 0 outside."""
    co, nc = w1.shape[0], w1.shape[1]
    w1e = jnp.concatenate([w1, jnp.zeros((co, nc, _KH, 1), w1.dtype)], axis=3)
    jj = np.arange(36)
    v = np.arange(_P1)
    bands = []
    for dv in range(2):
        kj = jj[:, None] - (2 * v[None, :] + dv)
        kj_idx = np.where((kj >= 0) & (kj < _KW), kj, _KW)        # KW -> zero col
        b = w1e[:, :, :, kj_idx]                                  # (co,nc,ki,36,14)
        b = jnp.transpose(b, (2, 3, 1, 4, 0))                     # (ki,jj,ci,v,co)
        b = jnp.pad(b, ((0, 0),) * 4 + ((0, _C1P - co),))
        bands.append(b.reshape(_KH, 36 * nc, _P1 * _C1P))
    return jnp.stack(bands, axis=1)                               # (5,2,36nc,112)


def _conv2_bands(w2):
    """band2[ki, dv, v*8+ci, j*16+co] = w2[co, ci, ki, v-(2j+dv)], 0 outside."""
    co, ci = w2.shape[0], w2.shape[1]
    w2e = jnp.concatenate([w2, jnp.zeros((co, ci, _KH, 1), w2.dtype)], axis=3)
    v = np.arange(_P1)
    j = np.arange(_P2)
    bands = []
    for dv in range(2):
        kj = v[:, None] - (2 * j[None, :] + dv)
        kj_idx = np.where((kj >= 0) & (kj < _KW), kj, _KW)
        b = w2e[:, :, :, kj_idx]                                  # (co,ci,ki,14,5)
        b = jnp.transpose(b, (2, 3, 1, 4, 0))                     # (ki,v,ci,j,co)
        b = jnp.pad(b, ((0, 0), (0, 0), (0, _C1P - ci), (0, 0), (0, 0)))
        bands.append(b.reshape(_KH, _P1 * _C1P, _P2 * co))
    return jnp.stack(bands, axis=1)                               # (5,2,112,80)


def _prep_params(params):
    """Rearrange PyTorch-layout weights into banded / lane-padded forms."""
    f32 = lambda a: a.astype(jnp.float32)
    n1 = params['w_fc1'].shape[0]            # 120
    n2 = params['w_fc2'].shape[0]            # 84
    nclass = params['w_fc3'].shape[0]        # 10
    assert params['w_fc1'].shape[1] == _C2 * _P2 * _P2
    assert n1 <= _LANE and n2 <= _LANE and nclass <= _LANE

    band1 = _conv1_bands(f32(params['w_conv1']))
    band2 = _conv2_bands(f32(params['w_conv2']))
    b1t = jnp.tile(jnp.pad(f32(params['b_conv1']), (0, _C1P - _C1)),
                   _P1).reshape(1, _P1 * _C1P)
    b2t = jnp.tile(f32(params['b_conv2']), _P2).reshape(1, _P2 * _C2)

    # fc1 with the NCHW flatten order (c*25 + u*5 + v) baked into the columns.
    wf1 = f32(params['w_fc1']).reshape(n1, _C2, _P2, _P2)         # (n,c,u,v)
    g = jnp.transpose(wf1, (2, 3, 1, 0)).reshape(_P2, _P2 * _C2, n1)
    g = jnp.pad(g, ((0, 0), (0, 0), (0, _LANE - n1)))
    bf1 = jnp.pad(f32(params['b_fc1']), (0, _LANE - n1)).reshape(1, _LANE)
    wf2 = jnp.pad(f32(params['w_fc2']).T, ((0, _LANE - n1), (0, _LANE - n2)))
    bf2 = jnp.pad(f32(params['b_fc2']), (0, _LANE - n2)).reshape(1, _LANE)
    wf3 = jnp.pad(f32(params['w_fc3']).T,
                  ((0, _LANE - n2), (0, _LANE - nclass)))
    bf3 = jnp.pad(f32(params['b_fc3']), (0, _LANE - nclass)).reshape(1, _LANE)
    return (band1, band2, b1t, b2t, g, bf1, wf2, bf2, wf3, bf3), nclass


# --------------------------------- forward ----------------------------------

def cnn_forward(params, x_nchw, *, tb=_TB):
    B = x_nchw.shape[0]
    weights, nclass = _prep_params(params)
    xk, bp = _prep_input(x_nchw, tb)

    def full(a):
        n = a.ndim
        return pl.BlockSpec(a.shape, lambda i, n=n: (0,) * n)

    out = pl.pallas_call(
        _lenet_kernel,
        out_shape=jax.ShapeDtypeStruct((bp, _LANE), jnp.float32),
        grid=(bp // tb,),
        in_specs=[pl.BlockSpec((tb,) + xk.shape[1:],
                               lambda i: (i, 0, 0, 0))]
                 + [full(w) for w in weights],
        out_specs=pl.BlockSpec((tb, _LANE), lambda i: (i, 0)),
        compiler_params=pltpu.CompilerParams(
            dimension_semantics=("parallel",)),
    )(xk, *weights)
    return out[:B, :nclass]


# ------------------------------ parameter init ------------------------------

def init_params(key, nc=1, number_classes=10):
    ks = jax.random.split(key, 10)

    def winit(k, shape, fan_in):
        return jax.random.normal(k, shape, dtype=jnp.float32) / jnp.sqrt(
            jnp.float32(fan_in))

    return {
        # PyTorch layouts: conv (Cout, Cin, KH, KW); linear (out, in)
        'w_conv1': winit(ks[0], (6, nc, 5, 5), nc * 25),
        'b_conv1': winit(ks[1], (6,), nc * 25),
        'w_conv2': winit(ks[2], (16, 6, 5, 5), 6 * 25),
        'b_conv2': winit(ks[3], (16,), 6 * 25),
        'w_fc1':   winit(ks[4], (120, 5 * 5 * 16), 400),
        'b_fc1':   winit(ks[5], (120,), 400),
        'w_fc2':   winit(ks[6], (84, 120), 120),
        'b_fc2':   winit(ks[7], (84,), 120),
        'w_fc3':   winit(ks[8], (number_classes, 84), 84),
        'b_fc3':   winit(ks[9], (number_classes,), 84),
    }


# ----------------------------- pure-JAX reference ---------------------------

def _reference_forward(params, x):
    y = jax.lax.conv_general_dilated(
        x.astype(jnp.float32), params['w_conv1'], (1, 1), ((2, 2), (2, 2)),
        dimension_numbers=('NCHW', 'OIHW', 'NCHW'))
    y = jnp.maximum(y + params['b_conv1'][None, :, None, None], 0.0)
    y = jax.lax.reduce_window(y, -jnp.inf, jax.lax.max,
                              (1, 1, 2, 2), (1, 1, 2, 2), 'VALID')
    y = jax.lax.conv_general_dilated(
        y, params['w_conv2'], (1, 1), 'VALID',
        dimension_numbers=('NCHW', 'OIHW', 'NCHW'))
    y = jnp.maximum(y + params['b_conv2'][None, :, None, None], 0.0)
    y = jax.lax.reduce_window(y, -jnp.inf, jax.lax.max,
                              (1, 1, 2, 2), (1, 1, 2, 2), 'VALID')
    f = y.reshape(y.shape[0], -1)
    f = jnp.maximum(f @ params['w_fc1'].T + params['b_fc1'], 0.0)
    f = jnp.maximum(f @ params['w_fc2'].T + params['b_fc2'], 0.0)
    return f @ params['w_fc3'].T + params['b_fc3']


# ----------------------------------- main ------------------------------------

if __name__ == "__main__":
    key = jax.random.PRNGKey(0)
    pkey, xkey = jax.random.split(key)

    params = init_params(pkey, nc=1, number_classes=10)
    # Input spatial size is fixed at 28x28 by fc1 = Linear(5*5*16, 120).
    x = jax.random.normal(xkey, (2, 1, 28, 28), dtype=jnp.float32)

    fwd = jax.jit(functools.partial(cnn_forward, params))
    out = jax.block_until_ready(fwd(x))

    assert out.shape == (2, 10), out.shape
    assert out.dtype == jnp.float32
    assert bool(jnp.all(jnp.isfinite(out)))

    ref = jax.block_until_ready(
        jax.jit(functools.partial(_reference_forward, params))(x))
    np.testing.assert_allclose(np.asarray(out), np.asarray(ref),
                               rtol=5e-2, atol=5e-2)
    print("KERNEL_OK")
</pallas_src>

<mosaic_0001>
module attributes {stable_mosaic.version = 11 : i64} {
  func.func @_lenet_kernel(%arg0: i32, %arg1: memref<8x4x9x36xf32, #tpu.memory_space<vmem>>, %arg2: memref<5x2x36x112xf32, #tpu.memory_space<vmem>>, %arg3: memref<5x2x112x80xf32, #tpu.memory_space<vmem>>, %arg4: memref<1x112xf32, #tpu.memory_space<vmem>>, %arg5: memref<1x80xf32, #tpu.memory_space<vmem>>, %arg6: memref<5x80x128xf32, #tpu.memory_space<vmem>>, %arg7: memref<1x128xf32, #tpu.memory_space<vmem>>, %arg8: memref<128x128xf32, #tpu.memory_space<vmem>>, %arg9: memref<1x128xf32, #tpu.memory_space<vmem>>, %arg10: memref<128x128xf32, #tpu.memory_space<vmem>>, %arg11: memref<1x128xf32, #tpu.memory_space<vmem>>, %arg12: memref<8x128xf32, #tpu.memory_space<vmem>>) attributes {dimension_semantics = [#tpu.dimension_semantics<parallel>], iteration_bounds = array<i64: 1>, scalar_prefetch = 0 : i64, scratch_operands = 0 : i64, tpu.core_type = #tpu.core_type<tc>, window_params = [{transform_indices = @transform_0, window_bounds = array<i64: 8, 4, 9, 36>}, {pipeline_mode = #tpu.pipeline_mode<synchronous>, transform_indices = @transform_1, window_bounds = array<i64: 5, 2, 36, 112>}, {pipeline_mode = #tpu.pipeline_mode<synchronous>, transform_indices = @transform_2, window_bounds = array<i64: 5, 2, 112, 80>}, {pipeline_mode = #tpu.pipeline_mode<synchronous>, transform_indices = @transform_3, window_bounds = array<i64: 1, 112>}, {pipeline_mode = #tpu.pipeline_mode<synchronous>, transform_indices = @transform_4, window_bounds = array<i64: 1, 80>}, {pipeline_mode = #tpu.pipeline_mode<synchronous>, transform_indices = @transform_5, window_bounds = array<i64: 5, 80, 128>}, {pipeline_mode = #tpu.pipeline_mode<synchronous>, transform_indices = @transform_6, window_bounds = array<i64: 1, 128>}, {pipeline_mode = #tpu.pipeline_mode<synchronous>, transform_indices = @transform_7, window_bounds = array<i64: 128, 128>}, {pipeline_mode = #tpu.pipeline_mode<synchronous>, transform_indices = @transform_8, window_bounds = array<i64: 1, 128>}, {pipeline_mode = #tpu.pipeline_mode<synchronous>, transform_indices = @transform_9, window_bounds = array<i64: 128, 128>}, {pipeline_mode = #tpu.pipeline_mode<synchronous>, transform_indices = @transform_10, window_bounds = array<i64: 1, 128>}, {transform_indices = @transform_11, window_bounds = array<i64: 8, 128>}]} {
    %c0 = arith.constant 0 : index
    %c0_0 = arith.constant 0 : index
    %c0_1 = arith.constant 0 : index
    %c0_2 = arith.constant 0 : index
    %0 = vector.load %arg1[%c0, %c0_0, %c0_1, %c0_2] : memref<8x4x9x36xf32, #tpu.memory_space<vmem>>, vector<8x4x9x36xf32>
    %1 = vector.extract_strided_slice %0 {offsets = [0, 0, 0, 0], sizes = [8, 1, 8, 36], strides = [1, 1, 1, 1]} : vector<8x4x9x36xf32> to vector<8x1x8x36xf32>
    %2 = vector.shape_cast %1 : vector<8x1x8x36xf32> to vector<8x8x36xf32>
    %3 = vector.shape_cast %2 : vector<8x8x36xf32> to vector<64x36xf32>
    %c0_3 = arith.constant 0 : index
    %c0_4 = arith.constant 0 : index
    %c0_5 = arith.constant 0 : index
    %c0_6 = arith.constant 0 : index
    %4 = vector.load %arg2[%c0_3, %c0_4, %c0_5, %c0_6] : memref<5x2x36x112xf32, #tpu.memory_space<vmem>>, vector<1x1x36x112xf32>
    %5 = vector.shape_cast %4 : vector<1x1x36x112xf32> to vector<36x112xf32>
    %cst = arith.constant dense<0.000000e+00> : vector<64x112xf32>
    %6 = tpu.matmul %3, %5, %cst {dimension_numbers = #tpu.dot_dimension_numbers<[1], [0], [0], [1], [0, 0, 1, 1], [], []>} : vector<64x36xf32>, vector<36x112xf32>, vector<64x112xf32> -> vector<64x112xf32>
    %c0_7 = arith.constant 0 : index
    %c1 = arith.constant 1 : index
    %c0_8 = arith.constant 0 : index
    %c0_9 = arith.constant 0 : index
    %7 = vector.load %arg2[%c0_7, %c1, %c0_8, %c0_9] : memref<5x2x36x112xf32, #tpu.memory_space<vmem>>, vector<1x1x36x112xf32>
    %8 = vector.shape_cast %7 : vector<1x1x36x112xf32> to vector<36x112xf32>
    %cst_10 = arith.constant dense<0.000000e+00> : vector<64x112xf32>
    %9 = tpu.matmul %3, %8, %cst_10 {dimension_numbers = #tpu.dot_dimension_numbers<[1], [0], [0], [1], [0, 0, 1, 1], [], []>} : vector<64x36xf32>, vector<36x112xf32>, vector<64x112xf32> -> vector<64x112xf32>
    %10 = vector.extract_strided_slice %0 {offsets = [0, 1, 0, 0], sizes = [8, 1, 8, 36], strides = [1, 1, 1, 1]} : vector<8x4x9x36xf32> to vector<8x1x8x36xf32>
    %11 = vector.shape_cast %10 : vector<8x1x8x36xf32> to vector<8x8x36xf32>
    %12 = vector.shape_cast %11 : vector<8x8x36xf32> to vector<64x36xf32>
    %c1_11 = arith.constant 1 : index
    %c0_12 = arith.constant 0 : index
    %c0_13 = arith.constant 0 : index
    %c0_14 = arith.constant 0 : index
    %13 = vector.load %arg2[%c1_11, %c0_12, %c0_13, %c0_14] : memref<5x2x36x112xf32, #tpu.memory_space<vmem>>, vector<1x1x36x112xf32>
    %14 = vector.shape_cast %13 : vector<1x1x36x112xf32> to vector<36x112xf32>
    %cst_15 = arith.constant dense<0.000000e+00> : vector<64x112xf32>
    %15 = tpu.matmul %12, %14, %cst_15 {dimension_numbers = #tpu.dot_dimension_numbers<[1], [0], [0], [1], [0, 0, 1, 1], [], []>} : vector<64x36xf32>, vector<36x112xf32>, vector<64x112xf32> -> vector<64x112xf32>
    %16 = arith.addf %6, %15 : vector<64x112xf32>
    %c1_16 = arith.constant 1 : index
    %c1_17 = arith.constant 1 : index
    %c0_18 = arith.constant 0 : index
    %c0_19 = arith.constant 0 : index
    %17 = vector.load %arg2[%c1_16, %c1_17, %c0_18, %c0_19] : memref<5x2x36x112xf32, #tpu.memory_space<vmem>>, vector<1x1x36x112xf32>
    %18 = vector.shape_cast %17 : vector<1x1x36x112xf32> to vector<36x112xf32>
    %cst_20 = arith.constant dense<0.000000e+00> : vector<64x112xf32>
    %19 = tpu.matmul %12, %18, %cst_20 {dimension_numbers = #tpu.dot_dimension_numbers<[1], [0], [0], [1], [0, 0, 1, 1], [], []>} : vector<64x36xf32>, vector<36x112xf32>, vector<64x112xf32> -> vector<64x112xf32>
    %20 = arith.addf %9, %19 : vector<64x112xf32>
    %21 = vector.extract_strided_slice %0 {offsets = [0, 2, 0, 0], sizes = [8, 1, 8, 36], strides = [1, 1, 1, 1]} : vector<8x4x9x36xf32> to vector<8x1x8x36xf32>
    %22 = vector.shape_cast %21 : vector<8x1x8x36xf32> to vector<8x8x36xf32>
    %23 = vector.shape_cast %22 : vector<8x8x36xf32> to vector<64x36xf32>
    %c2 = arith.constant 2 : index
    %c0_21 = arith.constant 0 : index
    %c0_22 = arith.constant 0 : index
    %c0_23 = arith.constant 0 : index
    %24 = vector.load %arg2[%c2, %c0_21, %c0_22, %c0_23] : memref<5x2x36x112xf32, #tpu.memory_space<vmem>>, vector<1x1x36x112xf32>
    %25 = vector.shape_cast %24 : vector<1x1x36x112xf32> to vector<36x112xf32>
    %cst_24 = arith.constant dense<0.000000e+00> : vector<64x112xf32>
    %26 = tpu.matmul %23, %25, %cst_24 {dimension_numbers = #tpu.dot_dimension_numbers<[1], [0], [0], [1], [0, 0, 1, 1], [], []>} : vector<64x36xf32>, vector<36x112xf32>, vector<64x112xf32> -> vector<64x112xf32>
    %27 = arith.addf %16, %26 : vector<64x112xf32>
    %c2_25 = arith.constant 2 : index
    %c1_26 = arith.constant 1 : index
    %c0_27 = arith.constant 0 : index
    %c0_28 = arith.constant 0 : index
    %28 = vector.load %arg2[%c2_25, %c1_26, %c0_27, %c0_28] : memref<5x2x36x112xf32, #tpu.memory_space<vmem>>, vector<1x1x36x112xf32>
    %29 = vector.shape_cast %28 : vector<1x1x36x112xf32> to vector<36x112xf32>
    %cst_29 = arith.constant dense<0.000000e+00> : vector<64x112xf32>
    %30 = tpu.matmul %23, %29, %cst_29 {dimension_numbers = #tpu.dot_dimension_numbers<[1], [0], [0], [1], [0, 0, 1, 1], [], []>} : vector<64x36xf32>, vector<36x112xf32>, vector<64x112xf32> -> vector<64x112xf32>
    %31 = arith.addf %20, %30 : vector<64x112xf32>
    %32 = vector.extract_strided_slice %0 {offsets = [0, 3, 0, 0], sizes = [8, 1, 8, 36], strides = [1, 1, 1, 1]} : vector<8x4x9x36xf32> to vector<8x1x8x36xf32>
    %33 = vector.shape_cast %32 : vector<8x1x8x36xf32> to vector<8x8x36xf32>
    %34 = vector.shape_cast %33 : vector<8x8x36xf32> to vector<64x36xf32>
    %c3 = arith.constant 3 : index
    %c0_30 = arith.constant 0 : index
    %c0_31 = arith.constant 0 : index
    %c0_32 = arith.constant 0 : index
    %35 = vector.load %arg2[%c3, %c0_30, %c0_31, %c0_32] : memref<5x2x36x112xf32, #tpu.memory_space<vmem>>, vector<1x1x36x112xf32>
    %36 = vector.shape_cast %35 : vector<1x1x36x112xf32> to vector<36x112xf32>
    %cst_33 = arith.constant dense<0.000000e+00> : vector<64x112xf32>
    %37 = tpu.matmul %34, %36, %cst_33 {dimension_numbers = #tpu.dot_dimension_numbers<[1], [0], [0], [1], [0, 0, 1, 1], [], []>} : vector<64x36xf32>, vector<36x112xf32>, vector<64x112xf32> -> vector<64x112xf32>
    %38 = arith.addf %27, %37 : vector<64x112xf32>
    %c3_34 = arith.constant 3 : index
    %c1_35 = arith.constant 1 : index
    %c0_36 = arith.constant 0 : index
    %c0_37 = arith.constant 0 : index
    %39 = vector.load %arg2[%c3_34, %c1_35, %c0_36, %c0_37] : memref<5x2x36x112xf32, #tpu.memory_space<vmem>>, vector<1x1x36x112xf32>
    %40 = vector.shape_cast %39 : vector<1x1x36x112xf32> to vector<36x112xf32>
    %cst_38 = arith.constant dense<0.000000e+00> : vector<64x112xf32>
    %41 = tpu.matmul %34, %40, %cst_38 {dimension_numbers = #tpu.dot_dimension_numbers<[1], [0], [0], [1], [0, 0, 1, 1], [], []>} : vector<64x36xf32>, vector<36x112xf32>, vector<64x112xf32> -> vector<64x112xf32>
    %42 = arith.addf %31, %41 : vector<64x112xf32>
    %43 = vector.extract_strided_slice %0 {offsets = [0, 0, 1, 0], sizes = [8, 1, 8, 36], strides = [1, 1, 1, 1]} : vector<8x4x9x36xf32> to vector<8x1x8x36xf32>
    %44 = vector.shape_cast %43 : vector<8x1x8x36xf32> to vector<8x8x36xf32>
    %45 = vector.shape_cast %44 : vector<8x8x36xf32> to vector<64x36xf32>
    %c4 = arith.constant 4 : index
    %c0_39 = arith.constant 0 : index
    %c0_40 = arith.constant 0 : index
    %c0_41 = arith.constant 0 : index
    %46 = vector.load %arg2[%c4, %c0_39, %c0_40, %c0_41] : memref<5x2x36x112xf32, #tpu.memory_space<vmem>>, vector<1x1x36x112xf32>
    %47 = vector.shape_cast %46 : vector<1x1x36x112xf32> to vector<36x112xf32>
    %cst_42 = arith.constant dense<0.000000e+00> : vector<64x112xf32>
    %48 = tpu.matmul %45, %47, %cst_42 {dimension_numbers = #tpu.dot_dimension_numbers<[1], [0], [0], [1], [0, 0, 1, 1], [], []>} : vector<64x36xf32>, vector<36x112xf32>, vector<64x112xf32> -> vector<64x112xf32>
    %49 = arith.addf %38, %48 : vector<64x112xf32>
    %c4_43 = arith.constant 4 : index
    %c1_44 = arith.constant 1 : index
    %c0_45 = arith.constant 0 : index
    %c0_46 = arith.constant 0 : index
    %50 = vector.load %arg2[%c4_43, %c1_44, %c0_45, %c0_46] : memref<5x2x36x112xf32, #tpu.memory_space<vmem>>, vector<1x1x36x112xf32>
    %51 = vector.shape_cast %50 : vector<1x1x36x112xf32> to vector<36x112xf32>
    %cst_47 = arith.constant dense<0.000000e+00> : vector<64x112xf32>
    %52 = tpu.matmul %45, %51, %cst_47 {dimension_numbers = #tpu.dot_dimension_numbers<[1], [0], [0], [1], [0, 0, 1, 1], [], []>} : vector<64x36xf32>, vector<36x112xf32>, vector<64x112xf32> -> vector<64x112xf32>
    %53 = arith.addf %42, %52 : vector<64x112xf32>
    %54 = vector.extract_strided_slice %0 {offsets = [0, 1, 0, 0], sizes = [8, 1, 8, 36], strides = [1, 1, 1, 1]} : vector<8x4x9x36xf32> to vector<8x1x8x36xf32>
    %55 = vector.shape_cast %54 : vector<8x1x8x36xf32> to vector<8x8x36xf32>
    %56 = vector.shape_cast %55 : vector<8x8x36xf32> to vector<64x36xf32>
    %c0_48 = arith.constant 0 : index
    %c0_49 = arith.constant 0 : index
    %c0_50 = arith.constant 0 : index
    %c0_51 = arith.constant 0 : index
    %57 = vector.load %arg2[%c0_48, %c0_49, %c0_50, %c0_51] : memref<5x2x36x112xf32, #tpu.memory_space<vmem>>, vector<1x1x36x112xf32>
    %58 = vector.shape_cast %57 : vector<1x1x36x112xf32> to vector<36x112xf32>
    %cst_52 = arith.constant dense<0.000000e+00> : vector<64x112xf32>
    %59 = tpu.matmul %56, %58, %cst_52 {dimension_numbers = #tpu.dot_dimension_numbers<[1], [0], [0], [1], [0, 0, 1, 1], [], []>} : vector<64x36xf32>, vector<36x112xf32>, vector<64x112xf32> -> vector<64x112xf32>
    %c0_53 = arith.constant 0 : index
    %c1_54 = arith.constant 1 : index
    %c0_55 = arith.constant 0 : index
    %c0_56 = arith.constant 0 : index
    %60 = vector.load %arg2[%c0_53, %c1_54, %c0_55, %c0_56] : memref<5x2x36x112xf32, #tpu.memory_space<vmem>>, vector<1x1x36x112xf32>
    %61 = vector.shape_cast %60 : vector<1x1x36x112xf32> to vector<36x112xf32>
    %cst_57 = arith.constant dense<0.000000e+00> : vector<64x112xf32>
    %62 = tpu.matmul %56, %61, %cst_57 {dimension_numbers = #tpu.dot_dimension_numbers<[1], [0], [0], [1], [0, 0, 1, 1], [], []>} : vector<64x36xf32>, vector<36x112xf32>, vector<64x112xf32> -> vector<64x112xf32>
    %63 = vector.extract_strided_slice %0 {offsets = [0, 2, 0, 0], sizes = [8, 1, 8, 36], strides = [1, 1, 1, 1]} : vector<8x4x9x36xf32> to vector<8x1x8x36xf32>
    %64 = vector.shape_cast %63 : vector<8x1x8x36xf32> to vector<8x8x36xf32>
    %65 = vector.shape_cast %64 : vector<8x8x36xf32> to vector<64x36xf32>
    %c1_58 = arith.constant 1 : index
    %c0_59 = arith.constant 0 : index
    %c0_60 = arith.constant 0 : index
    %c0_61 = arith.constant 0 : index
    %66 = vector.load %arg2[%c1_58, %c0_59, %c0_60, %c0_61] : memref<5x2x36x112xf32, #tpu.memory_space<vmem>>, vector<1x1x36x112xf32>
    %67 = vector.shape_cast %66 : vector<1x1x36x112xf32> to vector<36x112xf32>
    %cst_62 = arith.constant dense<0.000000e+00> : vector<64x112xf32>
    %68 = tpu.matmul %65, %67, %cst_62 {dimension_numbers = #tpu.dot_dimension_numbers<[1], [0], [0], [1], [0, 0, 1, 1], [], []>} : vector<64x36xf32>, vector<36x112xf32>, vector<64x112xf32> -> vector<64x112xf32>
    %69 = arith.addf %59, %68 : vector<64x112xf32>
    %c1_63 = arith.constant 1 : index
    %c1_64 = arith.constant 1 : index
    %c0_65 = arith.constant 0 : index
    %c0_66 = arith.constant 0 : index
    %70 = vector.load %arg2[%c1_63, %c1_64, %c0_65, %c0_66] : memref<5x2x36x112xf32, #tpu.memory_space<vmem>>, vector<1x1x36x112xf32>
    %71 = vector.shape_cast %70 : vector<1x1x36x112xf32> to vector<36x112xf32>
    %cst_67 = arith.constant dense<0.000000e+00> : vector<64x112xf32>
    %72 = tpu.matmul %65, %71, %cst_67 {dimension_numbers = #tpu.dot_dimension_numbers<[1], [0], [0], [1], [0, 0, 1, 1], [], []>} : vector<64x36xf32>, vector<36x112xf32>, vector<64x112xf32> -> vector<64x112xf32>
    %73 = arith.addf %62, %72 : vector<64x112xf32>
    %74 = vector.extract_strided_slice %0 {offsets = [0, 3, 0, 0], sizes = [8, 1, 8, 36], strides = [1, 1, 1, 1]} : vector<8x4x9x36xf32> to vector<8x1x8x36xf32>
    %75 = vector.shape_cast %74 : vector<8x1x8x36xf32> to vector<8x8x36xf32>
    %76 = vector.shape_cast %75 : vector<8x8x36xf32> to vector<64x36xf32>
    %c2_68 = arith.constant 2 : index
    %c0_69 = arith.constant 0 : index
    %c0_70 = arith.constant 0 : index
    %c0_71 = arith.constant 0 : index
    %77 = vector.load %arg2[%c2_68, %c0_69, %c0_70, %c0_71] : memref<5x2x36x112xf32, #tpu.memory_space<vmem>>, vector<1x1x36x112xf32>
    %78 = vector.shape_cast %77 : vector<1x1x36x112xf32> to vector<36x112xf32>
    %cst_72 = arith.constant dense<0.000000e+00> : vector<64x112xf32>
    %79 = tpu.matmul %76, %78, %cst_72 {dimension_numbers = #tpu.dot_dimension_numbers<[1], [0], [0], [1], [0, 0, 1, 1], [], []>} : vector<64x36xf32>, vector<36x112xf32>, vector<64x112xf32> -> vector<64x112xf32>
    %80 = arith.addf %69, %79 : vector<64x112xf32>
    %c2_73 = arith.constant 2 : index
    %c1_74 = arith.constant 1 : index
    %c0_75 = arith.constant 0 : index
    %c0_76 = arith.constant 0 : index
    %81 = vector.load %arg2[%c2_73, %c1_74, %c0_75, %c0_76] : memref<5x2x36x112xf32, #tpu.memory_space<vmem>>, vector<1x1x36x112xf32>
    %82 = vector.shape_cast %81 : vector<1x1x36x112xf32> to vector<36x112xf32>
    %cst_77 = arith.constant dense<0.000000e+00> : vector<64x112xf32>
    %83 = tpu.matmul %76, %82, %cst_77 {dimension_numbers = #tpu.dot_dimension_numbers<[1], [0], [0], [1], [0, 0, 1, 1], [], []>} : vector<64x36xf32>, vector<36x112xf32>, vector<64x112xf32> -> vector<64x112xf32>
    %84 = arith.addf %73, %83 : vector<64x112xf32>
    %85 = vector.extract_strided_slice %0 {offsets = [0, 0, 1, 0], sizes = [8, 1, 8, 36], strides = [1, 1, 1, 1]} : vector<8x4x9x36xf32> to vector<8x1x8x36xf32>
    %86 = vector.shape_cast %85 : vector<8x1x8x36xf32> to vector<8x8x36xf32>
    %87 = vector.shape_cast %86 : vector<8x8x36xf32> to vector<64x36xf32>
    %c3_78 = arith.constant 3 : index
    %c0_79 = arith.constant 0 : index
    %c0_80 = arith.constant 0 : index
    %c0_81 = arith.constant 0 : index
    %88 = vector.load %arg2[%c3_78, %c0_79, %c0_80, %c0_81] : memref<5x2x36x112xf32, #tpu.memory_space<vmem>>, vector<1x1x36x112xf32>
    %89 = vector.shape_cast %88 : vector<1x1x36x112xf32> to vector<36x112xf32>
    %cst_82 = arith.constant dense<0.000000e+00> : vector<64x112xf32>
    %90 = tpu.matmul %87, %89, %cst_82 {dimension_numbers = #tpu.dot_dimension_numbers<[1], [0], [0], [1], [0, 0, 1, 1], [], []>} : vector<64x36xf32>, vector<36x112xf32>, vector<64x112xf32> -> vector<64x112xf32>
    %91 = arith.addf %80, %90 : vector<64x112xf32>
    %c3_83 = arith.constant 3 : index
    %c1_84 = arith.constant 1 : index
    %c0_85 = arith.constant 0 : index
    %c0_86 = arith.constant 0 : index
    %92 = vector.load %arg2[%c3_83, %c1_84, %c0_85, %c0_86] : memref<5x2x36x112xf32, #tpu.memory_space<vmem>>, vector<1x1x36x112xf32>
    %93 = vector.shape_cast %92 : vector<1x1x36x112xf32> to vector<36x112xf32>
    %cst_87 = arith.constant dense<0.000000e+00> : vector<64x112xf32>
    %94 = tpu.matmul %87, %93, %cst_87 {dimension_numbers = #tpu.dot_dimension_numbers<[1], [0], [0], [1], [0, 0, 1, 1], [], []>} : vector<64x36xf32>, vector<36x112xf32>, vector<64x112xf32> -> vector<64x112xf32>
    %95 = arith.addf %84, %94 : vector<64x112xf32>
    %96 = vector.extract_strided_slice %0 {offsets = [0, 1, 1, 0], sizes = [8, 1, 8, 36], strides = [1, 1, 1, 1]} : vector<8x4x9x36xf32> to vector<8x1x8x36xf32>
    %97 = vector.shape_cast %96 : vector<8x1x8x36xf32> to vector<8x8x36xf32>
    %98 = vector.shape_cast %97 : vector<8x8x36xf32> to vector<64x36xf32>
    %c4_88 = arith.constant 4 : index
    %c0_89 = arith.constant 0 : index
    %c0_90 = arith.constant 0 : index
    %c0_91 = arith.constant 0 : index
    %99 = vector.load %arg2[%c4_88, %c0_89, %c0_90, %c0_91] : memref<5x2x36x112xf32, #tpu.memory_space<vmem>>, vector<1x1x36x112xf32>
    %100 = vector.shape_cast %99 : vector<1x1x36x112xf32> to vector<36x112xf32>
    %cst_92 = arith.constant dense<0.000000e+00> : vector<64x112xf32>
    %101 = tpu.matmul %98, %100, %cst_92 {dimension_numbers = #tpu.dot_dimension_numbers<[1], [0], [0], [1], [0, 0, 1, 1], [], []>} : vector<64x36xf32>, vector<36x112xf32>, vector<64x112xf32> -> vector<64x112xf32>
    %102 = arith.addf %91, %101 : vector<64x112xf32>
    %c4_93 = arith.constant 4 : index
    %c1_94 = arith.constant 1 : index
    %c0_95 = arith.constant 0 : index
    %c0_96 = arith.constant 0 : index
    %103 = vector.load %arg2[%c4_93, %c1_94, %c0_95, %c0_96] : memref<5x2x36x112xf32, #tpu.memory_space<vmem>>, vector<1x1x36x112xf32>
    %104 = vector.shape_cast %103 : vector<1x1x36x112xf32> to vector<36x112xf32>
    %cst_97 = arith.constant dense<0.000000e+00> : vector<64x112xf32>
    %105 = tpu.matmul %98, %104, %cst_97 {dimension_numbers = #tpu.dot_dimension_numbers<[1], [0], [0], [1], [0, 0, 1, 1], [], []>} : vector<64x36xf32>, vector<36x112xf32>, vector<64x112xf32> -> vector<64x112xf32>
    %106 = arith.addf %95, %105 : vector<64x112xf32>
    %107 = vector.extract_strided_slice %0 {offsets = [0, 2, 0, 0], sizes = [8, 1, 8, 36], strides = [1, 1, 1, 1]} : vector<8x4x9x36xf32> to vector<8x1x8x36xf32>
    %108 = vector.shape_cast %107 : vector<8x1x8x36xf32> to vector<8x8x36xf32>
    %109 = vector.shape_cast %108 : vector<8x8x36xf32> to vector<64x36xf32>
    %c0_98 = arith.constant 0 : index
    %c0_99 = arith.constant 0 : index
    %c0_100 = arith.constant 0 : index
    %c0_101 = arith.constant 0 : index
    %110 = vector.load %arg2[%c0_98, %c0_99, %c0_100, %c0_101] : memref<5x2x36x112xf32, #tpu.memory_space<vmem>>, vector<1x1x36x112xf32>
    %111 = vector.shape_cast %110 : vector<1x1x36x112xf32> to vector<36x112xf32>
    %cst_102 = arith.constant dense<0.000000e+00> : vector<64x112xf32>
    %112 = tpu.matmul %109, %111, %cst_102 {dimension_numbers = #tpu.dot_dimension_numbers<[1], [0], [0], [1], [0, 0, 1, 1], [], []>} : vector<64x36xf32>, vector<36x112xf32>, vector<64x112xf32> -> vector<64x112xf32>
    %c0_103 = arith.constant 0 : index
    %c1_104 = arith.constant 1 : index
    %c0_105 = arith.constant 0 : index
    %c0_106 = arith.constant 0 : index
    %113 = vector.load %arg2[%c0_103, %c1_104, %c0_105, %c0_106] : memref<5x2x36x112xf32, #tpu.memory_space<vmem>>, vector<1x1x36x112xf32>
    %114 = vector.shape_cast %113 : vector<1x1x36x112xf32> to vector<36x112xf32>
    %cst_107 = arith.constant dense<0.000000e+00> : vector<64x112xf32>
    %115 = tpu.matmul %109, %114, %cst_107 {dimension_numbers = #tpu.dot_dimension_numbers<[1], [0], [0], [1], [0, 0, 1, 1], [], []>} : vector<64x36xf32>, vector<36x112xf32>, vector<64x112xf32> -> vector<64x112xf32>
    %116 = vector.extract_strided_slice %0 {offsets = [0, 3, 0, 0], sizes = [8, 1, 8, 36], strides = [1, 1, 1, 1]} : vector<8x4x9x36xf32> to vector<8x1x8x36xf32>
    %117 = vector.shape_cast %116 : vector<8x1x8x36xf32> to vector<8x8x36xf32>
    %118 = vector.shape_cast %117 : vector<8x8x36xf32> to vector<64x36xf32>
    %c1_108 = arith.constant 1 : index
    %c0_109 = arith.constant 0 : index
    %c0_110 = arith.constant 0 : index
    %c0_111 = arith.constant 0 : index
    %119 = vector.load %arg2[%c1_108, %c0_109, %c0_110, %c0_111] : memref<5x2x36x112xf32, #tpu.memory_space<vmem>>, vector<1x1x36x112xf32>
    %120 = vector.shape_cast %119 : vector<1x1x36x112xf32> to vector<36x112xf32>
    %cst_112 = arith.constant dense<0.000000e+00> : vector<64x112xf32>
    %121 = tpu.matmul %118, %120, %cst_112 {dimension_numbers = #tpu.dot_dimension_numbers<[1], [0], [0], [1], [0, 0, 1, 1], [], []>} : vector<64x36xf32>, vector<36x112xf32>, vector<64x112xf32> -> vector<64x112xf32>
    %122 = arith.addf %112, %121 : vector<64x112xf32>
    %c1_113 = arith.constant 1 : index
    %c1_114 = arith.constant 1 : index
    %c0_115 = arith.constant 0 : index
    %c0_116 = arith.constant 0 : index
    %123 = vector.load %arg2[%c1_113, %c1_114, %c0_115, %c0_116] : memref<5x2x36x112xf32, #tpu.memory_space<vmem>>, vector<1x1x36x112xf32>
    %124 = vector.shape_cast %123 : vector<1x1x36x112xf32> to vector<36x112xf32>
    %cst_117 = arith.constant dense<0.000000e+00> : vector<64x112xf32>
    %125 = tpu.matmul %118, %124, %cst_117 {dimension_numbers = #tpu.dot_dimension_numbers<[1], [0], [0], [1], [0, 0, 1, 1], [], []>} : vector<64x36xf32>, vector<36x112xf32>, vector<64x112xf32> -> vector<64x112xf32>
    %126 = arith.addf %115, %125 : vector<64x112xf32>
    %127 = vector.extract_strided_slice %0 {offsets = [0, 0, 1, 0], sizes = [8, 1, 8, 36], strides = [1, 1, 1, 1]} : vector<8x4x9x36xf32> to vector<8x1x8x36xf32>
    %128 = vector.shape_cast %127 : vector<8x1x8x36xf32> to vector<8x8x36xf32>
    %129 = vector.shape_cast %128 : vector<8x8x36xf32> to vector<64x36xf32>
    %c2_118 = arith.constant 2 : index
    %c0_119 = arith.constant 0 : index
    %c0_120 = arith.constant 0 : index
    %c0_121 = arith.constant 0 : index
    %130 = vector.load %arg2[%c2_118, %c0_119, %c0_120, %c0_121] : memref<5x2x36x112xf32, #tpu.memory_space<vmem>>, vector<1x1x36x112xf32>
    %131 = vector.shape_cast %130 : vector<1x1x36x112xf32> to vector<36x112xf32>
    %cst_122 = arith.constant dense<0.000000e+00> : vector<64x112xf32>
    %132 = tpu.matmul %129, %131, %cst_122 {dimension_numbers = #tpu.dot_dimension_numbers<[1], [0], [0], [1], [0, 0, 1, 1], [], []>} : vector<64x36xf32>, vector<36x112xf32>, vector<64x112xf32> -> vector<64x112xf32>
    %133 = arith.addf %122, %132 : vector<64x112xf32>
    %c2_123 = arith.constant 2 : index
    %c1_124 = arith.constant 1 : index
    %c0_125 = arith.constant 0 : index
    %c0_126 = arith.constant 0 : index
    %134 = vector.load %arg2[%c2_123, %c1_124, %c0_125, %c0_126] : memref<5x2x36x112xf32, #tpu.memory_space<vmem>>, vector<1x1x36x112xf32>
    %135 = vector.shape_cast %134 : vector<1x1x36x112xf32> to vector<36x112xf32>
    %cst_127 = arith.constant dense<0.000000e+00> : vector<64x112xf32>
    %136 = tpu.matmul %129, %135, %cst_127 {dimension_numbers = #tpu.dot_dimension_numbers<[1], [0], [0], [1], [0, 0, 1, 1], [], []>} : vector<64x36xf32>, vector<36x112xf32>, vector<64x112xf32> -> vector<64x112xf32>
    %137 = arith.addf %126, %136 : vector<64x112xf32>
    %138 = vector.extract_strided_slice %0 {offsets = [0, 1, 1, 0], sizes = [8, 1, 8, 36], strides = [1, 1, 1, 1]} : vector<8x4x9x36xf32> to vector<8x1x8x36xf32>
    %139 = vector.shape_cast %138 : vector<8x1x8x36xf32> to vector<8x8x36xf32>
    %140 = vector.shape_cast %139 : vector<8x8x36xf32> to vector<64x36xf32>
    %c3_128 = arith.constant 3 : index
    %c0_129 = arith.constant 0 : index
    %c0_130 = arith.constant 0 : index
    %c0_131 = arith.constant 0 : index
    %141 = vector.load %arg2[%c3_128, %c0_129, %c0_130, %c0_131] : memref<5x2x36x112xf32, #tpu.memory_space<vmem>>, vector<1x1x36x112xf32>
    %142 = vector.shape_cast %141 : vector<1x1x36x112xf32> to vector<36x112xf32>
    %cst_132 = arith.constant dense<0.000000e+00> : vector<64x112xf32>
    %143 = tpu.matmul %140, %142, %cst_132 {dimension_numbers = #tpu.dot_dimension_numbers<[1], [0], [0], [1], [0, 0, 1, 1], [], []>} : vector<64x36xf32>, vector<36x112xf32>, vector<64x112xf32> -> vector<64x112xf32>
    %144 = arith.addf %133, %143 : vector<64x112xf32>
    %c3_133 = arith.constant 3 : index
    %c1_134 = arith.constant 1 : index
    %c0_135 = arith.constant 0 : index
    %c0_136 = arith.constant 0 : index
    %145 = vector.load %arg2[%c3_133, %c1_134, %c0_135, %c0_136] : memref<5x2x36x112xf32, #tpu.memory_space<vmem>>, vector<1x1x36x112xf32>
    %146 = vector.shape_cast %145 : vector<1x1x36x112xf32> to vector<36x112xf32>
    %cst_137 = arith.constant dense<0.000000e+00> : vector<64x112xf32>
    %147 = tpu.matmul %140, %146, %cst_137 {dimension_numbers = #tpu.dot_dimension_numbers<[1], [0], [0], [1], [0, 0, 1, 1], [], []>} : vector<64x36xf32>, vector<36x112xf32>, vector<64x112xf32> -> vector<64x112xf32>
    %148 = arith.addf %137, %147 : vector<64x112xf32>
    %149 = vector.extract_strided_slice %0 {offsets = [0, 2, 1, 0], sizes = [8, 1, 8, 36], strides = [1, 1, 1, 1]} : vector<8x4x9x36xf32> to vector<8x1x8x36xf32>
    %150 = vector.shape_cast %149 : vector<8x1x8x36xf32> to vector<8x8x36xf32>
    %151 = vector.shape_cast %150 : vector<8x8x36xf32> to vector<64x36xf32>
    %c4_138 = arith.constant 4 : index
    %c0_139 = arith.constant 0 : index
    %c0_140 = arith.constant 0 : index
    %c0_141 = arith.constant 0 : index
    %152 = vector.load %arg2[%c4_138, %c0_139, %c0_140, %c0_141] : memref<5x2x36x112xf32, #tpu.memory_space<vmem>>, vector<1x1x36x112xf32>
    %153 = vector.shape_cast %152 : vector<1x1x36x112xf32> to vector<36x112xf32>
    %cst_142 = arith.constant dense<0.000000e+00> : vector<64x112xf32>
    %154 = tpu.matmul %151, %153, %cst_142 {dimension_numbers = #tpu.dot_dimension_numbers<[1], [0], [0], [1], [0, 0, 1, 1], [], []>} : vector<64x36xf32>, vector<36x112xf32>, vector<64x112xf32> -> vector<64x112xf32>
    %155 = arith.addf %144, %154 : vector<64x112xf32>
    %c4_143 = arith.constant 4 : index
    %c1_144 = arith.constant 1 : index
    %c0_145 = arith.constant 0 : index
    %c0_146 = arith.constant 0 : index
    %156 = vector.load %arg2[%c4_143, %c1_144, %c0_145, %c0_146] : memref<5x2x36x112xf32, #tpu.memory_space<vmem>>, vector<1x1x36x112xf32>
    %157 = vector.shape_cast %156 : vector<1x1x36x112xf32> to vector<36x112xf32>
    %cst_147 = arith.constant dense<0.000000e+00> : vector<64x112xf32>
    %158 = tpu.matmul %151, %157, %cst_147 {dimension_numbers = #tpu.dot_dimension_numbers<[1], [0], [0], [1], [0, 0, 1, 1], [], []>} : vector<64x36xf32>, vector<36x112xf32>, vector<64x112xf32> -> vector<64x112xf32>
    %159 = arith.addf %148, %158 : vector<64x112xf32>
    %160 = vector.extract_strided_slice %0 {offsets = [0, 3, 0, 0], sizes = [8, 1, 8, 36], strides = [1, 1, 1, 1]} : vector<8x4x9x36xf32> to vector<8x1x8x36xf32>
    %161 = vector.shape_cast %160 : vector<8x1x8x36xf32> to vector<8x8x36xf32>
    %162 = vector.shape_cast %161 : vector<8x8x36xf32> to vector<64x36xf32>
    %c0_148 = arith.constant 0 : index
    %c0_149 = arith.constant 0 : index
    %c0_150 = arith.constant 0 : index
    %c0_151 = arith.constant 0 : index
    %163 = vector.load %arg2[%c0_148, %c0_149, %c0_150, %c0_151] : memref<5x2x36x112xf32, #tpu.memory_space<vmem>>, vector<1x1x36x112xf32>
    %164 = vector.shape_cast %163 : vector<1x1x36x112xf32> to vector<36x112xf32>
    %cst_152 = arith.constant dense<0.000000e+00> : vector<64x112xf32>
    %165 = tpu.matmul %162, %164, %cst_152 {dimension_numbers = #tpu.dot_dimension_numbers<[1], [0], [0], [1], [0, 0, 1, 1], [], []>} : vector<64x36xf32>, vector<36x112xf32>, vector<64x112xf32> -> vector<64x112xf32>
    %c0_153 = arith.constant 0 : index
    %c1_154 = arith.constant 1 : index
    %c0_155 = arith.constant 0 : index
    %c0_156 = arith.constant 0 : index
    %166 = vector.load %arg2[%c0_153, %c1_154, %c0_155, %c0_156] : memref<5x2x36x112xf32, #tpu.memory_space<vmem>>, vector<1x1x36x112xf32>
    %167 = vector.shape_cast %166 : vector<1x1x36x112xf32> to vector<36x112xf32>
    %cst_157 = arith.constant dense<0.000000e+00> : vector<64x112xf32>
    %168 = tpu.matmul %162, %167, %cst_157 {dimension_numbers = #tpu.dot_dimension_numbers<[1], [0], [0], [1], [0, 0, 1, 1], [], []>} : vector<64x36xf32>, vector<36x112xf32>, vector<64x112xf32> -> vector<64x112xf32>
    %169 = vector.extract_strided_slice %0 {offsets = [0, 0, 1, 0], sizes = [8, 1, 8, 36], strides = [1, 1, 1, 1]} : vector<8x4x9x36xf32> to vector<8x1x8x36xf32>
    %170 = vector.shape_cast %169 : vector<8x1x8x36xf32> to vector<8x8x36xf32>
    %171 = vector.shape_cast %170 : vector<8x8x36xf32> to vector<64x36xf32>
    %c1_158 = arith.constant 1 : index
    %c0_159 = arith.constant 0 : index
    %c0_160 = arith.constant 0 : index
    %c0_161 = arith.constant 0 : index
    %172 = vector.load %arg2[%c1_158, %c0_159, %c0_160, %c0_161] : memref<5x2x36x112xf32, #tpu.memory_space<vmem>>, vector<1x1x36x112xf32>
    %173 = vector.shape_cast %172 : vector<1x1x36x112xf32> to vector<36x112xf32>
    %cst_162 = arith.constant dense<0.000000e+00> : vector<64x112xf32>
    %174 = tpu.matmul %171, %173, %cst_162 {dimension_numbers = #tpu.dot_dimension_numbers<[1], [0], [0], [1], [0, 0, 1, 1], [], []>} : vector<64x36xf32>, vector<36x112xf32>, vector<64x112xf32> -> vector<64x112xf32>
    %175 = arith.addf %165, %174 : vector<64x112xf32>
    %c1_163 = arith.constant 1 : index
    %c1_164 = arith.constant 1 : index
    %c0_165 = arith.constant 0 : index
    %c0_166 = arith.constant 0 : index
    %176 = vector.load %arg2[%c1_163, %c1_164, %c0_165, %c0_166] : memref<5x2x36x112xf32, #tpu.memory_space<vmem>>, vector<1x1x36x112xf32>
    %177 = vector.shape_cast %176 : vector<1x1x36x112xf32> to vector<36x112xf32>
    %cst_167 = arith.constant dense<0.000000e+00> : vector<64x112xf32>
    %178 = tpu.matmul %171, %177, %cst_167 {dimension_numbers = #tpu.dot_dimension_numbers<[1], [0], [0], [1], [0, 0, 1, 1], [], []>} : vector<64x36xf32>, vector<36x112xf32>, vector<64x112xf32> -> vector<64x112xf32>
    %179 = arith.addf %168, %178 : vector<64x112xf32>
    %180 = vector.extract_strided_slice %0 {offsets = [0, 1, 1, 0], sizes = [8, 1, 8, 36], strides = [1, 1, 1, 1]} : vector<8x4x9x36xf32> to vector<8x1x8x36xf32>
    %181 = vector.shape_cast %180 : vector<8x1x8x36xf32> to vector<8x8x36xf32>
    %182 = vector.shape_cast %181 : vector<8x8x36xf32> to vector<64x36xf32>
    %c2_168 = arith.constant 2 : index
    %c0_169 = arith.constant 0 : index
    %c0_170 = arith.constant 0 : index
    %c0_171 = arith.constant 0 : index
    %183 = vector.load %arg2[%c2_168, %c0_169, %c0_170, %c0_171] : memref<5x2x36x112xf32, #tpu.memory_space<vmem>>, vector<1x1x36x112xf32>
    %184 = vector.shape_cast %183 : vector<1x1x36x112xf32> to vector<36x112xf32>
    %cst_172 = arith.constant dense<0.000000e+00> : vector<64x112xf32>
    %185 = tpu.matmul %182, %184, %cst_172 {dimension_numbers = #tpu.dot_dimension_numbers<[1], [0], [0], [1], [0, 0, 1, 1], [], []>} : vector<64x36xf32>, vector<36x112xf32>, vector<64x112xf32> -> vector<64x112xf32>
    %186 = arith.addf %175, %185 : vector<64x112xf32>
    %c2_173 = arith.constant 2 : index
    %c1_174 = arith.constant 1 : index
    %c0_175 = arith.constant 0 : index
    %c0_176 = arith.constant 0 : index
    %187 = vector.load %arg2[%c2_173, %c1_174, %c0_175, %c0_176] : memref<5x2x36x112xf32, #tpu.memory_space<vmem>>, vector<1x1x36x112xf32>
    %188 = vector.shape_cast %187 : vector<1x1x36x112xf32> to vector<36x112xf32>
    %cst_177 = arith.constant dense<0.000000e+00> : vector<64x112xf32>
    %189 = tpu.matmul %182, %188, %cst_177 {dimension_numbers = #tpu.dot_dimension_numbers<[1], [0], [0], [1], [0, 0, 1, 1], [], []>} : vector<64x36xf32>, vector<36x112xf32>, vector<64x112xf32> -> vector<64x112xf32>
    %190 = arith.addf %179, %189 : vector<64x112xf32>
    %191 = vector.extract_strided_slice %0 {offsets = [0, 2, 1, 0], sizes = [8, 1, 8, 36], strides = [1, 1, 1, 1]} : vector<8x4x9x36xf32> to vector<8x1x8x36xf32>
    %192 = vector.shape_cast %191 : vector<8x1x8x36xf32> to vector<8x8x36xf32>
    %193 = vector.shape_cast %192 : vector<8x8x36xf32> to vector<64x36xf32>
    %c3_178 = arith.constant 3 : index
    %c0_179 = arith.constant 0 : index
    %c0_180 = arith.constant 0 : index
    %c0_181 = arith.constant 0 : index
    %194 = vector.load %arg2[%c3_178, %c0_179, %c0_180, %c0_181] : memref<5x2x36x112xf32, #tpu.memory_space<vmem>>, vector<1x1x36x112xf32>
    %195 = vector.shape_cast %194 : vector<1x1x36x112xf32> to vector<36x112xf32>
    %cst_182 = arith.constant dense<0.000000e+00> : vector<64x112xf32>
    %196 = tpu.matmul %193, %195, %cst_182 {dimension_numbers = #tpu.dot_dimension_numbers<[1], [0], [0], [1], [0, 0, 1, 1], [], []>} : vector<64x36xf32>, vector<36x112xf32>, vector<64x112xf32> -> vector<64x112xf32>
    %197 = arith.addf %186, %196 : vector<64x112xf32>
    %c3_183 = arith.constant 3 : index
    %c1_184 = arith.constant 1 : index
    %c0_185 = arith.constant 0 : index
    %c0_186 = arith.constant 0 : index
    %198 = vector.load %arg2[%c3_183, %c1_184, %c0_185, %c0_186] : memref<5x2x36x112xf32, #tpu.memory_space<vmem>>, vector<1x1x36x112xf32>
    %199 = vector.shape_cast %198 : vector<1x1x36x112xf32> to vector<36x112xf32>
    %cst_187 = arith.constant dense<0.000000e+00> : vector<64x112xf32>
    %200 = tpu.matmul %193, %199, %cst_187 {dimension_numbers = #tpu.dot_dimension_numbers<[1], [0], [0], [1], [0, 0, 1, 1], [], []>} : vector<64x36xf32>, vector<36x112xf32>, vector<64x112xf32> -> vector<64x112xf32>
    %201 = arith.addf %190, %200 : vector<64x112xf32>
    %202 = vector.extract_strided_slice %0 {offsets = [0, 3, 1, 0], sizes = [8, 1, 8, 36], strides = [1, 1, 1, 1]} : vector<8x4x9x36xf32> to vector<8x1x8x36xf32>
    %203 = vector.shape_cast %202 : vector<8x1x8x36xf32> to vector<8x8x36xf32>
    %204 = vector.shape_cast %203 : vector<8x8x36xf32> to vector<64x36xf32>
    %c4_188 = arith.constant 4 : index
    %c0_189 = arith.constant 0 : index
    %c0_190 = arith.constant 0 : index
    %c0_191 = arith.constant 0 : index
    %205 = vector.load %arg2[%c4_188, %c0_189, %c0_190, %c0_191] : memref<5x2x36x112xf32, #tpu.memory_space<vmem>>, vector<1x1x36x112xf32>
    %206 = vector.shape_cast %205 : vector<1x1x36x112xf32> to vector<36x112xf32>
    %cst_192 = arith.constant dense<0.000000e+00> : vector<64x112xf32>
    %207 = tpu.matmul %204, %206, %cst_192 {dimension_numbers = #tpu.dot_dimension_numbers<[1], [0], [0], [1], [0, 0, 1, 1], [], []>} : vector<64x36xf32>, vector<36x112xf32>, vector<64x112xf32> -> vector<64x112xf32>
    %208 = arith.addf %197, %207 : vector<64x112xf32>
    %c4_193 = arith.constant 4 : index
    %c1_194 = arith.constant 1 : index
    %c0_195 = arith.constant 0 : index
    %c0_196 = arith.constant 0 : index
    %209 = vector.load %arg2[%c4_193, %c1_194, %c0_195, %c0_196] : memref<5x2x36x112xf32, #tpu.memory_space<vmem>>, vector<1x1x36x112xf32>
    %210 = vector.shape_cast %209 : vector<1x1x36x112xf32> to vector<36x112xf32>
    %cst_197 = arith.constant dense<0.000000e+00> : vector<64x112xf32>
    %211 = tpu.matmul %204, %210, %cst_197 {dimension_numbers = #tpu.dot_dimension_numbers<[1], [0], [0], [1], [0, 0, 1, 1], [], []>} : vector<64x36xf32>, vector<36x112xf32>, vector<64x112xf32> -> vector<64x112xf32>
    %212 = arith.addf %201, %211 : vector<64x112xf32>
    %213 = arith.maximumf %49, %53 : vector<64x112xf32>
    %214 = arith.maximumf %102, %106 : vector<64x112xf32>
    %215 = arith.maximumf %213, %214 : vector<64x112xf32>
    %c0_198 = arith.constant 0 : index
    %c0_199 = arith.constant 0 : index
    %216 = vector.load %arg4[%c0_198, %c0_199] : memref<1x112xf32, #tpu.memory_space<vmem>>, vector<1x112xf32>
    %217 = vector.broadcast %216 : vector<1x112xf32> to vector<64x112xf32>
    %218 = arith.addf %215, %217 : vector<64x112xf32>
    %cst_200 = arith.constant 0.000000e+00 : f32
    %219 = vector.broadcast %cst_200 : f32 to vector<64x112xf32>
    %220 = arith.maximumf %218, %219 : vector<64x112xf32>
    %221 = vector.shape_cast %220 : vector<64x112xf32> to vector<8x8x112xf32>
    %cst_201 = arith.constant 0.000000e+00 : f32
    %222 = vector.broadcast %cst_201 : f32 to vector<8x8x112xf32>
    %223 = tpu.concatenate %221, %222 in 1 : vector<8x8x112xf32>, vector<8x8x112xf32> -> vector<8x16x112xf32>
    %224 = arith.maximumf %155, %159 : vector<64x112xf32>
    %225 = arith.maximumf %208, %212 : vector<64x112xf32>
    %226 = arith.maximumf %224, %225 : vector<64x112xf32>
    %c0_202 = arith.constant 0 : index
    %c0_203 = arith.constant 0 : index
    %227 = vector.load %arg4[%c0_202, %c0_203] : memref<1x112xf32, #tpu.memory_space<vmem>>, vector<1x112xf32>
    %228 = vector.broadcast %227 : vector<1x112xf32> to vector<64x112xf32>
    %229 = arith.addf %226, %228 : vector<64x112xf32>
    %cst_204 = arith.constant 0.000000e+00 : f32
    %230 = vector.broadcast %cst_204 : f32 to vector<64x112xf32>
    %231 = arith.maximumf %229, %230 : vector<64x112xf32>
    %232 = vector.shape_cast %231 : vector<64x112xf32> to vector<8x8x112xf32>
    %cst_205 = arith.constant 0.000000e+00 : f32
    %233 = vector.broadcast %cst_205 : f32 to vector<8x8x112xf32>
    %234 = tpu.concatenate %232, %233 in 1 : vector<8x8x112xf32>, vector<8x8x112xf32> -> vector<8x16x112xf32>
    %235 = vector.extract_strided_slice %223 {offsets = [0, 0, 0], sizes = [8, 8, 112], strides = [1, 1, 1]} : vector<8x16x112xf32> to vector<8x8x112xf32>
    %236 = vector.shape_cast %235 : vector<8x8x112xf32> to vector<64x112xf32>
    %c0_206 = arith.constant 0 : index
    %c0_207 = arith.constant 0 : index
    %c0_208 = arith.constant 0 : index
    %c0_209 = arith.constant 0 : index
    %237 = vector.load %arg3[%c0_206, %c0_207, %c0_208, %c0_209] : memref<5x2x112x80xf32, #tpu.memory_space<vmem>>, vector<1x1x112x80xf32>
    %238 = vector.shape_cast %237 : vector<1x1x112x80xf32> to vector<112x80xf32>
    %cst_210 = arith.constant dense<0.000000e+00> : vector<64x80xf32>
    %239 = tpu.matmul %236, %238, %cst_210 {dimension_numbers = #tpu.dot_dimension_numbers<[1], [0], [0], [1], [0, 0, 1, 1], [], []>} : vector<64x112xf32>, vector<112x80xf32>, vector<64x80xf32> -> vector<64x80xf32>
    %c0_211 = arith.constant 0 : index
    %c1_212 = arith.constant 1 : index
    %c0_213 = arith.constant 0 : index
    %c0_214 = arith.constant 0 : index
    %240 = vector.load %arg3[%c0_211, %c1_212, %c0_213, %c0_214] : memref<5x2x112x80xf32, #tpu.memory_space<vmem>>, vector<1x1x112x80xf32>
    %241 = vector.shape_cast %240 : vector<1x1x112x80xf32> to vector<112x80xf32>
    %cst_215 = arith.constant dense<0.000000e+00> : vector<64x80xf32>
    %242 = tpu.matmul %236, %241, %cst_215 {dimension_numbers = #tpu.dot_dimension_numbers<[1], [0], [0], [1], [0, 0, 1, 1], [], []>} : vector<64x112xf32>, vector<112x80xf32>, vector<64x80xf32> -> vector<64x80xf32>
    %243 = vector.extract_strided_slice %234 {offsets = [0, 0, 0], sizes = [8, 8, 112], strides = [1, 1, 1]} : vector<8x16x112xf32> to vector<8x8x112xf32>
    %244 = vector.shape_cast %243 : vector<8x8x112xf32> to vector<64x112xf32>
    %c1_216 = arith.constant 1 : index
    %c0_217 = arith.constant 0 : index
    %c0_218 = arith.constant 0 : index
    %c0_219 = arith.constant 0 : index
    %245 = vector.load %arg3[%c1_216, %c0_217, %c0_218, %c0_219] : memref<5x2x112x80xf32, #tpu.memory_space<vmem>>, vector<1x1x112x80xf32>
    %246 = vector.shape_cast %245 : vector<1x1x112x80xf32> to vector<112x80xf32>
    %cst_220 = arith.constant dense<0.000000e+00> : vector<64x80xf32>
    %247 = tpu.matmul %244, %246, %cst_220 {dimension_numbers = #tpu.dot_dimension_numbers<[1], [0], [0], [1], [0, 0, 1, 1], [], []>} : vector<64x112xf32>, vector<112x80xf32>, vector<64x80xf32> -> vector<64x80xf32>
    %248 = arith.addf %239, %247 : vector<64x80xf32>
    %c1_221 = arith.constant 1 : index
    %c1_222 = arith.constant 1 : index
    %c0_223 = arith.constant 0 : index
    %c0_224 = arith.constant 0 : index
    %249 = vector.load %arg3[%c1_221, %c1_222, %c0_223, %c0_224] : memref<5x2x112x80xf32, #tpu.memory_space<vmem>>, vector<1x1x112x80xf32>
    %250 = vector.shape_cast %249 : vector<1x1x112x80xf32> to vector<112x80xf32>
    %cst_225 = arith.constant dense<0.000000e+00> : vector<64x80xf32>
    %251 = tpu.matmul %244, %250, %cst_225 {dimension_numbers = #tpu.dot_dimension_numbers<[1], [0], [0], [1], [0, 0, 1, 1], [], []>} : vector<64x112xf32>, vector<112x80xf32>, vector<64x80xf32> -> vector<64x80xf32>
    %252 = arith.addf %242, %251 : vector<64x80xf32>
    %253 = vector.extract_strided_slice %223 {offsets = [0, 1, 0], sizes = [8, 8, 112], strides = [1, 1, 1]} : vector<8x16x112xf32> to vector<8x8x112xf32>
    %254 = vector.shape_cast %253 : vector<8x8x112xf32> to vector<64x112xf32>
    %c2_226 = arith.constant 2 : index
    %c0_227 = arith.constant 0 : index
    %c0_228 = arith.constant 0 : index
    %c0_229 = arith.constant 0 : index
    %255 = vector.load %arg3[%c2_226, %c0_227, %c0_228, %c0_229] : memref<5x2x112x80xf32, #tpu.memory_space<vmem>>, vector<1x1x112x80xf32>
    %256 = vector.shape_cast %255 : vector<1x1x112x80xf32> to vector<112x80xf32>
    %cst_230 = arith.constant dense<0.000000e+00> : vector<64x80xf32>
    %257 = tpu.matmul %254, %256, %cst_230 {dimension_numbers = #tpu.dot_dimension_numbers<[1], [0], [0], [1], [0, 0, 1, 1], [], []>} : vector<64x112xf32>, vector<112x80xf32>, vector<64x80xf32> -> vector<64x80xf32>
    %258 = arith.addf %248, %257 : vector<64x80xf32>
    %c2_231 = arith.constant 2 : index
    %c1_232 = arith.constant 1 : index
    %c0_233 = arith.constant 0 : index
    %c0_234 = arith.constant 0 : index
    %259 = vector.load %arg3[%c2_231, %c1_232, %c0_233, %c0_234] : memref<5x2x112x80xf32, #tpu.memory_space<vmem>>, vector<1x1x112x80xf32>
    %260 = vector.shape_cast %259 : vector<1x1x112x80xf32> to vector<112x80xf32>
    %cst_235 = arith.constant dense<0.000000e+00> : vector<64x80xf32>
    %261 = tpu.matmul %254, %260, %cst_235 {dimension_numbers = #tpu.dot_dimension_numbers<[1], [0], [0], [1], [0, 0, 1, 1], [], []>} : vector<64x112xf32>, vector<112x80xf32>, vector<64x80xf32> -> vector<64x80xf32>
    %262 = arith.addf %252, %261 : vector<64x80xf32>
    %263 = vector.extract_strided_slice %234 {offsets = [0, 1, 0], sizes = [8, 8, 112], strides = [1, 1, 1]} : vector<8x16x112xf32> to vector<8x8x112xf32>
    %264 = vector.shape_cast %263 : vector<8x8x112xf32> to vector<64x112xf32>
    %c3_236 = arith.constant 3 : index
    %c0_237 = arith.constant 0 : index
    %c0_238 = arith.constant 0 : index
    %c0_239 = arith.constant 0 : index
    %265 = vector.load %arg3[%c3_236, %c0_237, %c0_238, %c0_239] : memref<5x2x112x80xf32, #tpu.memory_space<vmem>>, vector<1x1x112x80xf32>
    %266 = vector.shape_cast %265 : vector<1x1x112x80xf32> to vector<112x80xf32>
    %cst_240 = arith.constant dense<0.000000e+00> : vector<64x80xf32>
    %267 = tpu.matmul %264, %266, %cst_240 {dimension_numbers = #tpu.dot_dimension_numbers<[1], [0], [0], [1], [0, 0, 1, 1], [], []>} : vector<64x112xf32>, vector<112x80xf32>, vector<64x80xf32> -> vector<64x80xf32>
    %268 = arith.addf %258, %267 : vector<64x80xf32>
    %c3_241 = arith.constant 3 : index
    %c1_242 = arith.constant 1 : index
    %c0_243 = arith.constant 0 : index
    %c0_244 = arith.constant 0 : index
    %269 = vector.load %arg3[%c3_241, %c1_242, %c0_243, %c0_244] : memref<5x2x112x80xf32, #tpu.memory_space<vmem>>, vector<1x1x112x80xf32>
    %270 = vector.shape_cast %269 : vector<1x1x112x80xf32> to vector<112x80xf32>
    %cst_245 = arith.constant dense<0.000000e+00> : vector<64x80xf32>
    %271 = tpu.matmul %264, %270, %cst_245 {dimension_numbers = #tpu.dot_dimension_numbers<[1], [0], [0], [1], [0, 0, 1, 1], [], []>} : vector<64x112xf32>, vector<112x80xf32>, vector<64x80xf32> -> vector<64x80xf32>
    %272 = arith.addf %262, %271 : vector<64x80xf32>
    %273 = vector.extract_strided_slice %223 {offsets = [0, 2, 0], sizes = [8, 8, 112], strides = [1, 1, 1]} : vector<8x16x112xf32> to vector<8x8x112xf32>
    %274 = vector.shape_cast %273 : vector<8x8x112xf32> to vector<64x112xf32>
    %c4_246 = arith.constant 4 : index
    %c0_247 = arith.constant 0 : index
    %c0_248 = arith.constant 0 : index
    %c0_249 = arith.constant 0 : index
    %275 = vector.load %arg3[%c4_246, %c0_247, %c0_248, %c0_249] : memref<5x2x112x80xf32, #tpu.memory_space<vmem>>, vector<1x1x112x80xf32>
    %276 = vector.shape_cast %275 : vector<1x1x112x80xf32> to vector<112x80xf32>
    %cst_250 = arith.constant dense<0.000000e+00> : vector<64x80xf32>
    %277 = tpu.matmul %274, %276, %cst_250 {dimension_numbers = #tpu.dot_dimension_numbers<[1], [0], [0], [1], [0, 0, 1, 1], [], []>} : vector<64x112xf32>, vector<112x80xf32>, vector<64x80xf32> -> vector<64x80xf32>
    %278 = arith.addf %268, %277 : vector<64x80xf32>
    %c4_251 = arith.constant 4 : index
    %c1_252 = arith.constant 1 : index
    %c0_253 = arith.constant 0 : index
    %c0_254 = arith.constant 0 : index
    %279 = vector.load %arg3[%c4_251, %c1_252, %c0_253, %c0_254] : memref<5x2x112x80xf32, #tpu.memory_space<vmem>>, vector<1x1x112x80xf32>
    %280 = vector.shape_cast %279 : vector<1x1x112x80xf32> to vector<112x80xf32>
    %cst_255 = arith.constant dense<0.000000e+00> : vector<64x80xf32>
    %281 = tpu.matmul %274, %280, %cst_255 {dimension_numbers = #tpu.dot_dimension_numbers<[1], [0], [0], [1], [0, 0, 1, 1], [], []>} : vector<64x112xf32>, vector<112x80xf32>, vector<64x80xf32> -> vector<64x80xf32>
    %282 = arith.addf %272, %281 : vector<64x80xf32>
    %283 = vector.extract_strided_slice %234 {offsets = [0, 0, 0], sizes = [8, 8, 112], strides = [1, 1, 1]} : vector<8x16x112xf32> to vector<8x8x112xf32>
    %284 = vector.shape_cast %283 : vector<8x8x112xf32> to vector<64x112xf32>
    %c0_256 = arith.constant 0 : index
    %c0_257 = arith.constant 0 : index
    %c0_258 = arith.constant 0 : index
    %c0_259 = arith.constant 0 : index
    %285 = vector.load %arg3[%c0_256, %c0_257, %c0_258, %c0_259] : memref<5x2x112x80xf32, #tpu.memory_space<vmem>>, vector<1x1x112x80xf32>
    %286 = vector.shape_cast %285 : vector<1x1x112x80xf32> to vector<112x80xf32>
    %cst_260 = arith.constant dense<0.000000e+00> : vector<64x80xf32>
    %287 = tpu.matmul %284, %286, %cst_260 {dimension_numbers = #tpu.dot_dimension_numbers<[1], [0], [0], [1], [0, 0, 1, 1], [], []>} : vector<64x112xf32>, vector<112x80xf32>, vector<64x80xf32> -> vector<64x80xf32>
    %c0_261 = arith.constant 0 : index
    %c1_262 = arith.constant 1 : index
    %c0_263 = arith.constant 0 : index
    %c0_264 = arith.constant 0 : index
    %288 = vector.load %arg3[%c0_261, %c1_262, %c0_263, %c0_264] : memref<5x2x112x80xf32, #tpu.memory_space<vmem>>, vector<1x1x112x80xf32>
    %289 = vector.shape_cast %288 : vector<1x1x112x80xf32> to vector<112x80xf32>
    %cst_265 = arith.constant dense<0.000000e+00> : vector<64x80xf32>
    %290 = tpu.matmul %284, %289, %cst_265 {dimension_numbers = #tpu.dot_dimension_numbers<[1], [0], [0], [1], [0, 0, 1, 1], [], []>} : vector<64x112xf32>, vector<112x80xf32>, vector<64x80xf32> -> vector<64x80xf32>
    %291 = vector.extract_strided_slice %223 {offsets = [0, 1, 0], sizes = [8, 8, 112], strides = [1, 1, 1]} : vector<8x16x112xf32> to vector<8x8x112xf32>
    %292 = vector.shape_cast %291 : vector<8x8x112xf32> to vector<64x112xf32>
    %c1_266 = arith.constant 1 : index
    %c0_267 = arith.constant 0 : index
    %c0_268 = arith.constant 0 : index
    %c0_269 = arith.constant 0 : index
    %293 = vector.load %arg3[%c1_266, %c0_267, %c0_268, %c0_269] : memref<5x2x112x80xf32, #tpu.memory_space<vmem>>, vector<1x1x112x80xf32>
    %294 = vector.shape_cast %293 : vector<1x1x112x80xf32> to vector<112x80xf32>
    %cst_270 = arith.constant dense<0.000000e+00> : vector<64x80xf32>
    %295 = tpu.matmul %292, %294, %cst_270 {dimension_numbers = #tpu.dot_dimension_numbers<[1], [0], [0], [1], [0, 0, 1, 1], [], []>} : vector<64x112xf32>, vector<112x80xf32>, vector<64x80xf32> -> vector<64x80xf32>
    %296 = arith.addf %287, %295 : vector<64x80xf32>
    %c1_271 = arith.constant 1 : index
    %c1_272 = arith.constant 1 : index
    %c0_273 = arith.constant 0 : index
    %c0_274 = arith.constant 0 : index
    %297 = vector.load %arg3[%c1_271, %c1_272, %c0_273, %c0_274] : memref<5x2x112x80xf32, #tpu.memory_space<vmem>>, vector<1x1x112x80xf32>
    %298 = vector.shape_cast %297 : vector<1x1x112x80xf32> to vector<112x80xf32>
    %cst_275 = arith.constant dense<0.000000e+00> : vector<64x80xf32>
    %299 = tpu.matmul %292, %298, %cst_275 {dimension_numbers = #tpu.dot_dimension_numbers<[1], [0], [0], [1], [0, 0, 1, 1], [], []>} : vector<64x112xf32>, vector<112x80xf32>, vector<64x80xf32> -> vector<64x80xf32>
    %300 = arith.addf %290, %299 : vector<64x80xf32>
    %301 = vector.extract_strided_slice %234 {offsets = [0, 1, 0], sizes = [8, 8, 112], strides = [1, 1, 1]} : vector<8x16x112xf32> to vector<8x8x112xf32>
    %302 = vector.shape_cast %301 : vector<8x8x112xf32> to vector<64x112xf32>
    %c2_276 = arith.constant 2 : index
    %c0_277 = arith.constant 0 : index
    %c0_278 = arith.constant 0 : index
    %c0_279 = arith.constant 0 : index
    %303 = vector.load %arg3[%c2_276, %c0_277, %c0_278, %c0_279] : memref<5x2x112x80xf32, #tpu.memory_space<vmem>>, vector<1x1x112x80xf32>
    %304 = vector.shape_cast %303 : vector<1x1x112x80xf32> to vector<112x80xf32>
    %cst_280 = arith.constant dense<0.000000e+00> : vector<64x80xf32>
    %305 = tpu.matmul %302, %304, %cst_280 {dimension_numbers = #tpu.dot_dimension_numbers<[1], [0], [0], [1], [0, 0, 1, 1], [], []>} : vector<64x112xf32>, vector<112x80xf32>, vector<64x80xf32> -> vector<64x80xf32>
    %306 = arith.addf %296, %305 : vector<64x80xf32>
    %c2_281 = arith.constant 2 : index
    %c1_282 = arith.constant 1 : index
    %c0_283 = arith.constant 0 : index
    %c0_284 = arith.constant 0 : index
    %307 = vector.load %arg3[%c2_281, %c1_282, %c0_283, %c0_284] : memref<5x2x112x80xf32, #tpu.memory_space<vmem>>, vector<1x1x112x80xf32>
    %308 = vector.shape_cast %307 : vector<1x1x112x80xf32> to vector<112x80xf32>
    %cst_285 = arith.constant dense<0.000000e+00> : vector<64x80xf32>
    %309 = tpu.matmul %302, %308, %cst_285 {dimension_numbers = #tpu.dot_dimension_numbers<[1], [0], [0], [1], [0, 0, 1, 1], [], []>} : vector<64x112xf32>, vector<112x80xf32>, vector<64x80xf32> -> vector<64x80xf32>
    %310 = arith.addf %300, %309 : vector<64x80xf32>
    %311 = vector.extract_strided_slice %223 {offsets = [0, 2, 0], sizes = [8, 8, 112], strides = [1, 1, 1]} : vector<8x16x112xf32> to vector<8x8x112xf32>
    %312 = vector.shape_cast %311 : vector<8x8x112xf32> to vector<64x112xf32>
    %c3_286 = arith.constant 3 : index
    %c0_287 = arith.constant 0 : index
    %c0_288 = arith.constant 0 : index
    %c0_289 = arith.constant 0 : index
    %313 = vector.load %arg3[%c3_286, %c0_287, %c0_288, %c0_289] : memref<5x2x112x80xf32, #tpu.memory_space<vmem>>, vector<1x1x112x80xf32>
    %314 = vector.shape_cast %313 : vector<1x1x112x80xf32> to vector<112x80xf32>
    %cst_290 = arith.constant dense<0.000000e+00> : vector<64x80xf32>
    %315 = tpu.matmul %312, %314, %cst_290 {dimension_numbers = #tpu.dot_dimension_numbers<[1], [0], [0], [1], [0, 0, 1, 1], [], []>} : vector<64x112xf32>, vector<112x80xf32>, vector<64x80xf32> -> vector<64x80xf32>
    %316 = arith.addf %306, %315 : vector<64x80xf32>
    %c3_291 = arith.constant 3 : index
    %c1_292 = arith.constant 1 : index
    %c0_293 = arith.constant 0 : index
    %c0_294 = arith.constant 0 : index
    %317 = vector.load %arg3[%c3_291, %c1_292, %c0_293, %c0_294] : memref<5x2x112x80xf32, #tpu.memory_space<vmem>>, vector<1x1x112x80xf32>
    %318 = vector.shape_cast %317 : vector<1x1x112x80xf32> to vector<112x80xf32>
    %cst_295 = arith.constant dense<0.000000e+00> : vector<64x80xf32>
    %319 = tpu.matmul %312, %318, %cst_295 {dimension_numbers = #tpu.dot_dimension_numbers<[1], [0], [0], [1], [0, 0, 1, 1], [], []>} : vector<64x112xf32>, vector<112x80xf32>, vector<64x80xf32> -> vector<64x80xf32>
    %320 = arith.addf %310, %319 : vector<64x80xf32>
    %321 = vector.extract_strided_slice %234 {offsets = [0, 2, 0], sizes = [8, 8, 112], strides = [1, 1, 1]} : vector<8x16x112xf32> to vector<8x8x112xf32>
    %322 = vector.shape_cast %321 : vector<8x8x112xf32> to vector<64x112xf32>
    %c4_296 = arith.constant 4 : index
    %c0_297 = arith.constant 0 : index
    %c0_298 = arith.constant 0 : index
    %c0_299 = arith.constant 0 : index
    %323 = vector.load %arg3[%c4_296, %c0_297, %c0_298, %c0_299] : memref<5x2x112x80xf32, #tpu.memory_space<vmem>>, vector<1x1x112x80xf32>
    %324 = vector.shape_cast %323 : vector<1x1x112x80xf32> to vector<112x80xf32>
    %cst_300 = arith.constant dense<0.000000e+00> : vector<64x80xf32>
    %325 = tpu.matmul %322, %324, %cst_300 {dimension_numbers = #tpu.dot_dimension_numbers<[1], [0], [0], [1], [0, 0, 1, 1], [], []>} : vector<64x112xf32>, vector<112x80xf32>, vector<64x80xf32> -> vector<64x80xf32>
    %326 = arith.addf %316, %325 : vector<64x80xf32>
    %c4_301 = arith.constant 4 : index
    %c1_302 = arith.constant 1 : index
    %c0_303 = arith.constant 0 : index
    %c0_304 = arith.constant 0 : index
    %327 = vector.load %arg3[%c4_301, %c1_302, %c0_303, %c0_304] : memref<5x2x112x80xf32, #tpu.memory_space<vmem>>, vector<1x1x112x80xf32>
    %328 = vector.shape_cast %327 : vector<1x1x112x80xf32> to vector<112x80xf32>
    %cst_305 = arith.constant dense<0.000000e+00> : vector<64x80xf32>
    %329 = tpu.matmul %322, %328, %cst_305 {dimension_numbers = #tpu.dot_dimension_numbers<[1], [0], [0], [1], [0, 0, 1, 1], [], []>} : vector<64x112xf32>, vector<112x80xf32>, vector<64x80xf32> -> vector<64x80xf32>
    %330 = arith.addf %320, %329 : vector<64x80xf32>
    %331 = arith.maximumf %278, %282 : vector<64x80xf32>
    %332 = arith.maximumf %326, %330 : vector<64x80xf32>
    %333 = arith.maximumf %331, %332 : vector<64x80xf32>
    %c0_306 = arith.constant 0 : index
    %c0_307 = arith.constant 0 : index
    %334 = vector.load %arg5[%c0_306, %c0_307] : memref<1x80xf32, #tpu.memory_space<vmem>>, vector<1x80xf32>
    %335 = vector.broadcast %334 : vector<1x80xf32> to vector<64x80xf32>
    %336 = arith.addf %333, %335 : vector<64x80xf32>
    %cst_308 = arith.constant 0.000000e+00 : f32
    %337 = vector.broadcast %cst_308 : f32 to vector<64x80xf32>
    %338 = arith.maximumf %336, %337 : vector<64x80xf32>
    %339 = vector.shape_cast %338 : vector<64x80xf32> to vector<8x8x80xf32>
    %340 = vector.extract_strided_slice %339 {offsets = [0, 0, 0], sizes = [8, 1, 80], strides = [1, 1, 1]} : vector<8x8x80xf32> to vector<8x1x80xf32>
    %341 = vector.shape_cast %340 : vector<8x1x80xf32> to vector<8x80xf32>
    %c0_309 = arith.constant 0 : index
    %c0_310 = arith.constant 0 : index
    %c0_311 = arith.constant 0 : index
    %342 = vector.load %arg6[%c0_309, %c0_310, %c0_311] : memref<5x80x128xf32, #tpu.memory_space<vmem>>, vector<1x80x128xf32>
    %343 = vector.shape_cast %342 : vector<1x80x128xf32> to vector<80x128xf32>
    %cst_312 = arith.constant dense<0.000000e+00> : vector<8x128xf32>
    %344 = tpu.matmul %341, %343, %cst_312 {dimension_numbers = #tpu.dot_dimension_numbers<[1], [0], [0], [1], [0, 0, 1, 1], [], []>} : vector<8x80xf32>, vector<80x128xf32>, vector<8x128xf32> -> vector<8x128xf32>
    %345 = vector.extract_strided_slice %339 {offsets = [0, 1, 0], sizes = [8, 1, 80], strides = [1, 1, 1]} : vector<8x8x80xf32> to vector<8x1x80xf32>
    %346 = vector.shape_cast %345 : vector<8x1x80xf32> to vector<8x80xf32>
    %c1_313 = arith.constant 1 : index
    %c0_314 = arith.constant 0 : index
    %c0_315 = arith.constant 0 : index
    %347 = vector.load %arg6[%c1_313, %c0_314, %c0_315] : memref<5x80x128xf32, #tpu.memory_space<vmem>>, vector<1x80x128xf32>
    %348 = vector.shape_cast %347 : vector<1x80x128xf32> to vector<80x128xf32>
    %cst_316 = arith.constant dense<0.000000e+00> : vector<8x128xf32>
    %349 = tpu.matmul %346, %348, %cst_316 {dimension_numbers = #tpu.dot_dimension_numbers<[1], [0], [0], [1], [0, 0, 1, 1], [], []>} : vector<8x80xf32>, vector<80x128xf32>, vector<8x128xf32> -> vector<8x128xf32>
    %350 = arith.addf %344, %349 : vector<8x128xf32>
    %351 = vector.extract_strided_slice %339 {offsets = [0, 2, 0], sizes = [8, 1, 80], strides = [1, 1, 1]} : vector<8x8x80xf32> to vector<8x1x80xf32>
    %352 = vector.shape_cast %351 : vector<8x1x80xf32> to vector<8x80xf32>
    %c2_317 = arith.constant 2 : index
    %c0_318 = arith.constant 0 : index
    %c0_319 = arith.constant 0 : index
    %353 = vector.load %arg6[%c2_317, %c0_318, %c0_319] : memref<5x80x128xf32, #tpu.memory_space<vmem>>, vector<1x80x128xf32>
    %354 = vector.shape_cast %353 : vector<1x80x128xf32> to vector<80x128xf32>
    %cst_320 = arith.constant dense<0.000000e+00> : vector<8x128xf32>
    %355 = tpu.matmul %352, %354, %cst_320 {dimension_numbers = #tpu.dot_dimension_numbers<[1], [0], [0], [1], [0, 0, 1, 1], [], []>} : vector<8x80xf32>, vector<80x128xf32>, vector<8x128xf32> -> vector<8x128xf32>
    %356 = arith.addf %350, %355 : vector<8x128xf32>
    %357 = vector.extract_strided_slice %339 {offsets = [0, 3, 0], sizes = [8, 1, 80], strides = [1, 1, 1]} : vector<8x8x80xf32> to vector<8x1x80xf32>
    %358 = vector.shape_cast %357 : vector<8x1x80xf32> to vector<8x80xf32>
    %c3_321 = arith.constant 3 : index
    %c0_322 = arith.constant 0 : index
    %c0_323 = arith.constant 0 : index
    %359 = vector.load %arg6[%c3_321, %c0_322, %c0_323] : memref<5x80x128xf32, #tpu.memory_space<vmem>>, vector<1x80x128xf32>
    %360 = vector.shape_cast %359 : vector<1x80x128xf32> to vector<80x128xf32>
    %cst_324 = arith.constant dense<0.000000e+00> : vector<8x128xf32>
    %361 = tpu.matmul %358, %360, %cst_324 {dimension_numbers = #tpu.dot_dimension_numbers<[1], [0], [0], [1], [0, 0, 1, 1], [], []>} : vector<8x80xf32>, vector<80x128xf32>, vector<8x128xf32> -> vector<8x128xf32>
    %362 = arith.addf %356, %361 : vector<8x128xf32>
    %363 = vector.extract_strided_slice %339 {offsets = [0, 4, 0], sizes = [8, 1, 80], strides = [1, 1, 1]} : vector<8x8x80xf32> to vector<8x1x80xf32>
    %364 = vector.shape_cast %363 : vector<8x1x80xf32> to vector<8x80xf32>
    %c4_325 = arith.constant 4 : index
    %c0_326 = arith.constant 0 : index
    %c0_327 = arith.constant 0 : index
    %365 = vector.load %arg6[%c4_325, %c0_326, %c0_327] : memref<5x80x128xf32, #tpu.memory_space<vmem>>, vector<1x80x128xf32>
    %366 = vector.shape_cast %365 : vector<1x80x128xf32> to vector<80x128xf32>
    %cst_328 = arith.constant dense<0.000000e+00> : vector<8x128xf32>
    %367 = tpu.matmul %364, %366, %cst_328 {dimension_numbers = #tpu.dot_dimension_numbers<[1], [0], [0], [1], [0, 0, 1, 1], [], []>} : vector<8x80xf32>, vector<80x128xf32>, vector<8x128xf32> -> vector<8x128xf32>
    %368 = arith.addf %362, %367 : vector<8x128xf32>
    %c0_329 = arith.constant 0 : index
    %c0_330 = arith.constant 0 : index
    %369 = vector.load %arg7[%c0_329, %c0_330] : memref<1x128xf32, #tpu.memory_space<vmem>>, vector<1x128xf32>
    %370 = vector.broadcast %369 : vector<1x128xf32> to vector<8x128xf32>
    %371 = arith.addf %368, %370 : vector<8x128xf32>
    %cst_331 = arith.constant 0.000000e+00 : f32
    %372 = vector.broadcast %cst_331 : f32 to vector<8x128xf32>
    %373 = arith.maximumf %371, %372 : vector<8x128xf32>
    %c0_332 = arith.constant 0 : index
    %c0_333 = arith.constant 0 : index
    %374 = vector.load %arg8[%c0_332, %c0_333] : memref<128x128xf32, #tpu.memory_space<vmem>>, vector<128x128xf32>
    %cst_334 = arith.constant dense<0.000000e+00> : vector<8x128xf32>
    %375 = tpu.matmul %373, %374, %cst_334 {dimension_numbers = #tpu.dot_dimension_numbers<[1], [0], [0], [1], [0, 0, 1, 1], [], []>} : vector<8x128xf32>, vector<128x128xf32>, vector<8x128xf32> -> vector<8x128xf32>
    %c0_335 = arith.constant 0 : index
    %c0_336 = arith.constant 0 : index
    %376 = vector.load %arg9[%c0_335, %c0_336] : memref<1x128xf32, #tpu.memory_space<vmem>>, vector<1x128xf32>
    %377 = vector.broadcast %376 : vector<1x128xf32> to vector<8x128xf32>
    %378 = arith.addf %375, %377 : vector<8x128xf32>
    %cst_337 = arith.constant 0.000000e+00 : f32
    %379 = vector.broadcast %cst_337 : f32 to vector<8x128xf32>
    %380 = arith.maximumf %378, %379 : vector<8x128xf32>
    %c0_338 = arith.constant 0 : index
    %c0_339 = arith.constant 0 : index
    %381 = vector.load %arg10[%c0_338, %c0_339] : memref<128x128xf32, #tpu.memory_space<vmem>>, vector<128x128xf32>
    %cst_340 = arith.constant dense<0.000000e+00> : vector<8x128xf32>
    %382 = tpu.matmul %380, %381, %cst_340 {dimension_numbers = #tpu.dot_dimension_numbers<[1], [0], [0], [1], [0, 0, 1, 1], [], []>} : vector<8x128xf32>, vector<128x128xf32>, vector<8x128xf32> -> vector<8x128xf32>
    %c0_341 = arith.constant 0 : index
    %c0_342 = arith.constant 0 : index
    %383 = vector.load %arg11[%c0_341, %c0_342] : memref<1x128xf32, #tpu.memory_space<vmem>>, vector<1x128xf32>
    %384 = vector.broadcast %383 : vector<1x128xf32> to vector<8x128xf32>
    %385 = arith.addf %382, %384 : vector<8x128xf32>
    %c0_343 = arith.constant 0 : index
    %c0_344 = arith.constant 0 : index
    %386 = vector.load %arg12[%c0_343, %c0_344] : memref<8x128xf32, #tpu.memory_space<vmem>>, vector<8x128xf32>
    tpu.vector_store %arg12[%c0_343, %c0_344], %385 {strides = array<i32>} : memref<8x128xf32, #tpu.memory_space<vmem>>, vector<8x128xf32>,
    return
  }
  func.func @transform_0(%arg0: i32) -> (i32, i32, i32, i32) {
    %c0_i32 = arith.constant 0 : i32
    %c0_i32_0 = arith.constant 0 : i32
    %c0_i32_1 = arith.constant 0 : i32
    %c0_i32_2 = arith.constant 0 : i32
    return %arg0, %c0_i32, %c0_i32_0, %c0_i32_1 : i32, i32, i32, i32
  }
  func.func @transform_1(%arg0: i32) -> (i32, i32, i32, i32) {
    %c0_i32 = arith.constant 0 : i32
    %c0_i32_0 = arith.constant 0 : i32
    %c0_i32_1 = arith.constant 0 : i32
    %c0_i32_2 = arith.constant 0 : i32
    %c0_i32_3 = arith.constant 0 : i32
    return %c0_i32, %c0_i32_0, %c0_i32_1, %c0_i32_2 : i32, i32, i32, i32
  }
  func.func @transform_2(%arg0: i32) -> (i32, i32, i32, i32) {
    %c0_i32 = arith.constant 0 : i32
    %c0_i32_0 = arith.constant 0 : i32
    %c0_i32_1 = arith.constant 0 : i32
    %c0_i32_2 = arith.constant 0 : i32
    %c0_i32_3 = arith.constant 0 : i32
    return %c0_i32, %c0_i32_0, %c0_i32_1, %c0_i32_2 : i32, i32, i32, i32
  }
  func.func @transform_3(%arg0: i32) -> (i32, i32) {
    %c0_i32 = arith.constant 0 : i32
    %c0_i32_0 = arith.constant 0 : i32
    %c0_i32_1 = arith.constant 0 : i32
    return %c0_i32, %c0_i32_0 : i32, i32
  }
  func.func @transform_4(%arg0: i32) -> (i32, i32) {
    %c0_i32 = arith.constant 0 : i32
    %c0_i32_0 = arith.constant 0 : i32
    %c0_i32_1 = arith.constant 0 : i32
    return %c0_i32, %c0_i32_0 : i32, i32
  }
  func.func @transform_5(%arg0: i32) -> (i32, i32, i32) {
    %c0_i32 = arith.constant 0 : i32
    %c0_i32_0 = arith.constant 0 : i32
    %c0_i32_1 = arith.constant 0 : i32
    %c0_i32_2 = arith.constant 0 : i32
    return %c0_i32, %c0_i32_0, %c0_i32_1 : i32, i32, i32
  }
  func.func @transform_6(%arg0: i32) -> (i32, i32) {
    %c0_i32 = arith.constant 0 : i32
    %c0_i32_0 = arith.constant 0 : i32
    %c0_i32_1 = arith.constant 0 : i32
    return %c0_i32, %c0_i32_0 : i32, i32
  }
  func.func @transform_7(%arg0: i32) -> (i32, i32) {
    %c0_i32 = arith.constant 0 : i32
    %c0_i32_0 = arith.constant 0 : i32
    %c0_i32_1 = arith.constant 0 : i32
    return %c0_i32, %c0_i32_0 : i32, i32
  }
  func.func @transform_8(%arg0: i32) -> (i32, i32) {
    %c0_i32 = arith.constant 0 : i32
    %c0_i32_0 = arith.constant 0 : i32
    %c0_i32_1 = arith.constant 0 : i32
    return %c0_i32, %c0_i32_0 : i32, i32
  }
  func.func @transform_9(%arg0: i32) -> (i32, i32) {
    %c0_i32 = arith.constant 0 : i32
    %c0_i32_0 = arith.constant 0 : i32
    %c0_i32_1 = arith.constant 0 : i32
    return %c0_i32, %c0_i32_0 : i32, i32
  }
  func.func @transform_10(%arg0: i32) -> (i32, i32) {
    %c0_i32 = arith.constant 0 : i32
    %c0_i32_0 = arith.constant 0 : i32
    %c0_i32_1 = arith.constant 0 : i32
    return %c0_i32, %c0_i32_0 : i32, i32
  }
  func.func @transform_11(%arg0: i32) -> (i32, i32) {
    %c0_i32 = arith.constant 0 : i32
    %c0_i32_0 = arith.constant 0 : i32
    return %arg0, %c0_i32 : i32, i32
  }
}

</mosaic_0001>

<llo_original>
// kernel: tile.12
$region0: #{tile.12}
  #allocation0 [shape = 's32[1]{0}', space=sflag, size = 0x4, scoped, tag = 'scoped memory for tile.12']
  %s0 = inlined_call_operand.vmem [shape: f32[8], index: 0, kind: input, shape index: {}]
  %s1 = inlined_call_operand.vmem [shape: f32[14,8], index: 1, kind: output, shape index: {}]
  // Predicated region
  $region2: #{tile.12} parent=0 // pred_check
    _
  $region3: #{tile.12} parent=0 // pred_check_branch
    %3 = sbr.rel (0) target = $region5
  $region4: #{tile.12} parent=0 // pred_region
    _
  $region5: #{tile.12} parent=0 // pred_fallthru
    _
  %v4 = vld [vmem:[%s0] ss:$0 sm:$0xff]
  %5 = vst [vmem:[%s1] sm:$0xff] %v4
  %s6 = scalar_lea.vmem %s1, 8
  %7 = vst [vmem:[%s6] sm:$0xff] %v4

// kernel: tile.13
$region0: #{tile.13}
  %s0 = inlined_call_operand.vmem [shape: f32[14,8], index: 0, kind: input, shape index: {}]
  %s1 = inlined_call_operand.vmem [shape: f32[1,112], index: 1, kind: output, shape index: {}]
  $region1: #{tile.13} parent=0
    #allocation0 [shape = 'u8[4096]{0}', space=vmem, size = 0x1000, scoped, tag = 'scoped mem for output reshape']
    %v2 = vld [vmem:[%s0] sm:$0x1]
    %vm3 = vcmask 64512
    %4 = vst.msk [vmem:[#allocation0] sm:$0x1] %vm3, %v2
    %s5 = scalar_lea.vmem %s0, 13
    %v6 = vld [vmem:[%s5] sm:$0x1]
    %7 = vrot.lane.b32.xlu0 %v6, 104
    %v8 = vpop.permute.xlu0 %7
    %vm9 = vcmask 917312
    %10 = vst.msk [vmem:[#allocation0] sm:$0x1] %vm9, %v8
    %s11 = scalar_lea.vmem %s0, 12
    %v12 = vld [vmem:[%s11] sm:$0x1]
    %13 = vrot.lane.b32.xlu0 %v12, 96
    %v14 = vpop.permute.xlu0 %13
    %vm15 = vcmask 851712
    %16 = vst.msk [vmem:[#allocation0] sm:$0x1] %vm15, %v14
    %s17 = scalar_lea.vmem %s0, 11
    %v18 = vld [vmem:[%s17] sm:$0x1]
    %19 = vrot.lane.b32.xlu0 %v18, 88
    %v20 = vpop.permute.xlu0 %19
    %vm21 = vcmask 786112
    %22 = vst.msk [vmem:[#allocation0] sm:$0x1] %vm21, %v20
    %s23 = scalar_lea.vmem %s0, 10
    %v24 = vld [vmem:[%s23] sm:$0x1]
    %25 = vrot.lane.b32.xlu0 %v24, 80
    %v26 = vpop.permute.xlu0 %25
    %vm27 = vcmask 720512
    %28 = vst.msk [vmem:[#allocation0] sm:$0x1] %vm27, %v26
    %s29 = scalar_lea.vmem %s0, 9
    %v30 = vld [vmem:[%s29] sm:$0x1]
    %31 = vrot.lane.b32.xlu0 %v30, 72
    %v32 = vpop.permute.xlu0 %31
    %vm33 = vcmask 654912
    %34 = vst.msk [vmem:[#allocation0] sm:$0x1] %vm33, %v32
    %s35 = scalar_lea.vmem %s0, 8
    %v36 = vld [vmem:[%s35] sm:$0x1]
    %37 = vrot.lane.b32.xlu0 %v36, 64
    %v38 = vpop.permute.xlu0 %37
    %vm39 = vcmask 589312
    %40 = vst.msk [vmem:[#allocation0] sm:$0x1] %vm39, %v38
    %s41 = scalar_lea.vmem %s0, 7
    %v42 = vld [vmem:[%s41] sm:$0x1]
    %43 = vrot.lane.b32.xlu0 %v42, 56
    %v44 = vpop.permute.xlu0 %43
    %vm45 = vcmask 523712
    %46 = vst.msk [vmem:[#allocation0] sm:$0x1] %vm45, %v44
    %s47 = scalar_lea.vmem %s0, 6
    %v48 = vld [vmem:[%s47] sm:$0x1]
    %49 = vrot.lane.b32.xlu0 %v48, 48
    %v50 = vpop.permute.xlu0 %49
    %vm51 = vcmask 458112
    %52 = vst.msk [vmem:[#allocation0] sm:$0x1] %vm51, %v50
    %s53 = scalar_lea.vmem %s0, 5
    %v54 = vld [vmem:[%s53] sm:$0x1]
    %55 = vrot.lane.b32.xlu0 %v54, 40
    %v56 = vpop.permute.xlu0 %55
    %vm57 = vcmask 392512
    %58 = vst.msk [vmem:[#allocation0] sm:$0x1] %vm57, %v56
    %s59 = scalar_lea.vmem %s0, 4
    %v60 = vld [vmem:[%s59] sm:$0x1]
    %61 = vrot.lane.b32.xlu0 %v60, 32
    %v62 = vpop.permute.xlu0 %61
    %vm63 = vcmask 326912
    %64 = vst.msk [vmem:[#allocation0] sm:$0x1] %vm63, %v62
    %s65 = scalar_lea.vmem %s0, 3
    %v66 = vld [vmem:[%s65] sm:$0x1]
    %67 = vrot.lane.b32.xlu0 %v66, 24
    %v68 = vpop.permute.xlu0 %67
    %vm69 = vcmask 261312
    %70 = vst.msk [vmem:[#allocation0] sm:$0x1] %vm69, %v68
    %s71 = scalar_lea.vmem %s0, 2
    %v72 = vld [vmem:[%s71] sm:$0x1]
    %73 = vrot.lane.b32.xlu0 %v72, 16
    %v74 = vpop.permute.xlu0 %73
    %vm75 = vcmask 195712
    %76 = vst.msk [vmem:[#allocation0] sm:$0x1] %vm75, %v74
    %s77 = scalar_lea.vmem %s0, 1
    %v78 = vld [vmem:[%s77] sm:$0x1]
    %79 = vrot.lane.b32.xlu0 %v78, 8
    %v80 = vpop.permute.xlu0 %79
    %vm81 = vcmask 130112
    %82 = vst.msk [vmem:[#allocation0] sm:$0x1] %vm81, %v80
    %s84 = sshll.u32 1, 1
    %s85 = ssub.s32 %s84, 1
    %v87 = vld [vmem:[#allocation0] sm:%s85]
    %s88 = sshll.u32 1, 1
    %s89 = ssub.s32 %s88, 1
    %90 = vst [vmem:[%s1] sm:%s89] %v87

// kernel: tile.16
$region0: #{tile.16}
  #allocation0 [shape = 's32[1]{0}', space=sflag, size = 0x4, scoped, tag = 'scoped memory for tile.16']
  %s0 = inlined_call_operand.vmem [shape: f32[16], index: 0, kind: input, shape index: {}]
  %s1 = inlined_call_operand.vmem [shape: f32[5,16], index: 1, kind: output, shape index: {}]
  // Predicated region
  $region2: #{tile.16} parent=0 // pred_check
    _
  $region3: #{tile.16} parent=0 // pred_check_branch
    %3 = sbr.rel (0) target = $region5
  $region4: #{tile.16} parent=0 // pred_region
    _
  $region5: #{tile.16} parent=0 // pred_fallthru
    _
  %v4 = vld [vmem:[%s0] ss:$0 sm:$0xff]
  %5 = vst [vmem:[%s1] sm:$0xff] %v4

// kernel: tile.17
$region0: #{tile.17}
  %s0 = inlined_call_operand.vmem [shape: f32[5,16], index: 0, kind: input, shape index: {}]
  %s1 = inlined_call_operand.vmem [shape: f32[1,80], index: 1, kind: output, shape index: {}]
  $region1: #{tile.17} parent=0
    #allocation0 [shape = 'u8[4096]{0}', space=vmem, size = 0x1000, scoped, tag = 'scoped mem for output reshape']
    %v2 = vld [vmem:[%s0] sm:$0x1]
    %vm3 = vcmask 130048
    %4 = vst.msk [vmem:[#allocation0] sm:$0x1] %vm3, %v2
    %s5 = scalar_lea.vmem %s0, 4
    %v6 = vld [vmem:[%s5] sm:$0x1]
    %7 = vrot.lane.b32.xlu0 %v6, 64
    %v8 = vpop.permute.xlu0 %7
    %vm9 = vcmask 654848
    %10 = vst.msk [vmem:[#allocation0] sm:$0x1] %vm9, %v8
    %s11 = scalar_lea.vmem %s0, 3
    %v12 = vld [vmem:[%s11] sm:$0x1]
    %13 = vrot.lane.b32.xlu0 %v12, 48
    %v14 = vpop.permute.xlu0 %13
    %vm15 = vcmask 523648
    %16 = vst.msk [vmem:[#allocation0] sm:$0x1] %vm15, %v14
    %s17 = scalar_lea.vmem %s0, 2
    %v18 = vld [vmem:[%s17] sm:$0x1]
    %19 = vrot.lane.b32.xlu0 %v18, 32
    %v20 = vpop.permute.xlu0 %19
    %vm21 = vcmask 392448
    %22 = vst.msk [vmem:[#allocation0] sm:$0x1] %vm21, %v20
    %s23 = scalar_lea.vmem %s0, 1
    %v24 = vld [vmem:[%s23] sm:$0x1]
    %25 = vrot.lane.b32.xlu0 %v24, 16
    %v26 = vpop.permute.xlu0 %25
    %vm27 = vcmask 261248
    %28 = vst.msk [vmem:[#allocation0] sm:$0x1] %vm27, %v26
    %s30 = sshll.u32 1, 1
    %s31 = ssub.s32 %s30, 1
    %v33 = vld [vmem:[#allocation0] sm:%s31]
    %s34 = sshll.u32 1, 1
    %s35 = ssub.s32 %s34, 1
    %36 = vst [vmem:[%s1] sm:%s35] %v33

// kernel: cnn_forward.1
$region0: #{cnn_forward.1}
  #allocation0 [shape = 'u32[]', space=smem, size = 0x4, offset = 0x4, fixed_abs, tag = 'smem constant byte address 0x4 - core index']
  #allocation1 [shape = 'u32[144,128]{1,0:T(1,128)}', space=vmem, size = 0x12000, scoped, tag = 'internal scratch']
  %s0 = inlined_call_operand.vmem [shape: f32[8,4,9,36], index: 0, kind: input, shape index: {}]
  %s1 = inlined_call_operand.vmem [shape: f32[5,2,36,112], index: 1, kind: input, shape index: {}]
  %s2 = inlined_call_operand.hbm [shape: f32[5,2,112,80], index: 2, kind: input, shape index: {}]
  %s3 = inlined_call_operand.vmem [shape: f32[1,112], index: 3, kind: input, shape index: {}]
  %s4 = inlined_call_operand.vmem [shape: f32[1,80], index: 4, kind: input, shape index: {}]
  %s5 = inlined_call_operand.vmem [shape: f32[5,80,128], index: 5, kind: input, shape index: {}]
  %s6 = inlined_call_operand.vmem [shape: f32[1,128], index: 6, kind: input, shape index: {}]
  %s7 = inlined_call_operand.vmem [shape: f32[128,128], index: 7, kind: input, shape index: {}]
  %s8 = inlined_call_operand.vmem [shape: f32[1,128], index: 8, kind: input, shape index: {}]
  %s9 = inlined_call_operand.hbm [shape: f32[128,128], index: 9, kind: input, shape index: {}]
  %s10 = inlined_call_operand.vmem [shape: f32[1,128], index: 10, kind: input, shape index: {}]
  %s11 = inlined_call_operand.vmem [shape: f32[8,128], index: 11, kind: output, shape index: {}]
  %s12 = sld [smem:[#allocation0]]
  $region62: #{cnn_forward.1} parent=0
    _
  %s14 = ssub.s32 1, %s12
  %s15 = scalar_select 0, %s14, %s12
  $region1: #{cnn_forward.1} parent=0
    #allocation2 [shape = 'u8[573440]{0}', space=vmem, size = 0x8c000, scoped, tag = 'input window, operand 2, single buffered']
    #allocation3 [shape = 's32[1]{0}', space=sflag, size = 0x4, scoped, tag = 'scoped memory for cnn_forward.1']
    #allocation4 [shape = 'u8[65536]{0}', space=vmem, size = 0x10000, scoped, tag = 'input window, operand 9, single buffered']
    #allocation5 [shape = 's32[1]{0}', space=sflag, size = 0x4, scoped, tag = 'scoped memory for cnn_forward.1']
    %16 = vsyncpa [#allocation3], 0
    %17 = vsyncpa [#allocation5], 0
    // Predicated region
    $region2: #{cnn_forward.1} parent=1 // pred_check
      _
    $region3: #{cnn_forward.1} parent=1 // pred_check_branch
      %19 = sbr.rel (0) target = $region5
    $region4: #{cnn_forward.1} parent=1 // pred_region
      _
    $region5: #{cnn_forward.1} parent=1 // pred_fallthru
      _
    // Predicated region
    $region6: #{cnn_forward.1} parent=1 // pred_check
      _
    $region7: #{cnn_forward.1} parent=1 // pred_check_branch
      %21 = sbr.rel (0) target = $region9
    $region8: #{cnn_forward.1} parent=1 // pred_region
      _
    $region9: #{cnn_forward.1} parent=1 // pred_fallthru
      _
    // Predicated region
    $region10: #{cnn_forward.1} parent=1 // pred_check
      _
    $region11: #{cnn_forward.1} parent=1 // pred_check_branch
      %23 = sbr.rel (0) target = $region13
    $region12: #{cnn_forward.1} parent=1 // pred_region
      %s25 = ssub.s32 17920, 17920
      %26 = vsyncadd [#allocation3], %s25
      %s27 = sshll.u32 [#allocation2], 4
      %s28 = int_to_ptr.vmem [resolvable:$true] %s27
      %33 = dma.hbm_to_vmem [thread:$0]  %s2, 17920, %s28, [#allocation3], 128, 128, 8
    $region13: #{cnn_forward.1} parent=1 // pred_fallthru
      _
    // Predicated region
    $region14: #{cnn_forward.1} parent=1 // pred_check
      _
    $region15: #{cnn_forward.1} parent=1 // pred_check_branch
      %35 = sbr.rel (0) target = $region17
    $region16: #{cnn_forward.1} parent=1 // pred_region
      _
    $region17: #{cnn_forward.1} parent=1 // pred_fallthru
      _
    // Predicated region
    $region18: #{cnn_forward.1} parent=1 // pred_check
      _
    $region19: #{cnn_forward.1} parent=1 // pred_check_branch
      %37 = sbr.rel (0) target = $region21
    $region20: #{cnn_forward.1} parent=1 // pred_region
      _
    $region21: #{cnn_forward.1} parent=1 // pred_fallthru
      _
    // Predicated region
    $region22: #{cnn_forward.1} parent=1 // pred_check
      _
    $region23: #{cnn_forward.1} parent=1 // pred_check_branch
      %39 = sbr.rel (0) target = $region25
    $region24: #{cnn_forward.1} parent=1 // pred_region
      _
    $region25: #{cnn_forward.1} parent=1 // pred_fallthru
      _
    // Predicated region
    $region26: #{cnn_forward.1} parent=1 // pred_check
      _
    $region27: #{cnn_forward.1} parent=1 // pred_check_branch
      %41 = sbr.rel (0) target = $region29
    $region28: #{cnn_forward.1} parent=1 // pred_region
      _
    $region29: #{cnn_forward.1} parent=1 // pred_fallthru
      _
    // Predicated region
    $region30: #{cnn_forward.1} parent=1 // pred_check
      _
    $region31: #{cnn_forward.1} parent=1 // pred_check_branch
      %43 = sbr.rel (0) target = $region33
    $region32: #{cnn_forward.1} parent=1 // pred_region
      _
    $region33: #{cnn_forward.1} parent=1 // pred_fallthru
      _
    // Predicated region
    $region34: #{cnn_forward.1} parent=1 // pred_check
      _
    $region35: #{cnn_forward.1} parent=1 // pred_check_branch
      %45 = sbr.rel (0) target = $region37
    $region36: #{cnn_forward.1} parent=1 // pred_region
      _
    $region37: #{cnn_forward.1} parent=1 // pred_fallthru
      _
    // Predicated region
    $region38: #{cnn_forward.1} parent=1 // pred_check
      _
    $region39: #{cnn_forward.1} parent=1 // pred_check_branch
      %47 = sbr.rel (0) target = $region41
    $region40: #{cnn_forward.1} parent=1 // pred_region
      %s49 = ssub.s32 2048, 2048
      %50 = vsyncadd [#allocation5], %s49
      %s51 = sshll.u32 [#allocation4], 4
      %s52 = int_to_ptr.vmem [resolvable:$true] %s51
      %57 = dma.hbm_to_vmem [thread:$0]  %s9, 2048, %s52, [#allocation5], 128, 128, 8
    $region41: #{cnn_forward.1} parent=1 // pred_fallthru
      _
    // Predicated region
    $region42: #{cnn_forward.1} parent=1 // pred_check
      _
    $region43: #{cnn_forward.1} parent=1 // pred_check_branch
      %59 = sbr.rel (0) target = $region45
    $region44: #{cnn_forward.1} parent=1 // pred_region
      _
    $region45: #{cnn_forward.1} parent=1 // pred_fallthru
      _
    // Predicated region
    $region46: #{cnn_forward.1} parent=1 // pred_check
      _
    $region47: #{cnn_forward.1} parent=1 // pred_check_branch
      %61 = sbr.rel (0) target = $region49
    $region48: #{cnn_forward.1} parent=1 // pred_region
      %62 = dma.done [#allocation3], 17920
    $region49: #{cnn_forward.1} parent=1 // pred_fallthru
      _
    // Predicated region
    $region50: #{cnn_forward.1} parent=1 // pred_check
      _
    $region51: #{cnn_forward.1} parent=1 // pred_check_branch
      %64 = sbr.rel (0) target = $region53
    $region52: #{cnn_forward.1} parent=1 // pred_region
      %65 = dma.done [#allocation5], 2048
    $region53: #{cnn_forward.1} parent=1 // pred_fallthru
      _
    %v66 = vld [vmem:[%s0] sm:$0xff]
    %v67 = vld [vmem:[%s0 + $0x8] sm:$0x1]
    %v68 = vld [vmem:[%s0 + $0x10] sm:$0xff]
    %v69 = vld [vmem:[%s0 + $0x18] sm:$0x1]
    %v70 = vld [vmem:[%s0 + $0x20] sm:$0xff]
    %v71 = vld [vmem:[%s0 + $0x28] sm:$0x1]
    %v72 = vld [vmem:[%s0 + $0x30] sm:$0xff]
    %v73 = vld [vmem:[%s0 + $0x38] sm:$0x1]
    %v74 = vld [vmem:[%s0 + $0x40] sm:$0xff]
    %v75 = vld [vmem:[%s0 + $0x48] sm:$0x1]
    %v76 = vld [vmem:[%s0 + $0x50] sm:$0xff]
    %v77 = vld [vmem:[%s0 + $0x58] sm:$0x1]
    %v78 = vld [vmem:[%s0 + $0x60] sm:$0xff]
    %v79 = vld [vmem:[%s0 + $0x68] sm:$0x1]
    %v80 = vld [vmem:[%s0 + $0x70] sm:$0xff]
    %v81 = vld [vmem:[%s0 + $0x78] sm:$0x1]
    %v82 = vld [vmem:[%s0 + $0x80] sm:$0xff]
    %v83 = vld [vmem:[%s0 + $0x88] sm:$0x1]
    %v84 = vld [vmem:[%s0 + $0x90] sm:$0xff]
    %v85 = vld [vmem:[%s0 + $0x98] sm:$0x1]
    %v86 = vld [vmem:[%s0 + $0xa0] sm:$0xff]
    %v87 = vld [vmem:[%s0 + $0xa8] sm:$0x1]
    %v88 = vld [vmem:[%s0 + $0xb0] sm:$0xff]
    %v89 = vld [vmem:[%s0 + $0xb8] sm:$0x1]
    %v90 = vld [vmem:[%s0 + $0xc0] sm:$0xff]
    %v91 = vld [vmem:[%s0 + $0xc8] sm:$0x1]
    %v92 = vld [vmem:[%s0 + $0xd0] sm:$0xff]
    %v93 = vld [vmem:[%s0 + $0xd8] sm:$0x1]
    %v94 = vld [vmem:[%s0 + $0xe0] sm:$0xff]
    %v95 = vld [vmem:[%s0 + $0xe8] sm:$0x1]
    %v96 = vld [vmem:[%s0 + $0xf0] sm:$0xff]
    %v97 = vld [vmem:[%s0 + $0xf8] sm:$0x1]
    %v98 = vld [vmem:[%s0 + $0x100] sm:$0xff]
    %v99 = vld [vmem:[%s0 + $0x108] sm:$0x1]
    %v100 = vld [vmem:[%s0 + $0x110] sm:$0xff]
    %v101 = vld [vmem:[%s0 + $0x118] sm:$0x1]
    %v102 = vld [vmem:[%s0 + $0x120] sm:$0xff]
    %v103 = vld [vmem:[%s0 + $0x128] sm:$0x1]
    %v104 = vld [vmem:[%s0 + $0x130] sm:$0xff]
    %v105 = vld [vmem:[%s0 + $0x138] sm:$0x1]
    %v106 = vld [vmem:[%s0 + $0x140] sm:$0xff]
    %v107 = vld [vmem:[%s0 + $0x148] sm:$0x1]
    %v108 = vld [vmem:[%s0 + $0x150] sm:$0xff]
    %v109 = vld [vmem:[%s0 + $0x158] sm:$0x1]
    %v110 = vld [vmem:[%s0 + $0x160] sm:$0xff]
    %v111 = vld [vmem:[%s0 + $0x168] sm:$0x1]
    %v112 = vld [vmem:[%s0 + $0x170] sm:$0xff]
    %v113 = vld [vmem:[%s0 + $0x178] sm:$0x1]
    %v114 = vld [vmem:[%s0 + $0x180] sm:$0xff]
    %v115 = vld [vmem:[%s0 + $0x188] sm:$0x1]
    %v116 = vld [vmem:[%s0 + $0x190] sm:$0xff]
    %v117 = vld [vmem:[%s0 + $0x198] sm:$0x1]
    %v118 = vld [vmem:[%s0 + $0x1a0] sm:$0xff]
    %v119 = vld [vmem:[%s0 + $0x1a8] sm:$0x1]
    %v120 = vld [vmem:[%s0 + $0x1b0] sm:$0xff]
    %v121 = vld [vmem:[%s0 + $0x1b8] sm:$0x1]
    %v122 = vld [vmem:[%s0 + $0x1c0] sm:$0xff]
    %v123 = vld [vmem:[%s0 + $0x1c8] sm:$0x1]
    %v124 = vld [vmem:[%s0 + $0x1d0] sm:$0xff]
    %v125 = vld [vmem:[%s0 + $0x1d8] sm:$0x1]
    %v126 = vld [vmem:[%s0 + $0x1e0] sm:$0xff]
    %v127 = vld [vmem:[%s0 + $0x1e8] sm:$0x1]
    %v128 = vld [vmem:[%s0 + $0x1f0] sm:$0xff]
    %v129 = vld [vmem:[%s0 + $0x1f8] sm:$0x1]
    %v130 = vld [vmem:[%s1] sm:$0xff]
    %v131 = vld [vmem:[%s1 + $0x8] sm:$0xff]
    %v132 = vld [vmem:[%s1 + $0x10] sm:$0xff]
    %v133 = vld [vmem:[%s1 + $0x18] sm:$0xff]
    %v134 = vld [vmem:[%s1 + $0x20] sm:$0xf]
    %s135 = scalar_lea.vmem %s1, 40
    %v136 = vld [vmem:[%s135] sm:$0xff]
    %v137 = vld [vmem:[%s135 + $0x8] sm:$0xff]
    %v138 = vld [vmem:[%s135 + $0x10] sm:$0xff]
    %v139 = vld [vmem:[%s135 + $0x18] sm:$0xff]
    %v140 = vld [vmem:[%s135 + $0x20] sm:$0xf]
    %s141 = scalar_lea.vmem %s1, 80
    %v142 = vld [vmem:[%s141] sm:$0xff]
    %v143 = vld [vmem:[%s141 + $0x8] sm:$0xff]
    %v144 = vld [vmem:[%s141 + $0x10] sm:$0xff]
    %v145 = vld [vmem:[%s141 + $0x18] sm:$0xff]
    %v146 = vld [vmem:[%s141 + $0x20] sm:$0xf]
    %vm147 = vcmask 293888
    %v149 = vsel %vm147, %v68, 0
    %v152 = vsel %vm147, %v76, 0
    %v155 = vsel %vm147, %v84, 0
    %v158 = vsel %vm147, %v92, 0
    %v161 = vsel %vm147, %v100, 0
    %v164 = vsel %vm147, %v108, 0
    %v167 = vsel %vm147, %v116, 0
    %v170 = vsel %vm147, %v124, 0
    %vm172 = vcmask 1043456
    %v174 = vsel %vm172, %v146, 0
    %176 = vmatprep.subr.mxu0 0.0
    %177 = vmatpush1.msra.mxu0 0.0
    %178 = vmatprep.subr.mxu0 0.0
    %179 = vmatpush1.msra.mxu0 0.0
    %180 = vmatprep.subr.mxu0 0.0
    %181 = vmatpush1.msra.mxu0 0.0
    %182 = vmatprep.subr.mxu0 0.0
    %183 = vmatpush1.msra.mxu0 0.0
    %184 = vmatprep.subr.mxu0 0.0
    %185 = vmatpush1.msra.mxu0 0.0
    %186 = vmatprep.subr.mxu0 0.0
    %187 = vmatpush1.msra.mxu0 0.0
    %188 = vmatprep.subr.mxu0 0.0
    %189 = vmatpush1.msra.mxu0 0.0
    %190 = vmatprep.subr.mxu0 0.0
    %191 = vmatpush1.msra.mxu0 0.0
    %192 = vmatprep.subr.mxu0 0.0
    %193 = vmatpush1.msra.mxu0 0.0
    %194 = vmatprep.subr.mxu0 0.0
    %195 = vmatpush1.msra.mxu0 0.0
    %196 = vmatprep.subr.mxu0 0.0
    %197 = vmatpush1.msra.mxu0 0.0
    %198 = vmatprep.subr.mxu0 0.0
    %199 = vmatpush1.msra.mxu0 %v174
    %200 = vmatprep.subr.mxu0 0.0
    %201 = vmatpush1.msra.mxu0 %v145
    %202 = vmatprep.subr.mxu0 0.0
    %203 = vmatpush1.msra.mxu0 %v144
    %204 = vmatprep.subr.mxu0 0.0
    %205 = vmatpush1.msra.mxu0 %v143
    %206 = vmatprep.subr.mxu0 0.0
    %207 = vmatpush1.msra.mxu0 %v142
    %208 = vmatprep.subr.mxu0 0.0
    %209 = vmatpush2.msra.mxu0 0.0
    %210 = vmatprep.subr.mxu0 0.0
    %211 = vmatpush2.msra.mxu0 0.0
    %212 = vmatprep.subr.mxu0 0.0
    %213 = vmatpush2.msra.mxu0 0.0
    %214 = vmatprep.subr.mxu0 0.0
    %215 = vmatpush2.msra.mxu0 0.0
    %216 = vmatprep.subr.mxu0 0.0
    %217 = vmatpush2.msra.mxu0 0.0
    %218 = vmatprep.subr.mxu0 0.0
    %219 = vmatpush2.msra.mxu0 0.0
    %220 = vmatprep.subr.mxu0 0.0
    %221 = vmatpush2.msra.mxu0 0.0
    %222 = vmatprep.subr.mxu0 0.0
    %223 = vmatpush2.msra.mxu0 0.0
    %224 = vmatprep.subr.mxu0 0.0
    %225 = vmatpush2.msra.mxu0 0.0
    %226 = vmatprep.subr.mxu0 0.0
    %227 = vmatpush2.msra.mxu0 0.0
    %228 = vmatprep.subr.mxu0 0.0
    %229 = vmatpush2.msra.mxu0 0.0
    %230 = vmatprep.subr.mxu0 0.0
    %231 = vmatpush2.msra.mxu0 0.0
    %232 = vmatprep.subr.mxu0 0.0
    %233 = vmatpush2.msra.mxu0 0.0
    %234 = vmatprep.subr.mxu0 0.0
    %235 = vmatpush2.msra.mxu0 0.0
    %236 = vmatprep.subr.mxu0 0.0
    %237 = vmatpush2.msra.mxu0 0.0
    %238 = vmatprep.subr.mxu0 0.0
    %239 = vmatpush2.msra.mxu0 0.0
    %240 = vmatprep.mubr.f32.mxu0 0.0
    %241 = vmatmul.mubr.f32.gmra.mxu0 %v149
    %v242 = vpop.f32.mrf.mxu0
    %v243 = vadd.f32 0.0, %v242
    %v244 = vpop.f32.mrf.mxu0
    %245 = vmatprep.mubr.f32.mxu0 0.0
    %246 = vmatmul.mubr.f32.gmra.mxu0 %v152
    %v247 = vpop.f32.mrf.mxu0
    %v248 = vadd.f32 0.0, %v247
    %v249 = vpop.f32.mrf.mxu0
    %250 = vmatprep.mubr.f32.mxu0 0.0
    %251 = vmatmul.mubr.f32.gmra.mxu0 %v155
    %v252 = vpop.f32.mrf.mxu0
    %v253 = vadd.f32 0.0, %v252
    %v254 = vpop.f32.mrf.mxu0
    %255 = vmatprep.mubr.f32.mxu0 0.0
    %256 = vmatmul.mubr.f32.gmra.mxu0 %v158
    %v257 = vpop.f32.mrf.mxu0
    %v258 = vadd.f32 0.0, %v257
    %v259 = vpop.f32.mrf.mxu0
    %260 = vmatprep.mubr.f32.mxu0 0.0
    %261 = vmatmul.mubr.f32.gmra.mxu0 %v161
    %v262 = vpop.f32.mrf.mxu0
    %v263 = vadd.f32 0.0, %v262
    %v264 = vpop.f32.mrf.mxu0
    %265 = vmatprep.mubr.f32.mxu0 0.0
    %266 = vmatmul.mubr.f32.gmra.mxu0 %v164
    %v267 = vpop.f32.mrf.mxu0
    %v268 = vadd.f32 0.0, %v267
    %v269 = vpop.f32.mrf.mxu0
    %270 = vmatprep.mubr.f32.mxu0 0.0
    %271 = vmatmul.mubr.f32.gmra.mxu0 %v167
    %v272 = vpop.f32.mrf.mxu0
    %v273 = vadd.f32 0.0, %v272
    %v274 = vpop.f32.mrf.mxu0
    %275 = vmatprep.mubr.f32.mxu0 0.0
    %276 = vmatmul.mubr.f32.gmra.mxu0 %v170
    %v277 = vpop.f32.mrf.mxu0
    %v278 = vadd.f32 0.0, %v277
    %v279 = vpop.f32.mrf.mxu0
    %280 = vdwg.mxu0
    %v282 = vsel %vm147, %v66, 0
    %v285 = vsel %vm147, %v74, 0
    %v288 = vsel %vm147, %v82, 0
    %v291 = vsel %vm147, %v90, 0
    %v294 = vsel %vm147, %v98, 0
    %v297 = vsel %vm147, %v106, 0
    %v300 = vsel %vm147, %v114, 0
    %v303 = vsel %vm147, %v122, 0
    %v306 = vsel %vm172, %v134, 0
    %308 = vmatprep.subr.mxu0 0.0
    %309 = vmatpush1.msra.mxu0 0.0
    %310 = vmatprep.subr.mxu0 0.0
    %311 = vmatpush1.msra.mxu0 0.0
    %312 = vmatprep.subr.mxu0 0.0
    %313 = vmatpush1.msra.mxu0 0.0
    %314 = vmatprep.subr.mxu0 0.0
    %315 = vmatpush1.msra.mxu0 0.0
    %316 = vmatprep.subr.mxu0 0.0
    %317 = vmatpush1.msra.mxu0 0.0
    %318 = vmatprep.subr.mxu0 0.0
    %319 = vmatpush1.msra.mxu0 0.0
    %320 = vmatprep.subr.mxu0 0.0
    %321 = vmatpush1.msra.mxu0 0.0
    %322 = vmatprep.subr.mxu0 0.0
    %323 = vmatpush1.msra.mxu0 0.0
    %324 = vmatprep.subr.mxu0 0.0
    %325 = vmatpush1.msra.mxu0 0.0
    %326 = vmatprep.subr.mxu0 0.0
    %327 = vmatpush1.msra.mxu0 0.0
    %328 = vmatprep.subr.mxu0 0.0
    %329 = vmatpush1.msra.mxu0 0.0
    %330 = vmatprep.subr.mxu0 0.0
    %331 = vmatpush1.msra.mxu0 %v306
    %332 = vmatprep.subr.mxu0 0.0
    %333 = vmatpush1.msra.mxu0 %v133
    %334 = vmatprep.subr.mxu0 0.0
    %335 = vmatpush1.msra.mxu0 %v132
    %336 = vmatprep.subr.mxu0 0.0
    %337 = vmatpush1.msra.mxu0 %v131
    %338 = vmatprep.subr.mxu0 0.0
    %339 = vmatpush1.msra.mxu0 %v130
    %340 = vmatprep.subr.mxu0 0.0
    %341 = vmatpush2.msra.mxu0 0.0
    %342 = vmatprep.subr.mxu0 0.0
    %343 = vmatpush2.msra.mxu0 0.0
    %344 = vmatprep.subr.mxu0 0.0
    %345 = vmatpush2.msra.mxu0 0.0
    %346 = vmatprep.subr.mxu0 0.0
    %347 = vmatpush2.msra.mxu0 0.0
    %348 = vmatprep.subr.mxu0 0.0
    %349 = vmatpush2.msra.mxu0 0.0
    %350 = vmatprep.subr.mxu0 0.0
    %351 = vmatpush2.msra.mxu0 0.0
    %352 = vmatprep.subr.mxu0 0.0
    %353 = vmatpush2.msra.mxu0 0.0
    %354 = vmatprep.subr.mxu0 0.0
    %355 = vmatpush2.msra.mxu0 0.0
    %356 = vmatprep.subr.mxu0 0.0
    %357 = vmatpush2.msra.mxu0 0.0
    %358 = vmatprep.subr.mxu0 0.0
    %359 = vmatpush2.msra.mxu0 0.0
    %360 = vmatprep.subr.mxu0 0.0
    %361 = vmatpush2.msra.mxu0 0.0
    %362 = vmatprep.subr.mxu0 0.0
    %363 = vmatpush2.msra.mxu0 0.0
    %364 = vmatprep.subr.mxu0 0.0
    %365 = vmatpush2.msra.mxu0 0.0
    %366 = vmatprep.subr.mxu0 0.0
    %367 = vmatpush2.msra.mxu0 0.0
    %368 = vmatprep.subr.mxu0 0.0
    %369 = vmatpush2.msra.mxu0 0.0
    %370 = vmatprep.subr.mxu0 0.0
    %371 = vmatpush2.msra.mxu0 0.0
    %372 = vmatprep.mubr.f32.mxu0 0.0
    %373 = vmatmul.mubr.f32.gmra.mxu0 %v282
    %v374 = vpop.f32.mrf.mxu0
    %v375 = vadd.f32 %v243, %v374
    %v376 = vpop.f32.mrf.mxu0
    %377 = vmatprep.mubr.f32.mxu0 0.0
    %378 = vmatmul.mubr.f32.gmra.mxu0 %v285
    %v379 = vpop.f32.mrf.mxu0
    %v380 = vadd.f32 %v248, %v379
    %v381 = vpop.f32.mrf.mxu0
    %382 = vmatprep.mubr.f32.mxu0 0.0
    %383 = vmatmul.mubr.f32.gmra.mxu0 %v288
    %v384 = vpop.f32.mrf.mxu0
    %v385 = vadd.f32 %v253, %v384
    %v386 = vpop.f32.mrf.mxu0
    %387 = vmatprep.mubr.f32.mxu0 0.0
    %388 = vmatmul.mubr.f32.gmra.mxu0 %v291
    %v389 = vpop.f32.mrf.mxu0
    %v390 = vadd.f32 %v258, %v389
    %v391 = vpop.f32.mrf.mxu0
    %392 = vmatprep.mubr.f32.mxu0 0.0
    %393 = vmatmul.mubr.f32.gmra.mxu0 %v294
    %v394 = vpop.f32.mrf.mxu0
    %v395 = vadd.f32 %v263, %v394
    %v396 = vpop.f32.mrf.mxu0
    %397 = vmatprep.mubr.f32.mxu0 0.0
    %398 = vmatmul.mubr.f32.gmra.mxu0 %v297
    %v399 = vpop.f32.mrf.mxu0
    %v400 = vadd.f32 %v268, %v399
    %v401 = vpop.f32.mrf.mxu0
    %402 = vmatprep.mubr.f32.mxu0 0.0
    %403 = vmatmul.mubr.f32.gmra.mxu0 %v300
    %v404 = vpop.f32.mrf.mxu0
    %v405 = vadd.f32 %v273, %v404
    %v406 = vpop.f32.mrf.mxu0
    %407 = vmatprep.mubr.f32.mxu0 0.0
    %408 = vmatmul.mubr.f32.gmra.mxu0 %v303
    %v409 = vpop.f32.mrf.mxu0
    %v410 = vadd.f32 %v278, %v409
    %v411 = vpop.f32.mrf.mxu0
    %412 = vdwg.mxu0
    %s413 = scalar_lea.vmem %s1, 120
    %v414 = vld [vmem:[%s413] sm:$0xff]
    %v415 = vld [vmem:[%s413 + $0x8] sm:$0xff]
    %v416 = vld [vmem:[%s413 + $0x10] sm:$0xff]
    %v417 = vld [vmem:[%s413 + $0x18] sm:$0xff]
    %v418 = vld [vmem:[%s413 + $0x20] sm:$0xf]
    %v420 = vsel %vm172, %v418, 0
    %422 = vmatprep.subr.mxu0 0.0
    %423 = vmatpush1.msra.mxu0 0.0
    %424 = vmatprep.subr.mxu0 0.0
    %425 = vmatpush1.msra.mxu0 0.0
    %426 = vmatprep.subr.mxu0 0.0
    %427 = vmatpush1.msra.mxu0 0.0
    %428 = vmatprep.subr.mxu0 0.0
    %429 = vmatpush1.msra.mxu0 0.0
    %430 = vmatprep.subr.mxu0 0.0
    %431 = vmatpush1.msra.mxu0 0.0
    %432 = vmatprep.subr.mxu0 0.0
    %433 = vmatpush1.msra.mxu0 0.0
    %434 = vmatprep.subr.mxu0 0.0
    %435 = vmatpush1.msra.mxu0 0.0
    %436 = vmatprep.subr.mxu0 0.0
    %437 = vmatpush1.msra.mxu0 0.0
    %438 = vmatprep.subr.mxu0 0.0
    %439 = vmatpush1.msra.mxu0 0.0
    %440 = vmatprep.subr.mxu0 0.0
    %441 = vmatpush1.msra.mxu0 0.0
    %442 = vmatprep.subr.mxu0 0.0
    %443 = vmatpush1.msra.mxu0 0.0
    %444 = vmatprep.subr.mxu0 0.0
    %445 = vmatpush1.msra.mxu0 %v420
    %446 = vmatprep.subr.mxu0 0.0
    %447 = vmatpush1.msra.mxu0 %v417
    %448 = vmatprep.subr.mxu0 0.0
    %449 = vmatpush1.msra.mxu0 %v416
    %450 = vmatprep.subr.mxu0 0.0
    %451 = vmatpush1.msra.mxu0 %v415
    %452 = vmatprep.subr.mxu0 0.0
    %453 = vmatpush1.msra.mxu0 %v414
    %454 = vmatprep.subr.mxu0 0.0
    %455 = vmatpush2.msra.mxu0 0.0
    %456 = vmatprep.subr.mxu0 0.0
    %457 = vmatpush2.msra.mxu0 0.0
    %458 = vmatprep.subr.mxu0 0.0
    %459 = vmatpush2.msra.mxu0 0.0
    %460 = vmatprep.subr.mxu0 0.0
    %461 = vmatpush2.msra.mxu0 0.0
    %462 = vmatprep.subr.mxu0 0.0
    %463 = vmatpush2.msra.mxu0 0.0
    %464 = vmatprep.subr.mxu0 0.0
    %465 = vmatpush2.msra.mxu0 0.0
    %466 = vmatprep.subr.mxu0 0.0
    %467 = vmatpush2.msra.mxu0 0.0
    %468 = vmatprep.subr.mxu0 0.0
    %469 = vmatpush2.msra.mxu0 0.0
    %470 = vmatprep.subr.mxu0 0.0
    %471 = vmatpush2.msra.mxu0 0.0
    %472 = vmatprep.subr.mxu0 0.0
    %473 = vmatpush2.msra.mxu0 0.0
    %474 = vmatprep.subr.mxu0 0.0
    %475 = vmatpush2.msra.mxu0 0.0
    %476 = vmatprep.subr.mxu0 0.0
    %477 = vmatpush2.msra.mxu0 0.0
    %478 = vmatprep.subr.mxu0 0.0
    %479 = vmatpush2.msra.mxu0 0.0
    %480 = vmatprep.subr.mxu0 0.0
    %481 = vmatpush2.msra.mxu0 0.0
    %482 = vmatprep.subr.mxu0 0.0
    %483 = vmatpush2.msra.mxu0 0.0
    %484 = vmatprep.subr.mxu0 0.0
    %485 = vmatpush2.msra.mxu0 0.0
    %486 = vmatprep.mubr.f32.mxu0 0.0
    %487 = vmatmul.mubr.f32.gmra.mxu0 %v149
    %v488 = vpop.f32.mrf.mxu0
    %v489 = vadd.f32 0.0, %v488
    %v490 = vpop.f32.mrf.mxu0
    %491 = vmatprep.mubr.f32.mxu0 0.0
    %492 = vmatmul.mubr.f32.gmra.mxu0 %v152
    %v493 = vpop.f32.mrf.mxu0
    %v494 = vadd.f32 0.0, %v493
    %v495 = vpop.f32.mrf.mxu0
    %496 = vmatprep.mubr.f32.mxu0 0.0
    %497 = vmatmul.mubr.f32.gmra.mxu0 %v155
    %v498 = vpop.f32.mrf.mxu0
    %v499 = vadd.f32 0.0, %v498
    %v500 = vpop.f32.mrf.mxu0
    %501 = vmatprep.mubr.f32.mxu0 0.0
    %502 = vmatmul.mubr.f32.gmra.mxu0 %v158
    %v503 = vpop.f32.mrf.mxu0
    %v504 = vadd.f32 0.0, %v503
    %v505 = vpop.f32.mrf.mxu0
    %506 = vmatprep.mubr.f32.mxu0 0.0
    %507 = vmatmul.mubr.f32.gmra.mxu0 %v161
    %v508 = vpop.f32.mrf.mxu0
    %v509 = vadd.f32 0.0, %v508
    %v510 = vpop.f32.mrf.mxu0
    %511 = vmatprep.mubr.f32.mxu0 0.0
    %512 = vmatmul.mubr.f32.gmra.mxu0 %v164
    %v513 = vpop.f32.mrf.mxu0
    %v514 = vadd.f32 0.0, %v513
    %v515 = vpop.f32.mrf.mxu0
    %516 = vmatprep.mubr.f32.mxu0 0.0
    %517 = vmatmul.mubr.f32.gmra.mxu0 %v167
    %v518 = vpop.f32.mrf.mxu0
    %v519 = vadd.f32 0.0, %v518
    %v520 = vpop.f32.mrf.mxu0
    %521 = vmatprep.mubr.f32.mxu0 0.0
    %522 = vmatmul.mubr.f32.gmra.mxu0 %v170
    %v523 = vpop.f32.mrf.mxu0
    %v524 = vadd.f32 0.0, %v523
    %v525 = vpop.f32.mrf.mxu0
    %526 = vdwg.mxu0
    %v528 = vsel %vm172, %v140, 0
    %530 = vmatprep.subr.mxu0 0.0
    %531 = vmatpush1.msra.mxu0 0.0
    %532 = vmatprep.subr.mxu0 0.0
    %533 = vmatpush1.msra.mxu0 0.0
    %534 = vmatprep.subr.mxu0 0.0
    %535 = vmatpush1.msra.mxu0 0.0
    %536 = vmatprep.subr.mxu0 0.0
    %537 = vmatpush1.msra.mxu0 0.0
    %538 = vmatprep.subr.mxu0 0.0
    %539 = vmatpush1.msra.mxu0 0.0
    %540 = vmatprep.subr.mxu0 0.0
    %541 = vmatpush1.msra.mxu0 0.0
    %542 = vmatprep.subr.mxu0 0.0
    %543 = vmatpush1.msra.mxu0 0.0
    %544 = vmatprep.subr.mxu0 0.0
    %545 = vmatpush1.msra.mxu0 0.0
    %546 = vmatprep.subr.mxu0 0.0
    %547 = vmatpush1.msra.mxu0 0.0
    %548 = vmatprep.subr.mxu0 0.0
    %549 = vmatpush1.msra.mxu0 0.0
    %550 = vmatprep.subr.mxu0 0.0
    %551 = vmatpush1.msra.mxu0 0.0
    %552 = vmatprep.subr.mxu0 0.0
    %553 = vmatpush1.msra.mxu0 %v528
    %554 = vmatprep.subr.mxu0 0.0
    %555 = vmatpush1.msra.mxu0 %v139
    %556 = vmatprep.subr.mxu0 0.0
    %557 = vmatpush1.msra.mxu0 %v138
    %558 = vmatprep.subr.mxu0 0.0
    %559 = vmatpush1.msra.mxu0 %v137
    %560 = vmatprep.subr.mxu0 0.0
    %561 = vmatpush1.msra.mxu0 %v136
    %562 = vmatprep.subr.mxu0 0.0
    %563 = vmatpush2.msra.mxu0 0.0
    %564 = vmatprep.subr.mxu0 0.0
    %565 = vmatpush2.msra.mxu0 0.0
    %566 = vmatprep.subr.mxu0 0.0
    %567 = vmatpush2.msra.mxu0 0.0
    %568 = vmatprep.subr.mxu0 0.0
    %569 = vmatpush2.msra.mxu0 0.0
    %570 = vmatprep.subr.mxu0 0.0
    %571 = vmatpush2.msra.mxu0 0.0
    %572 = vmatprep.subr.mxu0 0.0
    %573 = vmatpush2.msra.mxu0 0.0
    %574 = vmatprep.subr.mxu0 0.0
    %575 = vmatpush2.msra.mxu0 0.0
    %576 = vmatprep.subr.mxu0 0.0
    %577 = vmatpush2.msra.mxu0 0.0
    %578 = vmatprep.subr.mxu0 0.0
    %579 = vmatpush2.msra.mxu0 0.0
    %580 = vmatprep.subr.mxu0 0.0
    %581 = vmatpush2.msra.mxu0 0.0
    %582 = vmatprep.subr.mxu0 0.0
    %583 = vmatpush2.msra.mxu0 0.0
    %584 = vmatprep.subr.mxu0 0.0
    %585 = vmatpush2.msra.mxu0 0.0
    %586 = vmatprep.subr.mxu0 0.0
    %587 = vmatpush2.msra.mxu0 0.0
    %588 = vmatprep.subr.mxu0 0.0
    %589 = vmatpush2.msra.mxu0 0.0
    %590 = vmatprep.subr.mxu0 0.0
    %591 = vmatpush2.msra.mxu0 0.0
    %592 = vmatprep.subr.mxu0 0.0
    %593 = vmatpush2.msra.mxu0 0.0
    %594 = vmatprep.mubr.f32.mxu0 0.0
    %595 = vmatmul.mubr.f32.gmra.mxu0 %v282
    %v596 = vpop.f32.mrf.mxu0
    %v597 = vadd.f32 %v489, %v596
    %v598 = vpop.f32.mrf.mxu0
    %599 = vmatprep.mubr.f32.mxu0 0.0
    %600 = vmatmul.mubr.f32.gmra.mxu0 %v285
    %v601 = vpop.f32.mrf.mxu0
    %v602 = vadd.f32 %v494, %v601
    %v603 = vpop.f32.mrf.mxu0
    %604 = vmatprep.mubr.f32.mxu0 0.0
    %605 = vmatmul.mubr.f32.gmra.mxu0 %v288
    %v606 = vpop.f32.mrf.mxu0
    %v607 = vadd.f32 %v499, %v606
    %v608 = vpop.f32.mrf.mxu0
    %609 = vmatprep.mubr.f32.mxu0 0.0
    %610 = vmatmul.mubr.f32.gmra.mxu0 %v291
    %v611 = vpop.f32.mrf.mxu0
    %v612 = vadd.f32 %v504, %v611
    %v613 = vpop.f32.mrf.mxu0
    %614 = vmatprep.mubr.f32.mxu0 0.0
    %615 = vmatmul.mubr.f32.gmra.mxu0 %v294
    %v616 = vpop.f32.mrf.mxu0
    %v617 = vadd.f32 %v509, %v616
    %v618 = vpop.f32.mrf.mxu0
    %619 = vmatprep.mubr.f32.mxu0 0.0
    %620 = vmatmul.mubr.f32.gmra.mxu0 %v297
    %v621 = vpop.f32.mrf.mxu0
    %v622 = vadd.f32 %v514, %v621
    %v623 = vpop.f32.mrf.mxu0
    %624 = vmatprep.mubr.f32.mxu0 0.0
    %625 = vmatmul.mubr.f32.gmra.mxu0 %v300
    %v626 = vpop.f32.mrf.mxu0
    %v627 = vadd.f32 %v519, %v626
    %v628 = vpop.f32.mrf.mxu0
    %629 = vmatprep.mubr.f32.mxu0 0.0
    %630 = vmatmul.mubr.f32.gmra.mxu0 %v303
    %v631 = vpop.f32.mrf.mxu0
    %v632 = vadd.f32 %v524, %v631
    %v633 = vpop.f32.mrf.mxu0
    %634 = vdwg.mxu0
    %s635 = scalar_lea.vmem %s1, 160
    %v636 = vld [vmem:[%s635] sm:$0xff]
    %v637 = vld [vmem:[%s635 + $0x8] sm:$0xff]
    %v638 = vld [vmem:[%s635 + $0x10] sm:$0xff]
    %v639 = vld [vmem:[%s635 + $0x18] sm:$0xff]
    %v640 = vld [vmem:[%s635 + $0x20] sm:$0xf]
    %v642 = vsel %vm147, %v70, 0
    %v645 = vsel %vm147, %v78, 0
    %v648 = vsel %vm147, %v86, 0
    %v651 = vsel %vm147, %v94, 0
    %v654 = vsel %vm147, %v102, 0
    %v657 = vsel %vm147, %v110, 0
    %v660 = vsel %vm147, %v118, 0
    %v663 = vsel %vm147, %v126, 0
    %v666 = vsel %vm172, %v640, 0
    %668 = vmatprep.subr.mxu0 0.0
    %669 = vmatpush1.msra.mxu0 0.0
    %670 = vmatprep.subr.mxu0 0.0
    %671 = vmatpush1.msra.mxu0 0.0
    %672 = vmatprep.subr.mxu0 0.0
    %673 = vmatpush1.msra.mxu0 0.0
    %674 = vmatprep.subr.mxu0 0.0
    %675 = vmatpush1.msra.mxu0 0.0
    %676 = vmatprep.subr.mxu0 0.0
    %677 = vmatpush1.msra.mxu0 0.0
    %678 = vmatprep.subr.mxu0 0.0
    %679 = vmatpush1.msra.mxu0 0.0
    %680 = vmatprep.subr.mxu0 0.0
    %681 = vmatpush1.msra.mxu0 0.0
    %682 = vmatprep.subr.mxu0 0.0
    %683 = vmatpush1.msra.mxu0 0.0
    %684 = vmatprep.subr.mxu0 0.0
    %685 = vmatpush1.msra.mxu0 0.0
    %686 = vmatprep.subr.mxu0 0.0
    %687 = vmatpush1.msra.mxu0 0.0
    %688 = vmatprep.subr.mxu0 0.0
    %689 = vmatpush1.msra.mxu0 0.0
    %690 = vmatprep.subr.mxu0 0.0
    %691 = vmatpush1.msra.mxu0 %v666
    %692 = vmatprep.subr.mxu0 0.0
    %693 = vmatpush1.msra.mxu0 %v639
    %694 = vmatprep.subr.mxu0 0.0
    %695 = vmatpush1.msra.mxu0 %v638
    %696 = vmatprep.subr.mxu0 0.0
    %697 = vmatpush1.msra.mxu0 %v637
    %698 = vmatprep.subr.mxu0 0.0
    %699 = vmatpush1.msra.mxu0 %v636
    %700 = vmatprep.subr.mxu0 0.0
    %701 = vmatpush2.msra.mxu0 0.0
    %702 = vmatprep.subr.mxu0 0.0
    %703 = vmatpush2.msra.mxu0 0.0
    %704 = vmatprep.subr.mxu0 0.0
    %705 = vmatpush2.msra.mxu0 0.0
    %706 = vmatprep.subr.mxu0 0.0
    %707 = vmatpush2.msra.mxu0 0.0
    %708 = vmatprep.subr.mxu0 0.0
    %709 = vmatpush2.msra.mxu0 0.0
    %710 = vmatprep.subr.mxu0 0.0
    %711 = vmatpush2.msra.mxu0 0.0
    %712 = vmatprep.subr.mxu0 0.0
    %713 = vmatpush2.msra.mxu0 0.0
    %714 = vmatprep.subr.mxu0 0.0
    %715 = vmatpush2.msra.mxu0 0.0
    %716 = vmatprep.subr.mxu0 0.0
    %717 = vmatpush2.msra.mxu0 0.0
    %718 = vmatprep.subr.mxu0 0.0
    %719 = vmatpush2.msra.mxu0 0.0
    %720 = vmatprep.subr.mxu0 0.0
    %721 = vmatpush2.msra.mxu0 0.0
    %722 = vmatprep.subr.mxu0 0.0
    %723 = vmatpush2.msra.mxu0 0.0
    %724 = vmatprep.subr.mxu0 0.0
    %725 = vmatpush2.msra.mxu0 0.0
    %726 = vmatprep.subr.mxu0 0.0
    %727 = vmatpush2.msra.mxu0 0.0
    %728 = vmatprep.subr.mxu0 0.0
    %729 = vmatpush2.msra.mxu0 0.0
    %730 = vmatprep.subr.mxu0 0.0
    %731 = vmatpush2.msra.mxu0 0.0
    %732 = vmatprep.mubr.f32.mxu0 0.0
    %733 = vmatmul.mubr.f32.gmra.mxu0 %v642
    %v734 = vpop.f32.mrf.mxu0
    %v735 = vadd.f32 0.0, %v734
    %v736 = vpop.f32.mrf.mxu0
    %737 = vmatprep.mubr.f32.mxu0 0.0
    %738 = vmatmul.mubr.f32.gmra.mxu0 %v645
    %v739 = vpop.f32.mrf.mxu0
    %v740 = vadd.f32 0.0, %v739
    %v741 = vpop.f32.mrf.mxu0
    %742 = vmatprep.mubr.f32.mxu0 0.0
    %743 = vmatmul.mubr.f32.gmra.mxu0 %v648
    %v744 = vpop.f32.mrf.mxu0
    %v745 = vadd.f32 0.0, %v744
    %v746 = vpop.f32.mrf.mxu0
    %747 = vmatprep.mubr.f32.mxu0 0.0
    %748 = vmatmul.mubr.f32.gmra.mxu0 %v651
    %v749 = vpop.f32.mrf.mxu0
    %v750 = vadd.f32 0.0, %v749
    %v751 = vpop.f32.mrf.mxu0
    %752 = vmatprep.mubr.f32.mxu0 0.0
    %753 = vmatmul.mubr.f32.gmra.mxu0 %v654
    %v754 = vpop.f32.mrf.mxu0
    %v755 = vadd.f32 0.0, %v754
    %v756 = vpop.f32.mrf.mxu0
    %757 = vmatprep.mubr.f32.mxu0 0.0
    %758 = vmatmul.mubr.f32.gmra.mxu0 %v657
    %v759 = vpop.f32.mrf.mxu0
    %v760 = vadd.f32 0.0, %v759
    %v761 = vpop.f32.mrf.mxu0
    %762 = vmatprep.mubr.f32.mxu0 0.0
    %763 = vmatmul.mubr.f32.gmra.mxu0 %v660
    %v764 = vpop.f32.mrf.mxu0
    %v765 = vadd.f32 0.0, %v764
    %v766 = vpop.f32.mrf.mxu0
    %767 = vmatprep.mubr.f32.mxu0 0.0
    %768 = vmatmul.mubr.f32.gmra.mxu0 %v663
    %v769 = vpop.f32.mrf.mxu0
    %v770 = vadd.f32 0.0, %v769
    %v771 = vpop.f32.mrf.mxu0
    %772 = vdwg.mxu0
    %v773 = vadd.f32 %v375, %v735
    %v774 = vadd.f32 %v380, %v740
    %v775 = vadd.f32 %v385, %v745
    %v776 = vadd.f32 %v390, %v750
    %v777 = vadd.f32 %v395, %v755
    %v778 = vadd.f32 %v400, %v760
    %v779 = vadd.f32 %v405, %v765
    %v780 = vadd.f32 %v410, %v770
    %s781 = scalar_lea.vmem %s1, 200
    %v782 = vld [vmem:[%s781] sm:$0xff]
    %v783 = vld [vmem:[%s781 + $0x8] sm:$0xff]
    %v784 = vld [vmem:[%s781 + $0x10] sm:$0xff]
    %v785 = vld [vmem:[%s781 + $0x18] sm:$0xff]
    %v786 = vld [vmem:[%s781 + $0x20] sm:$0xf]
    %v788 = vsel %vm172, %v786, 0
    %790 = vmatprep.subr.mxu0 0.0
    %791 = vmatpush1.msra.mxu0 0.0
    %792 = vmatprep.subr.mxu0 0.0
    %793 = vmatpush1.msra.mxu0 0.0
    %794 = vmatprep.subr.mxu0 0.0
    %795 = vmatpush1.msra.mxu0 0.0
    %796 = vmatprep.subr.mxu0 0.0
    %797 = vmatpush1.msra.mxu0 0.0
    %798 = vmatprep.subr.mxu0 0.0
    %799 = vmatpush1.msra.mxu0 0.0
    %800 = vmatprep.subr.mxu0 0.0
    %801 = vmatpush1.msra.mxu0 0.0
    %802 = vmatprep.subr.mxu0 0.0
    %803 = vmatpush1.msra.mxu0 0.0
    %804 = vmatprep.subr.mxu0 0.0
    %805 = vmatpush1.msra.mxu0 0.0
    %806 = vmatprep.subr.mxu0 0.0
    %807 = vmatpush1.msra.mxu0 0.0
    %808 = vmatprep.subr.mxu0 0.0
    %809 = vmatpush1.msra.mxu0 0.0
    %810 = vmatprep.subr.mxu0 0.0
    %811 = vmatpush1.msra.mxu0 0.0
    %812 = vmatprep.subr.mxu0 0.0
    %813 = vmatpush1.msra.mxu0 %v788
    %814 = vmatprep.subr.mxu0 0.0
    %815 = vmatpush1.msra.mxu0 %v785
    %816 = vmatprep.subr.mxu0 0.0
    %817 = vmatpush1.msra.mxu0 %v784
    %818 = vmatprep.subr.mxu0 0.0
    %819 = vmatpush1.msra.mxu0 %v783
    %820 = vmatprep.subr.mxu0 0.0
    %821 = vmatpush1.msra.mxu0 %v782
    %822 = vmatprep.subr.mxu0 0.0
    %823 = vmatpush2.msra.mxu0 0.0
    %824 = vmatprep.subr.mxu0 0.0
    %825 = vmatpush2.msra.mxu0 0.0
    %826 = vmatprep.subr.mxu0 0.0
    %827 = vmatpush2.msra.mxu0 0.0
    %828 = vmatprep.subr.mxu0 0.0
    %829 = vmatpush2.msra.mxu0 0.0
    %830 = vmatprep.subr.mxu0 0.0
    %831 = vmatpush2.msra.mxu0 0.0
    %832 = vmatprep.subr.mxu0 0.0
    %833 = vmatpush2.msra.mxu0 0.0
    %834 = vmatprep.subr.mxu0 0.0
    %835 = vmatpush2.msra.mxu0 0.0
    %836 = vmatprep.subr.mxu0 0.0
    %837 = vmatpush2.msra.mxu0 0.0
    %838 = vmatprep.subr.mxu0 0.0
    %839 = vmatpush2.msra.mxu0 0.0
    %840 = vmatprep.subr.mxu0 0.0
    %841 = vmatpush2.msra.mxu0 0.0
    %842 = vmatprep.subr.mxu0 0.0
    %843 = vmatpush2.msra.mxu0 0.0
    %844 = vmatprep.subr.mxu0 0.0
    %845 = vmatpush2.msra.mxu0 0.0
    %846 = vmatprep.subr.mxu0 0.0
    %847 = vmatpush2.msra.mxu0 0.0
    %848 = vmatprep.subr.mxu0 0.0
    %849 = vmatpush2.msra.mxu0 0.0
    %850 = vmatprep.subr.mxu0 0.0
    %851 = vmatpush2.msra.mxu0 0.0
    %852 = vmatprep.subr.mxu0 0.0
    %853 = vmatpush2.msra.mxu0 0.0
    %854 = vmatprep.mubr.f32.mxu0 0.0
    %855 = vmatmul.mubr.f32.gmra.mxu0 %v642
    %v856 = vpop.f32.mrf.mxu0
    %v857 = vadd.f32 0.0, %v856
    %v858 = vpop.f32.mrf.mxu0
    %859 = vmatprep.mubr.f32.mxu0 0.0
    %860 = vmatmul.mubr.f32.gmra.mxu0 %v645
    %v861 = vpop.f32.mrf.mxu0
    %v862 = vadd.f32 0.0, %v861
    %v863 = vpop.f32.mrf.mxu0
    %864 = vmatprep.mubr.f32.mxu0 0.0
    %865 = vmatmul.mubr.f32.gmra.mxu0 %v648
    %v866 = vpop.f32.mrf.mxu0
    %v867 = vadd.f32 0.0, %v866
    %v868 = vpop.f32.mrf.mxu0
    %869 = vmatprep.mubr.f32.mxu0 0.0
    %870 = vmatmul.mubr.f32.gmra.mxu0 %v651
    %v871 = vpop.f32.mrf.mxu0
    %v872 = vadd.f32 0.0, %v871
    %v873 = vpop.f32.mrf.mxu0
    %874 = vmatprep.mubr.f32.mxu0 0.0
    %875 = vmatmul.mubr.f32.gmra.mxu0 %v654
    %v876 = vpop.f32.mrf.mxu0
    %v877 = vadd.f32 0.0, %v876
    %v878 = vpop.f32.mrf.mxu0
    %879 = vmatprep.mubr.f32.mxu0 0.0
    %880 = vmatmul.mubr.f32.gmra.mxu0 %v657
    %v881 = vpop.f32.mrf.mxu0
    %v882 = vadd.f32 0.0, %v881
    %v883 = vpop.f32.mrf.mxu0
    %884 = vmatprep.mubr.f32.mxu0 0.0
    %885 = vmatmul.mubr.f32.gmra.mxu0 %v660
    %v886 = vpop.f32.mrf.mxu0
    %v887 = vadd.f32 0.0, %v886
    %v888 = vpop.f32.mrf.mxu0
    %889 = vmatprep.mubr.f32.mxu0 0.0
    %890 = vmatmul.mubr.f32.gmra.mxu0 %v663
    %v891 = vpop.f32.mrf.mxu0
    %v892 = vadd.f32 0.0, %v891
    %v893 = vpop.f32.mrf.mxu0
    %894 = vdwg.mxu0
    %v895 = vadd.f32 %v597, %v857
    %v896 = vadd.f32 %v602, %v862
    %v897 = vadd.f32 %v607, %v867
    %v898 = vadd.f32 %v612, %v872
    %v899 = vadd.f32 %v617, %v877
    %v900 = vadd.f32 %v622, %v882
    %v901 = vadd.f32 %v627, %v887
    %v902 = vadd.f32 %v632, %v892
    %s903 = scalar_lea.vmem %s1, 240
    %v904 = vld [vmem:[%s903] sm:$0xff]
    %v905 = vld [vmem:[%s903 + $0x8] sm:$0xff]
    %v906 = vld [vmem:[%s903 + $0x10] sm:$0xff]
    %v907 = vld [vmem:[%s903 + $0x18] sm:$0xff]
    %v908 = vld [vmem:[%s903 + $0x20] sm:$0xf]
    %v910 = vsel %vm147, %v72, 0
    %v913 = vsel %vm147, %v80, 0
    %v916 = vsel %vm147, %v88, 0
    %v919 = vsel %vm147, %v96, 0
    %v922 = vsel %vm147, %v104, 0
    %v925 = vsel %vm147, %v112, 0
    %v928 = vsel %vm147, %v120, 0
    %v931 = vsel %vm147, %v128, 0
    %v934 = vsel %vm172, %v908, 0
    %936 = vmatprep.subr.mxu0 0.0
    %937 = vmatpush1.msra.mxu0 0.0
    %938 = vmatprep.subr.mxu0 0.0
    %939 = vmatpush1.msra.mxu0 0.0
    %940 = vmatprep.subr.mxu0 0.0
    %941 = vmatpush1.msra.mxu0 0.0
    %942 = vmatprep.subr.mxu0 0.0
    %943 = vmatpush1.msra.mxu0 0.0
    %944 = vmatprep.subr.mxu0 0.0
    %945 = vmatpush1.msra.mxu0 0.0
    %946 = vmatprep.subr.mxu0 0.0
    %947 = vmatpush1.msra.mxu0 0.0
    %948 = vmatprep.subr.mxu0 0.0
    %949 = vmatpush1.msra.mxu0 0.0
    %950 = vmatprep.subr.mxu0 0.0
    %951 = vmatpush1.msra.mxu0 0.0
    %952 = vmatprep.subr.mxu0 0.0
    %953 = vmatpush1.msra.mxu0 0.0
    %954 = vmatprep.subr.mxu0 0.0
    %955 = vmatpush1.msra.mxu0 0.0
    %956 = vmatprep.subr.mxu0 0.0
    %957 = vmatpush1.msra.mxu0 0.0
    %958 = vmatprep.subr.mxu0 0.0
    %959 = vmatpush1.msra.mxu0 %v934
    %960 = vmatprep.subr.mxu0 0.0
    %961 = vmatpush1.msra.mxu0 %v907
    %962 = vmatprep.subr.mxu0 0.0
    %963 = vmatpush1.msra.mxu0 %v906
    %964 = vmatprep.subr.mxu0 0.0
    %965 = vmatpush1.msra.mxu0 %v905
    %966 = vmatprep.subr.mxu0 0.0
    %967 = vmatpush1.msra.mxu0 %v904
    %968 = vmatprep.subr.mxu0 0.0
    %969 = vmatpush2.msra.mxu0 0.0
    %970 = vmatprep.subr.mxu0 0.0
    %971 = vmatpush2.msra.mxu0 0.0
    %972 = vmatprep.subr.mxu0 0.0
    %973 = vmatpush2.msra.mxu0 0.0
    %974 = vmatprep.subr.mxu0 0.0
    %975 = vmatpush2.msra.mxu0 0.0
    %976 = vmatprep.subr.mxu0 0.0
    %977 = vmatpush2.msra.mxu0 0.0
    %978 = vmatprep.subr.mxu0 0.0
    %979 = vmatpush2.msra.mxu0 0.0
    %980 = vmatprep.subr.mxu0 0.0
    %981 = vmatpush2.msra.mxu0 0.0
    %982 = vmatprep.subr.mxu0 0.0
    %983 = vmatpush2.msra.mxu0 0.0
    %984 = vmatprep.subr.mxu0 0.0
    %985 = vmatpush2.msra.mxu0 0.0
    %986 = vmatprep.subr.mxu0 0.0
    %987 = vmatpush2.msra.mxu0 0.0
    %988 = vmatprep.subr.mxu0 0.0
    %989 = vmatpush2.msra.mxu0 0.0
    %990 = vmatprep.subr.mxu0 0.0
    %991 = vmatpush2.msra.mxu0 0.0
    %992 = vmatprep.subr.mxu0 0.0
    %993 = vmatpush2.msra.mxu0 0.0
    %994 = vmatprep.subr.mxu0 0.0
    %995 = vmatpush2.msra.mxu0 0.0
    %996 = vmatprep.subr.mxu0 0.0
    %997 = vmatpush2.msra.mxu0 0.0
    %998 = vmatprep.subr.mxu0 0.0
    %999 = vmatpush2.msra.mxu0 0.0
    %1000 = vmatprep.mubr.f32.mxu0 0.0
    %1001 = vmatmul.mubr.f32.gmra.mxu0 %v910
    %v1002 = vpop.f32.mrf.mxu0
    %v1003 = vadd.f32 0.0, %v1002
    %v1004 = vpop.f32.mrf.mxu0
    %1005 = vmatprep.mubr.f32.mxu0 0.0
    %1006 = vmatmul.mubr.f32.gmra.mxu0 %v913
    %v1007 = vpop.f32.mrf.mxu0
    %v1008 = vadd.f32 0.0, %v1007
    %v1009 = vpop.f32.mrf.mxu0
    %1010 = vmatprep.mubr.f32.mxu0 0.0
    %1011 = vmatmul.mubr.f32.gmra.mxu0 %v916
    %v1012 = vpop.f32.mrf.mxu0
    %v1013 = vadd.f32 0.0, %v1012
    %v1014 = vpop.f32.mrf.mxu0
    %1015 = vmatprep.mubr.f32.mxu0 0.0
    %1016 = vmatmul.mubr.f32.gmra.mxu0 %v919
    %v1017 = vpop.f32.mrf.mxu0
    %v1018 = vadd.f32 0.0, %v1017
    %v1019 = vpop.f32.mrf.mxu0
    %1020 = vmatprep.mubr.f32.mxu0 0.0
    %1021 = vmatmul.mubr.f32.gmra.mxu0 %v922
    %v1022 = vpop.f32.mrf.mxu0
    %v1023 = vadd.f32 0.0, %v1022
    %v1024 = vpop.f32.mrf.mxu0
    %1025 = vmatprep.mubr.f32.mxu0 0.0
    %1026 = vmatmul.mubr.f32.gmra.mxu0 %v925
    %v1027 = vpop.f32.mrf.mxu0
    %v1028 = vadd.f32 0.0, %v1027
    %v1029 = vpop.f32.mrf.mxu0
    %1030 = vmatprep.mubr.f32.mxu0 0.0
    %1031 = vmatmul.mubr.f32.gmra.mxu0 %v928
    %v1032 = vpop.f32.mrf.mxu0
    %v1033 = vadd.f32 0.0, %v1032
    %v1034 = vpop.f32.mrf.mxu0
    %1035 = vmatprep.mubr.f32.mxu0 0.0
    %1036 = vmatmul.mubr.f32.gmra.mxu0 %v931
    %v1037 = vpop.f32.mrf.mxu0
    %v1038 = vadd.f32 0.0, %v1037
    %v1039 = vpop.f32.mrf.mxu0
    %1040 = vdwg.mxu0
    %v1041 = vadd.f32 %v773, %v1003
    %v1042 = vadd.f32 %v774, %v1008
    %v1043 = vadd.f32 %v775, %v1013
    %v1044 = vadd.f32 %v776, %v1018
    %v1045 = vadd.f32 %v777, %v1023
    %v1046 = vadd.f32 %v778, %v1028
    %v1047 = vadd.f32 %v779, %v1033
    %v1048 = vadd.f32 %v780, %v1038
    %s1049 = scalar_lea.vmem %s1, 280
    %v1050 = vld [vmem:[%s1049] sm:$0xff]
    %v1051 = vld [vmem:[%s1049 + $0x8] sm:$0xff]
    %v1052 = vld [vmem:[%s1049 + $0x10] sm:$0xff]
    %v1053 = vld [vmem:[%s1049 + $0x18] sm:$0xff]
    %v1054 = vld [vmem:[%s1049 + $0x20] sm:$0xf]
    %v1056 = vsel %vm172, %v1054, 0
    %1058 = vmatprep.subr.mxu0 0.0
    %1059 = vmatpush1.msra.mxu0 0.0
    %1060 = vmatprep.subr.mxu0 0.0
    %1061 = vmatpush1.msra.mxu0 0.0
    %1062 = vmatprep.subr.mxu0 0.0
    %1063 = vmatpush1.msra.mxu0 0.0
    %1064 = vmatprep.subr.mxu0 0.0
    %1065 = vmatpush1.msra.mxu0 0.0
    %1066 = vmatprep.subr.mxu0 0.0
    %1067 = vmatpush1.msra.mxu0 0.0
    %1068 = vmatprep.subr.mxu0 0.0
    %1069 = vmatpush1.msra.mxu0 0.0
    %1070 = vmatprep.subr.mxu0 0.0
    %1071 = vmatpush1.msra.mxu0 0.0
    %1072 = vmatprep.subr.mxu0 0.0
    %1073 = vmatpush1.msra.mxu0 0.0
    %1074 = vmatprep.subr.mxu0 0.0
    %1075 = vmatpush1.msra.mxu0 0.0
    %1076 = vmatprep.subr.mxu0 0.0
    %1077 = vmatpush1.msra.mxu0 0.0
    %1078 = vmatprep.subr.mxu0 0.0
    %1079 = vmatpush1.msra.mxu0 0.0
    %1080 = vmatprep.subr.mxu0 0.0
    %1081 = vmatpush1.msra.mxu0 %v1056
    %1082 = vmatprep.subr.mxu0 0.0
    %1083 = vmatpush1.msra.mxu0 %v1053
    %1084 = vmatprep.subr.mxu0 0.0
    %1085 = vmatpush1.msra.mxu0 %v1052
    %1086 = vmatprep.subr.mxu0 0.0
    %1087 = vmatpush1.msra.mxu0 %v1051
    %1088 = vmatprep.subr.mxu0 0.0
    %1089 = vmatpush1.msra.mxu0 %v1050
    %1090 = vmatprep.subr.mxu0 0.0
    %1091 = vmatpush2.msra.mxu0 0.0
    %1092 = vmatprep.subr.mxu0 0.0
    %1093 = vmatpush2.msra.mxu0 0.0
    %1094 = vmatprep.subr.mxu0 0.0
    %1095 = vmatpush2.msra.mxu0 0.0
    %1096 = vmatprep.subr.mxu0 0.0
    %1097 = vmatpush2.msra.mxu0 0.0
    %1098 = vmatprep.subr.mxu0 0.0
    %1099 = vmatpush2.msra.mxu0 0.0
    %1100 = vmatprep.subr.mxu0 0.0
    %1101 = vmatpush2.msra.mxu0 0.0
    %1102 = vmatprep.subr.mxu0 0.0
    %1103 = vmatpush2.msra.mxu0 0.0
    %1104 = vmatprep.subr.mxu0 0.0
    %1105 = vmatpush2.msra.mxu0 0.0
    %1106 = vmatprep.subr.mxu0 0.0
    %1107 = vmatpush2.msra.mxu0 0.0
    %1108 = vmatprep.subr.mxu0 0.0
    %1109 = vmatpush2.msra.mxu0 0.0
    %1110 = vmatprep.subr.mxu0 0.0
    %1111 = vmatpush2.msra.mxu0 0.0
    %1112 = vmatprep.subr.mxu0 0.0
    %1113 = vmatpush2.msra.mxu0 0.0
    %1114 = vmatprep.subr.mxu0 0.0
    %1115 = vmatpush2.msra.mxu0 0.0
    %1116 = vmatprep.subr.mxu0 0.0
    %1117 = vmatpush2.msra.mxu0 0.0
    %1118 = vmatprep.subr.mxu0 0.0
    %1119 = vmatpush2.msra.mxu0 0.0
    %1120 = vmatprep.subr.mxu0 0.0
    %1121 = vmatpush2.msra.mxu0 0.0
    %1122 = vmatprep.mubr.f32.mxu0 0.0
    %1123 = vmatmul.mubr.f32.gmra.mxu0 %v910
    %v1124 = vpop.f32.mrf.mxu0
    %v1125 = vadd.f32 0.0, %v1124
    %v1126 = vpop.f32.mrf.mxu0
    %1127 = vmatprep.mubr.f32.mxu0 0.0
    %1128 = vmatmul.mubr.f32.gmra.mxu0 %v913
    %v1129 = vpop.f32.mrf.mxu0
    %v1130 = vadd.f32 0.0, %v1129
    %v1131 = vpop.f32.mrf.mxu0
    %1132 = vmatprep.mubr.f32.mxu0 0.0
    %1133 = vmatmul.mubr.f32.gmra.mxu0 %v916
    %v1134 = vpop.f32.mrf.mxu0
    %v1135 = vadd.f32 0.0, %v1134
    %v1136 = vpop.f32.mrf.mxu0
    %1137 = vmatprep.mubr.f32.mxu0 0.0
    %1138 = vmatmul.mubr.f32.gmra.mxu0 %v919
    %v1139 = vpop.f32.mrf.mxu0
    %v1140 = vadd.f32 0.0, %v1139
    %v1141 = vpop.f32.mrf.mxu0
    %1142 = vmatprep.mubr.f32.mxu0 0.0
    %1143 = vmatmul.mubr.f32.gmra.mxu0 %v922
    %v1144 = vpop.f32.mrf.mxu0
    %v1145 = vadd.f32 0.0, %v1144
    %v1146 = vpop.f32.mrf.mxu0
    %1147 = vmatprep.mubr.f32.mxu0 0.0
    %1148 = vmatmul.mubr.f32.gmra.mxu0 %v925
    %v1149 = vpop.f32.mrf.mxu0
    %v1150 = vadd.f32 0.0, %v1149
    %v1151 = vpop.f32.mrf.mxu0
    %1152 = vmatprep.mubr.f32.mxu0 0.0
    %1153 = vmatmul.mubr.f32.gmra.mxu0 %v928
    %v1154 = vpop.f32.mrf.mxu0
    %v1155 = vadd.f32 0.0, %v1154
    %v1156 = vpop.f32.mrf.mxu0
    %1157 = vmatprep.mubr.f32.mxu0 0.0
    %1158 = vmatmul.mubr.f32.gmra.mxu0 %v931
    %v1159 = vpop.f32.mrf.mxu0
    %v1160 = vadd.f32 0.0, %v1159
    %v1161 = vpop.f32.mrf.mxu0
    %1162 = vdwg.mxu0
    %v1163 = vadd.f32 %v895, %v1125
    %v1164 = vadd.f32 %v896, %v1130
    %v1165 = vadd.f32 %v897, %v1135
    %v1166 = vadd.f32 %v898, %v1140
    %v1167 = vadd.f32 %v899, %v1145
    %v1168 = vadd.f32 %v900, %v1150
    %v1169 = vadd.f32 %v901, %v1155
    %v1170 = vadd.f32 %v902, %v1160
    %vm1179 = vcmask 1046528
    %v1180 = vrot.slane %v66, 1
    %v1181 = vrot.slane %v67, 1
    %v1182 = vsel %vm1179, %v1180, %v1181
    %v1183 = vrot.slane %v74, 1
    %v1184 = vrot.slane %v75, 1
    %v1185 = vsel %vm1179, %v1183, %v1184
    %v1186 = vrot.slane %v82, 1
    %v1187 = vrot.slane %v83, 1
    %v1188 = vsel %vm1179, %v1186, %v1187
    %v1189 = vrot.slane %v90, 1
    %v1190 = vrot.slane %v91, 1
    %v1191 = vsel %vm1179, %v1189, %v1190
    %v1192 = vrot.slane %v98, 1
    %v1193 = vrot.slane %v99, 1
    %v1194 = vsel %vm1179, %v1192, %v1193
    %v1195 = vrot.slane %v106, 1
    %v1196 = vrot.slane %v107, 1
    %v1197 = vsel %vm1179, %v1195, %v1196
    %v1198 = vrot.slane %v114, 1
    %v1199 = vrot.slane %v115, 1
    %v1200 = vsel %vm1179, %v1198, %v1199
    %v1201 = vrot.slane %v122, 1
    %v1202 = vrot.slane %v123, 1
    %v1203 = vsel %vm1179, %v1201, %v1202
    %s1204 = scalar_lea.vmem %s1, 320
    %v1205 = vld [vmem:[%s1204] sm:$0xff]
    %v1206 = vld [vmem:[%s1204 + $0x8] sm:$0xff]
    %v1207 = vld [vmem:[%s1204 + $0x10] sm:$0xff]
    %v1208 = vld [vmem:[%s1204 + $0x18] sm:$0xff]
    %v1209 = vld [vmem:[%s1204 + $0x20] sm:$0xf]
    %v1210 = vsel %vm147, %v1182, 0
    %v1212 = vsel %vm147, %v1185, 0
    %v1214 = vsel %vm147, %v1188, 0
    %v1216 = vsel %vm147, %v1191, 0
    %v1218 = vsel %vm147, %v1194, 0
    %v1220 = vsel %vm147, %v1197, 0
    %v1222 = vsel %vm147, %v1200, 0
    %v1224 = vsel %vm147, %v1203, 0
    %v1227 = vsel %vm172, %v1209, 0
    %1229 = vmatprep.subr.mxu0 0.0
    %1230 = vmatpush1.msra.mxu0 0.0
    %1231 = vmatprep.subr.mxu0 0.0
    %1232 = vmatpush1.msra.mxu0 0.0
    %1233 = vmatprep.subr.mxu0 0.0
    %1234 = vmatpush1.msra.mxu0 0.0
    %1235 = vmatprep.subr.mxu0 0.0
    %1236 = vmatpush1.msra.mxu0 0.0
    %1237 = vmatprep.subr.mxu0 0.0
    %1238 = vmatpush1.msra.mxu0 0.0
    %1239 = vmatprep.subr.mxu0 0.0
    %1240 = vmatpush1.msra.mxu0 0.0
    %1241 = vmatprep.subr.mxu0 0.0
    %1242 = vmatpush1.msra.mxu0 0.0
    %1243 = vmatprep.subr.mxu0 0.0
    %1244 = vmatpush1.msra.mxu0 0.0
    %1245 = vmatprep.subr.mxu0 0.0
    %1246 = vmatpush1.msra.mxu0 0.0
    %1247 = vmatprep.subr.mxu0 0.0
    %1248 = vmatpush1.msra.mxu0 0.0
    %1249 = vmatprep.subr.mxu0 0.0
    %1250 = vmatpush1.msra.mxu0 0.0
    %1251 = vmatprep.subr.mxu0 0.0
    %1252 = vmatpush1.msra.mxu0 %v1227
    %1253 = vmatprep.subr.mxu0 0.0
    %1254 = vmatpush1.msra.mxu0 %v1208
    %1255 = vmatprep.subr.mxu0 0.0
    %1256 = vmatpush1.msra.mxu0 %v1207
    %1257 = vmatprep.subr.mxu0 0.0
    %1258 = vmatpush1.msra.mxu0 %v1206
    %1259 = vmatprep.subr.mxu0 0.0
    %1260 = vmatpush1.msra.mxu0 %v1205
    %1261 = vmatprep.subr.mxu0 0.0
    %1262 = vmatpush2.msra.mxu0 0.0
    %1263 = vmatprep.subr.mxu0 0.0
    %1264 = vmatpush2.msra.mxu0 0.0
    %1265 = vmatprep.subr.mxu0 0.0
    %1266 = vmatpush2.msra.mxu0 0.0
    %1267 = vmatprep.subr.mxu0 0.0
    %1268 = vmatpush2.msra.mxu0 0.0
    %1269 = vmatprep.subr.mxu0 0.0
    %1270 = vmatpush2.msra.mxu0 0.0
    %1271 = vmatprep.subr.mxu0 0.0
    %1272 = vmatpush2.msra.mxu0 0.0
    %1273 = vmatprep.subr.mxu0 0.0
    %1274 = vmatpush2.msra.mxu0 0.0
    %1275 = vmatprep.subr.mxu0 0.0
    %1276 = vmatpush2.msra.mxu0 0.0
    %1277 = vmatprep.subr.mxu0 0.0
    %1278 = vmatpush2.msra.mxu0 0.0
    %1279 = vmatprep.subr.mxu0 0.0
    %1280 = vmatpush2.msra.mxu0 0.0
    %1281 = vmatprep.subr.mxu0 0.0
    %1282 = vmatpush2.msra.mxu0 0.0
    %1283 = vmatprep.subr.mxu0 0.0
    %1284 = vmatpush2.msra.mxu0 0.0
    %1285 = vmatprep.subr.mxu0 0.0
    %1286 = vmatpush2.msra.mxu0 0.0
    %1287 = vmatprep.subr.mxu0 0.0
    %1288 = vmatpush2.msra.mxu0 0.0
    %1289 = vmatprep.subr.mxu0 0.0
    %1290 = vmatpush2.msra.mxu0 0.0
    %1291 = vmatprep.subr.mxu0 0.0
    %1292 = vmatpush2.msra.mxu0 0.0
    %1293 = vmatprep.mubr.f32.mxu0 0.0
    %1294 = vmatmul.mubr.f32.gmra.mxu0 %v1210
    %v1295 = vpop.f32.mrf.mxu0
    %v1296 = vadd.f32 0.0, %v1295
    %v1297 = vpop.f32.mrf.mxu0
    %1298 = vmatprep.mubr.f32.mxu0 0.0
    %1299 = vmatmul.mubr.f32.gmra.mxu0 %v1212
    %v1300 = vpop.f32.mrf.mxu0
    %v1301 = vadd.f32 0.0, %v1300
    %v1302 = vpop.f32.mrf.mxu0
    %1303 = vmatprep.mubr.f32.mxu0 0.0
    %1304 = vmatmul.mubr.f32.gmra.mxu0 %v1214
    %v1305 = vpop.f32.mrf.mxu0
    %v1306 = vadd.f32 0.0, %v1305
    %v1307 = vpop.f32.mrf.mxu0
    %1308 = vmatprep.mubr.f32.mxu0 0.0
    %1309 = vmatmul.mubr.f32.gmra.mxu0 %v1216
    %v1310 = vpop.f32.mrf.mxu0
    %v1311 = vadd.f32 0.0, %v1310
    %v1312 = vpop.f32.mrf.mxu0
    %1313 = vmatprep.mubr.f32.mxu0 0.0
    %1314 = vmatmul.mubr.f32.gmra.mxu0 %v1218
    %v1315 = vpop.f32.mrf.mxu0
    %v1316 = vadd.f32 0.0, %v1315
    %v1317 = vpop.f32.mrf.mxu0
    %1318 = vmatprep.mubr.f32.mxu0 0.0
    %1319 = vmatmul.mubr.f32.gmra.mxu0 %v1220
    %v1320 = vpop.f32.mrf.mxu0
    %v1321 = vadd.f32 0.0, %v1320
    %v1322 = vpop.f32.mrf.mxu0
    %1323 = vmatprep.mubr.f32.mxu0 0.0
    %1324 = vmatmul.mubr.f32.gmra.mxu0 %v1222
    %v1325 = vpop.f32.mrf.mxu0
    %v1326 = vadd.f32 0.0, %v1325
    %v1327 = vpop.f32.mrf.mxu0
    %1328 = vmatprep.mubr.f32.mxu0 0.0
    %1329 = vmatmul.mubr.f32.gmra.mxu0 %v1224
    %v1330 = vpop.f32.mrf.mxu0
    %v1331 = vadd.f32 0.0, %v1330
    %v1332 = vpop.f32.mrf.mxu0
    %1333 = vdwg.mxu0
    %v1334 = vadd.f32 %v1041, %v1296
    %v1335 = vadd.f32 %v1042, %v1301
    %v1336 = vadd.f32 %v1043, %v1306
    %v1337 = vadd.f32 %v1044, %v1311
    %v1338 = vadd.f32 %v1045, %v1316
    %v1339 = vadd.f32 %v1046, %v1321
    %v1340 = vadd.f32 %v1047, %v1326
    %v1341 = vadd.f32 %v1048, %v1331
    %s1342 = scalar_lea.vmem %s1, 360
    %v1343 = vld [vmem:[%s1342] sm:$0xff]
    %v1344 = vld [vmem:[%s1342 + $0x8] sm:$0xff]
    %v1345 = vld [vmem:[%s1342 + $0x10] sm:$0xff]
    %v1346 = vld [vmem:[%s1342 + $0x18] sm:$0xff]
    %v1347 = vld [vmem:[%s1342 + $0x20] sm:$0xf]
    %v1349 = vsel %vm172, %v1347, 0
    %1351 = vmatprep.subr.mxu0 0.0
    %1352 = vmatpush1.msra.mxu0 0.0
    %1353 = vmatprep.subr.mxu0 0.0
    %1354 = vmatpush1.msra.mxu0 0.0
    %1355 = vmatprep.subr.mxu0 0.0
    %1356 = vmatpush1.msra.mxu0 0.0
    %1357 = vmatprep.subr.mxu0 0.0
    %1358 = vmatpush1.msra.mxu0 0.0
    %1359 = vmatprep.subr.mxu0 0.0
    %1360 = vmatpush1.msra.mxu0 0.0
    %1361 = vmatprep.subr.mxu0 0.0
    %1362 = vmatpush1.msra.mxu0 0.0
    %1363 = vmatprep.subr.mxu0 0.0
    %1364 = vmatpush1.msra.mxu0 0.0
    %1365 = vmatprep.subr.mxu0 0.0
    %1366 = vmatpush1.msra.mxu0 0.0
    %1367 = vmatprep.subr.mxu0 0.0
    %1368 = vmatpush1.msra.mxu0 0.0
    %1369 = vmatprep.subr.mxu0 0.0
    %1370 = vmatpush1.msra.mxu0 0.0
    %1371 = vmatprep.subr.mxu0 0.0
    %1372 = vmatpush1.msra.mxu0 0.0
    %1373 = vmatprep.subr.mxu0 0.0
    %1374 = vmatpush1.msra.mxu0 %v1349
    %1375 = vmatprep.subr.mxu0 0.0
    %1376 = vmatpush1.msra.mxu0 %v1346
    %1377 = vmatprep.subr.mxu0 0.0
    %1378 = vmatpush1.msra.mxu0 %v1345
    %1379 = vmatprep.subr.mxu0 0.0
    %1380 = vmatpush1.msra.mxu0 %v1344
    %1381 = vmatprep.subr.mxu0 0.0
    %1382 = vmatpush1.msra.mxu0 %v1343
    %1383 = vmatprep.subr.mxu0 0.0
    %1384 = vmatpush2.msra.mxu0 0.0
    %1385 = vmatprep.subr.mxu0 0.0
    %1386 = vmatpush2.msra.mxu0 0.0
    %1387 = vmatprep.subr.mxu0 0.0
    %1388 = vmatpush2.msra.mxu0 0.0
    %1389 = vmatprep.subr.mxu0 0.0
    %1390 = vmatpush2.msra.mxu0 0.0
    %1391 = vmatprep.subr.mxu0 0.0
    %1392 = vmatpush2.msra.mxu0 0.0
    %1393 = vmatprep.subr.mxu0 0.0
    %1394 = vmatpush2.msra.mxu0 0.0
    %1395 = vmatprep.subr.mxu0 0.0
    %1396 = vmatpush2.msra.mxu0 0.0
    %1397 = vmatprep.subr.mxu0 0.0
    %1398 = vmatpush2.msra.mxu0 0.0
    %1399 = vmatprep.subr.mxu0 0.0
    %1400 = vmatpush2.msra.mxu0 0.0
    %1401 = vmatprep.subr.mxu0 0.0
    %1402 = vmatpush2.msra.mxu0 0.0
    %1403 = vmatprep.subr.mxu0 0.0
    %1404 = vmatpush2.msra.mxu0 0.0
    %1405 = vmatprep.subr.mxu0 0.0
    %1406 = vmatpush2.msra.mxu0 0.0
    %1407 = vmatprep.subr.mxu0 0.0
    %1408 = vmatpush2.msra.mxu0 0.0
    %1409 = vmatprep.subr.mxu0 0.0
    %1410 = vmatpush2.msra.mxu0 0.0
    %1411 = vmatprep.subr.mxu0 0.0
    %1412 = vmatpush2.msra.mxu0 0.0
    %1413 = vmatprep.subr.mxu0 0.0
    %1414 = vmatpush2.msra.mxu0 0.0
    %1415 = vmatprep.mubr.f32.mxu0 0.0
    %1416 = vmatmul.mubr.f32.gmra.mxu0 %v1210
    %v1417 = vpop.f32.mrf.mxu0
    %v1418 = vadd.f32 0.0, %v1417
    %v1419 = vpop.f32.mrf.mxu0
    %1420 = vmatprep.mubr.f32.mxu0 0.0
    %1421 = vmatmul.mubr.f32.gmra.mxu0 %v1212
    %v1422 = vpop.f32.mrf.mxu0
    %v1423 = vadd.f32 0.0, %v1422
    %v1424 = vpop.f32.mrf.mxu0
    %1425 = vmatprep.mubr.f32.mxu0 0.0
    %1426 = vmatmul.mubr.f32.gmra.mxu0 %v1214
    %v1427 = vpop.f32.mrf.mxu0
    %v1428 = vadd.f32 0.0, %v1427
    %v1429 = vpop.f32.mrf.mxu0
    %1430 = vmatprep.mubr.f32.mxu0 0.0
    %1431 = vmatmul.mubr.f32.gmra.mxu0 %v1216
    %v1432 = vpop.f32.mrf.mxu0
    %v1433 = vadd.f32 0.0, %v1432
    %v1434 = vpop.f32.mrf.mxu0
    %1435 = vmatprep.mubr.f32.mxu0 0.0
    %1436 = vmatmul.mubr.f32.gmra.mxu0 %v1218
    %v1437 = vpop.f32.mrf.mxu0
    %v1438 = vadd.f32 0.0, %v1437
    %v1439 = vpop.f32.mrf.mxu0
    %1440 = vmatprep.mubr.f32.mxu0 0.0
    %1441 = vmatmul.mubr.f32.gmra.mxu0 %v1220
    %v1442 = vpop.f32.mrf.mxu0
    %v1443 = vadd.f32 0.0, %v1442
    %v1444 = vpop.f32.mrf.mxu0
    %1445 = vmatprep.mubr.f32.mxu0 0.0
    %1446 = vmatmul.mubr.f32.gmra.mxu0 %v1222
    %v1447 = vpop.f32.mrf.mxu0
    %v1448 = vadd.f32 0.0, %v1447
    %v1449 = vpop.f32.mrf.mxu0
    %1450 = vmatprep.mubr.f32.mxu0 0.0
    %1451 = vmatmul.mubr.f32.gmra.mxu0 %v1224
    %v1452 = vpop.f32.mrf.mxu0
    %v1453 = vadd.f32 0.0, %v1452
    %v1454 = vpop.f32.mrf.mxu0
    %1455 = vdwg.mxu0
    %v1456 = vadd.f32 %v1163, %v1418
    %v1457 = vadd.f32 %v1164, %v1423
    %v1458 = vadd.f32 %v1165, %v1428
    %v1459 = vadd.f32 %v1166, %v1433
    %v1460 = vadd.f32 %v1167, %v1438
    %v1461 = vadd.f32 %v1168, %v1443
    %v1462 = vadd.f32 %v1169, %v1448
    %v1463 = vadd.f32 %v1170, %v1453
    %1464 = vmatprep.subr.mxu0 0.0
    %1465 = vmatpush1.msra.mxu0 0.0
    %1466 = vmatprep.subr.mxu0 0.0
    %1467 = vmatpush1.msra.mxu0 0.0
    %1468 = vmatprep.subr.mxu0 0.0
    %1469 = vmatpush1.msra.mxu0 0.0
    %1470 = vmatprep.subr.mxu0 0.0
    %1471 = vmatpush1.msra.mxu0 0.0
    %1472 = vmatprep.subr.mxu0 0.0
    %1473 = vmatpush1.msra.mxu0 0.0
    %1474 = vmatprep.subr.mxu0 0.0
    %1475 = vmatpush1.msra.mxu0 0.0
    %1476 = vmatprep.subr.mxu0 0.0
    %1477 = vmatpush1.msra.mxu0 0.0
    %1478 = vmatprep.subr.mxu0 0.0
    %1479 = vmatpush1.msra.mxu0 0.0
    %1480 = vmatprep.subr.mxu0 0.0
    %1481 = vmatpush1.msra.mxu0 0.0
    %1482 = vmatprep.subr.mxu0 0.0
    %1483 = vmatpush1.msra.mxu0 0.0
    %1484 = vmatprep.subr.mxu0 0.0
    %1485 = vmatpush1.msra.mxu0 0.0
    %1486 = vmatprep.subr.mxu0 0.0
    %1487 = vmatpush1.msra.mxu0 %v174
    %1488 = vmatprep.subr.mxu0 0.0
    %1489 = vmatpush1.msra.mxu0 %v145
    %1490 = vmatprep.subr.mxu0 0.0
    %1491 = vmatpush1.msra.mxu0 %v144
    %1492 = vmatprep.subr.mxu0 0.0
    %1493 = vmatpush1.msra.mxu0 %v143
    %1494 = vmatprep.subr.mxu0 0.0
    %1495 = vmatpush1.msra.mxu0 %v142
    %1496 = vmatprep.subr.mxu0 0.0
    %1497 = vmatpush2.msra.mxu0 0.0
    %1498 = vmatprep.subr.mxu0 0.0
    %1499 = vmatpush2.msra.mxu0 0.0
    %1500 = vmatprep.subr.mxu0 0.0
    %1501 = vmatpush2.msra.mxu0 0.0
    %1502 = vmatprep.subr.mxu0 0.0
    %1503 = vmatpush2.msra.mxu0 0.0
    %1504 = vmatprep.subr.mxu0 0.0
    %1505 = vmatpush2.msra.mxu0 0.0
    %1506 = vmatprep.subr.mxu0 0.0
    %1507 = vmatpush2.msra.mxu0 0.0
    %1508 = vmatprep.subr.mxu0 0.0
    %1509 = vmatpush2.msra.mxu0 0.0
    %1510 = vmatprep.subr.mxu0 0.0
    %1511 = vmatpush2.msra.mxu0 0.0
    %1512 = vmatprep.subr.mxu0 0.0
    %1513 = vmatpush2.msra.mxu0 0.0
    %1514 = vmatprep.subr.mxu0 0.0
    %1515 = vmatpush2.msra.mxu0 0.0
    %1516 = vmatprep.subr.mxu0 0.0
    %1517 = vmatpush2.msra.mxu0 0.0
    %1518 = vmatprep.subr.mxu0 0.0
    %1519 = vmatpush2.msra.mxu0 0.0
    %1520 = vmatprep.subr.mxu0 0.0
    %1521 = vmatpush2.msra.mxu0 0.0
    %1522 = vmatprep.subr.mxu0 0.0
    %1523 = vmatpush2.msra.mxu0 0.0
    %1524 = vmatprep.subr.mxu0 0.0
    %1525 = vmatpush2.msra.mxu0 0.0
    %1526 = vmatprep.subr.mxu0 0.0
    %1527 = vmatpush2.msra.mxu0 0.0
    %1528 = vmatprep.mubr.f32.mxu0 0.0
    %1529 = vmatmul.mubr.f32.gmra.mxu0 %v642
    %v1530 = vpop.f32.mrf.mxu0
    %v1531 = vadd.f32 0.0, %v1530
    %v1532 = vpop.f32.mrf.mxu0
    %1533 = vmatprep.mubr.f32.mxu0 0.0
    %1534 = vmatmul.mubr.f32.gmra.mxu0 %v645
    %v1535 = vpop.f32.mrf.mxu0
    %v1536 = vadd.f32 0.0, %v1535
    %v1537 = vpop.f32.mrf.mxu0
    %1538 = vmatprep.mubr.f32.mxu0 0.0
    %1539 = vmatmul.mubr.f32.gmra.mxu0 %v648
    %v1540 = vpop.f32.mrf.mxu0
    %v1541 = vadd.f32 0.0, %v1540
    %v1542 = vpop.f32.mrf.mxu0
    %1543 = vmatprep.mubr.f32.mxu0 0.0
    %1544 = vmatmul.mubr.f32.gmra.mxu0 %v651
    %v1545 = vpop.f32.mrf.mxu0
    %v1546 = vadd.f32 0.0, %v1545
    %v1547 = vpop.f32.mrf.mxu0
    %1548 = vmatprep.mubr.f32.mxu0 0.0
    %1549 = vmatmul.mubr.f32.gmra.mxu0 %v654
    %v1550 = vpop.f32.mrf.mxu0
    %v1551 = vadd.f32 0.0, %v1550
    %v1552 = vpop.f32.mrf.mxu0
    %1553 = vmatprep.mubr.f32.mxu0 0.0
    %1554 = vmatmul.mubr.f32.gmra.mxu0 %v657
    %v1555 = vpop.f32.mrf.mxu0
    %v1556 = vadd.f32 0.0, %v1555
    %v1557 = vpop.f32.mrf.mxu0
    %1558 = vmatprep.mubr.f32.mxu0 0.0
    %1559 = vmatmul.mubr.f32.gmra.mxu0 %v660
    %v1560 = vpop.f32.mrf.mxu0
    %v1561 = vadd.f32 0.0, %v1560
    %v1562 = vpop.f32.mrf.mxu0
    %1563 = vmatprep.mubr.f32.mxu0 0.0
    %1564 = vmatmul.mubr.f32.gmra.mxu0 %v663
    %v1565 = vpop.f32.mrf.mxu0
    %v1566 = vadd.f32 0.0, %v1565
    %v1567 = vpop.f32.mrf.mxu0
    %1568 = vdwg.mxu0
    %1569 = vmatprep.subr.mxu0 0.0
    %1570 = vmatpush1.msra.mxu0 0.0
    %1571 = vmatprep.subr.mxu0 0.0
    %1572 = vmatpush1.msra.mxu0 0.0
    %1573 = vmatprep.subr.mxu0 0.0
    %1574 = vmatpush1.msra.mxu0 0.0
    %1575 = vmatprep.subr.mxu0 0.0
    %1576 = vmatpush1.msra.mxu0 0.0
    %1577 = vmatprep.subr.mxu0 0.0
    %1578 = vmatpush1.msra.mxu0 0.0
    %1579 = vmatprep.subr.mxu0 0.0
    %1580 = vmatpush1.msra.mxu0 0.0
    %1581 = vmatprep.subr.mxu0 0.0
    %1582 = vmatpush1.msra.mxu0 0.0
    %1583 = vmatprep.subr.mxu0 0.0
    %1584 = vmatpush1.msra.mxu0 0.0
    %1585 = vmatprep.subr.mxu0 0.0
    %1586 = vmatpush1.msra.mxu0 0.0
    %1587 = vmatprep.subr.mxu0 0.0
    %1588 = vmatpush1.msra.mxu0 0.0
    %1589 = vmatprep.subr.mxu0 0.0
    %1590 = vmatpush1.msra.mxu0 0.0
    %1591 = vmatprep.subr.mxu0 0.0
    %1592 = vmatpush1.msra.mxu0 %v306
    %1593 = vmatprep.subr.mxu0 0.0
    %1594 = vmatpush1.msra.mxu0 %v133
    %1595 = vmatprep.subr.mxu0 0.0
    %1596 = vmatpush1.msra.mxu0 %v132
    %1597 = vmatprep.subr.mxu0 0.0
    %1598 = vmatpush1.msra.mxu0 %v131
    %1599 = vmatprep.subr.mxu0 0.0
    %1600 = vmatpush1.msra.mxu0 %v130
    %1601 = vmatprep.subr.mxu0 0.0
    %1602 = vmatpush2.msra.mxu0 0.0
    %1603 = vmatprep.subr.mxu0 0.0
    %1604 = vmatpush2.msra.mxu0 0.0
    %1605 = vmatprep.subr.mxu0 0.0
    %1606 = vmatpush2.msra.mxu0 0.0
    %1607 = vmatprep.subr.mxu0 0.0
    %1608 = vmatpush2.msra.mxu0 0.0
    %1609 = vmatprep.subr.mxu0 0.0
    %1610 = vmatpush2.msra.mxu0 0.0
    %1611 = vmatprep.subr.mxu0 0.0
    %1612 = vmatpush2.msra.mxu0 0.0
    %1613 = vmatprep.subr.mxu0 0.0
    %1614 = vmatpush2.msra.mxu0 0.0
    %1615 = vmatprep.subr.mxu0 0.0
    %1616 = vmatpush2.msra.mxu0 0.0
    %1617 = vmatprep.subr.mxu0 0.0
    %1618 = vmatpush2.msra.mxu0 0.0
    %1619 = vmatprep.subr.mxu0 0.0
    %1620 = vmatpush2.msra.mxu0 0.0
    %1621 = vmatprep.subr.mxu0 0.0
    %1622 = vmatpush2.msra.mxu0 0.0
    %1623 = vmatprep.subr.mxu0 0.0
    %1624 = vmatpush2.msra.mxu0 0.0
    %1625 = vmatprep.subr.mxu0 0.0
    %1626 = vmatpush2.msra.mxu0 0.0
    %1627 = vmatprep.subr.mxu0 0.0
    %1628 = vmatpush2.msra.mxu0 0.0
    %1629 = vmatprep.subr.mxu0 0.0
    %1630 = vmatpush2.msra.mxu0 0.0
    %1631 = vmatprep.subr.mxu0 0.0
    %1632 = vmatpush2.msra.mxu0 0.0
    %1633 = vmatprep.mubr.f32.mxu0 0.0
    %1634 = vmatmul.mubr.f32.gmra.mxu0 %v149
    %v1635 = vpop.f32.mrf.mxu0
    %v1636 = vadd.f32 %v1531, %v1635
    %v1637 = vpop.f32.mrf.mxu0
    %1638 = vmatprep.mubr.f32.mxu0 0.0
    %1639 = vmatmul.mubr.f32.gmra.mxu0 %v152
    %v1640 = vpop.f32.mrf.mxu0
    %v1641 = vadd.f32 %v1536, %v1640
    %v1642 = vpop.f32.mrf.mxu0
    %1643 = vmatprep.mubr.f32.mxu0 0.0
    %1644 = vmatmul.mubr.f32.gmra.mxu0 %v155
    %v1645 = vpop.f32.mrf.mxu0
    %v1646 = vadd.f32 %v1541, %v1645
    %v1647 = vpop.f32.mrf.mxu0
    %1648 = vmatprep.mubr.f32.mxu0 0.0
    %1649 = vmatmul.mubr.f32.gmra.mxu0 %v158
    %v1650 = vpop.f32.mrf.mxu0
    %v1651 = vadd.f32 %v1546, %v1650
    %v1652 = vpop.f32.mrf.mxu0
    %1653 = vmatprep.mubr.f32.mxu0 0.0
    %1654 = vmatmul.mubr.f32.gmra.mxu0 %v161
    %v1655 = vpop.f32.mrf.mxu0
    %v1656 = vadd.f32 %v1551, %v1655
    %v1657 = vpop.f32.mrf.mxu0
    %1658 = vmatprep.mubr.f32.mxu0 0.0
    %1659 = vmatmul.mubr.f32.gmra.mxu0 %v164
    %v1660 = vpop.f32.mrf.mxu0
    %v1661 = vadd.f32 %v1556, %v1660
    %v1662 = vpop.f32.mrf.mxu0
    %1663 = vmatprep.mubr.f32.mxu0 0.0
    %1664 = vmatmul.mubr.f32.gmra.mxu0 %v167
    %v1665 = vpop.f32.mrf.mxu0
    %v1666 = vadd.f32 %v1561, %v1665
    %v1667 = vpop.f32.mrf.mxu0
    %1668 = vmatprep.mubr.f32.mxu0 0.0
    %1669 = vmatmul.mubr.f32.gmra.mxu0 %v170
    %v1670 = vpop.f32.mrf.mxu0
    %v1671 = vadd.f32 %v1566, %v1670
    %v1672 = vpop.f32.mrf.mxu0
    %1673 = vdwg.mxu0
    %1674 = vmatprep.subr.mxu0 0.0
    %1675 = vmatpush1.msra.mxu0 0.0
    %1676 = vmatprep.subr.mxu0 0.0
    %1677 = vmatpush1.msra.mxu0 0.0
    %1678 = vmatprep.subr.mxu0 0.0
    %1679 = vmatpush1.msra.mxu0 0.0
    %1680 = vmatprep.subr.mxu0 0.0
    %1681 = vmatpush1.msra.mxu0 0.0
    %1682 = vmatprep.subr.mxu0 0.0
    %1683 = vmatpush1.msra.mxu0 0.0
    %1684 = vmatprep.subr.mxu0 0.0
    %1685 = vmatpush1.msra.mxu0 0.0
    %1686 = vmatprep.subr.mxu0 0.0
    %1687 = vmatpush1.msra.mxu0 0.0
    %1688 = vmatprep.subr.mxu0 0.0
    %1689 = vmatpush1.msra.mxu0 0.0
    %1690 = vmatprep.subr.mxu0 0.0
    %1691 = vmatpush1.msra.mxu0 0.0
    %1692 = vmatprep.subr.mxu0 0.0
    %1693 = vmatpush1.msra.mxu0 0.0
    %1694 = vmatprep.subr.mxu0 0.0
    %1695 = vmatpush1.msra.mxu0 0.0
    %1696 = vmatprep.subr.mxu0 0.0
    %1697 = vmatpush1.msra.mxu0 %v420
    %1698 = vmatprep.subr.mxu0 0.0
    %1699 = vmatpush1.msra.mxu0 %v417
    %1700 = vmatprep.subr.mxu0 0.0
    %1701 = vmatpush1.msra.mxu0 %v416
    %1702 = vmatprep.subr.mxu0 0.0
    %1703 = vmatpush1.msra.mxu0 %v415
    %1704 = vmatprep.subr.mxu0 0.0
    %1705 = vmatpush1.msra.mxu0 %v414
    %1706 = vmatprep.subr.mxu0 0.0
    %1707 = vmatpush2.msra.mxu0 0.0
    %1708 = vmatprep.subr.mxu0 0.0
    %1709 = vmatpush2.msra.mxu0 0.0
    %1710 = vmatprep.subr.mxu0 0.0
    %1711 = vmatpush2.msra.mxu0 0.0
    %1712 = vmatprep.subr.mxu0 0.0
    %1713 = vmatpush2.msra.mxu0 0.0
    %1714 = vmatprep.subr.mxu0 0.0
    %1715 = vmatpush2.msra.mxu0 0.0
    %1716 = vmatprep.subr.mxu0 0.0
    %1717 = vmatpush2.msra.mxu0 0.0
    %1718 = vmatprep.subr.mxu0 0.0
    %1719 = vmatpush2.msra.mxu0 0.0
    %1720 = vmatprep.subr.mxu0 0.0
    %1721 = vmatpush2.msra.mxu0 0.0
    %1722 = vmatprep.subr.mxu0 0.0
    %1723 = vmatpush2.msra.mxu0 0.0
    %1724 = vmatprep.subr.mxu0 0.0
    %1725 = vmatpush2.msra.mxu0 0.0
    %1726 = vmatprep.subr.mxu0 0.0
    %1727 = vmatpush2.msra.mxu0 0.0
    %1728 = vmatprep.subr.mxu0 0.0
    %1729 = vmatpush2.msra.mxu0 0.0
    %1730 = vmatprep.subr.mxu0 0.0
    %1731 = vmatpush2.msra.mxu0 0.0
    %1732 = vmatprep.subr.mxu0 0.0
    %1733 = vmatpush2.msra.mxu0 0.0
    %1734 = vmatprep.subr.mxu0 0.0
    %1735 = vmatpush2.msra.mxu0 0.0
    %1736 = vmatprep.subr.mxu0 0.0
    %1737 = vmatpush2.msra.mxu0 0.0
    %1738 = vmatprep.mubr.f32.mxu0 0.0
    %1739 = vmatmul.mubr.f32.gmra.mxu0 %v642
    %v1740 = vpop.f32.mrf.mxu0
    %v1741 = vadd.f32 0.0, %v1740
    %v1742 = vpop.f32.mrf.mxu0
    %1743 = vmatprep.mubr.f32.mxu0 0.0
    %1744 = vmatmul.mubr.f32.gmra.mxu0 %v645
    %v1745 = vpop.f32.mrf.mxu0
    %v1746 = vadd.f32 0.0, %v1745
    %v1747 = vpop.f32.mrf.mxu0
    %1748 = vmatprep.mubr.f32.mxu0 0.0
    %1749 = vmatmul.mubr.f32.gmra.mxu0 %v648
    %v1750 = vpop.f32.mrf.mxu0
    %v1751 = vadd.f32 0.0, %v1750
    %v1752 = vpop.f32.mrf.mxu0
    %1753 = vmatprep.mubr.f32.mxu0 0.0
    %1754 = vmatmul.mubr.f32.gmra.mxu0 %v651
    %v1755 = vpop.f32.mrf.mxu0
    %v1756 = vadd.f32 0.0, %v1755
    %v1757 = vpop.f32.mrf.mxu0
    %1758 = vmatprep.mubr.f32.mxu0 0.0
    %1759 = vmatmul.mubr.f32.gmra.mxu0 %v654
    %v1760 = vpop.f32.mrf.mxu0
    %v1761 = vadd.f32 0.0, %v1760
    %v1762 = vpop.f32.mrf.mxu0
    %1763 = vmatprep.mubr.f32.mxu0 0.0
    %1764 = vmatmul.mubr.f32.gmra.mxu0 %v657
    %v1765 = vpop.f32.mrf.mxu0
    %v1766 = vadd.f32 0.0, %v1765
    %v1767 = vpop.f32.mrf.mxu0
    %1768 = vmatprep.mubr.f32.mxu0 0.0
    %1769 = vmatmul.mubr.f32.gmra.mxu0 %v660
    %v1770 = vpop.f32.mrf.mxu0
    %v1771 = vadd.f32 0.0, %v1770
    %v1772 = vpop.f32.mrf.mxu0
    %1773 = vmatprep.mubr.f32.mxu0 0.0
    %1774 = vmatmul.mubr.f32.gmra.mxu0 %v663
    %v1775 = vpop.f32.mrf.mxu0
    %v1776 = vadd.f32 0.0, %v1775
    %v1777 = vpop.f32.mrf.mxu0
    %1778 = vdwg.mxu0
    %1779 = vmatprep.subr.mxu0 0.0
    %1780 = vmatpush1.msra.mxu0 0.0
    %1781 = vmatprep.subr.mxu0 0.0
    %1782 = vmatpush1.msra.mxu0 0.0
    %1783 = vmatprep.subr.mxu0 0.0
    %1784 = vmatpush1.msra.mxu0 0.0
    %1785 = vmatprep.subr.mxu0 0.0
    %1786 = vmatpush1.msra.mxu0 0.0
    %1787 = vmatprep.subr.mxu0 0.0
    %1788 = vmatpush1.msra.mxu0 0.0
    %1789 = vmatprep.subr.mxu0 0.0
    %1790 = vmatpush1.msra.mxu0 0.0
    %1791 = vmatprep.subr.mxu0 0.0
    %1792 = vmatpush1.msra.mxu0 0.0
    %1793 = vmatprep.subr.mxu0 0.0
    %1794 = vmatpush1.msra.mxu0 0.0
    %1795 = vmatprep.subr.mxu0 0.0
    %1796 = vmatpush1.msra.mxu0 0.0
    %1797 = vmatprep.subr.mxu0 0.0
    %1798 = vmatpush1.msra.mxu0 0.0
    %1799 = vmatprep.subr.mxu0 0.0
    %1800 = vmatpush1.msra.mxu0 0.0
    %1801 = vmatprep.subr.mxu0 0.0
    %1802 = vmatpush1.msra.mxu0 %v528
    %1803 = vmatprep.subr.mxu0 0.0
    %1804 = vmatpush1.msra.mxu0 %v139
    %1805 = vmatprep.subr.mxu0 0.0
    %1806 = vmatpush1.msra.mxu0 %v138
    %1807 = vmatprep.subr.mxu0 0.0
    %1808 = vmatpush1.msra.mxu0 %v137
    %1809 = vmatprep.subr.mxu0 0.0
    %1810 = vmatpush1.msra.mxu0 %v136
    %1811 = vmatprep.subr.mxu0 0.0
    %1812 = vmatpush2.msra.mxu0 0.0
    %1813 = vmatprep.subr.mxu0 0.0
    %1814 = vmatpush2.msra.mxu0 0.0
    %1815 = vmatprep.subr.mxu0 0.0
    %1816 = vmatpush2.msra.mxu0 0.0
    %1817 = vmatprep.subr.mxu0 0.0
    %1818 = vmatpush2.msra.mxu0 0.0
    %1819 = vmatprep.subr.mxu0 0.0
    %1820 = vmatpush2.msra.mxu0 0.0
    %1821 = vmatprep.subr.mxu0 0.0
    %1822 = vmatpush2.msra.mxu0 0.0
    %1823 = vmatprep.subr.mxu0 0.0
    %1824 = vmatpush2.msra.mxu0 0.0
    %1825 = vmatprep.subr.mxu0 0.0
    %1826 = vmatpush2.msra.mxu0 0.0
    %1827 = vmatprep.subr.mxu0 0.0
    %1828 = vmatpush2.msra.mxu0 0.0
    %1829 = vmatprep.subr.mxu0 0.0
    %1830 = vmatpush2.msra.mxu0 0.0
    %1831 = vmatprep.subr.mxu0 0.0
    %1832 = vmatpush2.msra.mxu0 0.0
    %1833 = vmatprep.subr.mxu0 0.0
    %1834 = vmatpush2.msra.mxu0 0.0
    %1835 = vmatprep.subr.mxu0 0.0
    %1836 = vmatpush2.msra.mxu0 0.0
    %1837 = vmatprep.subr.mxu0 0.0
    %1838 = vmatpush2.msra.mxu0 0.0
    %1839 = vmatprep.subr.mxu0 0.0
    %1840 = vmatpush2.msra.mxu0 0.0
    %1841 = vmatprep.subr.mxu0 0.0
    %1842 = vmatpush2.msra.mxu0 0.0
    %1843 = vmatprep.mubr.f32.mxu0 0.0
    %1844 = vmatmul.mubr.f32.gmra.mxu0 %v149
    %v1845 = vpop.f32.mrf.mxu0
    %v1846 = vadd.f32 %v1741, %v1845
    %v1847 = vpop.f32.mrf.mxu0
    %1848 = vmatprep.mubr.f32.mxu0 0.0
    %1849 = vmatmul.mubr.f32.gmra.mxu0 %v152
    %v1850 = vpop.f32.mrf.mxu0
    %v1851 = vadd.f32 %v1746, %v1850
    %v1852 = vpop.f32.mrf.mxu0
    %1853 = vmatprep.mubr.f32.mxu0 0.0
    %1854 = vmatmul.mubr.f32.gmra.mxu0 %v155
    %v1855 = vpop.f32.mrf.mxu0
    %v1856 = vadd.f32 %v1751, %v1855
    %v1857 = vpop.f32.mrf.mxu0
    %1858 = vmatprep.mubr.f32.mxu0 0.0
    %1859 = vmatmul.mubr.f32.gmra.mxu0 %v158
    %v1860 = vpop.f32.mrf.mxu0
    %v1861 = vadd.f32 %v1756, %v1860
    %v1862 = vpop.f32.mrf.mxu0
    %1863 = vmatprep.mubr.f32.mxu0 0.0
    %1864 = vmatmul.mubr.f32.gmra.mxu0 %v161
    %v1865 = vpop.f32.mrf.mxu0
    %v1866 = vadd.f32 %v1761, %v1865
    %v1867 = vpop.f32.mrf.mxu0
    %1868 = vmatprep.mubr.f32.mxu0 0.0
    %1869 = vmatmul.mubr.f32.gmra.mxu0 %v164
    %v1870 = vpop.f32.mrf.mxu0
    %v1871 = vadd.f32 %v1766, %v1870
    %v1872 = vpop.f32.mrf.mxu0
    %1873 = vmatprep.mubr.f32.mxu0 0.0
    %1874 = vmatmul.mubr.f32.gmra.mxu0 %v167
    %v1875 = vpop.f32.mrf.mxu0
    %v1876 = vadd.f32 %v1771, %v1875
    %v1877 = vpop.f32.mrf.mxu0
    %1878 = vmatprep.mubr.f32.mxu0 0.0
    %1879 = vmatmul.mubr.f32.gmra.mxu0 %v170
    %v1880 = vpop.f32.mrf.mxu0
    %v1881 = vadd.f32 %v1776, %v1880
    %v1882 = vpop.f32.mrf.mxu0
    %1883 = vdwg.mxu0
    %1884 = vmatprep.subr.mxu0 0.0
    %1885 = vmatpush1.msra.mxu0 0.0
    %1886 = vmatprep.subr.mxu0 0.0
    %1887 = vmatpush1.msra.mxu0 0.0
    %1888 = vmatprep.subr.mxu0 0.0
    %1889 = vmatpush1.msra.mxu0 0.0
    %1890 = vmatprep.subr.mxu0 0.0
    %1891 = vmatpush1.msra.mxu0 0.0
    %1892 = vmatprep.subr.mxu0 0.0
    %1893 = vmatpush1.msra.mxu0 0.0
    %1894 = vmatprep.subr.mxu0 0.0
    %1895 = vmatpush1.msra.mxu0 0.0
    %1896 = vmatprep.subr.mxu0 0.0
    %1897 = vmatpush1.msra.mxu0 0.0
    %1898 = vmatprep.subr.mxu0 0.0
    %1899 = vmatpush1.msra.mxu0 0.0
    %1900 = vmatprep.subr.mxu0 0.0
    %1901 = vmatpush1.msra.mxu0 0.0
    %1902 = vmatprep.subr.mxu0 0.0
    %1903 = vmatpush1.msra.mxu0 0.0
    %1904 = vmatprep.subr.mxu0 0.0
    %1905 = vmatpush1.msra.mxu0 0.0
    %1906 = vmatprep.subr.mxu0 0.0
    %1907 = vmatpush1.msra.mxu0 %v666
    %1908 = vmatprep.subr.mxu0 0.0
    %1909 = vmatpush1.msra.mxu0 %v639
    %1910 = vmatprep.subr.mxu0 0.0
    %1911 = vmatpush1.msra.mxu0 %v638
    %1912 = vmatprep.subr.mxu0 0.0
    %1913 = vmatpush1.msra.mxu0 %v637
    %1914 = vmatprep.subr.mxu0 0.0
    %1915 = vmatpush1.msra.mxu0 %v636
    %1916 = vmatprep.subr.mxu0 0.0
    %1917 = vmatpush2.msra.mxu0 0.0
    %1918 = vmatprep.subr.mxu0 0.0
    %1919 = vmatpush2.msra.mxu0 0.0
    %1920 = vmatprep.subr.mxu0 0.0
    %1921 = vmatpush2.msra.mxu0 0.0
    %1922 = vmatprep.subr.mxu0 0.0
    %1923 = vmatpush2.msra.mxu0 0.0
    %1924 = vmatprep.subr.mxu0 0.0
    %1925 = vmatpush2.msra.mxu0 0.0
    %1926 = vmatprep.subr.mxu0 0.0
    %1927 = vmatpush2.msra.mxu0 0.0
    %1928 = vmatprep.subr.mxu0 0.0
    %1929 = vmatpush2.msra.mxu0 0.0
    %1930 = vmatprep.subr.mxu0 0.0
    %1931 = vmatpush2.msra.mxu0 0.0
    %1932 = vmatprep.subr.mxu0 0.0
    %1933 = vmatpush2.msra.mxu0 0.0
    %1934 = vmatprep.subr.mxu0 0.0
    %1935 = vmatpush2.msra.mxu0 0.0
    %1936 = vmatprep.subr.mxu0 0.0
    %1937 = vmatpush2.msra.mxu0 0.0
    %1938 = vmatprep.subr.mxu0 0.0
    %1939 = vmatpush2.msra.mxu0 0.0
    %1940 = vmatprep.subr.mxu0 0.0
    %1941 = vmatpush2.msra.mxu0 0.0
    %1942 = vmatprep.subr.mxu0 0.0
    %1943 = vmatpush2.msra.mxu0 0.0
    %1944 = vmatprep.subr.mxu0 0.0
    %1945 = vmatpush2.msra.mxu0 0.0
    %1946 = vmatprep.subr.mxu0 0.0
    %1947 = vmatpush2.msra.mxu0 0.0
    %1948 = vmatprep.mubr.f32.mxu0 0.0
    %1949 = vmatmul.mubr.f32.gmra.mxu0 %v910
    %v1950 = vpop.f32.mrf.mxu0
    %v1951 = vadd.f32 0.0, %v1950
    %v1952 = vpop.f32.mrf.mxu0
    %1953 = vmatprep.mubr.f32.mxu0 0.0
    %1954 = vmatmul.mubr.f32.gmra.mxu0 %v913
    %v1955 = vpop.f32.mrf.mxu0
    %v1956 = vadd.f32 0.0, %v1955
    %v1957 = vpop.f32.mrf.mxu0
    %1958 = vmatprep.mubr.f32.mxu0 0.0
    %1959 = vmatmul.mubr.f32.gmra.mxu0 %v916
    %v1960 = vpop.f32.mrf.mxu0
    %v1961 = vadd.f32 0.0, %v1960
    %v1962 = vpop.f32.mrf.mxu0
    %1963 = vmatprep.mubr.f32.mxu0 0.0
    %1964 = vmatmul.mubr.f32.gmra.mxu0 %v919
    %v1965 = vpop.f32.mrf.mxu0
    %v1966 = vadd.f32 0.0, %v1965
    %v1967 = vpop.f32.mrf.mxu0
    %1968 = vmatprep.mubr.f32.mxu0 0.0
    %1969 = vmatmul.mubr.f32.gmra.mxu0 %v922
    %v1970 = vpop.f32.mrf.mxu0
    %v1971 = vadd.f32 0.0, %v1970
    %v1972 = vpop.f32.mrf.mxu0
    %1973 = vmatprep.mubr.f32.mxu0 0.0
    %1974 = vmatmul.mubr.f32.gmra.mxu0 %v925
    %v1975 = vpop.f32.mrf.mxu0
    %v1976 = vadd.f32 0.0, %v1975
    %v1977 = vpop.f32.mrf.mxu0
    %1978 = vmatprep.mubr.f32.mxu0 0.0
    %1979 = vmatmul.mubr.f32.gmra.mxu0 %v928
    %v1980 = vpop.f32.mrf.mxu0
    %v1981 = vadd.f32 0.0, %v1980
    %v1982 = vpop.f32.mrf.mxu0
    %1983 = vmatprep.mubr.f32.mxu0 0.0
    %1984 = vmatmul.mubr.f32.gmra.mxu0 %v931
    %v1985 = vpop.f32.mrf.mxu0
    %v1986 = vadd.f32 0.0, %v1985
    %v1987 = vpop.f32.mrf.mxu0
    %1988 = vdwg.mxu0
    %v1989 = vadd.f32 %v1636, %v1951
    %v1990 = vadd.f32 %v1641, %v1956
    %v1991 = vadd.f32 %v1646, %v1961
    %v1992 = vadd.f32 %v1651, %v1966
    %v1993 = vadd.f32 %v1656, %v1971
    %v1994 = vadd.f32 %v1661, %v1976
    %v1995 = vadd.f32 %v1666, %v1981
    %v1996 = vadd.f32 %v1671, %v1986
    %1997 = vmatprep.subr.mxu0 0.0
    %1998 = vmatpush1.msra.mxu0 0.0
    %1999 = vmatprep.subr.mxu0 0.0
    %2000 = vmatpush1.msra.mxu0 0.0
    %2001 = vmatprep.subr.mxu0 0.0
    %2002 = vmatpush1.msra.mxu0 0.0
    %2003 = vmatprep.subr.mxu0 0.0
    %2004 = vmatpush1.msra.mxu0 0.0
    %2005 = vmatprep.subr.mxu0 0.0
    %2006 = vmatpush1.msra.mxu0 0.0
    %2007 = vmatprep.subr.mxu0 0.0
    %2008 = vmatpush1.msra.mxu0 0.0
    %2009 = vmatprep.subr.mxu0 0.0
    %2010 = vmatpush1.msra.mxu0 0.0
    %2011 = vmatprep.subr.mxu0 0.0
    %2012 = vmatpush1.msra.mxu0 0.0
    %2013 = vmatprep.subr.mxu0 0.0
    %2014 = vmatpush1.msra.mxu0 0.0
    %2015 = vmatprep.subr.mxu0 0.0
    %2016 = vmatpush1.msra.mxu0 0.0
    %2017 = vmatprep.subr.mxu0 0.0
    %2018 = vmatpush1.msra.mxu0 0.0
    %2019 = vmatprep.subr.mxu0 0.0
    %2020 = vmatpush1.msra.mxu0 %v788
    %2021 = vmatprep.subr.mxu0 0.0
    %2022 = vmatpush1.msra.mxu0 %v785
    %2023 = vmatprep.subr.mxu0 0.0
    %2024 = vmatpush1.msra.mxu0 %v784
    %2025 = vmatprep.subr.mxu0 0.0
    %2026 = vmatpush1.msra.mxu0 %v783
    %2027 = vmatprep.subr.mxu0 0.0
    %2028 = vmatpush1.msra.mxu0 %v782
    %2029 = vmatprep.subr.mxu0 0.0
    %2030 = vmatpush2.msra.mxu0 0.0
    %2031 = vmatprep.subr.mxu0 0.0
    %2032 = vmatpush2.msra.mxu0 0.0
    %2033 = vmatprep.subr.mxu0 0.0
    %2034 = vmatpush2.msra.mxu0 0.0
    %2035 = vmatprep.subr.mxu0 0.0
    %2036 = vmatpush2.msra.mxu0 0.0
    %2037 = vmatprep.subr.mxu0 0.0
    %2038 = vmatpush2.msra.mxu0 0.0
    %2039 = vmatprep.subr.mxu0 0.0
    %2040 = vmatpush2.msra.mxu0 0.0
    %2041 = vmatprep.subr.mxu0 0.0
    %2042 = vmatpush2.msra.mxu0 0.0
    %2043 = vmatprep.subr.mxu0 0.0
    %2044 = vmatpush2.msra.mxu0 0.0
    %2045 = vmatprep.subr.mxu0 0.0
    %2046 = vmatpush2.msra.mxu0 0.0
    %2047 = vmatprep.subr.mxu0 0.0
    %2048 = vmatpush2.msra.mxu0 0.0
    %2049 = vmatprep.subr.mxu0 0.0
    %2050 = vmatpush2.msra.mxu0 0.0
    %2051 = vmatprep.subr.mxu0 0.0
    %2052 = vmatpush2.msra.mxu0 0.0
    %2053 = vmatprep.subr.mxu0 0.0
    %2054 = vmatpush2.msra.mxu0 0.0
    %2055 = vmatprep.subr.mxu0 0.0
    %2056 = vmatpush2.msra.mxu0 0.0
    %2057 = vmatprep.subr.mxu0 0.0
    %2058 = vmatpush2.msra.mxu0 0.0
    %2059 = vmatprep.subr.mxu0 0.0
    %2060 = vmatpush2.msra.mxu0 0.0
    %2061 = vmatprep.mubr.f32.mxu0 0.0
    %2062 = vmatmul.mubr.f32.gmra.mxu0 %v910
    %v2063 = vpop.f32.mrf.mxu0
    %v2064 = vadd.f32 0.0, %v2063
    %v2065 = vpop.f32.mrf.mxu0
    %2066 = vmatprep.mubr.f32.mxu0 0.0
    %2067 = vmatmul.mubr.f32.gmra.mxu0 %v913
    %v2068 = vpop.f32.mrf.mxu0
    %v2069 = vadd.f32 0.0, %v2068
    %v2070 = vpop.f32.mrf.mxu0
    %2071 = vmatprep.mubr.f32.mxu0 0.0
    %2072 = vmatmul.mubr.f32.gmra.mxu0 %v916
    %v2073 = vpop.f32.mrf.mxu0
    %v2074 = vadd.f32 0.0, %v2073
    %v2075 = vpop.f32.mrf.mxu0
    %2076 = vmatprep.mubr.f32.mxu0 0.0
    %2077 = vmatmul.mubr.f32.gmra.mxu0 %v919
    %v2078 = vpop.f32.mrf.mxu0
    %v2079 = vadd.f32 0.0, %v2078
    %v2080 = vpop.f32.mrf.mxu0
    %2081 = vmatprep.mubr.f32.mxu0 0.0
    %2082 = vmatmul.mubr.f32.gmra.mxu0 %v922
    %v2083 = vpop.f32.mrf.mxu0
    %v2084 = vadd.f32 0.0, %v2083
    %v2085 = vpop.f32.mrf.mxu0
    %2086 = vmatprep.mubr.f32.mxu0 0.0
    %2087 = vmatmul.mubr.f32.gmra.mxu0 %v925
    %v2088 = vpop.f32.mrf.mxu0
    %v2089 = vadd.f32 0.0, %v2088
    %v2090 = vpop.f32.mrf.mxu0
    %2091 = vmatprep.mubr.f32.mxu0 0.0
    %2092 = vmatmul.mubr.f32.gmra.mxu0 %v928
    %v2093 = vpop.f32.mrf.mxu0
    %v2094 = vadd.f32 0.0, %v2093
    %v2095 = vpop.f32.mrf.mxu0
    %2096 = vmatprep.mubr.f32.mxu0 0.0
    %2097 = vmatmul.mubr.f32.gmra.mxu0 %v931
    %v2098 = vpop.f32.mrf.mxu0
    %v2099 = vadd.f32 0.0, %v2098
    %v2100 = vpop.f32.mrf.mxu0
    %2101 = vdwg.mxu0
    %v2102 = vadd.f32 %v1846, %v2064
    %v2103 = vadd.f32 %v1851, %v2069
    %v2104 = vadd.f32 %v1856, %v2074
    %v2105 = vadd.f32 %v1861, %v2079
    %v2106 = vadd.f32 %v1866, %v2084
    %v2107 = vadd.f32 %v1871, %v2089
    %v2108 = vadd.f32 %v1876, %v2094
    %v2109 = vadd.f32 %v1881, %v2099
    %2110 = vmatprep.subr.mxu0 0.0
    %2111 = vmatpush1.msra.mxu0 0.0
    %2112 = vmatprep.subr.mxu0 0.0
    %2113 = vmatpush1.msra.mxu0 0.0
    %2114 = vmatprep.subr.mxu0 0.0
    %2115 = vmatpush1.msra.mxu0 0.0
    %2116 = vmatprep.subr.mxu0 0.0
    %2117 = vmatpush1.msra.mxu0 0.0
    %2118 = vmatprep.subr.mxu0 0.0
    %2119 = vmatpush1.msra.mxu0 0.0
    %2120 = vmatprep.subr.mxu0 0.0
    %2121 = vmatpush1.msra.mxu0 0.0
    %2122 = vmatprep.subr.mxu0 0.0
    %2123 = vmatpush1.msra.mxu0 0.0
    %2124 = vmatprep.subr.mxu0 0.0
    %2125 = vmatpush1.msra.mxu0 0.0
    %2126 = vmatprep.subr.mxu0 0.0
    %2127 = vmatpush1.msra.mxu0 0.0
    %2128 = vmatprep.subr.mxu0 0.0
    %2129 = vmatpush1.msra.mxu0 0.0
    %2130 = vmatprep.subr.mxu0 0.0
    %2131 = vmatpush1.msra.mxu0 0.0
    %2132 = vmatprep.subr.mxu0 0.0
    %2133 = vmatpush1.msra.mxu0 %v934
    %2134 = vmatprep.subr.mxu0 0.0
    %2135 = vmatpush1.msra.mxu0 %v907
    %2136 = vmatprep.subr.mxu0 0.0
    %2137 = vmatpush1.msra.mxu0 %v906
    %2138 = vmatprep.subr.mxu0 0.0
    %2139 = vmatpush1.msra.mxu0 %v905
    %2140 = vmatprep.subr.mxu0 0.0
    %2141 = vmatpush1.msra.mxu0 %v904
    %2142 = vmatprep.subr.mxu0 0.0
    %2143 = vmatpush2.msra.mxu0 0.0
    %2144 = vmatprep.subr.mxu0 0.0
    %2145 = vmatpush2.msra.mxu0 0.0
    %2146 = vmatprep.subr.mxu0 0.0
    %2147 = vmatpush2.msra.mxu0 0.0
    %2148 = vmatprep.subr.mxu0 0.0
    %2149 = vmatpush2.msra.mxu0 0.0
    %2150 = vmatprep.subr.mxu0 0.0
    %2151 = vmatpush2.msra.mxu0 0.0
    %2152 = vmatprep.subr.mxu0 0.0
    %2153 = vmatpush2.msra.mxu0 0.0
    %2154 = vmatprep.subr.mxu0 0.0
    %2155 = vmatpush2.msra.mxu0 0.0
    %2156 = vmatprep.subr.mxu0 0.0
    %2157 = vmatpush2.msra.mxu0 0.0
    %2158 = vmatprep.subr.mxu0 0.0
    %2159 = vmatpush2.msra.mxu0 0.0
    %2160 = vmatprep.subr.mxu0 0.0
    %2161 = vmatpush2.msra.mxu0 0.0
    %2162 = vmatprep.subr.mxu0 0.0
    %2163 = vmatpush2.msra.mxu0 0.0
    %2164 = vmatprep.subr.mxu0 0.0
    %2165 = vmatpush2.msra.mxu0 0.0
    %2166 = vmatprep.subr.mxu0 0.0
    %2167 = vmatpush2.msra.mxu0 0.0
    %2168 = vmatprep.subr.mxu0 0.0
    %2169 = vmatpush2.msra.mxu0 0.0
    %2170 = vmatprep.subr.mxu0 0.0
    %2171 = vmatpush2.msra.mxu0 0.0
    %2172 = vmatprep.subr.mxu0 0.0
    %2173 = vmatpush2.msra.mxu0 0.0
    %2174 = vmatprep.mubr.f32.mxu0 0.0
    %2175 = vmatmul.mubr.f32.gmra.mxu0 %v1210
    %v2176 = vpop.f32.mrf.mxu0
    %v2177 = vadd.f32 0.0, %v2176
    %v2178 = vpop.f32.mrf.mxu0
    %2179 = vmatprep.mubr.f32.mxu0 0.0
    %2180 = vmatmul.mubr.f32.gmra.mxu0 %v1212
    %v2181 = vpop.f32.mrf.mxu0
    %v2182 = vadd.f32 0.0, %v2181
    %v2183 = vpop.f32.mrf.mxu0
    %2184 = vmatprep.mubr.f32.mxu0 0.0
    %2185 = vmatmul.mubr.f32.gmra.mxu0 %v1214
    %v2186 = vpop.f32.mrf.mxu0
    %v2187 = vadd.f32 0.0, %v2186
    %v2188 = vpop.f32.mrf.mxu0
    %2189 = vmatprep.mubr.f32.mxu0 0.0
    %2190 = vmatmul.mubr.f32.gmra.mxu0 %v1216
    %v2191 = vpop.f32.mrf.mxu0
    %v2192 = vadd.f32 0.0, %v2191
    %v2193 = vpop.f32.mrf.mxu0
    %2194 = vmatprep.mubr.f32.mxu0 0.0
    %2195 = vmatmul.mubr.f32.gmra.mxu0 %v1218
    %v2196 = vpop.f32.mrf.mxu0
    %v2197 = vadd.f32 0.0, %v2196
    %v2198 = vpop.f32.mrf.mxu0
    %2199 = vmatprep.mubr.f32.mxu0 0.0
    %2200 = vmatmul.mubr.f32.gmra.mxu0 %v1220
    %v2201 = vpop.f32.mrf.mxu0
    %v2202 = vadd.f32 0.0, %v2201
    %v2203 = vpop.f32.mrf.mxu0
    %2204 = vmatprep.mubr.f32.mxu0 0.0
    %2205 = vmatmul.mubr.f32.gmra.mxu0 %v1222
    %v2206 = vpop.f32.mrf.mxu0
    %v2207 = vadd.f32 0.0, %v2206
    %v2208 = vpop.f32.mrf.mxu0
    %2209 = vmatprep.mubr.f32.mxu0 0.0
    %2210 = vmatmul.mubr.f32.gmra.mxu0 %v1224
    %v2211 = vpop.f32.mrf.mxu0
    %v2212 = vadd.f32 0.0, %v2211
    %v2213 = vpop.f32.mrf.mxu0
    %2214 = vdwg.mxu0
    %v2215 = vadd.f32 %v1989, %v2177
    %v2216 = vadd.f32 %v1990, %v2182
    %v2217 = vadd.f32 %v1991, %v2187
    %v2218 = vadd.f32 %v1992, %v2192
    %v2219 = vadd.f32 %v1993, %v2197
    %v2220 = vadd.f32 %v1994, %v2202
    %v2221 = vadd.f32 %v1995, %v2207
    %v2222 = vadd.f32 %v1996, %v2212
    %2223 = vmatprep.subr.mxu0 0.0
    %2224 = vmatpush1.msra.mxu0 0.0
    %2225 = vmatprep.subr.mxu0 0.0
    %2226 = vmatpush1.msra.mxu0 0.0
    %2227 = vmatprep.subr.mxu0 0.0
    %2228 = vmatpush1.msra.mxu0 0.0
    %2229 = vmatprep.subr.mxu0 0.0
    %2230 = vmatpush1.msra.mxu0 0.0
    %2231 = vmatprep.subr.mxu0 0.0
    %2232 = vmatpush1.msra.mxu0 0.0
    %2233 = vmatprep.subr.mxu0 0.0
    %2234 = vmatpush1.msra.mxu0 0.0
    %2235 = vmatprep.subr.mxu0 0.0
    %2236 = vmatpush1.msra.mxu0 0.0
    %2237 = vmatprep.subr.mxu0 0.0
    %2238 = vmatpush1.msra.mxu0 0.0
    %2239 = vmatprep.subr.mxu0 0.0
    %2240 = vmatpush1.msra.mxu0 0.0
    %2241 = vmatprep.subr.mxu0 0.0
    %2242 = vmatpush1.msra.mxu0 0.0
    %2243 = vmatprep.subr.mxu0 0.0
    %2244 = vmatpush1.msra.mxu0 0.0
    %2245 = vmatprep.subr.mxu0 0.0
    %2246 = vmatpush1.msra.mxu0 %v1056
    %2247 = vmatprep.subr.mxu0 0.0
    %2248 = vmatpush1.msra.mxu0 %v1053
    %2249 = vmatprep.subr.mxu0 0.0
    %2250 = vmatpush1.msra.mxu0 %v1052
    %2251 = vmatprep.subr.mxu0 0.0
    %2252 = vmatpush1.msra.mxu0 %v1051
    %2253 = vmatprep.subr.mxu0 0.0
    %2254 = vmatpush1.msra.mxu0 %v1050
    %2255 = vmatprep.subr.mxu0 0.0
    %2256 = vmatpush2.msra.mxu0 0.0
    %2257 = vmatprep.subr.mxu0 0.0
    %2258 = vmatpush2.msra.mxu0 0.0
    %2259 = vmatprep.subr.mxu0 0.0
    %2260 = vmatpush2.msra.mxu0 0.0
    %2261 = vmatprep.subr.mxu0 0.0
    %2262 = vmatpush2.msra.mxu0 0.0
    %2263 = vmatprep.subr.mxu0 0.0
    %2264 = vmatpush2.msra.mxu0 0.0
    %2265 = vmatprep.subr.mxu0 0.0
    %2266 = vmatpush2.msra.mxu0 0.0
    %2267 = vmatprep.subr.mxu0 0.0
    %2268 = vmatpush2.msra.mxu0 0.0
    %2269 = vmatprep.subr.mxu0 0.0
    %2270 = vmatpush2.msra.mxu0 0.0
    %2271 = vmatprep.subr.mxu0 0.0
    %2272 = vmatpush2.msra.mxu0 0.0
    %2273 = vmatprep.subr.mxu0 0.0
    %2274 = vmatpush2.msra.mxu0 0.0
    %2275 = vmatprep.subr.mxu0 0.0
    %2276 = vmatpush2.msra.mxu0 0.0
    %2277 = vmatprep.subr.mxu0 0.0
    %2278 = vmatpush2.msra.mxu0 0.0
    %2279 = vmatprep.subr.mxu0 0.0
    %2280 = vmatpush2.msra.mxu0 0.0
    %2281 = vmatprep.subr.mxu0 0.0
    %2282 = vmatpush2.msra.mxu0 0.0
    %2283 = vmatprep.subr.mxu0 0.0
    %2284 = vmatpush2.msra.mxu0 0.0
    %2285 = vmatprep.subr.mxu0 0.0
    %2286 = vmatpush2.msra.mxu0 0.0
    %2287 = vmatprep.mubr.f32.mxu0 0.0
    %2288 = vmatmul.mubr.f32.gmra.mxu0 %v1210
    %v2289 = vpop.f32.mrf.mxu0
    %v2290 = vadd.f32 0.0, %v2289
    %v2291 = vpop.f32.mrf.mxu0
    %2292 = vmatprep.mubr.f32.mxu0 0.0
    %2293 = vmatmul.mubr.f32.gmra.mxu0 %v1212
    %v2294 = vpop.f32.mrf.mxu0
    %v2295 = vadd.f32 0.0, %v2294
    %v2296 = vpop.f32.mrf.mxu0
    %2297 = vmatprep.mubr.f32.mxu0 0.0
    %2298 = vmatmul.mubr.f32.gmra.mxu0 %v1214
    %v2299 = vpop.f32.mrf.mxu0
    %v2300 = vadd.f32 0.0, %v2299
    %v2301 = vpop.f32.mrf.mxu0
    %2302 = vmatprep.mubr.f32.mxu0 0.0
    %2303 = vmatmul.mubr.f32.gmra.mxu0 %v1216
    %v2304 = vpop.f32.mrf.mxu0
    %v2305 = vadd.f32 0.0, %v2304
    %v2306 = vpop.f32.mrf.mxu0
    %2307 = vmatprep.mubr.f32.mxu0 0.0
    %2308 = vmatmul.mubr.f32.gmra.mxu0 %v1218
    %v2309 = vpop.f32.mrf.mxu0
    %v2310 = vadd.f32 0.0, %v2309
    %v2311 = vpop.f32.mrf.mxu0
    %2312 = vmatprep.mubr.f32.mxu0 0.0
    %2313 = vmatmul.mubr.f32.gmra.mxu0 %v1220
    %v2314 = vpop.f32.mrf.mxu0
    %v2315 = vadd.f32 0.0, %v2314
    %v2316 = vpop.f32.mrf.mxu0
    %2317 = vmatprep.mubr.f32.mxu0 0.0
    %2318 = vmatmul.mubr.f32.gmra.mxu0 %v1222
    %v2319 = vpop.f32.mrf.mxu0
    %v2320 = vadd.f32 0.0, %v2319
    %v2321 = vpop.f32.mrf.mxu0
    %2322 = vmatprep.mubr.f32.mxu0 0.0
    %2323 = vmatmul.mubr.f32.gmra.mxu0 %v1224
    %v2324 = vpop.f32.mrf.mxu0
    %v2325 = vadd.f32 0.0, %v2324
    %v2326 = vpop.f32.mrf.mxu0
    %2327 = vdwg.mxu0
    %v2328 = vadd.f32 %v2102, %v2290
    %v2329 = vadd.f32 %v2103, %v2295
    %v2330 = vadd.f32 %v2104, %v2300
    %v2331 = vadd.f32 %v2105, %v2305
    %v2332 = vadd.f32 %v2106, %v2310
    %v2333 = vadd.f32 %v2107, %v2315
    %v2334 = vadd.f32 %v2108, %v2320
    %v2335 = vadd.f32 %v2109, %v2325
    %v2344 = vrot.slane %v68, 1
    %v2345 = vrot.slane %v69, 1
    %v2346 = vsel %vm1179, %v2344, %v2345
    %v2347 = vrot.slane %v76, 1
    %v2348 = vrot.slane %v77, 1
    %v2349 = vsel %vm1179, %v2347, %v2348
    %v2350 = vrot.slane %v84, 1
    %v2351 = vrot.slane %v85, 1
    %v2352 = vsel %vm1179, %v2350, %v2351
    %v2353 = vrot.slane %v92, 1
    %v2354 = vrot.slane %v93, 1
    %v2355 = vsel %vm1179, %v2353, %v2354
    %v2356 = vrot.slane %v100, 1
    %v2357 = vrot.slane %v101, 1
    %v2358 = vsel %vm1179, %v2356, %v2357
    %v2359 = vrot.slane %v108, 1
    %v2360 = vrot.slane %v109, 1
    %v2361 = vsel %vm1179, %v2359, %v2360
    %v2362 = vrot.slane %v116, 1
    %v2363 = vrot.slane %v117, 1
    %v2364 = vsel %vm1179, %v2362, %v2363
    %v2365 = vrot.slane %v124, 1
    %v2366 = vrot.slane %v125, 1
    %v2367 = vsel %vm1179, %v2365, %v2366
    %v2368 = vsel %vm147, %v2346, 0
    %v2370 = vsel %vm147, %v2349, 0
    %v2372 = vsel %vm147, %v2352, 0
    %v2374 = vsel %vm147, %v2355, 0
    %v2376 = vsel %vm147, %v2358, 0
    %v2378 = vsel %vm147, %v2361, 0
    %v2380 = vsel %vm147, %v2364, 0
    %v2382 = vsel %vm147, %v2367, 0
    %2384 = vmatprep.subr.mxu0 0.0
    %2385 = vmatpush1.msra.mxu0 0.0
    %2386 = vmatprep.subr.mxu0 0.0
    %2387 = vmatpush1.msra.mxu0 0.0
    %2388 = vmatprep.subr.mxu0 0.0
    %2389 = vmatpush1.msra.mxu0 0.0
    %2390 = vmatprep.subr.mxu0 0.0
    %2391 = vmatpush1.msra.mxu0 0.0
    %2392 = vmatprep.subr.mxu0 0.0
    %2393 = vmatpush1.msra.mxu0 0.0
    %2394 = vmatprep.subr.mxu0 0.0
    %2395 = vmatpush1.msra.mxu0 0.0
    %2396 = vmatprep.subr.mxu0 0.0
    %2397 = vmatpush1.msra.mxu0 0.0
    %2398 = vmatprep.subr.mxu0 0.0
    %2399 = vmatpush1.msra.mxu0 0.0
    %2400 = vmatprep.subr.mxu0 0.0
    %2401 = vmatpush1.msra.mxu0 0.0
    %2402 = vmatprep.subr.mxu0 0.0
    %2403 = vmatpush1.msra.mxu0 0.0
    %2404 = vmatprep.subr.mxu0 0.0
    %2405 = vmatpush1.msra.mxu0 0.0
    %2406 = vmatprep.subr.mxu0 0.0
    %2407 = vmatpush1.msra.mxu0 %v1227
    %2408 = vmatprep.subr.mxu0 0.0
    %2409 = vmatpush1.msra.mxu0 %v1208
    %2410 = vmatprep.subr.mxu0 0.0
    %2411 = vmatpush1.msra.mxu0 %v1207
    %2412 = vmatprep.subr.mxu0 0.0
    %2413 = vmatpush1.msra.mxu0 %v1206
    %2414 = vmatprep.subr.mxu0 0.0
    %2415 = vmatpush1.msra.mxu0 %v1205
    %2416 = vmatprep.subr.mxu0 0.0
    %2417 = vmatpush2.msra.mxu0 0.0
    %2418 = vmatprep.subr.mxu0 0.0
    %2419 = vmatpush2.msra.mxu0 0.0
    %2420 = vmatprep.subr.mxu0 0.0
    %2421 = vmatpush2.msra.mxu0 0.0
    %2422 = vmatprep.subr.mxu0 0.0
    %2423 = vmatpush2.msra.mxu0 0.0
    %2424 = vmatprep.subr.mxu0 0.0
    %2425 = vmatpush2.msra.mxu0 0.0
    %2426 = vmatprep.subr.mxu0 0.0
    %2427 = vmatpush2.msra.mxu0 0.0
    %2428 = vmatprep.subr.mxu0 0.0
    %2429 = vmatpush2.msra.mxu0 0.0
    %2430 = vmatprep.subr.mxu0 0.0
    %2431 = vmatpush2.msra.mxu0 0.0
    %2432 = vmatprep.subr.mxu0 0.0
    %2433 = vmatpush2.msra.mxu0 0.0
    %2434 = vmatprep.subr.mxu0 0.0
    %2435 = vmatpush2.msra.mxu0 0.0
    %2436 = vmatprep.subr.mxu0 0.0
    %2437 = vmatpush2.msra.mxu0 0.0
    %2438 = vmatprep.subr.mxu0 0.0
    %2439 = vmatpush2.msra.mxu0 0.0
    %2440 = vmatprep.subr.mxu0 0.0
    %2441 = vmatpush2.msra.mxu0 0.0
    %2442 = vmatprep.subr.mxu0 0.0
    %2443 = vmatpush2.msra.mxu0 0.0
    %2444 = vmatprep.subr.mxu0 0.0
    %2445 = vmatpush2.msra.mxu0 0.0
    %2446 = vmatprep.subr.mxu0 0.0
    %2447 = vmatpush2.msra.mxu0 0.0
    %2448 = vmatprep.mubr.f32.mxu0 0.0
    %2449 = vmatmul.mubr.f32.gmra.mxu0 %v2368
    %v2450 = vpop.f32.mrf.mxu0
    %v2451 = vadd.f32 0.0, %v2450
    %v2452 = vpop.f32.mrf.mxu0
    %2453 = vmatprep.mubr.f32.mxu0 0.0
    %2454 = vmatmul.mubr.f32.gmra.mxu0 %v2370
    %v2455 = vpop.f32.mrf.mxu0
    %v2456 = vadd.f32 0.0, %v2455
    %v2457 = vpop.f32.mrf.mxu0
    %2458 = vmatprep.mubr.f32.mxu0 0.0
    %2459 = vmatmul.mubr.f32.gmra.mxu0 %v2372
    %v2460 = vpop.f32.mrf.mxu0
    %v2461 = vadd.f32 0.0, %v2460
    %v2462 = vpop.f32.mrf.mxu0
    %2463 = vmatprep.mubr.f32.mxu0 0.0
    %2464 = vmatmul.mubr.f32.gmra.mxu0 %v2374
    %v2465 = vpop.f32.mrf.mxu0
    %v2466 = vadd.f32 0.0, %v2465
    %v2467 = vpop.f32.mrf.mxu0
    %2468 = vmatprep.mubr.f32.mxu0 0.0
    %2469 = vmatmul.mubr.f32.gmra.mxu0 %v2376
    %v2470 = vpop.f32.mrf.mxu0
    %v2471 = vadd.f32 0.0, %v2470
    %v2472 = vpop.f32.mrf.mxu0
    %2473 = vmatprep.mubr.f32.mxu0 0.0
    %2474 = vmatmul.mubr.f32.gmra.mxu0 %v2378
    %v2475 = vpop.f32.mrf.mxu0
    %v2476 = vadd.f32 0.0, %v2475
    %v2477 = vpop.f32.mrf.mxu0
    %2478 = vmatprep.mubr.f32.mxu0 0.0
    %2479 = vmatmul.mubr.f32.gmra.mxu0 %v2380
    %v2480 = vpop.f32.mrf.mxu0
    %v2481 = vadd.f32 0.0, %v2480
    %v2482 = vpop.f32.mrf.mxu0
    %2483 = vmatprep.mubr.f32.mxu0 0.0
    %2484 = vmatmul.mubr.f32.gmra.mxu0 %v2382
    %v2485 = vpop.f32.mrf.mxu0
    %v2486 = vadd.f32 0.0, %v2485
    %v2487 = vpop.f32.mrf.mxu0
    %2488 = vdwg.mxu0
    %v2489 = vadd.f32 %v2215, %v2451
    %v2490 = vadd.f32 %v2216, %v2456
    %v2491 = vadd.f32 %v2217, %v2461
    %v2492 = vadd.f32 %v2218, %v2466
    %v2493 = vadd.f32 %v2219, %v2471
    %v2494 = vadd.f32 %v2220, %v2476
    %v2495 = vadd.f32 %v2221, %v2481
    %v2496 = vadd.f32 %v2222, %v2486
    %2497 = vmatprep.subr.mxu0 0.0
    %2498 = vmatpush1.msra.mxu0 0.0
    %2499 = vmatprep.subr.mxu0 0.0
    %2500 = vmatpush1.msra.mxu0 0.0
    %2501 = vmatprep.subr.mxu0 0.0
    %2502 = vmatpush1.msra.mxu0 0.0
    %2503 = vmatprep.subr.mxu0 0.0
    %2504 = vmatpush1.msra.mxu0 0.0
    %2505 = vmatprep.subr.mxu0 0.0
    %2506 = vmatpush1.msra.mxu0 0.0
    %2507 = vmatprep.subr.mxu0 0.0
    %2508 = vmatpush1.msra.mxu0 0.0
    %2509 = vmatprep.subr.mxu0 0.0
    %2510 = vmatpush1.msra.mxu0 0.0
    %2511 = vmatprep.subr.mxu0 0.0
    %2512 = vmatpush1.msra.mxu0 0.0
    %2513 = vmatprep.subr.mxu0 0.0
    %2514 = vmatpush1.msra.mxu0 0.0
    %2515 = vmatprep.subr.mxu0 0.0
    %2516 = vmatpush1.msra.mxu0 0.0
    %2517 = vmatprep.subr.mxu0 0.0
    %2518 = vmatpush1.msra.mxu0 0.0
    %2519 = vmatprep.subr.mxu0 0.0
    %2520 = vmatpush1.msra.mxu0 %v1349
    %2521 = vmatprep.subr.mxu0 0.0
    %2522 = vmatpush1.msra.mxu0 %v1346
    %2523 = vmatprep.subr.mxu0 0.0
    %2524 = vmatpush1.msra.mxu0 %v1345
    %2525 = vmatprep.subr.mxu0 0.0
    %2526 = vmatpush1.msra.mxu0 %v1344
    %2527 = vmatprep.subr.mxu0 0.0
    %2528 = vmatpush1.msra.mxu0 %v1343
    %2529 = vmatprep.subr.mxu0 0.0
    %2530 = vmatpush2.msra.mxu0 0.0
    %2531 = vmatprep.subr.mxu0 0.0
    %2532 = vmatpush2.msra.mxu0 0.0
    %2533 = vmatprep.subr.mxu0 0.0
    %2534 = vmatpush2.msra.mxu0 0.0
    %2535 = vmatprep.subr.mxu0 0.0
    %2536 = vmatpush2.msra.mxu0 0.0
    %2537 = vmatprep.subr.mxu0 0.0
    %2538 = vmatpush2.msra.mxu0 0.0
    %2539 = vmatprep.subr.mxu0 0.0
    %2540 = vmatpush2.msra.mxu0 0.0
    %2541 = vmatprep.subr.mxu0 0.0
    %2542 = vmatpush2.msra.mxu0 0.0
    %2543 = vmatprep.subr.mxu0 0.0
    %2544 = vmatpush2.msra.mxu0 0.0
    %2545 = vmatprep.subr.mxu0 0.0
    %2546 = vmatpush2.msra.mxu0 0.0
    %2547 = vmatprep.subr.mxu0 0.0
    %2548 = vmatpush2.msra.mxu0 0.0
    %2549 = vmatprep.subr.mxu0 0.0
    %2550 = vmatpush2.msra.mxu0 0.0
    %2551 = vmatprep.subr.mxu0 0.0
    %2552 = vmatpush2.msra.mxu0 0.0
    %2553 = vmatprep.subr.mxu0 0.0
    %2554 = vmatpush2.msra.mxu0 0.0
    %2555 = vmatprep.subr.mxu0 0.0
    %2556 = vmatpush2.msra.mxu0 0.0
    %2557 = vmatprep.subr.mxu0 0.0
    %2558 = vmatpush2.msra.mxu0 0.0
    %2559 = vmatprep.subr.mxu0 0.0
    %2560 = vmatpush2.msra.mxu0 0.0
    %2561 = vmatprep.mubr.f32.mxu0 0.0
    %2562 = vmatmul.mubr.f32.gmra.mxu0 %v2368
    %v2563 = vpop.f32.mrf.mxu0
    %v2564 = vadd.f32 0.0, %v2563
    %v2565 = vpop.f32.mrf.mxu0
    %2566 = vmatprep.mubr.f32.mxu0 0.0
    %2567 = vmatmul.mubr.f32.gmra.mxu0 %v2370
    %v2568 = vpop.f32.mrf.mxu0
    %v2569 = vadd.f32 0.0, %v2568
    %v2570 = vpop.f32.mrf.mxu0
    %2571 = vmatprep.mubr.f32.mxu0 0.0
    %2572 = vmatmul.mubr.f32.gmra.mxu0 %v2372
    %v2573 = vpop.f32.mrf.mxu0
    %v2574 = vadd.f32 0.0, %v2573
    %v2575 = vpop.f32.mrf.mxu0
    %2576 = vmatprep.mubr.f32.mxu0 0.0
    %2577 = vmatmul.mubr.f32.gmra.mxu0 %v2374
    %v2578 = vpop.f32.mrf.mxu0
    %v2579 = vadd.f32 0.0, %v2578
    %v2580 = vpop.f32.mrf.mxu0
    %2581 = vmatprep.mubr.f32.mxu0 0.0
    %2582 = vmatmul.mubr.f32.gmra.mxu0 %v2376
    %v2583 = vpop.f32.mrf.mxu0
    %v2584 = vadd.f32 0.0, %v2583
    %v2585 = vpop.f32.mrf.mxu0
    %2586 = vmatprep.mubr.f32.mxu0 0.0
    %2587 = vmatmul.mubr.f32.gmra.mxu0 %v2378
    %v2588 = vpop.f32.mrf.mxu0
    %v2589 = vadd.f32 0.0, %v2588
    %v2590 = vpop.f32.mrf.mxu0
    %2591 = vmatprep.mubr.f32.mxu0 0.0
    %2592 = vmatmul.mubr.f32.gmra.mxu0 %v2380
    %v2593 = vpop.f32.mrf.mxu0
    %v2594 = vadd.f32 0.0, %v2593
    %v2595 = vpop.f32.mrf.mxu0
    %2596 = vmatprep.mubr.f32.mxu0 0.0
    %2597 = vmatmul.mubr.f32.gmra.mxu0 %v2382
    %v2598 = vpop.f32.mrf.mxu0
    %v2599 = vadd.f32 0.0, %v2598
    %v2600 = vpop.f32.mrf.mxu0
    %2601 = vdwg.mxu0
    %v2602 = vadd.f32 %v2328, %v2564
    %v2603 = vadd.f32 %v2329, %v2569
    %v2604 = vadd.f32 %v2330, %v2574
    %v2605 = vadd.f32 %v2331, %v2579
    %v2606 = vadd.f32 %v2332, %v2584
    %v2607 = vadd.f32 %v2333, %v2589
    %v2608 = vadd.f32 %v2334, %v2594
    %v2609 = vadd.f32 %v2335, %v2599
    %2610 = vmatprep.subr.mxu0 0.0
    %2611 = vmatpush1.msra.mxu0 0.0
    %2612 = vmatprep.subr.mxu0 0.0
    %2613 = vmatpush1.msra.mxu0 0.0
    %2614 = vmatprep.subr.mxu0 0.0
    %2615 = vmatpush1.msra.mxu0 0.0
    %2616 = vmatprep.subr.mxu0 0.0
    %2617 = vmatpush1.msra.mxu0 0.0
    %2618 = vmatprep.subr.mxu0 0.0
    %2619 = vmatpush1.msra.mxu0 0.0
    %2620 = vmatprep.subr.mxu0 0.0
    %2621 = vmatpush1.msra.mxu0 0.0
    %2622 = vmatprep.subr.mxu0 0.0
    %2623 = vmatpush1.msra.mxu0 0.0
    %2624 = vmatprep.subr.mxu0 0.0
    %2625 = vmatpush1.msra.mxu0 0.0
    %2626 = vmatprep.subr.mxu0 0.0
    %2627 = vmatpush1.msra.mxu0 0.0
    %2628 = vmatprep.subr.mxu0 0.0
    %2629 = vmatpush1.msra.mxu0 0.0
    %2630 = vmatprep.subr.mxu0 0.0
    %2631 = vmatpush1.msra.mxu0 0.0
    %2632 = vmatprep.subr.mxu0 0.0
    %2633 = vmatpush1.msra.mxu0 %v174
    %2634 = vmatprep.subr.mxu0 0.0
    %2635 = vmatpush1.msra.mxu0 %v145
    %2636 = vmatprep.subr.mxu0 0.0
    %2637 = vmatpush1.msra.mxu0 %v144
    %2638 = vmatprep.subr.mxu0 0.0
    %2639 = vmatpush1.msra.mxu0 %v143
    %2640 = vmatprep.subr.mxu0 0.0
    %2641 = vmatpush1.msra.mxu0 %v142
    %2642 = vmatprep.subr.mxu0 0.0
    %2643 = vmatpush2.msra.mxu0 0.0
    %2644 = vmatprep.subr.mxu0 0.0
    %2645 = vmatpush2.msra.mxu0 0.0
    %2646 = vmatprep.subr.mxu0 0.0
    %2647 = vmatpush2.msra.mxu0 0.0
    %2648 = vmatprep.subr.mxu0 0.0
    %2649 = vmatpush2.msra.mxu0 0.0
    %2650 = vmatprep.subr.mxu0 0.0
    %2651 = vmatpush2.msra.mxu0 0.0
    %2652 = vmatprep.subr.mxu0 0.0
    %2653 = vmatpush2.msra.mxu0 0.0
    %2654 = vmatprep.subr.mxu0 0.0
    %2655 = vmatpush2.msra.mxu0 0.0
    %2656 = vmatprep.subr.mxu0 0.0
    %2657 = vmatpush2.msra.mxu0 0.0
    %2658 = vmatprep.subr.mxu0 0.0
    %2659 = vmatpush2.msra.mxu0 0.0
    %2660 = vmatprep.subr.mxu0 0.0
    %2661 = vmatpush2.msra.mxu0 0.0
    %2662 = vmatprep.subr.mxu0 0.0
    %2663 = vmatpush2.msra.mxu0 0.0
    %2664 = vmatprep.subr.mxu0 0.0
    %2665 = vmatpush2.msra.mxu0 0.0
    %2666 = vmatprep.subr.mxu0 0.0
    %2667 = vmatpush2.msra.mxu0 0.0
    %2668 = vmatprep.subr.mxu0 0.0
    %2669 = vmatpush2.msra.mxu0 0.0
    %2670 = vmatprep.subr.mxu0 0.0
    %2671 = vmatpush2.msra.mxu0 0.0
    %2672 = vmatprep.subr.mxu0 0.0
    %2673 = vmatpush2.msra.mxu0 0.0
    %2674 = vmatprep.mubr.f32.mxu0 0.0
    %2675 = vmatmul.mubr.f32.gmra.mxu0 %v910
    %v2676 = vpop.f32.mrf.mxu0
    %v2677 = vadd.f32 0.0, %v2676
    %v2678 = vpop.f32.mrf.mxu0
    %2679 = vmatprep.mubr.f32.mxu0 0.0
    %2680 = vmatmul.mubr.f32.gmra.mxu0 %v913
    %v2681 = vpop.f32.mrf.mxu0
    %v2682 = vadd.f32 0.0, %v2681
    %v2683 = vpop.f32.mrf.mxu0
    %2684 = vmatprep.mubr.f32.mxu0 0.0
    %2685 = vmatmul.mubr.f32.gmra.mxu0 %v916
    %v2686 = vpop.f32.mrf.mxu0
    %v2687 = vadd.f32 0.0, %v2686
    %v2688 = vpop.f32.mrf.mxu0
    %2689 = vmatprep.mubr.f32.mxu0 0.0
    %2690 = vmatmul.mubr.f32.gmra.mxu0 %v919
    %v2691 = vpop.f32.mrf.mxu0
    %v2692 = vadd.f32 0.0, %v2691
    %v2693 = vpop.f32.mrf.mxu0
    %2694 = vmatprep.mubr.f32.mxu0 0.0
    %2695 = vmatmul.mubr.f32.gmra.mxu0 %v922
    %v2696 = vpop.f32.mrf.mxu0
    %v2697 = vadd.f32 0.0, %v2696
    %v2698 = vpop.f32.mrf.mxu0
    %2699 = vmatprep.mubr.f32.mxu0 0.0
    %2700 = vmatmul.mubr.f32.gmra.mxu0 %v925
    %v2701 = vpop.f32.mrf.mxu0
    %v2702 = vadd.f32 0.0, %v2701
    %v2703 = vpop.f32.mrf.mxu0
    %2704 = vmatprep.mubr.f32.mxu0 0.0
    %2705 = vmatmul.mubr.f32.gmra.mxu0 %v928
    %v2706 = vpop.f32.mrf.mxu0
    %v2707 = vadd.f32 0.0, %v2706
    %v2708 = vpop.f32.mrf.mxu0
    %2709 = vmatprep.mubr.f32.mxu0 0.0
    %2710 = vmatmul.mubr.f32.gmra.mxu0 %v931
    %v2711 = vpop.f32.mrf.mxu0
    %v2712 = vadd.f32 0.0, %v2711
    %v2713 = vpop.f32.mrf.mxu0
    %2714 = vdwg.mxu0
    %2715 = vmatprep.subr.mxu0 0.0
    %2716 = vmatpush1.msra.mxu0 0.0
    %2717 = vmatprep.subr.mxu0 0.0
    %2718 = vmatpush1.msra.mxu0 0.0
    %2719 = vmatprep.subr.mxu0 0.0
    %2720 = vmatpush1.msra.mxu0 0.0
    %2721 = vmatprep.subr.mxu0 0.0
    %2722 = vmatpush1.msra.mxu0 0.0
    %2723 = vmatprep.subr.mxu0 0.0
    %2724 = vmatpush1.msra.mxu0 0.0
    %2725 = vmatprep.subr.mxu0 0.0
    %2726 = vmatpush1.msra.mxu0 0.0
    %2727 = vmatprep.subr.mxu0 0.0
    %2728 = vmatpush1.msra.mxu0 0.0
    %2729 = vmatprep.subr.mxu0 0.0
    %2730 = vmatpush1.msra.mxu0 0.0
    %2731 = vmatprep.subr.mxu0 0.0
    %2732 = vmatpush1.msra.mxu0 0.0
    %2733 = vmatprep.subr.mxu0 0.0
    %2734 = vmatpush1.msra.mxu0 0.0
    %2735 = vmatprep.subr.mxu0 0.0
    %2736 = vmatpush1.msra.mxu0 0.0
    %2737 = vmatprep.subr.mxu0 0.0
    %2738 = vmatpush1.msra.mxu0 %v306
    %2739 = vmatprep.subr.mxu0 0.0
    %2740 = vmatpush1.msra.mxu0 %v133
    %2741 = vmatprep.subr.mxu0 0.0
    %2742 = vmatpush1.msra.mxu0 %v132
    %2743 = vmatprep.subr.mxu0 0.0
    %2744 = vmatpush1.msra.mxu0 %v131
    %2745 = vmatprep.subr.mxu0 0.0
    %2746 = vmatpush1.msra.mxu0 %v130
    %2747 = vmatprep.subr.mxu0 0.0
    %2748 = vmatpush2.msra.mxu0 0.0
    %2749 = vmatprep.subr.mxu0 0.0
    %2750 = vmatpush2.msra.mxu0 0.0
    %2751 = vmatprep.subr.mxu0 0.0
    %2752 = vmatpush2.msra.mxu0 0.0
    %2753 = vmatprep.subr.mxu0 0.0
    %2754 = vmatpush2.msra.mxu0 0.0
    %2755 = vmatprep.subr.mxu0 0.0
    %2756 = vmatpush2.msra.mxu0 0.0
    %2757 = vmatprep.subr.mxu0 0.0
    %2758 = vmatpush2.msra.mxu0 0.0
    %2759 = vmatprep.subr.mxu0 0.0
    %2760 = vmatpush2.msra.mxu0 0.0
    %2761 = vmatprep.subr.mxu0 0.0
    %2762 = vmatpush2.msra.mxu0 0.0
    %2763 = vmatprep.subr.mxu0 0.0
    %2764 = vmatpush2.msra.mxu0 0.0
    %2765 = vmatprep.subr.mxu0 0.0
    %2766 = vmatpush2.msra.mxu0 0.0
    %2767 = vmatprep.subr.mxu0 0.0
    %2768 = vmatpush2.msra.mxu0 0.0
    %2769 = vmatprep.subr.mxu0 0.0
    %2770 = vmatpush2.msra.mxu0 0.0
    %2771 = vmatprep.subr.mxu0 0.0
    %2772 = vmatpush2.msra.mxu0 0.0
    %2773 = vmatprep.subr.mxu0 0.0
    %2774 = vmatpush2.msra.mxu0 0.0
    %2775 = vmatprep.subr.mxu0 0.0
    %2776 = vmatpush2.msra.mxu0 0.0
    %2777 = vmatprep.subr.mxu0 0.0
    %2778 = vmatpush2.msra.mxu0 0.0
    %2779 = vmatprep.mubr.f32.mxu0 0.0
    %2780 = vmatmul.mubr.f32.gmra.mxu0 %v642
    %v2781 = vpop.f32.mrf.mxu0
    %v2782 = vadd.f32 %v2677, %v2781
    %v2783 = vpop.f32.mrf.mxu0
    %2784 = vmatprep.mubr.f32.mxu0 0.0
    %2785 = vmatmul.mubr.f32.gmra.mxu0 %v645
    %v2786 = vpop.f32.mrf.mxu0
    %v2787 = vadd.f32 %v2682, %v2786
    %v2788 = vpop.f32.mrf.mxu0
    %2789 = vmatprep.mubr.f32.mxu0 0.0
    %2790 = vmatmul.mubr.f32.gmra.mxu0 %v648
    %v2791 = vpop.f32.mrf.mxu0
    %v2792 = vadd.f32 %v2687, %v2791
    %v2793 = vpop.f32.mrf.mxu0
    %2794 = vmatprep.mubr.f32.mxu0 0.0
    %2795 = vmatmul.mubr.f32.gmra.mxu0 %v651
    %v2796 = vpop.f32.mrf.mxu0
    %v2797 = vadd.f32 %v2692, %v2796
    %v2798 = vpop.f32.mrf.mxu0
    %2799 = vmatprep.mubr.f32.mxu0 0.0
    %2800 = vmatmul.mubr.f32.gmra.mxu0 %v654
    %v2801 = vpop.f32.mrf.mxu0
    %v2802 = vadd.f32 %v2697, %v2801
    %v2803 = vpop.f32.mrf.mxu0
    %2804 = vmatprep.mubr.f32.mxu0 0.0
    %2805 = vmatmul.mubr.f32.gmra.mxu0 %v657
    %v2806 = vpop.f32.mrf.mxu0
    %v2807 = vadd.f32 %v2702, %v2806
    %v2808 = vpop.f32.mrf.mxu0
    %2809 = vmatprep.mubr.f32.mxu0 0.0
    %2810 = vmatmul.mubr.f32.gmra.mxu0 %v660
    %v2811 = vpop.f32.mrf.mxu0
    %v2812 = vadd.f32 %v2707, %v2811
    %v2813 = vpop.f32.mrf.mxu0
    %2814 = vmatprep.mubr.f32.mxu0 0.0
    %2815 = vmatmul.mubr.f32.gmra.mxu0 %v663
    %v2816 = vpop.f32.mrf.mxu0
    %v2817 = vadd.f32 %v2712, %v2816
    %v2818 = vpop.f32.mrf.mxu0
    %2819 = vdwg.mxu0
    %2820 = vmatprep.subr.mxu0 0.0
    %2821 = vmatpush1.msra.mxu0 0.0
    %2822 = vmatprep.subr.mxu0 0.0
    %2823 = vmatpush1.msra.mxu0 0.0
    %2824 = vmatprep.subr.mxu0 0.0
    %2825 = vmatpush1.msra.mxu0 0.0
    %2826 = vmatprep.subr.mxu0 0.0
    %2827 = vmatpush1.msra.mxu0 0.0
    %2828 = vmatprep.subr.mxu0 0.0
    %2829 = vmatpush1.msra.mxu0 0.0
    %2830 = vmatprep.subr.mxu0 0.0
    %2831 = vmatpush1.msra.mxu0 0.0
    %2832 = vmatprep.subr.mxu0 0.0
    %2833 = vmatpush1.msra.mxu0 0.0
    %2834 = vmatprep.subr.mxu0 0.0
    %2835 = vmatpush1.msra.mxu0 0.0
    %2836 = vmatprep.subr.mxu0 0.0
    %2837 = vmatpush1.msra.mxu0 0.0
    %2838 = vmatprep.subr.mxu0 0.0
    %2839 = vmatpush1.msra.mxu0 0.0
    %2840 = vmatprep.subr.mxu0 0.0
    %2841 = vmatpush1.msra.mxu0 0.0
    %2842 = vmatprep.subr.mxu0 0.0
    %2843 = vmatpush1.msra.mxu0 %v420
    %2844 = vmatprep.subr.mxu0 0.0
    %2845 = vmatpush1.msra.mxu0 %v417
    %2846 = vmatprep.subr.mxu0 0.0
    %2847 = vmatpush1.msra.mxu0 %v416
    %2848 = vmatprep.subr.mxu0 0.0
    %2849 = vmatpush1.msra.mxu0 %v415
    %2850 = vmatprep.subr.mxu0 0.0
    %2851 = vmatpush1.msra.mxu0 %v414
    %2852 = vmatprep.subr.mxu0 0.0
    %2853 = vmatpush2.msra.mxu0 0.0
    %2854 = vmatprep.subr.mxu0 0.0
    %2855 = vmatpush2.msra.mxu0 0.0
    %2856 = vmatprep.subr.mxu0 0.0
    %2857 = vmatpush2.msra.mxu0 0.0
    %2858 = vmatprep.subr.mxu0 0.0
    %2859 = vmatpush2.msra.mxu0 0.0
    %2860 = vmatprep.subr.mxu0 0.0
    %2861 = vmatpush2.msra.mxu0 0.0
    %2862 = vmatprep.subr.mxu0 0.0
    %2863 = vmatpush2.msra.mxu0 0.0
    %2864 = vmatprep.subr.mxu0 0.0
    %2865 = vmatpush2.msra.mxu0 0.0
    %2866 = vmatprep.subr.mxu0 0.0
    %2867 = vmatpush2.msra.mxu0 0.0
    %2868 = vmatprep.subr.mxu0 0.0
    %2869 = vmatpush2.msra.mxu0 0.0
    %2870 = vmatprep.subr.mxu0 0.0
    %2871 = vmatpush2.msra.mxu0 0.0
    %2872 = vmatprep.subr.mxu0 0.0
    %2873 = vmatpush2.msra.mxu0 0.0
    %2874 = vmatprep.subr.mxu0 0.0
    %2875 = vmatpush2.msra.mxu0 0.0
    %2876 = vmatprep.subr.mxu0 0.0
    %2877 = vmatpush2.msra.mxu0 0.0
    %2878 = vmatprep.subr.mxu0 0.0
    %2879 = vmatpush2.msra.mxu0 0.0
    %2880 = vmatprep.subr.mxu0 0.0
    %2881 = vmatpush2.msra.mxu0 0.0
    %2882 = vmatprep.subr.mxu0 0.0
    %2883 = vmatpush2.msra.mxu0 0.0
    %2884 = vmatprep.mubr.f32.mxu0 0.0
    %2885 = vmatmul.mubr.f32.gmra.mxu0 %v910
    %v2886 = vpop.f32.mrf.mxu0
    %v2887 = vadd.f32 0.0, %v2886
    %v2888 = vpop.f32.mrf.mxu0
    %2889 = vmatprep.mubr.f32.mxu0 0.0
    %2890 = vmatmul.mubr.f32.gmra.mxu0 %v913
    %v2891 = vpop.f32.mrf.mxu0
    %v2892 = vadd.f32 0.0, %v2891
    %v2893 = vpop.f32.mrf.mxu0
    %2894 = vmatprep.mubr.f32.mxu0 0.0
    %2895 = vmatmul.mubr.f32.gmra.mxu0 %v916
    %v2896 = vpop.f32.mrf.mxu0
    %v2897 = vadd.f32 0.0, %v2896
    %v2898 = vpop.f32.mrf.mxu0
    %2899 = vmatprep.mubr.f32.mxu0 0.0
    %2900 = vmatmul.mubr.f32.gmra.mxu0 %v919
    %v2901 = vpop.f32.mrf.mxu0
    %v2902 = vadd.f32 0.0, %v2901
    %v2903 = vpop.f32.mrf.mxu0
    %2904 = vmatprep.mubr.f32.mxu0 0.0
    %2905 = vmatmul.mubr.f32.gmra.mxu0 %v922
    %v2906 = vpop.f32.mrf.mxu0
    %v2907 = vadd.f32 0.0, %v2906
    %v2908 = vpop.f32.mrf.mxu0
    %2909 = vmatprep.mubr.f32.mxu0 0.0
    %2910 = vmatmul.mubr.f32.gmra.mxu0 %v925
    %v2911 = vpop.f32.mrf.mxu0
    %v2912 = vadd.f32 0.0, %v2911
    %v2913 = vpop.f32.mrf.mxu0
    %2914 = vmatprep.mubr.f32.mxu0 0.0
    %2915 = vmatmul.mubr.f32.gmra.mxu0 %v928
    %v2916 = vpop.f32.mrf.mxu0
    %v2917 = vadd.f32 0.0, %v2916
    %v2918 = vpop.f32.mrf.mxu0
    %2919 = vmatprep.mubr.f32.mxu0 0.0
    %2920 = vmatmul.mubr.f32.gmra.mxu0 %v931
    %v2921 = vpop.f32.mrf.mxu0
    %v2922 = vadd.f32 0.0, %v2921
    %v2923 = vpop.f32.mrf.mxu0
    %2924 = vdwg.mxu0
    %2925 = vmatprep.subr.mxu0 0.0
    %2926 = vmatpush1.msra.mxu0 0.0
    %2927 = vmatprep.subr.mxu0 0.0
    %2928 = vmatpush1.msra.mxu0 0.0
    %2929 = vmatprep.subr.mxu0 0.0
    %2930 = vmatpush1.msra.mxu0 0.0
    %2931 = vmatprep.subr.mxu0 0.0
    %2932 = vmatpush1.msra.mxu0 0.0
    %2933 = vmatprep.subr.mxu0 0.0
    %2934 = vmatpush1.msra.mxu0 0.0
    %2935 = vmatprep.subr.mxu0 0.0
    %2936 = vmatpush1.msra.mxu0 0.0
    %2937 = vmatprep.subr.mxu0 0.0
    %2938 = vmatpush1.msra.mxu0 0.0
    %2939 = vmatprep.subr.mxu0 0.0
    %2940 = vmatpush1.msra.mxu0 0.0
    %2941 = vmatprep.subr.mxu0 0.0
    %2942 = vmatpush1.msra.mxu0 0.0
    %2943 = vmatprep.subr.mxu0 0.0
    %2944 = vmatpush1.msra.mxu0 0.0
    %2945 = vmatprep.subr.mxu0 0.0
    %2946 = vmatpush1.msra.mxu0 0.0
    %2947 = vmatprep.subr.mxu0 0.0
    %2948 = vmatpush1.msra.mxu0 %v528
    %2949 = vmatprep.subr.mxu0 0.0
    %2950 = vmatpush1.msra.mxu0 %v139
    %2951 = vmatprep.subr.mxu0 0.0
    %2952 = vmatpush1.msra.mxu0 %v138
    %2953 = vmatprep.subr.mxu0 0.0
    %2954 = vmatpush1.msra.mxu0 %v137
    %2955 = vmatprep.subr.mxu0 0.0
    %2956 = vmatpush1.msra.mxu0 %v136
    %2957 = vmatprep.subr.mxu0 0.0
    %2958 = vmatpush2.msra.mxu0 0.0
    %2959 = vmatprep.subr.mxu0 0.0
    %2960 = vmatpush2.msra.mxu0 0.0
    %2961 = vmatprep.subr.mxu0 0.0
    %2962 = vmatpush2.msra.mxu0 0.0
    %2963 = vmatprep.subr.mxu0 0.0
    %2964 = vmatpush2.msra.mxu0 0.0
    %2965 = vmatprep.subr.mxu0 0.0
    %2966 = vmatpush2.msra.mxu0 0.0
    %2967 = vmatprep.subr.mxu0 0.0
    %2968 = vmatpush2.msra.mxu0 0.0
    %2969 = vmatprep.subr.mxu0 0.0
    %2970 = vmatpush2.msra.mxu0 0.0
    %2971 = vmatprep.subr.mxu0 0.0
    %2972 = vmatpush2.msra.mxu0 0.0
    %2973 = vmatprep.subr.mxu0 0.0
    %2974 = vmatpush2.msra.mxu0 0.0
    %2975 = vmatprep.subr.mxu0 0.0
    %2976 = vmatpush2.msra.mxu0 0.0
    %2977 = vmatprep.subr.mxu0 0.0
    %2978 = vmatpush2.msra.mxu0 0.0
    %2979 = vmatprep.subr.mxu0 0.0
    %2980 = vmatpush2.msra.mxu0 0.0
    %2981 = vmatprep.subr.mxu0 0.0
    %2982 = vmatpush2.msra.mxu0 0.0
    %2983 = vmatprep.subr.mxu0 0.0
    %2984 = vmatpush2.msra.mxu0 0.0
    %2985 = vmatprep.subr.mxu0 0.0
    %2986 = vmatpush2.msra.mxu0 0.0
    %2987 = vmatprep.subr.mxu0 0.0
    %2988 = vmatpush2.msra.mxu0 0.0
    %2989 = vmatprep.mubr.f32.mxu0 0.0
    %2990 = vmatmul.mubr.f32.gmra.mxu0 %v642
    %v2991 = vpop.f32.mrf.mxu0
    %v2992 = vadd.f32 %v2887, %v2991
    %v2993 = vpop.f32.mrf.mxu0
    %2994 = vmatprep.mubr.f32.mxu0 0.0
    %2995 = vmatmul.mubr.f32.gmra.mxu0 %v645
    %v2996 = vpop.f32.mrf.mxu0
    %v2997 = vadd.f32 %v2892, %v2996
    %v2998 = vpop.f32.mrf.mxu0
    %2999 = vmatprep.mubr.f32.mxu0 0.0
    %3000 = vmatmul.mubr.f32.gmra.mxu0 %v648
    %v3001 = vpop.f32.mrf.mxu0
    %v3002 = vadd.f32 %v2897, %v3001
    %v3003 = vpop.f32.mrf.mxu0
    %3004 = vmatprep.mubr.f32.mxu0 0.0
    %3005 = vmatmul.mubr.f32.gmra.mxu0 %v651
    %v3006 = vpop.f32.mrf.mxu0
    %v3007 = vadd.f32 %v2902, %v3006
    %v3008 = vpop.f32.mrf.mxu0
    %3009 = vmatprep.mubr.f32.mxu0 0.0
    %3010 = vmatmul.mubr.f32.gmra.mxu0 %v654
    %v3011 = vpop.f32.mrf.mxu0
    %v3012 = vadd.f32 %v2907, %v3011
    %v3013 = vpop.f32.mrf.mxu0
    %3014 = vmatprep.mubr.f32.mxu0 0.0
    %3015 = vmatmul.mubr.f32.gmra.mxu0 %v657
    %v3016 = vpop.f32.mrf.mxu0
    %v3017 = vadd.f32 %v2912, %v3016
    %v3018 = vpop.f32.mrf.mxu0
    %3019 = vmatprep.mubr.f32.mxu0 0.0
    %3020 = vmatmul.mubr.f32.gmra.mxu0 %v660
    %v3021 = vpop.f32.mrf.mxu0
    %v3022 = vadd.f32 %v2917, %v3021
    %v3023 = vpop.f32.mrf.mxu0
    %3024 = vmatprep.mubr.f32.mxu0 0.0
    %3025 = vmatmul.mubr.f32.gmra.mxu0 %v663
    %v3026 = vpop.f32.mrf.mxu0
    %v3027 = vadd.f32 %v2922, %v3026
    %v3028 = vpop.f32.mrf.mxu0
    %3029 = vdwg.mxu0
    %3030 = vmatprep.subr.mxu0 0.0
    %3031 = vmatpush1.msra.mxu0 0.0
    %3032 = vmatprep.subr.mxu0 0.0
    %3033 = vmatpush1.msra.mxu0 0.0
    %3034 = vmatprep.subr.mxu0 0.0
    %3035 = vmatpush1.msra.mxu0 0.0
    %3036 = vmatprep.subr.mxu0 0.0
    %3037 = vmatpush1.msra.mxu0 0.0
    %3038 = vmatprep.subr.mxu0 0.0
    %3039 = vmatpush1.msra.mxu0 0.0
    %3040 = vmatprep.subr.mxu0 0.0
    %3041 = vmatpush1.msra.mxu0 0.0
    %3042 = vmatprep.subr.mxu0 0.0
    %3043 = vmatpush1.msra.mxu0 0.0
    %3044 = vmatprep.subr.mxu0 0.0
    %3045 = vmatpush1.msra.mxu0 0.0
    %3046 = vmatprep.subr.mxu0 0.0
    %3047 = vmatpush1.msra.mxu0 0.0
    %3048 = vmatprep.subr.mxu0 0.0
    %3049 = vmatpush1.msra.mxu0 0.0
    %3050 = vmatprep.subr.mxu0 0.0
    %3051 = vmatpush1.msra.mxu0 0.0
    %3052 = vmatprep.subr.mxu0 0.0
    %3053 = vmatpush1.msra.mxu0 %v666
    %3054 = vmatprep.subr.mxu0 0.0
    %3055 = vmatpush1.msra.mxu0 %v639
    %3056 = vmatprep.subr.mxu0 0.0
    %3057 = vmatpush1.msra.mxu0 %v638
    %3058 = vmatprep.subr.mxu0 0.0
    %3059 = vmatpush1.msra.mxu0 %v637
    %3060 = vmatprep.subr.mxu0 0.0
    %3061 = vmatpush1.msra.mxu0 %v636
    %3062 = vmatprep.subr.mxu0 0.0
    %3063 = vmatpush2.msra.mxu0 0.0
    %3064 = vmatprep.subr.mxu0 0.0
    %3065 = vmatpush2.msra.mxu0 0.0
    %3066 = vmatprep.subr.mxu0 0.0
    %3067 = vmatpush2.msra.mxu0 0.0
    %3068 = vmatprep.subr.mxu0 0.0
    %3069 = vmatpush2.msra.mxu0 0.0
    %3070 = vmatprep.subr.mxu0 0.0
    %3071 = vmatpush2.msra.mxu0 0.0
    %3072 = vmatprep.subr.mxu0 0.0
    %3073 = vmatpush2.msra.mxu0 0.0
    %3074 = vmatprep.subr.mxu0 0.0
    %3075 = vmatpush2.msra.mxu0 0.0
    %3076 = vmatprep.subr.mxu0 0.0
    %3077 = vmatpush2.msra.mxu0 0.0
    %3078 = vmatprep.subr.mxu0 0.0
    %3079 = vmatpush2.msra.mxu0 0.0
    %3080 = vmatprep.subr.mxu0 0.0
    %3081 = vmatpush2.msra.mxu0 0.0
    %3082 = vmatprep.subr.mxu0 0.0
    %3083 = vmatpush2.msra.mxu0 0.0
    %3084 = vmatprep.subr.mxu0 0.0
    %3085 = vmatpush2.msra.mxu0 0.0
    %3086 = vmatprep.subr.mxu0 0.0
    %3087 = vmatpush2.msra.mxu0 0.0
    %3088 = vmatprep.subr.mxu0 0.0
    %3089 = vmatpush2.msra.mxu0 0.0
    %3090 = vmatprep.subr.mxu0 0.0
    %3091 = vmatpush2.msra.mxu0 0.0
    %3092 = vmatprep.subr.mxu0 0.0
    %3093 = vmatpush2.msra.mxu0 0.0
    %3094 = vmatprep.mubr.f32.mxu0 0.0
    %3095 = vmatmul.mubr.f32.gmra.mxu0 %v1210
    %v3096 = vpop.f32.mrf.mxu0
    %v3097 = vadd.f32 0.0, %v3096
    %v3098 = vpop.f32.mrf.mxu0
    %3099 = vmatprep.mubr.f32.mxu0 0.0
    %3100 = vmatmul.mubr.f32.gmra.mxu0 %v1212
    %v3101 = vpop.f32.mrf.mxu0
    %v3102 = vadd.f32 0.0, %v3101
    %v3103 = vpop.f32.mrf.mxu0
    %3104 = vmatprep.mubr.f32.mxu0 0.0
    %3105 = vmatmul.mubr.f32.gmra.mxu0 %v1214
    %v3106 = vpop.f32.mrf.mxu0
    %v3107 = vadd.f32 0.0, %v3106
    %v3108 = vpop.f32.mrf.mxu0
    %3109 = vmatprep.mubr.f32.mxu0 0.0
    %3110 = vmatmul.mubr.f32.gmra.mxu0 %v1216
    %v3111 = vpop.f32.mrf.mxu0
    %v3112 = vadd.f32 0.0, %v3111
    %v3113 = vpop.f32.mrf.mxu0
    %3114 = vmatprep.mubr.f32.mxu0 0.0
    %3115 = vmatmul.mubr.f32.gmra.mxu0 %v1218
    %v3116 = vpop.f32.mrf.mxu0
    %v3117 = vadd.f32 0.0, %v3116
    %v3118 = vpop.f32.mrf.mxu0
    %3119 = vmatprep.mubr.f32.mxu0 0.0
    %3120 = vmatmul.mubr.f32.gmra.mxu0 %v1220
    %v3121 = vpop.f32.mrf.mxu0
    %v3122 = vadd.f32 0.0, %v3121
    %v3123 = vpop.f32.mrf.mxu0
    %3124 = vmatprep.mubr.f32.mxu0 0.0
    %3125 = vmatmul.mubr.f32.gmra.mxu0 %v1222
    %v3126 = vpop.f32.mrf.mxu0
    %v3127 = vadd.f32 0.0, %v3126
    %v3128 = vpop.f32.mrf.mxu0
    %3129 = vmatprep.mubr.f32.mxu0 0.0
    %3130 = vmatmul.mubr.f32.gmra.mxu0 %v1224
    %v3131 = vpop.f32.mrf.mxu0
    %v3132 = vadd.f32 0.0, %v3131
    %v3133 = vpop.f32.mrf.mxu0
    %3134 = vdwg.mxu0
    %v3135 = vadd.f32 %v2782, %v3097
    %v3136 = vadd.f32 %v2787, %v3102
    %v3137 = vadd.f32 %v2792, %v3107
    %v3138 = vadd.f32 %v2797, %v3112
    %v3139 = vadd.f32 %v2802, %v3117
    %v3140 = vadd.f32 %v2807, %v3122
    %v3141 = vadd.f32 %v2812, %v3127
    %v3142 = vadd.f32 %v2817, %v3132
    %3143 = vmatprep.subr.mxu0 0.0
    %3144 = vmatpush1.msra.mxu0 0.0
    %3145 = vmatprep.subr.mxu0 0.0
    %3146 = vmatpush1.msra.mxu0 0.0
    %3147 = vmatprep.subr.mxu0 0.0
    %3148 = vmatpush1.msra.mxu0 0.0
    %3149 = vmatprep.subr.mxu0 0.0
    %3150 = vmatpush1.msra.mxu0 0.0
    %3151 = vmatprep.subr.mxu0 0.0
    %3152 = vmatpush1.msra.mxu0 0.0
    %3153 = vmatprep.subr.mxu0 0.0
    %3154 = vmatpush1.msra.mxu0 0.0
    %3155 = vmatprep.subr.mxu0 0.0
    %3156 = vmatpush1.msra.mxu0 0.0
    %3157 = vmatprep.subr.mxu0 0.0
    %3158 = vmatpush1.msra.mxu0 0.0
    %3159 = vmatprep.subr.mxu0 0.0
    %3160 = vmatpush1.msra.mxu0 0.0
    %3161 = vmatprep.subr.mxu0 0.0
    %3162 = vmatpush1.msra.mxu0 0.0
    %3163 = vmatprep.subr.mxu0 0.0
    %3164 = vmatpush1.msra.mxu0 0.0
    %3165 = vmatprep.subr.mxu0 0.0
    %3166 = vmatpush1.msra.mxu0 %v788
    %3167 = vmatprep.subr.mxu0 0.0
    %3168 = vmatpush1.msra.mxu0 %v785
    %3169 = vmatprep.subr.mxu0 0.0
    %3170 = vmatpush1.msra.mxu0 %v784
    %3171 = vmatprep.subr.mxu0 0.0
    %3172 = vmatpush1.msra.mxu0 %v783
    %3173 = vmatprep.subr.mxu0 0.0
    %3174 = vmatpush1.msra.mxu0 %v782
    %3175 = vmatprep.subr.mxu0 0.0
    %3176 = vmatpush2.msra.mxu0 0.0
    %3177 = vmatprep.subr.mxu0 0.0
    %3178 = vmatpush2.msra.mxu0 0.0
    %3179 = vmatprep.subr.mxu0 0.0
    %3180 = vmatpush2.msra.mxu0 0.0
    %3181 = vmatprep.subr.mxu0 0.0
    %3182 = vmatpush2.msra.mxu0 0.0
    %3183 = vmatprep.subr.mxu0 0.0
    %3184 = vmatpush2.msra.mxu0 0.0
    %3185 = vmatprep.subr.mxu0 0.0
    %3186 = vmatpush2.msra.mxu0 0.0
    %3187 = vmatprep.subr.mxu0 0.0
    %3188 = vmatpush2.msra.mxu0 0.0
    %3189 = vmatprep.subr.mxu0 0.0
    %3190 = vmatpush2.msra.mxu0 0.0
    %3191 = vmatprep.subr.mxu0 0.0
    %3192 = vmatpush2.msra.mxu0 0.0
    %3193 = vmatprep.subr.mxu0 0.0
    %3194 = vmatpush2.msra.mxu0 0.0
    %3195 = vmatprep.subr.mxu0 0.0
    %3196 = vmatpush2.msra.mxu0 0.0
    %3197 = vmatprep.subr.mxu0 0.0
    %3198 = vmatpush2.msra.mxu0 0.0
    %3199 = vmatprep.subr.mxu0 0.0
    %3200 = vmatpush2.msra.mxu0 0.0
    %3201 = vmatprep.subr.mxu0 0.0
    %3202 = vmatpush2.msra.mxu0 0.0
    %3203 = vmatprep.subr.mxu0 0.0
    %3204 = vmatpush2.msra.mxu0 0.0
    %3205 = vmatprep.subr.mxu0 0.0
    %3206 = vmatpush2.msra.mxu0 0.0
    %3207 = vmatprep.mubr.f32.mxu0 0.0
    %3208 = vmatmul.mubr.f32.gmra.mxu0 %v1210
    %v3209 = vpop.f32.mrf.mxu0
    %v3210 = vadd.f32 0.0, %v3209
    %v3211 = vpop.f32.mrf.mxu0
    %3212 = vmatprep.mubr.f32.mxu0 0.0
    %3213 = vmatmul.mubr.f32.gmra.mxu0 %v1212
    %v3214 = vpop.f32.mrf.mxu0
    %v3215 = vadd.f32 0.0, %v3214
    %v3216 = vpop.f32.mrf.mxu0
    %3217 = vmatprep.mubr.f32.mxu0 0.0
    %3218 = vmatmul.mubr.f32.gmra.mxu0 %v1214
    %v3219 = vpop.f32.mrf.mxu0
    %v3220 = vadd.f32 0.0, %v3219
    %v3221 = vpop.f32.mrf.mxu0
    %3222 = vmatprep.mubr.f32.mxu0 0.0
    %3223 = vmatmul.mubr.f32.gmra.mxu0 %v1216
    %v3224 = vpop.f32.mrf.mxu0
    %v3225 = vadd.f32 0.0, %v3224
    %v3226 = vpop.f32.mrf.mxu0
    %3227 = vmatprep.mubr.f32.mxu0 0.0
    %3228 = vmatmul.mubr.f32.gmra.mxu0 %v1218
    %v3229 = vpop.f32.mrf.mxu0
    %v3230 = vadd.f32 0.0, %v3229
    %v3231 = vpop.f32.mrf.mxu0
    %3232 = vmatprep.mubr.f32.mxu0 0.0
    %3233 = vmatmul.mubr.f32.gmra.mxu0 %v1220
    %v3234 = vpop.f32.mrf.mxu0
    %v3235 = vadd.f32 0.0, %v3234
    %v3236 = vpop.f32.mrf.mxu0
    %3237 = vmatprep.mubr.f32.mxu0 0.0
    %3238 = vmatmul.mubr.f32.gmra.mxu0 %v1222
    %v3239 = vpop.f32.mrf.mxu0
    %v3240 = vadd.f32 0.0, %v3239
    %v3241 = vpop.f32.mrf.mxu0
    %3242 = vmatprep.mubr.f32.mxu0 0.0
    %3243 = vmatmul.mubr.f32.gmra.mxu0 %v1224
    %v3244 = vpop.f32.mrf.mxu0
    %v3245 = vadd.f32 0.0, %v3244
    %v3246 = vpop.f32.mrf.mxu0
    %3247 = vdwg.mxu0
    %v3248 = vadd.f32 %v2992, %v3210
    %v3249 = vadd.f32 %v2997, %v3215
    %v3250 = vadd.f32 %v3002, %v3220
    %v3251 = vadd.f32 %v3007, %v3225
    %v3252 = vadd.f32 %v3012, %v3230
    %v3253 = vadd.f32 %v3017, %v3235
    %v3254 = vadd.f32 %v3022, %v3240
    %v3255 = vadd.f32 %v3027, %v3245
    %3256 = vmatprep.subr.mxu0 0.0
    %3257 = vmatpush1.msra.mxu0 0.0
    %3258 = vmatprep.subr.mxu0 0.0
    %3259 = vmatpush1.msra.mxu0 0.0
    %3260 = vmatprep.subr.mxu0 0.0
    %3261 = vmatpush1.msra.mxu0 0.0
    %3262 = vmatprep.subr.mxu0 0.0
    %3263 = vmatpush1.msra.mxu0 0.0
    %3264 = vmatprep.subr.mxu0 0.0
    %3265 = vmatpush1.msra.mxu0 0.0
    %3266 = vmatprep.subr.mxu0 0.0
    %3267 = vmatpush1.msra.mxu0 0.0
    %3268 = vmatprep.subr.mxu0 0.0
    %3269 = vmatpush1.msra.mxu0 0.0
    %3270 = vmatprep.subr.mxu0 0.0
    %3271 = vmatpush1.msra.mxu0 0.0
    %3272 = vmatprep.subr.mxu0 0.0
    %3273 = vmatpush1.msra.mxu0 0.0
    %3274 = vmatprep.subr.mxu0 0.0
    %3275 = vmatpush1.msra.mxu0 0.0
    %3276 = vmatprep.subr.mxu0 0.0
    %3277 = vmatpush1.msra.mxu0 0.0
    %3278 = vmatprep.subr.mxu0 0.0
    %3279 = vmatpush1.msra.mxu0 %v934
    %3280 = vmatprep.subr.mxu0 0.0
    %3281 = vmatpush1.msra.mxu0 %v907
    %3282 = vmatprep.subr.mxu0 0.0
    %3283 = vmatpush1.msra.mxu0 %v906
    %3284 = vmatprep.subr.mxu0 0.0
    %3285 = vmatpush1.msra.mxu0 %v905
    %3286 = vmatprep.subr.mxu0 0.0
    %3287 = vmatpush1.msra.mxu0 %v904
    %3288 = vmatprep.subr.mxu0 0.0
    %3289 = vmatpush2.msra.mxu0 0.0
    %3290 = vmatprep.subr.mxu0 0.0
    %3291 = vmatpush2.msra.mxu0 0.0
    %3292 = vmatprep.subr.mxu0 0.0
    %3293 = vmatpush2.msra.mxu0 0.0
    %3294 = vmatprep.subr.mxu0 0.0
    %3295 = vmatpush2.msra.mxu0 0.0
    %3296 = vmatprep.subr.mxu0 0.0
    %3297 = vmatpush2.msra.mxu0 0.0
    %3298 = vmatprep.subr.mxu0 0.0
    %3299 = vmatpush2.msra.mxu0 0.0
    %3300 = vmatprep.subr.mxu0 0.0
    %3301 = vmatpush2.msra.mxu0 0.0
    %3302 = vmatprep.subr.mxu0 0.0
    %3303 = vmatpush2.msra.mxu0 0.0
    %3304 = vmatprep.subr.mxu0 0.0
    %3305 = vmatpush2.msra.mxu0 0.0
    %3306 = vmatprep.subr.mxu0 0.0
    %3307 = vmatpush2.msra.mxu0 0.0
    %3308 = vmatprep.subr.mxu0 0.0
    %3309 = vmatpush2.msra.mxu0 0.0
    %3310 = vmatprep.subr.mxu0 0.0
    %3311 = vmatpush2.msra.mxu0 0.0
    %3312 = vmatprep.subr.mxu0 0.0
    %3313 = vmatpush2.msra.mxu0 0.0
    %3314 = vmatprep.subr.mxu0 0.0
    %3315 = vmatpush2.msra.mxu0 0.0
    %3316 = vmatprep.subr.mxu0 0.0
    %3317 = vmatpush2.msra.mxu0 0.0
    %3318 = vmatprep.subr.mxu0 0.0
    %3319 = vmatpush2.msra.mxu0 0.0
    %3320 = vmatprep.mubr.f32.mxu0 0.0
    %3321 = vmatmul.mubr.f32.gmra.mxu0 %v2368
    %v3322 = vpop.f32.mrf.mxu0
    %v3323 = vadd.f32 0.0, %v3322
    %v3324 = vpop.f32.mrf.mxu0
    %3325 = vmatprep.mubr.f32.mxu0 0.0
    %3326 = vmatmul.mubr.f32.gmra.mxu0 %v2370
    %v3327 = vpop.f32.mrf.mxu0
    %v3328 = vadd.f32 0.0, %v3327
    %v3329 = vpop.f32.mrf.mxu0
    %3330 = vmatprep.mubr.f32.mxu0 0.0
    %3331 = vmatmul.mubr.f32.gmra.mxu0 %v2372
    %v3332 = vpop.f32.mrf.mxu0
    %v3333 = vadd.f32 0.0, %v3332
    %v3334 = vpop.f32.mrf.mxu0
    %3335 = vmatprep.mubr.f32.mxu0 0.0
    %3336 = vmatmul.mubr.f32.gmra.mxu0 %v2374
    %v3337 = vpop.f32.mrf.mxu0
    %v3338 = vadd.f32 0.0, %v3337
    %v3339 = vpop.f32.mrf.mxu0
    %3340 = vmatprep.mubr.f32.mxu0 0.0
    %3341 = vmatmul.mubr.f32.gmra.mxu0 %v2376
    %v3342 = vpop.f32.mrf.mxu0
    %v3343 = vadd.f32 0.0, %v3342
    %v3344 = vpop.f32.mrf.mxu0
    %3345 = vmatprep.mubr.f32.mxu0 0.0
    %3346 = vmatmul.mubr.f32.gmra.mxu0 %v2378
    %v3347 = vpop.f32.mrf.mxu0
    %v3348 = vadd.f32 0.0, %v3347
    %v3349 = vpop.f32.mrf.mxu0
    %3350 = vmatprep.mubr.f32.mxu0 0.0
    %3351 = vmatmul.mubr.f32.gmra.mxu0 %v2380
    %v3352 = vpop.f32.mrf.mxu0
    %v3353 = vadd.f32 0.0, %v3352
    %v3354 = vpop.f32.mrf.mxu0
    %3355 = vmatprep.mubr.f32.mxu0 0.0
    %3356 = vmatmul.mubr.f32.gmra.mxu0 %v2382
    %v3357 = vpop.f32.mrf.mxu0
    %v3358 = vadd.f32 0.0, %v3357
    %v3359 = vpop.f32.mrf.mxu0
    %3360 = vdwg.mxu0
    %v3361 = vadd.f32 %v3135, %v3323
    %v3362 = vadd.f32 %v3136, %v3328
    %v3363 = vadd.f32 %v3137, %v3333
    %v3364 = vadd.f32 %v3138, %v3338
    %v3365 = vadd.f32 %v3139, %v3343
    %v3366 = vadd.f32 %v3140, %v3348
    %v3367 = vadd.f32 %v3141, %v3353
    %v3368 = vadd.f32 %v3142, %v3358
    %3369 = vmatprep.subr.mxu0 0.0
    %3370 = vmatpush1.msra.mxu0 0.0
    %3371 = vmatprep.subr.mxu0 0.0
    %3372 = vmatpush1.msra.mxu0 0.0
    %3373 = vmatprep.subr.mxu0 0.0
    %3374 = vmatpush1.msra.mxu0 0.0
    %3375 = vmatprep.subr.mxu0 0.0
    %3376 = vmatpush1.msra.mxu0 0.0
    %3377 = vmatprep.subr.mxu0 0.0
    %3378 = vmatpush1.msra.mxu0 0.0
    %3379 = vmatprep.subr.mxu0 0.0
    %3380 = vmatpush1.msra.mxu0 0.0
    %3381 = vmatprep.subr.mxu0 0.0
    %3382 = vmatpush1.msra.mxu0 0.0
    %3383 = vmatprep.subr.mxu0 0.0
    %3384 = vmatpush1.msra.mxu0 0.0
    %3385 = vmatprep.subr.mxu0 0.0
    %3386 = vmatpush1.msra.mxu0 0.0
    %3387 = vmatprep.subr.mxu0 0.0
    %3388 = vmatpush1.msra.mxu0 0.0
    %3389 = vmatprep.subr.mxu0 0.0
    %3390 = vmatpush1.msra.mxu0 0.0
    %3391 = vmatprep.subr.mxu0 0.0
    %3392 = vmatpush1.msra.mxu0 %v1056
    %3393 = vmatprep.subr.mxu0 0.0
    %3394 = vmatpush1.msra.mxu0 %v1053
    %3395 = vmatprep.subr.mxu0 0.0
    %3396 = vmatpush1.msra.mxu0 %v1052
    %3397 = vmatprep.subr.mxu0 0.0
    %3398 = vmatpush1.msra.mxu0 %v1051
    %3399 = vmatprep.subr.mxu0 0.0
    %3400 = vmatpush1.msra.mxu0 %v1050
    %3401 = vmatprep.subr.mxu0 0.0
    %3402 = vmatpush2.msra.mxu0 0.0
    %3403 = vmatprep.subr.mxu0 0.0
    %3404 = vmatpush2.msra.mxu0 0.0
    %3405 = vmatprep.subr.mxu0 0.0
    %3406 = vmatpush2.msra.mxu0 0.0
    %3407 = vmatprep.subr.mxu0 0.0
    %3408 = vmatpush2.msra.mxu0 0.0
    %3409 = vmatprep.subr.mxu0 0.0
    %3410 = vmatpush2.msra.mxu0 0.0
    %3411 = vmatprep.subr.mxu0 0.0
    %3412 = vmatpush2.msra.mxu0 0.0
    %3413 = vmatprep.subr.mxu0 0.0
    %3414 = vmatpush2.msra.mxu0 0.0
    %3415 = vmatprep.subr.mxu0 0.0
    %3416 = vmatpush2.msra.mxu0 0.0
    %3417 = vmatprep.subr.mxu0 0.0
    %3418 = vmatpush2.msra.mxu0 0.0
    %3419 = vmatprep.subr.mxu0 0.0
    %3420 = vmatpush2.msra.mxu0 0.0
    %3421 = vmatprep.subr.mxu0 0.0
    %3422 = vmatpush2.msra.mxu0 0.0
    %3423 = vmatprep.subr.mxu0 0.0
    %3424 = vmatpush2.msra.mxu0 0.0
    %3425 = vmatprep.subr.mxu0 0.0
    %3426 = vmatpush2.msra.mxu0 0.0
    %3427 = vmatprep.subr.mxu0 0.0
    %3428 = vmatpush2.msra.mxu0 0.0
    %3429 = vmatprep.subr.mxu0 0.0
    %3430 = vmatpush2.msra.mxu0 0.0
    %3431 = vmatprep.subr.mxu0 0.0
    %3432 = vmatpush2.msra.mxu0 0.0
    %3433 = vmatprep.mubr.f32.mxu0 0.0
    %3434 = vmatmul.mubr.f32.gmra.mxu0 %v2368
    %v3435 = vpop.f32.mrf.mxu0
    %v3436 = vadd.f32 0.0, %v3435
    %v3437 = vpop.f32.mrf.mxu0
    %3438 = vmatprep.mubr.f32.mxu0 0.0
    %3439 = vmatmul.mubr.f32.gmra.mxu0 %v2370
    %v3440 = vpop.f32.mrf.mxu0
    %v3441 = vadd.f32 0.0, %v3440
    %v3442 = vpop.f32.mrf.mxu0
    %3443 = vmatprep.mubr.f32.mxu0 0.0
    %3444 = vmatmul.mubr.f32.gmra.mxu0 %v2372
    %v3445 = vpop.f32.mrf.mxu0
    %v3446 = vadd.f32 0.0, %v3445
    %v3447 = vpop.f32.mrf.mxu0
    %3448 = vmatprep.mubr.f32.mxu0 0.0
    %3449 = vmatmul.mubr.f32.gmra.mxu0 %v2374
    %v3450 = vpop.f32.mrf.mxu0
    %v3451 = vadd.f32 0.0, %v3450
    %v3452 = vpop.f32.mrf.mxu0
    %3453 = vmatprep.mubr.f32.mxu0 0.0
    %3454 = vmatmul.mubr.f32.gmra.mxu0 %v2376
    %v3455 = vpop.f32.mrf.mxu0
    %v3456 = vadd.f32 0.0, %v3455
    %v3457 = vpop.f32.mrf.mxu0
    %3458 = vmatprep.mubr.f32.mxu0 0.0
    %3459 = vmatmul.mubr.f32.gmra.mxu0 %v2378
    %v3460 = vpop.f32.mrf.mxu0
    %v3461 = vadd.f32 0.0, %v3460
    %v3462 = vpop.f32.mrf.mxu0
    %3463 = vmatprep.mubr.f32.mxu0 0.0
    %3464 = vmatmul.mubr.f32.gmra.mxu0 %v2380
    %v3465 = vpop.f32.mrf.mxu0
    %v3466 = vadd.f32 0.0, %v3465
    %v3467 = vpop.f32.mrf.mxu0
    %3468 = vmatprep.mubr.f32.mxu0 0.0
    %3469 = vmatmul.mubr.f32.gmra.mxu0 %v2382
    %v3470 = vpop.f32.mrf.mxu0
    %v3471 = vadd.f32 0.0, %v3470
    %v3472 = vpop.f32.mrf.mxu0
    %3473 = vdwg.mxu0
    %v3474 = vadd.f32 %v3248, %v3436
    %v3475 = vadd.f32 %v3249, %v3441
    %v3476 = vadd.f32 %v3250, %v3446
    %v3477 = vadd.f32 %v3251, %v3451
    %v3478 = vadd.f32 %v3252, %v3456
    %v3479 = vadd.f32 %v3253, %v3461
    %v3480 = vadd.f32 %v3254, %v3466
    %v3481 = vadd.f32 %v3255, %v3471
    %v3490 = vrot.slane %v70, 1
    %v3491 = vrot.slane %v71, 1
    %v3492 = vsel %vm1179, %v3490, %v3491
    %v3493 = vrot.slane %v78, 1
    %v3494 = vrot.slane %v79, 1
    %v3495 = vsel %vm1179, %v3493, %v3494
    %v3496 = vrot.slane %v86, 1
    %v3497 = vrot.slane %v87, 1
    %v3498 = vsel %vm1179, %v3496, %v3497
    %v3499 = vrot.slane %v94, 1
    %v3500 = vrot.slane %v95, 1
    %v3501 = vsel %vm1179, %v3499, %v3500
    %v3502 = vrot.slane %v102, 1
    %v3503 = vrot.slane %v103, 1
    %v3504 = vsel %vm1179, %v3502, %v3503
    %v3505 = vrot.slane %v110, 1
    %v3506 = vrot.slane %v111, 1
    %v3507 = vsel %vm1179, %v3505, %v3506
    %v3508 = vrot.slane %v118, 1
    %v3509 = vrot.slane %v119, 1
    %v3510 = vsel %vm1179, %v3508, %v3509
    %v3511 = vrot.slane %v126, 1
    %v3512 = vrot.slane %v127, 1
    %v3513 = vsel %vm1179, %v3511, %v3512
    %v3514 = vsel %vm147, %v3492, 0
    %v3516 = vsel %vm147, %v3495, 0
    %v3518 = vsel %vm147, %v3498, 0
    %v3520 = vsel %vm147, %v3501, 0
    %v3522 = vsel %vm147, %v3504, 0
    %v3524 = vsel %vm147, %v3507, 0
    %v3526 = vsel %vm147, %v3510, 0
    %v3528 = vsel %vm147, %v3513, 0
    %3530 = vmatprep.subr.mxu0 0.0
    %3531 = vmatpush1.msra.mxu0 0.0
    %3532 = vmatprep.subr.mxu0 0.0
    %3533 = vmatpush1.msra.mxu0 0.0
    %3534 = vmatprep.subr.mxu0 0.0
    %3535 = vmatpush1.msra.mxu0 0.0
    %3536 = vmatprep.subr.mxu0 0.0
    %3537 = vmatpush1.msra.mxu0 0.0
    %3538 = vmatprep.subr.mxu0 0.0
    %3539 = vmatpush1.msra.mxu0 0.0
    %3540 = vmatprep.subr.mxu0 0.0
    %3541 = vmatpush1.msra.mxu0 0.0
    %3542 = vmatprep.subr.mxu0 0.0
    %3543 = vmatpush1.msra.mxu0 0.0
    %3544 = vmatprep.subr.mxu0 0.0
    %3545 = vmatpush1.msra.mxu0 0.0
    %3546 = vmatprep.subr.mxu0 0.0
    %3547 = vmatpush1.msra.mxu0 0.0
    %3548 = vmatprep.subr.mxu0 0.0
    %3549 = vmatpush1.msra.mxu0 0.0
    %3550 = vmatprep.subr.mxu0 0.0
    %3551 = vmatpush1.msra.mxu0 0.0
    %3552 = vmatprep.subr.mxu0 0.0
    %3553 = vmatpush1.msra.mxu0 %v1227
    %3554 = vmatprep.subr.mxu0 0.0
    %3555 = vmatpush1.msra.mxu0 %v1208
    %3556 = vmatprep.subr.mxu0 0.0
    %3557 = vmatpush1.msra.mxu0 %v1207
    %3558 = vmatprep.subr.mxu0 0.0
    %3559 = vmatpush1.msra.mxu0 %v1206
    %3560 = vmatprep.subr.mxu0 0.0
    %3561 = vmatpush1.msra.mxu0 %v1205
    %3562 = vmatprep.subr.mxu0 0.0
    %3563 = vmatpush2.msra.mxu0 0.0
    %3564 = vmatprep.subr.mxu0 0.0
    %3565 = vmatpush2.msra.mxu0 0.0
    %3566 = vmatprep.subr.mxu0 0.0
    %3567 = vmatpush2.msra.mxu0 0.0
    %3568 = vmatprep.subr.mxu0 0.0
    %3569 = vmatpush2.msra.mxu0 0.0
    %3570 = vmatprep.subr.mxu0 0.0
    %3571 = vmatpush2.msra.mxu0 0.0
    %3572 = vmatprep.subr.mxu0 0.0
    %3573 = vmatpush2.msra.mxu0 0.0
    %3574 = vmatprep.subr.mxu0 0.0
    %3575 = vmatpush2.msra.mxu0 0.0
    %3576 = vmatprep.subr.mxu0 0.0
    %3577 = vmatpush2.msra.mxu0 0.0
    %3578 = vmatprep.subr.mxu0 0.0
    %3579 = vmatpush2.msra.mxu0 0.0
    %3580 = vmatprep.subr.mxu0 0.0
    %3581 = vmatpush2.msra.mxu0 0.0
    %3582 = vmatprep.subr.mxu0 0.0
    %3583 = vmatpush2.msra.mxu0 0.0
    %3584 = vmatprep.subr.mxu0 0.0
    %3585 = vmatpush2.msra.mxu0 0.0
    %3586 = vmatprep.subr.mxu0 0.0
    %3587 = vmatpush2.msra.mxu0 0.0
    %3588 = vmatprep.subr.mxu0 0.0
    %3589 = vmatpush2.msra.mxu0 0.0
    %3590 = vmatprep.subr.mxu0 0.0
    %3591 = vmatpush2.msra.mxu0 0.0
    %3592 = vmatprep.subr.mxu0 0.0
    %3593 = vmatpush2.msra.mxu0 0.0
    %3594 = vmatprep.mubr.f32.mxu0 0.0
    %3595 = vmatmul.mubr.f32.gmra.mxu0 %v3514
    %v3596 = vpop.f32.mrf.mxu0
    %v3597 = vadd.f32 0.0, %v3596
    %v3598 = vpop.f32.mrf.mxu0
    %3599 = vmatprep.mubr.f32.mxu0 0.0
    %3600 = vmatmul.mubr.f32.gmra.mxu0 %v3516
    %v3601 = vpop.f32.mrf.mxu0
    %v3602 = vadd.f32 0.0, %v3601
    %v3603 = vpop.f32.mrf.mxu0
    %3604 = vmatprep.mubr.f32.mxu0 0.0
    %3605 = vmatmul.mubr.f32.gmra.mxu0 %v3518
    %v3606 = vpop.f32.mrf.mxu0
    %v3607 = vadd.f32 0.0, %v3606
    %v3608 = vpop.f32.mrf.mxu0
    %3609 = vmatprep.mubr.f32.mxu0 0.0
    %3610 = vmatmul.mubr.f32.gmra.mxu0 %v3520
    %v3611 = vpop.f32.mrf.mxu0
    %v3612 = vadd.f32 0.0, %v3611
    %v3613 = vpop.f32.mrf.mxu0
    %3614 = vmatprep.mubr.f32.mxu0 0.0
    %3615 = vmatmul.mubr.f32.gmra.mxu0 %v3522
    %v3616 = vpop.f32.mrf.mxu0
    %v3617 = vadd.f32 0.0, %v3616
    %v3618 = vpop.f32.mrf.mxu0
    %3619 = vmatprep.mubr.f32.mxu0 0.0
    %3620 = vmatmul.mubr.f32.gmra.mxu0 %v3524
    %v3621 = vpop.f32.mrf.mxu0
    %v3622 = vadd.f32 0.0, %v3621
    %v3623 = vpop.f32.mrf.mxu0
    %3624 = vmatprep.mubr.f32.mxu0 0.0
    %3625 = vmatmul.mubr.f32.gmra.mxu0 %v3526
    %v3626 = vpop.f32.mrf.mxu0
    %v3627 = vadd.f32 0.0, %v3626
    %v3628 = vpop.f32.mrf.mxu0
    %3629 = vmatprep.mubr.f32.mxu0 0.0
    %3630 = vmatmul.mubr.f32.gmra.mxu0 %v3528
    %v3631 = vpop.f32.mrf.mxu0
    %v3632 = vadd.f32 0.0, %v3631
    %v3633 = vpop.f32.mrf.mxu0
    %3634 = vdwg.mxu0
    %v3635 = vadd.f32 %v3361, %v3597
    %v3636 = vadd.f32 %v3362, %v3602
    %v3637 = vadd.f32 %v3363, %v3607
    %v3638 = vadd.f32 %v3364, %v3612
    %v3639 = vadd.f32 %v3365, %v3617
    %v3640 = vadd.f32 %v3366, %v3622
    %v3641 = vadd.f32 %v3367, %v3627
    %v3642 = vadd.f32 %v3368, %v3632
    %3643 = vmatprep.subr.mxu0 0.0
    %3644 = vmatpush1.msra.mxu0 0.0
    %3645 = vmatprep.subr.mxu0 0.0
    %3646 = vmatpush1.msra.mxu0 0.0
    %3647 = vmatprep.subr.mxu0 0.0
    %3648 = vmatpush1.msra.mxu0 0.0
    %3649 = vmatprep.subr.mxu0 0.0
    %3650 = vmatpush1.msra.mxu0 0.0
    %3651 = vmatprep.subr.mxu0 0.0
    %3652 = vmatpush1.msra.mxu0 0.0
    %3653 = vmatprep.subr.mxu0 0.0
    %3654 = vmatpush1.msra.mxu0 0.0
    %3655 = vmatprep.subr.mxu0 0.0
    %3656 = vmatpush1.msra.mxu0 0.0
    %3657 = vmatprep.subr.mxu0 0.0
    %3658 = vmatpush1.msra.mxu0 0.0
    %3659 = vmatprep.subr.mxu0 0.0
    %3660 = vmatpush1.msra.mxu0 0.0
    %3661 = vmatprep.subr.mxu0 0.0
    %3662 = vmatpush1.msra.mxu0 0.0
    %3663 = vmatprep.subr.mxu0 0.0
    %3664 = vmatpush1.msra.mxu0 0.0
    %3665 = vmatprep.subr.mxu0 0.0
    %3666 = vmatpush1.msra.mxu0 %v1349
    %3667 = vmatprep.subr.mxu0 0.0
    %3668 = vmatpush1.msra.mxu0 %v1346
    %3669 = vmatprep.subr.mxu0 0.0
    %3670 = vmatpush1.msra.mxu0 %v1345
    %3671 = vmatprep.subr.mxu0 0.0
    %3672 = vmatpush1.msra.mxu0 %v1344
    %3673 = vmatprep.subr.mxu0 0.0
    %3674 = vmatpush1.msra.mxu0 %v1343
    %3675 = vmatprep.subr.mxu0 0.0
    %3676 = vmatpush2.msra.mxu0 0.0
    %3677 = vmatprep.subr.mxu0 0.0
    %3678 = vmatpush2.msra.mxu0 0.0
    %3679 = vmatprep.subr.mxu0 0.0
    %3680 = vmatpush2.msra.mxu0 0.0
    %3681 = vmatprep.subr.mxu0 0.0
    %3682 = vmatpush2.msra.mxu0 0.0
    %3683 = vmatprep.subr.mxu0 0.0
    %3684 = vmatpush2.msra.mxu0 0.0
    %3685 = vmatprep.subr.mxu0 0.0
    %3686 = vmatpush2.msra.mxu0 0.0
    %3687 = vmatprep.subr.mxu0 0.0
    %3688 = vmatpush2.msra.mxu0 0.0
    %3689 = vmatprep.subr.mxu0 0.0
    %3690 = vmatpush2.msra.mxu0 0.0
    %3691 = vmatprep.subr.mxu0 0.0
    %3692 = vmatpush2.msra.mxu0 0.0
    %3693 = vmatprep.subr.mxu0 0.0
    %3694 = vmatpush2.msra.mxu0 0.0
    %3695 = vmatprep.subr.mxu0 0.0
    %3696 = vmatpush2.msra.mxu0 0.0
    %3697 = vmatprep.subr.mxu0 0.0
    %3698 = vmatpush2.msra.mxu0 0.0
    %3699 = vmatprep.subr.mxu0 0.0
    %3700 = vmatpush2.msra.mxu0 0.0
    %3701 = vmatprep.subr.mxu0 0.0
    %3702 = vmatpush2.msra.mxu0 0.0
    %3703 = vmatprep.subr.mxu0 0.0
    %3704 = vmatpush2.msra.mxu0 0.0
    %3705 = vmatprep.subr.mxu0 0.0
    %3706 = vmatpush2.msra.mxu0 0.0
    %3707 = vmatprep.mubr.f32.mxu0 0.0
    %3708 = vmatmul.mubr.f32.gmra.mxu0 %v3514
    %v3709 = vpop.f32.mrf.mxu0
    %v3710 = vadd.f32 0.0, %v3709
    %v3711 = vpop.f32.mrf.mxu0
    %3712 = vmatprep.mubr.f32.mxu0 0.0
    %3713 = vmatmul.mubr.f32.gmra.mxu0 %v3516
    %v3714 = vpop.f32.mrf.mxu0
    %v3715 = vadd.f32 0.0, %v3714
    %v3716 = vpop.f32.mrf.mxu0
    %3717 = vmatprep.mubr.f32.mxu0 0.0
    %3718 = vmatmul.mubr.f32.gmra.mxu0 %v3518
    %v3719 = vpop.f32.mrf.mxu0
    %v3720 = vadd.f32 0.0, %v3719
    %v3721 = vpop.f32.mrf.mxu0
    %3722 = vmatprep.mubr.f32.mxu0 0.0
    %3723 = vmatmul.mubr.f32.gmra.mxu0 %v3520
    %v3724 = vpop.f32.mrf.mxu0
    %v3725 = vadd.f32 0.0, %v3724
    %v3726 = vpop.f32.mrf.mxu0
    %3727 = vmatprep.mubr.f32.mxu0 0.0
    %3728 = vmatmul.mubr.f32.gmra.mxu0 %v3522
    %v3729 = vpop.f32.mrf.mxu0
    %v3730 = vadd.f32 0.0, %v3729
    %v3731 = vpop.f32.mrf.mxu0
    %3732 = vmatprep.mubr.f32.mxu0 0.0
    %3733 = vmatmul.mubr.f32.gmra.mxu0 %v3524
    %v3734 = vpop.f32.mrf.mxu0
    %v3735 = vadd.f32 0.0, %v3734
    %v3736 = vpop.f32.mrf.mxu0
    %3737 = vmatprep.mubr.f32.mxu0 0.0
    %3738 = vmatmul.mubr.f32.gmra.mxu0 %v3526
    %v3739 = vpop.f32.mrf.mxu0
    %v3740 = vadd.f32 0.0, %v3739
    %v3741 = vpop.f32.mrf.mxu0
    %3742 = vmatprep.mubr.f32.mxu0 0.0
    %3743 = vmatmul.mubr.f32.gmra.mxu0 %v3528
    %v3744 = vpop.f32.mrf.mxu0
    %v3745 = vadd.f32 0.0, %v3744
    %v3746 = vpop.f32.mrf.mxu0
    %3747 = vdwg.mxu0
    %v3748 = vadd.f32 %v3474, %v3710
    %v3749 = vadd.f32 %v3475, %v3715
    %v3750 = vadd.f32 %v3476, %v3720
    %v3751 = vadd.f32 %v3477, %v3725
    %v3752 = vadd.f32 %v3478, %v3730
    %v3753 = vadd.f32 %v3479, %v3735
    %v3754 = vadd.f32 %v3480, %v3740
    %v3755 = vadd.f32 %v3481, %v3745
    %3756 = vmatprep.subr.mxu0 0.0
    %3757 = vmatpush1.msra.mxu0 0.0
    %3758 = vmatprep.subr.mxu0 0.0
    %3759 = vmatpush1.msra.mxu0 0.0
    %3760 = vmatprep.subr.mxu0 0.0
    %3761 = vmatpush1.msra.mxu0 0.0
    %3762 = vmatprep.subr.mxu0 0.0
    %3763 = vmatpush1.msra.mxu0 0.0
    %3764 = vmatprep.subr.mxu0 0.0
    %3765 = vmatpush1.msra.mxu0 0.0
    %3766 = vmatprep.subr.mxu0 0.0
    %3767 = vmatpush1.msra.mxu0 0.0
    %3768 = vmatprep.subr.mxu0 0.0
    %3769 = vmatpush1.msra.mxu0 0.0
    %3770 = vmatprep.subr.mxu0 0.0
    %3771 = vmatpush1.msra.mxu0 0.0
    %3772 = vmatprep.subr.mxu0 0.0
    %3773 = vmatpush1.msra.mxu0 0.0
    %3774 = vmatprep.subr.mxu0 0.0
    %3775 = vmatpush1.msra.mxu0 0.0
    %3776 = vmatprep.subr.mxu0 0.0
    %3777 = vmatpush1.msra.mxu0 0.0
    %3778 = vmatprep.subr.mxu0 0.0
    %3779 = vmatpush1.msra.mxu0 %v174
    %3780 = vmatprep.subr.mxu0 0.0
    %3781 = vmatpush1.msra.mxu0 %v145
    %3782 = vmatprep.subr.mxu0 0.0
    %3783 = vmatpush1.msra.mxu0 %v144
    %3784 = vmatprep.subr.mxu0 0.0
    %3785 = vmatpush1.msra.mxu0 %v143
    %3786 = vmatprep.subr.mxu0 0.0
    %3787 = vmatpush1.msra.mxu0 %v142
    %3788 = vmatprep.subr.mxu0 0.0
    %3789 = vmatpush2.msra.mxu0 0.0
    %3790 = vmatprep.subr.mxu0 0.0
    %3791 = vmatpush2.msra.mxu0 0.0
    %3792 = vmatprep.subr.mxu0 0.0
    %3793 = vmatpush2.msra.mxu0 0.0
    %3794 = vmatprep.subr.mxu0 0.0
    %3795 = vmatpush2.msra.mxu0 0.0
    %3796 = vmatprep.subr.mxu0 0.0
    %3797 = vmatpush2.msra.mxu0 0.0
    %3798 = vmatprep.subr.mxu0 0.0
    %3799 = vmatpush2.msra.mxu0 0.0
    %3800 = vmatprep.subr.mxu0 0.0
    %3801 = vmatpush2.msra.mxu0 0.0
    %3802 = vmatprep.subr.mxu0 0.0
    %3803 = vmatpush2.msra.mxu0 0.0
    %3804 = vmatprep.subr.mxu0 0.0
    %3805 = vmatpush2.msra.mxu0 0.0
    %3806 = vmatprep.subr.mxu0 0.0
    %3807 = vmatpush2.msra.mxu0 0.0
    %3808 = vmatprep.subr.mxu0 0.0
    %3809 = vmatpush2.msra.mxu0 0.0
    %3810 = vmatprep.subr.mxu0 0.0
    %3811 = vmatpush2.msra.mxu0 0.0
    %3812 = vmatprep.subr.mxu0 0.0
    %3813 = vmatpush2.msra.mxu0 0.0
    %3814 = vmatprep.subr.mxu0 0.0
    %3815 = vmatpush2.msra.mxu0 0.0
    %3816 = vmatprep.subr.mxu0 0.0
    %3817 = vmatpush2.msra.mxu0 0.0
    %3818 = vmatprep.subr.mxu0 0.0
    %3819 = vmatpush2.msra.mxu0 0.0
    %3820 = vmatprep.mubr.f32.mxu0 0.0
    %3821 = vmatmul.mubr.f32.gmra.mxu0 %v1210
    %v3822 = vpop.f32.mrf.mxu0
    %v3823 = vadd.f32 0.0, %v3822
    %v3824 = vpop.f32.mrf.mxu0
    %3825 = vmatprep.mubr.f32.mxu0 0.0
    %3826 = vmatmul.mubr.f32.gmra.mxu0 %v1212
    %v3827 = vpop.f32.mrf.mxu0
    %v3828 = vadd.f32 0.0, %v3827
    %v3829 = vpop.f32.mrf.mxu0
    %3830 = vmatprep.mubr.f32.mxu0 0.0
    %3831 = vmatmul.mubr.f32.gmra.mxu0 %v1214
    %v3832 = vpop.f32.mrf.mxu0
    %v3833 = vadd.f32 0.0, %v3832
    %v3834 = vpop.f32.mrf.mxu0
    %3835 = vmatprep.mubr.f32.mxu0 0.0
    %3836 = vmatmul.mubr.f32.gmra.mxu0 %v1216
    %v3837 = vpop.f32.mrf.mxu0
    %v3838 = vadd.f32 0.0, %v3837
    %v3839 = vpop.f32.mrf.mxu0
    %3840 = vmatprep.mubr.f32.mxu0 0.0
    %3841 = vmatmul.mubr.f32.gmra.mxu0 %v1218
    %v3842 = vpop.f32.mrf.mxu0
    %v3843 = vadd.f32 0.0, %v3842
    %v3844 = vpop.f32.mrf.mxu0
    %3845 = vmatprep.mubr.f32.mxu0 0.0
    %3846 = vmatmul.mubr.f32.gmra.mxu0 %v1220
    %v3847 = vpop.f32.mrf.mxu0
    %v3848 = vadd.f32 0.0, %v3847
    %v3849 = vpop.f32.mrf.mxu0
    %3850 = vmatprep.mubr.f32.mxu0 0.0
    %3851 = vmatmul.mubr.f32.gmra.mxu0 %v1222
    %v3852 = vpop.f32.mrf.mxu0
    %v3853 = vadd.f32 0.0, %v3852
    %v3854 = vpop.f32.mrf.mxu0
    %3855 = vmatprep.mubr.f32.mxu0 0.0
    %3856 = vmatmul.mubr.f32.gmra.mxu0 %v1224
    %v3857 = vpop.f32.mrf.mxu0
    %v3858 = vadd.f32 0.0, %v3857
    %v3859 = vpop.f32.mrf.mxu0
    %3860 = vdwg.mxu0
    %3861 = vmatprep.subr.mxu0 0.0
    %3862 = vmatpush1.msra.mxu0 0.0
    %3863 = vmatprep.subr.mxu0 0.0
    %3864 = vmatpush1.msra.mxu0 0.0
    %3865 = vmatprep.subr.mxu0 0.0
    %3866 = vmatpush1.msra.mxu0 0.0
    %3867 = vmatprep.subr.mxu0 0.0
    %3868 = vmatpush1.msra.mxu0 0.0
    %3869 = vmatprep.subr.mxu0 0.0
    %3870 = vmatpush1.msra.mxu0 0.0
    %3871 = vmatprep.subr.mxu0 0.0
    %3872 = vmatpush1.msra.mxu0 0.0
    %3873 = vmatprep.subr.mxu0 0.0
    %3874 = vmatpush1.msra.mxu0 0.0
    %3875 = vmatprep.subr.mxu0 0.0
    %3876 = vmatpush1.msra.mxu0 0.0
    %3877 = vmatprep.subr.mxu0 0.0
    %3878 = vmatpush1.msra.mxu0 0.0
    %3879 = vmatprep.subr.mxu0 0.0
    %3880 = vmatpush1.msra.mxu0 0.0
    %3881 = vmatprep.subr.mxu0 0.0
    %3882 = vmatpush1.msra.mxu0 0.0
    %3883 = vmatprep.subr.mxu0 0.0
    %3884 = vmatpush1.msra.mxu0 %v306
    %3885 = vmatprep.subr.mxu0 0.0
    %3886 = vmatpush1.msra.mxu0 %v133
    %3887 = vmatprep.subr.mxu0 0.0
    %3888 = vmatpush1.msra.mxu0 %v132
    %3889 = vmatprep.subr.mxu0 0.0
    %3890 = vmatpush1.msra.mxu0 %v131
    %3891 = vmatprep.subr.mxu0 0.0
    %3892 = vmatpush1.msra.mxu0 %v130
    %3893 = vmatprep.subr.mxu0 0.0
    %3894 = vmatpush2.msra.mxu0 0.0
    %3895 = vmatprep.subr.mxu0 0.0
    %3896 = vmatpush2.msra.mxu0 0.0
    %3897 = vmatprep.subr.mxu0 0.0
    %3898 = vmatpush2.msra.mxu0 0.0
    %3899 = vmatprep.subr.mxu0 0.0
    %3900 = vmatpush2.msra.mxu0 0.0
    %3901 = vmatprep.subr.mxu0 0.0
    %3902 = vmatpush2.msra.mxu0 0.0
    %3903 = vmatprep.subr.mxu0 0.0
    %3904 = vmatpush2.msra.mxu0 0.0
    %3905 = vmatprep.subr.mxu0 0.0
    %3906 = vmatpush2.msra.mxu0 0.0
    %3907 = vmatprep.subr.mxu0 0.0
    %3908 = vmatpush2.msra.mxu0 0.0
    %3909 = vmatprep.subr.mxu0 0.0
    %3910 = vmatpush2.msra.mxu0 0.0
    %3911 = vmatprep.subr.mxu0 0.0
    %3912 = vmatpush2.msra.mxu0 0.0
    %3913 = vmatprep.subr.mxu0 0.0
    %3914 = vmatpush2.msra.mxu0 0.0
    %3915 = vmatprep.subr.mxu0 0.0
    %3916 = vmatpush2.msra.mxu0 0.0
    %3917 = vmatprep.subr.mxu0 0.0
    %3918 = vmatpush2.msra.mxu0 0.0
    %3919 = vmatprep.subr.mxu0 0.0
    %3920 = vmatpush2.msra.mxu0 0.0
    %3921 = vmatprep.subr.mxu0 0.0
    %3922 = vmatpush2.msra.mxu0 0.0
    %3923 = vmatprep.subr.mxu0 0.0
    %3924 = vmatpush2.msra.mxu0 0.0
    %3925 = vmatprep.mubr.f32.mxu0 0.0
    %3926 = vmatmul.mubr.f32.gmra.mxu0 %v910
    %v3927 = vpop.f32.mrf.mxu0
    %v3928 = vadd.f32 %v3823, %v3927
    %v3929 = vpop.f32.mrf.mxu0
    %3930 = vmatprep.mubr.f32.mxu0 0.0
    %3931 = vmatmul.mubr.f32.gmra.mxu0 %v913
    %v3932 = vpop.f32.mrf.mxu0
    %v3933 = vadd.f32 %v3828, %v3932
    %v3934 = vpop.f32.mrf.mxu0
    %3935 = vmatprep.mubr.f32.mxu0 0.0
    %3936 = vmatmul.mubr.f32.gmra.mxu0 %v916
    %v3937 = vpop.f32.mrf.mxu0
    %v3938 = vadd.f32 %v3833, %v3937
    %v3939 = vpop.f32.mrf.mxu0
    %3940 = vmatprep.mubr.f32.mxu0 0.0
    %3941 = vmatmul.mubr.f32.gmra.mxu0 %v919
    %v3942 = vpop.f32.mrf.mxu0
    %v3943 = vadd.f32 %v3838, %v3942
    %v3944 = vpop.f32.mrf.mxu0
    %3945 = vmatprep.mubr.f32.mxu0 0.0
    %3946 = vmatmul.mubr.f32.gmra.mxu0 %v922
    %v3947 = vpop.f32.mrf.mxu0
    %v3948 = vadd.f32 %v3843, %v3947
    %v3949 = vpop.f32.mrf.mxu0
    %3950 = vmatprep.mubr.f32.mxu0 0.0
    %3951 = vmatmul.mubr.f32.gmra.mxu0 %v925
    %v3952 = vpop.f32.mrf.mxu0
    %v3953 = vadd.f32 %v3848, %v3952
    %v3954 = vpop.f32.mrf.mxu0
    %3955 = vmatprep.mubr.f32.mxu0 0.0
    %3956 = vmatmul.mubr.f32.gmra.mxu0 %v928
    %v3957 = vpop.f32.mrf.mxu0
    %v3958 = vadd.f32 %v3853, %v3957
    %v3959 = vpop.f32.mrf.mxu0
    %3960 = vmatprep.mubr.f32.mxu0 0.0
    %3961 = vmatmul.mubr.f32.gmra.mxu0 %v931
    %v3962 = vpop.f32.mrf.mxu0
    %v3963 = vadd.f32 %v3858, %v3962
    %v3964 = vpop.f32.mrf.mxu0
    %3965 = vdwg.mxu0
    %3966 = vmatprep.subr.mxu0 0.0
    %3967 = vmatpush1.msra.mxu0 0.0
    %3968 = vmatprep.subr.mxu0 0.0
    %3969 = vmatpush1.msra.mxu0 0.0
    %3970 = vmatprep.subr.mxu0 0.0
    %3971 = vmatpush1.msra.mxu0 0.0
    %3972 = vmatprep.subr.mxu0 0.0
    %3973 = vmatpush1.msra.mxu0 0.0
    %3974 = vmatprep.subr.mxu0 0.0
    %3975 = vmatpush1.msra.mxu0 0.0
    %3976 = vmatprep.subr.mxu0 0.0
    %3977 = vmatpush1.msra.mxu0 0.0
    %3978 = vmatprep.subr.mxu0 0.0
    %3979 = vmatpush1.msra.mxu0 0.0
    %3980 = vmatprep.subr.mxu0 0.0
    %3981 = vmatpush1.msra.mxu0 0.0
    %3982 = vmatprep.subr.mxu0 0.0
    %3983 = vmatpush1.msra.mxu0 0.0
    %3984 = vmatprep.subr.mxu0 0.0
    %3985 = vmatpush1.msra.mxu0 0.0
    %3986 = vmatprep.subr.mxu0 0.0
    %3987 = vmatpush1.msra.mxu0 0.0
    %3988 = vmatprep.subr.mxu0 0.0
    %3989 = vmatpush1.msra.mxu0 %v420
    %3990 = vmatprep.subr.mxu0 0.0
    %3991 = vmatpush1.msra.mxu0 %v417
    %3992 = vmatprep.subr.mxu0 0.0
    %3993 = vmatpush1.msra.mxu0 %v416
    %3994 = vmatprep.subr.mxu0 0.0
    %3995 = vmatpush1.msra.mxu0 %v415
    %3996 = vmatprep.subr.mxu0 0.0
    %3997 = vmatpush1.msra.mxu0 %v414
    %3998 = vmatprep.subr.mxu0 0.0
    %3999 = vmatpush2.msra.mxu0 0.0
    %4000 = vmatprep.subr.mxu0 0.0
    %4001 = vmatpush2.msra.mxu0 0.0
    %4002 = vmatprep.subr.mxu0 0.0
    %4003 = vmatpush2.msra.mxu0 0.0
    %4004 = vmatprep.subr.mxu0 0.0
    %4005 = vmatpush2.msra.mxu0 0.0
    %4006 = vmatprep.subr.mxu0 0.0
    %4007 = vmatpush2.msra.mxu0 0.0
    %4008 = vmatprep.subr.mxu0 0.0
    %4009 = vmatpush2.msra.mxu0 0.0
    %4010 = vmatprep.subr.mxu0 0.0
    %4011 = vmatpush2.msra.mxu0 0.0
    %4012 = vmatprep.subr.mxu0 0.0
    %4013 = vmatpush2.msra.mxu0 0.0
    %4014 = vmatprep.subr.mxu0 0.0
    %4015 = vmatpush2.msra.mxu0 0.0
    %4016 = vmatprep.subr.mxu0 0.0
    %4017 = vmatpush2.msra.mxu0 0.0
    %4018 = vmatprep.subr.mxu0 0.0
    %4019 = vmatpush2.msra.mxu0 0.0
    %4020 = vmatprep.subr.mxu0 0.0
    %4021 = vmatpush2.msra.mxu0 0.0
    %4022 = vmatprep.subr.mxu0 0.0
    %4023 = vmatpush2.msra.mxu0 0.0
    %4024 = vmatprep.subr.mxu0 0.0
    %4025 = vmatpush2.msra.mxu0 0.0
    %4026 = vmatprep.subr.mxu0 0.0
    %4027 = vmatpush2.msra.mxu0 0.0
    %4028 = vmatprep.subr.mxu0 0.0
    %4029 = vmatpush2.msra.mxu0 0.0
    %4030 = vmatprep.mubr.f32.mxu0 0.0
    %4031 = vmatmul.mubr.f32.gmra.mxu0 %v1210
    %v4032 = vpop.f32.mrf.mxu0
    %v4033 = vadd.f32 0.0, %v4032
    %v4034 = vpop.f32.mrf.mxu0
    %4035 = vmatprep.mubr.f32.mxu0 0.0
    %4036 = vmatmul.mubr.f32.gmra.mxu0 %v1212
    %v4037 = vpop.f32.mrf.mxu0
    %v4038 = vadd.f32 0.0, %v4037
    %v4039 = vpop.f32.mrf.mxu0
    %4040 = vmatprep.mubr.f32.mxu0 0.0
    %4041 = vmatmul.mubr.f32.gmra.mxu0 %v1214
    %v4042 = vpop.f32.mrf.mxu0
    %v4043 = vadd.f32 0.0, %v4042
    %v4044 = vpop.f32.mrf.mxu0
    %4045 = vmatprep.mubr.f32.mxu0 0.0
    %4046 = vmatmul.mubr.f32.gmra.mxu0 %v1216
    %v4047 = vpop.f32.mrf.mxu0
    %v4048 = vadd.f32 0.0, %v4047
    %v4049 = vpop.f32.mrf.mxu0
    %4050 = vmatprep.mubr.f32.mxu0 0.0
    %4051 = vmatmul.mubr.f32.gmra.mxu0 %v1218
    %v4052 = vpop.f32.mrf.mxu0
    %v4053 = vadd.f32 0.0, %v4052
    %v4054 = vpop.f32.mrf.mxu0
    %4055 = vmatprep.mubr.f32.mxu0 0.0
    %4056 = vmatmul.mubr.f32.gmra.mxu0 %v1220
    %v4057 = vpop.f32.mrf.mxu0
    %v4058 = vadd.f32 0.0, %v4057
    %v4059 = vpop.f32.mrf.mxu0
    %4060 = vmatprep.mubr.f32.mxu0 0.0
    %4061 = vmatmul.mubr.f32.gmra.mxu0 %v1222
    %v4062 = vpop.f32.mrf.mxu0
    %v4063 = vadd.f32 0.0, %v4062
    %v4064 = vpop.f32.mrf.mxu0
    %4065 = vmatprep.mubr.f32.mxu0 0.0
    %4066 = vmatmul.mubr.f32.gmra.mxu0 %v1224
    %v4067 = vpop.f32.mrf.mxu0
    %v4068 = vadd.f32 0.0, %v4067
    %v4069 = vpop.f32.mrf.mxu0
    %4070 = vdwg.mxu0
    %4071 = vmatprep.subr.mxu0 0.0
    %4072 = vmatpush1.msra.mxu0 0.0
    %4073 = vmatprep.subr.mxu0 0.0
    %4074 = vmatpush1.msra.mxu0 0.0
    %4075 = vmatprep.subr.mxu0 0.0
    %4076 = vmatpush1.msra.mxu0 0.0
    %4077 = vmatprep.subr.mxu0 0.0
    %4078 = vmatpush1.msra.mxu0 0.0
    %4079 = vmatprep.subr.mxu0 0.0
    %4080 = vmatpush1.msra.mxu0 0.0
    %4081 = vmatprep.subr.mxu0 0.0
    %4082 = vmatpush1.msra.mxu0 0.0
    %4083 = vmatprep.subr.mxu0 0.0
    %4084 = vmatpush1.msra.mxu0 0.0
    %4085 = vmatprep.subr.mxu0 0.0
    %4086 = vmatpush1.msra.mxu0 0.0
    %4087 = vmatprep.subr.mxu0 0.0
    %4088 = vmatpush1.msra.mxu0 0.0
    %4089 = vmatprep.subr.mxu0 0.0
    %4090 = vmatpush1.msra.mxu0 0.0
    %4091 = vmatprep.subr.mxu0 0.0
    %4092 = vmatpush1.msra.mxu0 0.0
    %4093 = vmatprep.subr.mxu0 0.0
    %4094 = vmatpush1.msra.mxu0 %v528
    %4095 = vmatprep.subr.mxu0 0.0
    %4096 = vmatpush1.msra.mxu0 %v139
    %4097 = vmatprep.subr.mxu0 0.0
    %4098 = vmatpush1.msra.mxu0 %v138
    %4099 = vmatprep.subr.mxu0 0.0
    %4100 = vmatpush1.msra.mxu0 %v137
    %4101 = vmatprep.subr.mxu0 0.0
    %4102 = vmatpush1.msra.mxu0 %v136
    %4103 = vmatprep.subr.mxu0 0.0
    %4104 = vmatpush2.msra.mxu0 0.0
    %4105 = vmatprep.subr.mxu0 0.0
    %4106 = vmatpush2.msra.mxu0 0.0
    %4107 = vmatprep.subr.mxu0 0.0
    %4108 = vmatpush2.msra.mxu0 0.0
    %4109 = vmatprep.subr.mxu0 0.0
    %4110 = vmatpush2.msra.mxu0 0.0
    %4111 = vmatprep.subr.mxu0 0.0
    %4112 = vmatpush2.msra.mxu0 0.0
    %4113 = vmatprep.subr.mxu0 0.0
    %4114 = vmatpush2.msra.mxu0 0.0
    %4115 = vmatprep.subr.mxu0 0.0
    %4116 = vmatpush2.msra.mxu0 0.0
    %4117 = vmatprep.subr.mxu0 0.0
    %4118 = vmatpush2.msra.mxu0 0.0
    %4119 = vmatprep.subr.mxu0 0.0
    %4120 = vmatpush2.msra.mxu0 0.0
    %4121 = vmatprep.subr.mxu0 0.0
    %4122 = vmatpush2.msra.mxu0 0.0
    %4123 = vmatprep.subr.mxu0 0.0
    %4124 = vmatpush2.msra.mxu0 0.0
    %4125 = vmatprep.subr.mxu0 0.0
    %4126 = vmatpush2.msra.mxu0 0.0
    %4127 = vmatprep.subr.mxu0 0.0
    %4128 = vmatpush2.msra.mxu0 0.0
    %4129 = vmatprep.subr.mxu0 0.0
    %4130 = vmatpush2.msra.mxu0 0.0
    %4131 = vmatprep.subr.mxu0 0.0
    %4132 = vmatpush2.msra.mxu0 0.0
    %4133 = vmatprep.subr.mxu0 0.0
    %4134 = vmatpush2.msra.mxu0 0.0
    %4135 = vmatprep.mubr.f32.mxu0 0.0
    %4136 = vmatmul.mubr.f32.gmra.mxu0 %v910
    %v4137 = vpop.f32.mrf.mxu0
    %v4138 = vadd.f32 %v4033, %v4137
    %v4139 = vpop.f32.mrf.mxu0
    %4140 = vmatprep.mubr.f32.mxu0 0.0
    %4141 = vmatmul.mubr.f32.gmra.mxu0 %v913
    %v4142 = vpop.f32.mrf.mxu0
    %v4143 = vadd.f32 %v4038, %v4142
    %v4144 = vpop.f32.mrf.mxu0
    %4145 = vmatprep.mubr.f32.mxu0 0.0
    %4146 = vmatmul.mubr.f32.gmra.mxu0 %v916
    %v4147 = vpop.f32.mrf.mxu0
    %v4148 = vadd.f32 %v4043, %v4147
    %v4149 = vpop.f32.mrf.mxu0
    %4150 = vmatprep.mubr.f32.mxu0 0.0
    %4151 = vmatmul.mubr.f32.gmra.mxu0 %v919
    %v4152 = vpop.f32.mrf.mxu0
    %v4153 = vadd.f32 %v4048, %v4152
    %v4154 = vpop.f32.mrf.mxu0
    %4155 = vmatprep.mubr.f32.mxu0 0.0
    %4156 = vmatmul.mubr.f32.gmra.mxu0 %v922
    %v4157 = vpop.f32.mrf.mxu0
    %v4158 = vadd.f32 %v4053, %v4157
    %v4159 = vpop.f32.mrf.mxu0
    %4160 = vmatprep.mubr.f32.mxu0 0.0
    %4161 = vmatmul.mubr.f32.gmra.mxu0 %v925
    %v4162 = vpop.f32.mrf.mxu0
    %v4163 = vadd.f32 %v4058, %v4162
    %v4164 = vpop.f32.mrf.mxu0
    %4165 = vmatprep.mubr.f32.mxu0 0.0
    %4166 = vmatmul.mubr.f32.gmra.mxu0 %v928
    %v4167 = vpop.f32.mrf.mxu0
    %v4168 = vadd.f32 %v4063, %v4167
    %v4169 = vpop.f32.mrf.mxu0
    %4170 = vmatprep.mubr.f32.mxu0 0.0
    %4171 = vmatmul.mubr.f32.gmra.mxu0 %v931
    %v4172 = vpop.f32.mrf.mxu0
    %v4173 = vadd.f32 %v4068, %v4172
    %v4174 = vpop.f32.mrf.mxu0
    %4175 = vdwg.mxu0
    %4176 = vmatprep.subr.mxu0 0.0
    %4177 = vmatpush1.msra.mxu0 0.0
    %4178 = vmatprep.subr.mxu0 0.0
    %4179 = vmatpush1.msra.mxu0 0.0
    %4180 = vmatprep.subr.mxu0 0.0
    %4181 = vmatpush1.msra.mxu0 0.0
    %4182 = vmatprep.subr.mxu0 0.0
    %4183 = vmatpush1.msra.mxu0 0.0
    %4184 = vmatprep.subr.mxu0 0.0
    %4185 = vmatpush1.msra.mxu0 0.0
    %4186 = vmatprep.subr.mxu0 0.0
    %4187 = vmatpush1.msra.mxu0 0.0
    %4188 = vmatprep.subr.mxu0 0.0
    %4189 = vmatpush1.msra.mxu0 0.0
    %4190 = vmatprep.subr.mxu0 0.0
    %4191 = vmatpush1.msra.mxu0 0.0
    %4192 = vmatprep.subr.mxu0 0.0
    %4193 = vmatpush1.msra.mxu0 0.0
    %4194 = vmatprep.subr.mxu0 0.0
    %4195 = vmatpush1.msra.mxu0 0.0
    %4196 = vmatprep.subr.mxu0 0.0
    %4197 = vmatpush1.msra.mxu0 0.0
    %4198 = vmatprep.subr.mxu0 0.0
    %4199 = vmatpush1.msra.mxu0 %v666
    %4200 = vmatprep.subr.mxu0 0.0
    %4201 = vmatpush1.msra.mxu0 %v639
    %4202 = vmatprep.subr.mxu0 0.0
    %4203 = vmatpush1.msra.mxu0 %v638
    %4204 = vmatprep.subr.mxu0 0.0
    %4205 = vmatpush1.msra.mxu0 %v637
    %4206 = vmatprep.subr.mxu0 0.0
    %4207 = vmatpush1.msra.mxu0 %v636
    %4208 = vmatprep.subr.mxu0 0.0
    %4209 = vmatpush2.msra.mxu0 0.0
    %4210 = vmatprep.subr.mxu0 0.0
    %4211 = vmatpush2.msra.mxu0 0.0
    %4212 = vmatprep.subr.mxu0 0.0
    %4213 = vmatpush2.msra.mxu0 0.0
    %4214 = vmatprep.subr.mxu0 0.0
    %4215 = vmatpush2.msra.mxu0 0.0
    %4216 = vmatprep.subr.mxu0 0.0
    %4217 = vmatpush2.msra.mxu0 0.0
    %4218 = vmatprep.subr.mxu0 0.0
    %4219 = vmatpush2.msra.mxu0 0.0
    %4220 = vmatprep.subr.mxu0 0.0
    %4221 = vmatpush2.msra.mxu0 0.0
    %4222 = vmatprep.subr.mxu0 0.0
    %4223 = vmatpush2.msra.mxu0 0.0
    %4224 = vmatprep.subr.mxu0 0.0
    %4225 = vmatpush2.msra.mxu0 0.0
    %4226 = vmatprep.subr.mxu0 0.0
    %4227 = vmatpush2.msra.mxu0 0.0
    %4228 = vmatprep.subr.mxu0 0.0
    %4229 = vmatpush2.msra.mxu0 0.0
    %4230 = vmatprep.subr.mxu0 0.0
    %4231 = vmatpush2.msra.mxu0 0.0
    %4232 = vmatprep.subr.mxu0 0.0
    %4233 = vmatpush2.msra.mxu0 0.0
    %4234 = vmatprep.subr.mxu0 0.0
    %4235 = vmatpush2.msra.mxu0 0.0
    %4236 = vmatprep.subr.mxu0 0.0
    %4237 = vmatpush2.msra.mxu0 0.0
    %4238 = vmatprep.subr.mxu0 0.0
    %4239 = vmatpush2.msra.mxu0 0.0
    %4240 = vmatprep.mubr.f32.mxu0 0.0
    %4241 = vmatmul.mubr.f32.gmra.mxu0 %v2368
    %v4242 = vpop.f32.mrf.mxu0
    %v4243 = vadd.f32 0.0, %v4242
    %v4244 = vpop.f32.mrf.mxu0
    %4245 = vmatprep.mubr.f32.mxu0 0.0
    %4246 = vmatmul.mubr.f32.gmra.mxu0 %v2370
    %v4247 = vpop.f32.mrf.mxu0
    %v4248 = vadd.f32 0.0, %v4247
    %v4249 = vpop.f32.mrf.mxu0
    %4250 = vmatprep.mubr.f32.mxu0 0.0
    %4251 = vmatmul.mubr.f32.gmra.mxu0 %v2372
    %v4252 = vpop.f32.mrf.mxu0
    %v4253 = vadd.f32 0.0, %v4252
    %v4254 = vpop.f32.mrf.mxu0
    %4255 = vmatprep.mubr.f32.mxu0 0.0
    %4256 = vmatmul.mubr.f32.gmra.mxu0 %v2374
    %v4257 = vpop.f32.mrf.mxu0
    %v4258 = vadd.f32 0.0, %v4257
    %v4259 = vpop.f32.mrf.mxu0
    %4260 = vmatprep.mubr.f32.mxu0 0.0
    %4261 = vmatmul.mubr.f32.gmra.mxu0 %v2376
    %v4262 = vpop.f32.mrf.mxu0
    %v4263 = vadd.f32 0.0, %v4262
    %v4264 = vpop.f32.mrf.mxu0
    %4265 = vmatprep.mubr.f32.mxu0 0.0
    %4266 = vmatmul.mubr.f32.gmra.mxu0 %v2378
    %v4267 = vpop.f32.mrf.mxu0
    %v4268 = vadd.f32 0.0, %v4267
    %v4269 = vpop.f32.mrf.mxu0
    %4270 = vmatprep.mubr.f32.mxu0 0.0
    %4271 = vmatmul.mubr.f32.gmra.mxu0 %v2380
    %v4272 = vpop.f32.mrf.mxu0
    %v4273 = vadd.f32 0.0, %v4272
    %v4274 = vpop.f32.mrf.mxu0
    %4275 = vmatprep.mubr.f32.mxu0 0.0
    %4276 = vmatmul.mubr.f32.gmra.mxu0 %v2382
    %v4277 = vpop.f32.mrf.mxu0
    %v4278 = vadd.f32 0.0, %v4277
    %v4279 = vpop.f32.mrf.mxu0
    %4280 = vdwg.mxu0
    %v4281 = vadd.f32 %v3928, %v4243
    %v4282 = vadd.f32 %v3933, %v4248
    %v4283 = vadd.f32 %v3938, %v4253
    %v4284 = vadd.f32 %v3943, %v4258
    %v4285 = vadd.f32 %v3948, %v4263
    %v4286 = vadd.f32 %v3953, %v4268
    %v4287 = vadd.f32 %v3958, %v4273
    %v4288 = vadd.f32 %v3963, %v4278
    %4289 = vmatprep.subr.mxu0 0.0
    %4290 = vmatpush1.msra.mxu0 0.0
    %4291 = vmatprep.subr.mxu0 0.0
    %4292 = vmatpush1.msra.mxu0 0.0
    %4293 = vmatprep.subr.mxu0 0.0
    %4294 = vmatpush1.msra.mxu0 0.0
    %4295 = vmatprep.subr.mxu0 0.0
    %4296 = vmatpush1.msra.mxu0 0.0
    %4297 = vmatprep.subr.mxu0 0.0
    %4298 = vmatpush1.msra.mxu0 0.0
    %4299 = vmatprep.subr.mxu0 0.0
    %4300 = vmatpush1.msra.mxu0 0.0
    %4301 = vmatprep.subr.mxu0 0.0
    %4302 = vmatpush1.msra.mxu0 0.0
    %4303 = vmatprep.subr.mxu0 0.0
    %4304 = vmatpush1.msra.mxu0 0.0
    %4305 = vmatprep.subr.mxu0 0.0
    %4306 = vmatpush1.msra.mxu0 0.0
    %4307 = vmatprep.subr.mxu0 0.0
    %4308 = vmatpush1.msra.mxu0 0.0
    %4309 = vmatprep.subr.mxu0 0.0
    %4310 = vmatpush1.msra.mxu0 0.0
    %4311 = vmatprep.subr.mxu0 0.0
    %4312 = vmatpush1.msra.mxu0 %v788
    %4313 = vmatprep.subr.mxu0 0.0
    %4314 = vmatpush1.msra.mxu0 %v785
    %4315 = vmatprep.subr.mxu0 0.0
    %4316 = vmatpush1.msra.mxu0 %v784
    %4317 = vmatprep.subr.mxu0 0.0
    %4318 = vmatpush1.msra.mxu0 %v783
    %4319 = vmatprep.subr.mxu0 0.0
    %4320 = vmatpush1.msra.mxu0 %v782
    %4321 = vmatprep.subr.mxu0 0.0
    %4322 = vmatpush2.msra.mxu0 0.0
    %4323 = vmatprep.subr.mxu0 0.0
    %4324 = vmatpush2.msra.mxu0 0.0
    %4325 = vmatprep.subr.mxu0 0.0
    %4326 = vmatpush2.msra.mxu0 0.0
    %4327 = vmatprep.subr.mxu0 0.0
    %4328 = vmatpush2.msra.mxu0 0.0
    %4329 = vmatprep.subr.mxu0 0.0
    %4330 = vmatpush2.msra.mxu0 0.0
    %4331 = vmatprep.subr.mxu0 0.0
    %4332 = vmatpush2.msra.mxu0 0.0
    %4333 = vmatprep.subr.mxu0 0.0
    %4334 = vmatpush2.msra.mxu0 0.0
    %4335 = vmatprep.subr.mxu0 0.0
    %4336 = vmatpush2.msra.mxu0 0.0
    %4337 = vmatprep.subr.mxu0 0.0
    %4338 = vmatpush2.msra.mxu0 0.0
    %4339 = vmatprep.subr.mxu0 0.0
    %4340 = vmatpush2.msra.mxu0 0.0
    %4341 = vmatprep.subr.mxu0 0.0
    %4342 = vmatpush2.msra.mxu0 0.0
    %4343 = vmatprep.subr.mxu0 0.0
    %4344 = vmatpush2.msra.mxu0 0.0
    %4345 = vmatprep.subr.mxu0 0.0
    %4346 = vmatpush2.msra.mxu0 0.0
    %4347 = vmatprep.subr.mxu0 0.0
    %4348 = vmatpush2.msra.mxu0 0.0
    %4349 = vmatprep.subr.mxu0 0.0
    %4350 = vmatpush2.msra.mxu0 0.0
    %4351 = vmatprep.subr.mxu0 0.0
    %4352 = vmatpush2.msra.mxu0 0.0
    %4353 = vmatprep.mubr.f32.mxu0 0.0
    %4354 = vmatmul.mubr.f32.gmra.mxu0 %v2368
    %v4355 = vpop.f32.mrf.mxu0
    %v4356 = vadd.f32 0.0, %v4355
    %v4357 = vpop.f32.mrf.mxu0
    %4358 = vmatprep.mubr.f32.mxu0 0.0
    %4359 = vmatmul.mubr.f32.gmra.mxu0 %v2370
    %v4360 = vpop.f32.mrf.mxu0
    %v4361 = vadd.f32 0.0, %v4360
    %v4362 = vpop.f32.mrf.mxu0
    %4363 = vmatprep.mubr.f32.mxu0 0.0
    %4364 = vmatmul.mubr.f32.gmra.mxu0 %v2372
    %v4365 = vpop.f32.mrf.mxu0
    %v4366 = vadd.f32 0.0, %v4365
    %v4367 = vpop.f32.mrf.mxu0
    %4368 = vmatprep.mubr.f32.mxu0 0.0
    %4369 = vmatmul.mubr.f32.gmra.mxu0 %v2374
    %v4370 = vpop.f32.mrf.mxu0
    %v4371 = vadd.f32 0.0, %v4370
    %v4372 = vpop.f32.mrf.mxu0
    %4373 = vmatprep.mubr.f32.mxu0 0.0
    %4374 = vmatmul.mubr.f32.gmra.mxu0 %v2376
    %v4375 = vpop.f32.mrf.mxu0
    %v4376 = vadd.f32 0.0, %v4375
    %v4377 = vpop.f32.mrf.mxu0
    %4378 = vmatprep.mubr.f32.mxu0 0.0
    %4379 = vmatmul.mubr.f32.gmra.mxu0 %v2378
    %v4380 = vpop.f32.mrf.mxu0
    %v4381 = vadd.f32 0.0, %v4380
    %v4382 = vpop.f32.mrf.mxu0
    %4383 = vmatprep.mubr.f32.mxu0 0.0
    %4384 = vmatmul.mubr.f32.gmra.mxu0 %v2380
    %v4385 = vpop.f32.mrf.mxu0
    %v4386 = vadd.f32 0.0, %v4385
    %v4387 = vpop.f32.mrf.mxu0
    %4388 = vmatprep.mubr.f32.mxu0 0.0
    %4389 = vmatmul.mubr.f32.gmra.mxu0 %v2382
    %v4390 = vpop.f32.mrf.mxu0
    %v4391 = vadd.f32 0.0, %v4390
    %v4392 = vpop.f32.mrf.mxu0
    %4393 = vdwg.mxu0
    %v4394 = vadd.f32 %v4138, %v4356
    %v4395 = vadd.f32 %v4143, %v4361
    %v4396 = vadd.f32 %v4148, %v4366
    %v4397 = vadd.f32 %v4153, %v4371
    %v4398 = vadd.f32 %v4158, %v4376
    %v4399 = vadd.f32 %v4163, %v4381
    %v4400 = vadd.f32 %v4168, %v4386
    %v4401 = vadd.f32 %v4173, %v4391
    %4402 = vmatprep.subr.mxu0 0.0
    %4403 = vmatpush1.msra.mxu0 0.0
    %4404 = vmatprep.subr.mxu0 0.0
    %4405 = vmatpush1.msra.mxu0 0.0
    %4406 = vmatprep.subr.mxu0 0.0
    %4407 = vmatpush1.msra.mxu0 0.0
    %4408 = vmatprep.subr.mxu0 0.0
    %4409 = vmatpush1.msra.mxu0 0.0
    %4410 = vmatprep.subr.mxu0 0.0
    %4411 = vmatpush1.msra.mxu0 0.0
    %4412 = vmatprep.subr.mxu0 0.0
    %4413 = vmatpush1.msra.mxu0 0.0
    %4414 = vmatprep.subr.mxu0 0.0
    %4415 = vmatpush1.msra.mxu0 0.0
    %4416 = vmatprep.subr.mxu0 0.0
    %4417 = vmatpush1.msra.mxu0 0.0
    %4418 = vmatprep.subr.mxu0 0.0
    %4419 = vmatpush1.msra.mxu0 0.0
    %4420 = vmatprep.subr.mxu0 0.0
    %4421 = vmatpush1.msra.mxu0 0.0
    %4422 = vmatprep.subr.mxu0 0.0
    %4423 = vmatpush1.msra.mxu0 0.0
    %4424 = vmatprep.subr.mxu0 0.0
    %4425 = vmatpush1.msra.mxu0 %v934
    %4426 = vmatprep.subr.mxu0 0.0
    %4427 = vmatpush1.msra.mxu0 %v907
    %4428 = vmatprep.subr.mxu0 0.0
    %4429 = vmatpush1.msra.mxu0 %v906
    %4430 = vmatprep.subr.mxu0 0.0
    %4431 = vmatpush1.msra.mxu0 %v905
    %4432 = vmatprep.subr.mxu0 0.0
    %4433 = vmatpush1.msra.mxu0 %v904
    %4434 = vmatprep.subr.mxu0 0.0
    %4435 = vmatpush2.msra.mxu0 0.0
    %4436 = vmatprep.subr.mxu0 0.0
    %4437 = vmatpush2.msra.mxu0 0.0
    %4438 = vmatprep.subr.mxu0 0.0
    %4439 = vmatpush2.msra.mxu0 0.0
    %4440 = vmatprep.subr.mxu0 0.0
    %4441 = vmatpush2.msra.mxu0 0.0
    %4442 = vmatprep.subr.mxu0 0.0
    %4443 = vmatpush2.msra.mxu0 0.0
    %4444 = vmatprep.subr.mxu0 0.0
    %4445 = vmatpush2.msra.mxu0 0.0
    %4446 = vmatprep.subr.mxu0 0.0
    %4447 = vmatpush2.msra.mxu0 0.0
    %4448 = vmatprep.subr.mxu0 0.0
    %4449 = vmatpush2.msra.mxu0 0.0
    %4450 = vmatprep.subr.mxu0 0.0
    %4451 = vmatpush2.msra.mxu0 0.0
    %4452 = vmatprep.subr.mxu0 0.0
    %4453 = vmatpush2.msra.mxu0 0.0
    %4454 = vmatprep.subr.mxu0 0.0
    %4455 = vmatpush2.msra.mxu0 0.0
    %4456 = vmatprep.subr.mxu0 0.0
    %4457 = vmatpush2.msra.mxu0 0.0
    %4458 = vmatprep.subr.mxu0 0.0
    %4459 = vmatpush2.msra.mxu0 0.0
    %4460 = vmatprep.subr.mxu0 0.0
    %4461 = vmatpush2.msra.mxu0 0.0
    %4462 = vmatprep.subr.mxu0 0.0
    %4463 = vmatpush2.msra.mxu0 0.0
    %4464 = vmatprep.subr.mxu0 0.0
    %4465 = vmatpush2.msra.mxu0 0.0
    %4466 = vmatprep.mubr.f32.mxu0 0.0
    %4467 = vmatmul.mubr.f32.gmra.mxu0 %v3514
    %v4468 = vpop.f32.mrf.mxu0
    %v4469 = vadd.f32 0.0, %v4468
    %v4470 = vpop.f32.mrf.mxu0
    %4471 = vmatprep.mubr.f32.mxu0 0.0
    %4472 = vmatmul.mubr.f32.gmra.mxu0 %v3516
    %v4473 = vpop.f32.mrf.mxu0
    %v4474 = vadd.f32 0.0, %v4473
    %v4475 = vpop.f32.mrf.mxu0
    %4476 = vmatprep.mubr.f32.mxu0 0.0
    %4477 = vmatmul.mubr.f32.gmra.mxu0 %v3518
    %v4478 = vpop.f32.mrf.mxu0
    %v4479 = vadd.f32 0.0, %v4478
    %v4480 = vpop.f32.mrf.mxu0
    %4481 = vmatprep.mubr.f32.mxu0 0.0
    %4482 = vmatmul.mubr.f32.gmra.mxu0 %v3520
    %v4483 = vpop.f32.mrf.mxu0
    %v4484 = vadd.f32 0.0, %v4483
    %v4485 = vpop.f32.mrf.mxu0
    %4486 = vmatprep.mubr.f32.mxu0 0.0
    %4487 = vmatmul.mubr.f32.gmra.mxu0 %v3522
    %v4488 = vpop.f32.mrf.mxu0
    %v4489 = vadd.f32 0.0, %v4488
    %v4490 = vpop.f32.mrf.mxu0
    %4491 = vmatprep.mubr.f32.mxu0 0.0
    %4492 = vmatmul.mubr.f32.gmra.mxu0 %v3524
    %v4493 = vpop.f32.mrf.mxu0
    %v4494 = vadd.f32 0.0, %v4493
    %v4495 = vpop.f32.mrf.mxu0
    %4496 = vmatprep.mubr.f32.mxu0 0.0
    %4497 = vmatmul.mubr.f32.gmra.mxu0 %v3526
    %v4498 = vpop.f32.mrf.mxu0
    %v4499 = vadd.f32 0.0, %v4498
    %v4500 = vpop.f32.mrf.mxu0
    %4501 = vmatprep.mubr.f32.mxu0 0.0
    %4502 = vmatmul.mubr.f32.gmra.mxu0 %v3528
    %v4503 = vpop.f32.mrf.mxu0
    %v4504 = vadd.f32 0.0, %v4503
    %v4505 = vpop.f32.mrf.mxu0
    %4506 = vdwg.mxu0
    %v4507 = vadd.f32 %v4281, %v4469
    %v4508 = vadd.f32 %v4282, %v4474
    %v4509 = vadd.f32 %v4283, %v4479
    %v4510 = vadd.f32 %v4284, %v4484
    %v4511 = vadd.f32 %v4285, %v4489
    %v4512 = vadd.f32 %v4286, %v4494
    %v4513 = vadd.f32 %v4287, %v4499
    %v4514 = vadd.f32 %v4288, %v4504
    %4515 = vmatprep.subr.mxu0 0.0
    %4516 = vmatpush1.msra.mxu0 0.0
    %4517 = vmatprep.subr.mxu0 0.0
    %4518 = vmatpush1.msra.mxu0 0.0
    %4519 = vmatprep.subr.mxu0 0.0
    %4520 = vmatpush1.msra.mxu0 0.0
    %4521 = vmatprep.subr.mxu0 0.0
    %4522 = vmatpush1.msra.mxu0 0.0
    %4523 = vmatprep.subr.mxu0 0.0
    %4524 = vmatpush1.msra.mxu0 0.0
    %4525 = vmatprep.subr.mxu0 0.0
    %4526 = vmatpush1.msra.mxu0 0.0
    %4527 = vmatprep.subr.mxu0 0.0
    %4528 = vmatpush1.msra.mxu0 0.0
    %4529 = vmatprep.subr.mxu0 0.0
    %4530 = vmatpush1.msra.mxu0 0.0
    %4531 = vmatprep.subr.mxu0 0.0
    %4532 = vmatpush1.msra.mxu0 0.0
    %4533 = vmatprep.subr.mxu0 0.0
    %4534 = vmatpush1.msra.mxu0 0.0
    %4535 = vmatprep.subr.mxu0 0.0
    %4536 = vmatpush1.msra.mxu0 0.0
    %4537 = vmatprep.subr.mxu0 0.0
    %4538 = vmatpush1.msra.mxu0 %v1056
    %4539 = vmatprep.subr.mxu0 0.0
    %4540 = vmatpush1.msra.mxu0 %v1053
    %4541 = vmatprep.subr.mxu0 0.0
    %4542 = vmatpush1.msra.mxu0 %v1052
    %4543 = vmatprep.subr.mxu0 0.0
    %4544 = vmatpush1.msra.mxu0 %v1051
    %4545 = vmatprep.subr.mxu0 0.0
    %4546 = vmatpush1.msra.mxu0 %v1050
    %4547 = vmatprep.subr.mxu0 0.0
    %4548 = vmatpush2.msra.mxu0 0.0
    %4549 = vmatprep.subr.mxu0 0.0
    %4550 = vmatpush2.msra.mxu0 0.0
    %4551 = vmatprep.subr.mxu0 0.0
    %4552 = vmatpush2.msra.mxu0 0.0
    %4553 = vmatprep.subr.mxu0 0.0
    %4554 = vmatpush2.msra.mxu0 0.0
    %4555 = vmatprep.subr.mxu0 0.0
    %4556 = vmatpush2.msra.mxu0 0.0
    %4557 = vmatprep.subr.mxu0 0.0
    %4558 = vmatpush2.msra.mxu0 0.0
    %4559 = vmatprep.subr.mxu0 0.0
    %4560 = vmatpush2.msra.mxu0 0.0
    %4561 = vmatprep.subr.mxu0 0.0
    %4562 = vmatpush2.msra.mxu0 0.0
    %4563 = vmatprep.subr.mxu0 0.0
    %4564 = vmatpush2.msra.mxu0 0.0
    %4565 = vmatprep.subr.mxu0 0.0
    %4566 = vmatpush2.msra.mxu0 0.0
    %4567 = vmatprep.subr.mxu0 0.0
    %4568 = vmatpush2.msra.mxu0 0.0
    %4569 = vmatprep.subr.mxu0 0.0
    %4570 = vmatpush2.msra.mxu0 0.0
    %4571 = vmatprep.subr.mxu0 0.0
    %4572 = vmatpush2.msra.mxu0 0.0
    %4573 = vmatprep.subr.mxu0 0.0
    %4574 = vmatpush2.msra.mxu0 0.0
    %4575 = vmatprep.subr.mxu0 0.0
    %4576 = vmatpush2.msra.mxu0 0.0
    %4577 = vmatprep.subr.mxu0 0.0
    %4578 = vmatpush2.msra.mxu0 0.0
    %4579 = vmatprep.mubr.f32.mxu0 0.0
    %4580 = vmatmul.mubr.f32.gmra.mxu0 %v3514
    %v4581 = vpop.f32.mrf.mxu0
    %v4582 = vadd.f32 0.0, %v4581
    %v4583 = vpop.f32.mrf.mxu0
    %4584 = vmatprep.mubr.f32.mxu0 0.0
    %4585 = vmatmul.mubr.f32.gmra.mxu0 %v3516
    %v4586 = vpop.f32.mrf.mxu0
    %v4587 = vadd.f32 0.0, %v4586
    %v4588 = vpop.f32.mrf.mxu0
    %4589 = vmatprep.mubr.f32.mxu0 0.0
    %4590 = vmatmul.mubr.f32.gmra.mxu0 %v3518
    %v4591 = vpop.f32.mrf.mxu0
    %v4592 = vadd.f32 0.0, %v4591
    %v4593 = vpop.f32.mrf.mxu0
    %4594 = vmatprep.mubr.f32.mxu0 0.0
    %4595 = vmatmul.mubr.f32.gmra.mxu0 %v3520
    %v4596 = vpop.f32.mrf.mxu0
    %v4597 = vadd.f32 0.0, %v4596
    %v4598 = vpop.f32.mrf.mxu0
    %4599 = vmatprep.mubr.f32.mxu0 0.0
    %4600 = vmatmul.mubr.f32.gmra.mxu0 %v3522
    %v4601 = vpop.f32.mrf.mxu0
    %v4602 = vadd.f32 0.0, %v4601
    %v4603 = vpop.f32.mrf.mxu0
    %4604 = vmatprep.mubr.f32.mxu0 0.0
    %4605 = vmatmul.mubr.f32.gmra.mxu0 %v3524
    %v4606 = vpop.f32.mrf.mxu0
    %v4607 = vadd.f32 0.0, %v4606
    %v4608 = vpop.f32.mrf.mxu0
    %4609 = vmatprep.mubr.f32.mxu0 0.0
    %4610 = vmatmul.mubr.f32.gmra.mxu0 %v3526
    %v4611 = vpop.f32.mrf.mxu0
    %v4612 = vadd.f32 0.0, %v4611
    %v4613 = vpop.f32.mrf.mxu0
    %4614 = vmatprep.mubr.f32.mxu0 0.0
    %4615 = vmatmul.mubr.f32.gmra.mxu0 %v3528
    %v4616 = vpop.f32.mrf.mxu0
    %v4617 = vadd.f32 0.0, %v4616
    %v4618 = vpop.f32.mrf.mxu0
    %4619 = vdwg.mxu0
    %v4620 = vadd.f32 %v4394, %v4582
    %v4621 = vadd.f32 %v4395, %v4587
    %v4622 = vadd.f32 %v4396, %v4592
    %v4623 = vadd.f32 %v4397, %v4597
    %v4624 = vadd.f32 %v4398, %v4602
    %v4625 = vadd.f32 %v4399, %v4607
    %v4626 = vadd.f32 %v4400, %v4612
    %v4627 = vadd.f32 %v4401, %v4617
    %v4636 = vrot.slane %v72, 1
    %v4637 = vrot.slane %v73, 1
    %v4638 = vsel %vm1179, %v4636, %v4637
    %v4639 = vrot.slane %v80, 1
    %v4640 = vrot.slane %v81, 1
    %v4641 = vsel %vm1179, %v4639, %v4640
    %v4642 = vrot.slane %v88, 1
    %v4643 = vrot.slane %v89, 1
    %v4644 = vsel %vm1179, %v4642, %v4643
    %v4645 = vrot.slane %v96, 1
    %v4646 = vrot.slane %v97, 1
    %v4647 = vsel %vm1179, %v4645, %v4646
    %v4648 = vrot.slane %v104, 1
    %v4649 = vrot.slane %v105, 1
    %v4650 = vsel %vm1179, %v4648, %v4649
    %v4651 = vrot.slane %v112, 1
    %v4652 = vrot.slane %v113, 1
    %v4653 = vsel %vm1179, %v4651, %v4652
    %v4654 = vrot.slane %v120, 1
    %v4655 = vrot.slane %v121, 1
    %v4656 = vsel %vm1179, %v4654, %v4655
    %v4657 = vrot.slane %v128, 1
    %v4658 = vrot.slane %v129, 1
    %v4659 = vsel %vm1179, %v4657, %v4658
    %v4660 = vsel %vm147, %v4638, 0
    %v4662 = vsel %vm147, %v4641, 0
    %v4664 = vsel %vm147, %v4644, 0
    %v4666 = vsel %vm147, %v4647, 0
    %v4668 = vsel %vm147, %v4650, 0
    %v4670 = vsel %vm147, %v4653, 0
    %v4672 = vsel %vm147, %v4656, 0
    %v4674 = vsel %vm147, %v4659, 0
    %4676 = vmatprep.subr.mxu0 0.0
    %4677 = vmatpush1.msra.mxu0 0.0
    %4678 = vmatprep.subr.mxu0 0.0
    %4679 = vmatpush1.msra.mxu0 0.0
    %4680 = vmatprep.subr.mxu0 0.0
    %4681 = vmatpush1.msra.mxu0 0.0
    %4682 = vmatprep.subr.mxu0 0.0
    %4683 = vmatpush1.msra.mxu0 0.0
    %4684 = vmatprep.subr.mxu0 0.0
    %4685 = vmatpush1.msra.mxu0 0.0
    %4686 = vmatprep.subr.mxu0 0.0
    %4687 = vmatpush1.msra.mxu0 0.0
    %4688 = vmatprep.subr.mxu0 0.0
    %4689 = vmatpush1.msra.mxu0 0.0
    %4690 = vmatprep.subr.mxu0 0.0
    %4691 = vmatpush1.msra.mxu0 0.0
    %4692 = vmatprep.subr.mxu0 0.0
    %4693 = vmatpush1.msra.mxu0 0.0
    %4694 = vmatprep.subr.mxu0 0.0
    %4695 = vmatpush1.msra.mxu0 0.0
    %4696 = vmatprep.subr.mxu0 0.0
    %4697 = vmatpush1.msra.mxu0 0.0
    %4698 = vmatprep.subr.mxu0 0.0
    %4699 = vmatpush1.msra.mxu0 %v1227
    %4700 = vmatprep.subr.mxu0 0.0
    %4701 = vmatpush1.msra.mxu0 %v1208
    %4702 = vmatprep.subr.mxu0 0.0
    %4703 = vmatpush1.msra.mxu0 %v1207
    %4704 = vmatprep.subr.mxu0 0.0
    %4705 = vmatpush1.msra.mxu0 %v1206
    %4706 = vmatprep.subr.mxu0 0.0
    %4707 = vmatpush1.msra.mxu0 %v1205
    %4708 = vmatprep.subr.mxu0 0.0
    %4709 = vmatpush2.msra.mxu0 0.0
    %4710 = vmatprep.subr.mxu0 0.0
    %4711 = vmatpush2.msra.mxu0 0.0
    %4712 = vmatprep.subr.mxu0 0.0
    %4713 = vmatpush2.msra.mxu0 0.0
    %4714 = vmatprep.subr.mxu0 0.0
    %4715 = vmatpush2.msra.mxu0 0.0
    %4716 = vmatprep.subr.mxu0 0.0
    %4717 = vmatpush2.msra.mxu0 0.0
    %4718 = vmatprep.subr.mxu0 0.0
    %4719 = vmatpush2.msra.mxu0 0.0
    %4720 = vmatprep.subr.mxu0 0.0
    %4721 = vmatpush2.msra.mxu0 0.0
    %4722 = vmatprep.subr.mxu0 0.0
    %4723 = vmatpush2.msra.mxu0 0.0
    %4724 = vmatprep.subr.mxu0 0.0
    %4725 = vmatpush2.msra.mxu0 0.0
    %4726 = vmatprep.subr.mxu0 0.0
    %4727 = vmatpush2.msra.mxu0 0.0
    %4728 = vmatprep.subr.mxu0 0.0
    %4729 = vmatpush2.msra.mxu0 0.0
    %4730 = vmatprep.subr.mxu0 0.0
    %4731 = vmatpush2.msra.mxu0 0.0
    %4732 = vmatprep.subr.mxu0 0.0
    %4733 = vmatpush2.msra.mxu0 0.0
    %4734 = vmatprep.subr.mxu0 0.0
    %4735 = vmatpush2.msra.mxu0 0.0
    %4736 = vmatprep.subr.mxu0 0.0
    %4737 = vmatpush2.msra.mxu0 0.0
    %4738 = vmatprep.subr.mxu0 0.0
    %4739 = vmatpush2.msra.mxu0 0.0
    %4740 = vmatprep.mubr.f32.mxu0 0.0
    %4741 = vmatmul.mubr.f32.gmra.mxu0 %v4660
    %v4742 = vpop.f32.mrf.mxu0
    %v4743 = vadd.f32 0.0, %v4742
    %v4744 = vpop.f32.mrf.mxu0
    %4745 = vmatprep.mubr.f32.mxu0 0.0
    %4746 = vmatmul.mubr.f32.gmra.mxu0 %v4662
    %v4747 = vpop.f32.mrf.mxu0
    %v4748 = vadd.f32 0.0, %v4747
    %v4749 = vpop.f32.mrf.mxu0
    %4750 = vmatprep.mubr.f32.mxu0 0.0
    %4751 = vmatmul.mubr.f32.gmra.mxu0 %v4664
    %v4752 = vpop.f32.mrf.mxu0
    %v4753 = vadd.f32 0.0, %v4752
    %v4754 = vpop.f32.mrf.mxu0
    %4755 = vmatprep.mubr.f32.mxu0 0.0
    %4756 = vmatmul.mubr.f32.gmra.mxu0 %v4666
    %v4757 = vpop.f32.mrf.mxu0
    %v4758 = vadd.f32 0.0, %v4757
    %v4759 = vpop.f32.mrf.mxu0
    %4760 = vmatprep.mubr.f32.mxu0 0.0
    %4761 = vmatmul.mubr.f32.gmra.mxu0 %v4668
    %v4762 = vpop.f32.mrf.mxu0
    %v4763 = vadd.f32 0.0, %v4762
    %v4764 = vpop.f32.mrf.mxu0
    %4765 = vmatprep.mubr.f32.mxu0 0.0
    %4766 = vmatmul.mubr.f32.gmra.mxu0 %v4670
    %v4767 = vpop.f32.mrf.mxu0
    %v4768 = vadd.f32 0.0, %v4767
    %v4769 = vpop.f32.mrf.mxu0
    %4770 = vmatprep.mubr.f32.mxu0 0.0
    %4771 = vmatmul.mubr.f32.gmra.mxu0 %v4672
    %v4772 = vpop.f32.mrf.mxu0
    %v4773 = vadd.f32 0.0, %v4772
    %v4774 = vpop.f32.mrf.mxu0
    %4775 = vmatprep.mubr.f32.mxu0 0.0
    %4776 = vmatmul.mubr.f32.gmra.mxu0 %v4674
    %v4777 = vpop.f32.mrf.mxu0
    %v4778 = vadd.f32 0.0, %v4777
    %v4779 = vpop.f32.mrf.mxu0
    %4780 = vdwg.mxu0
    %v4781 = vadd.f32 %v4507, %v4743
    %v4782 = vadd.f32 %v4508, %v4748
    %v4783 = vadd.f32 %v4509, %v4753
    %v4784 = vadd.f32 %v4510, %v4758
    %v4785 = vadd.f32 %v4511, %v4763
    %v4786 = vadd.f32 %v4512, %v4768
    %v4787 = vadd.f32 %v4513, %v4773
    %v4788 = vadd.f32 %v4514, %v4778
    %4789 = vmatprep.subr.mxu0 0.0
    %4790 = vmatpush1.msra.mxu0 0.0
    %4791 = vmatprep.subr.mxu0 0.0
    %4792 = vmatpush1.msra.mxu0 0.0
    %4793 = vmatprep.subr.mxu0 0.0
    %4794 = vmatpush1.msra.mxu0 0.0
    %4795 = vmatprep.subr.mxu0 0.0
    %4796 = vmatpush1.msra.mxu0 0.0
    %4797 = vmatprep.subr.mxu0 0.0
    %4798 = vmatpush1.msra.mxu0 0.0
    %4799 = vmatprep.subr.mxu0 0.0
    %4800 = vmatpush1.msra.mxu0 0.0
    %4801 = vmatprep.subr.mxu0 0.0
    %4802 = vmatpush1.msra.mxu0 0.0
    %4803 = vmatprep.subr.mxu0 0.0
    %4804 = vmatpush1.msra.mxu0 0.0
    %4805 = vmatprep.subr.mxu0 0.0
    %4806 = vmatpush1.msra.mxu0 0.0
    %4807 = vmatprep.subr.mxu0 0.0
    %4808 = vmatpush1.msra.mxu0 0.0
    %4809 = vmatprep.subr.mxu0 0.0
    %4810 = vmatpush1.msra.mxu0 0.0
    %4811 = vmatprep.subr.mxu0 0.0
    %4812 = vmatpush1.msra.mxu0 %v1349
    %4813 = vmatprep.subr.mxu0 0.0
    %4814 = vmatpush1.msra.mxu0 %v1346
    %4815 = vmatprep.subr.mxu0 0.0
    %4816 = vmatpush1.msra.mxu0 %v1345
    %4817 = vmatprep.subr.mxu0 0.0
    %4818 = vmatpush1.msra.mxu0 %v1344
    %4819 = vmatprep.subr.mxu0 0.0
    %4820 = vmatpush1.msra.mxu0 %v1343
    %4821 = vmatprep.subr.mxu0 0.0
    %4822 = vmatpush2.msra.mxu0 0.0
    %4823 = vmatprep.subr.mxu0 0.0
    %4824 = vmatpush2.msra.mxu0 0.0
    %4825 = vmatprep.subr.mxu0 0.0
    %4826 = vmatpush2.msra.mxu0 0.0
    %4827 = vmatprep.subr.mxu0 0.0
    %4828 = vmatpush2.msra.mxu0 0.0
    %4829 = vmatprep.subr.mxu0 0.0
    %4830 = vmatpush2.msra.mxu0 0.0
    %4831 = vmatprep.subr.mxu0 0.0
    %4832 = vmatpush2.msra.mxu0 0.0
    %4833 = vmatprep.subr.mxu0 0.0
    %4834 = vmatpush2.msra.mxu0 0.0
    %4835 = vmatprep.subr.mxu0 0.0
    %4836 = vmatpush2.msra.mxu0 0.0
    %4837 = vmatprep.subr.mxu0 0.0
    %4838 = vmatpush2.msra.mxu0 0.0
    %4839 = vmatprep.subr.mxu0 0.0
    %4840 = vmatpush2.msra.mxu0 0.0
    %4841 = vmatprep.subr.mxu0 0.0
    %4842 = vmatpush2.msra.mxu0 0.0
    %4843 = vmatprep.subr.mxu0 0.0
    %4844 = vmatpush2.msra.mxu0 0.0
    %4845 = vmatprep.subr.mxu0 0.0
    %4846 = vmatpush2.msra.mxu0 0.0
    %4847 = vmatprep.subr.mxu0 0.0
    %4848 = vmatpush2.msra.mxu0 0.0
    %4849 = vmatprep.subr.mxu0 0.0
    %4850 = vmatpush2.msra.mxu0 0.0
    %4851 = vmatprep.subr.mxu0 0.0
    %4852 = vmatpush2.msra.mxu0 0.0
    %4853 = vmatprep.mubr.f32.mxu0 0.0
    %4854 = vmatmul.mubr.f32.gmra.mxu0 %v4660
    %v4855 = vpop.f32.mrf.mxu0
    %v4856 = vadd.f32 0.0, %v4855
    %v4857 = vpop.f32.mrf.mxu0
    %4858 = vmatprep.mubr.f32.mxu0 0.0
    %4859 = vmatmul.mubr.f32.gmra.mxu0 %v4662
    %v4860 = vpop.f32.mrf.mxu0
    %v4861 = vadd.f32 0.0, %v4860
    %v4862 = vpop.f32.mrf.mxu0
    %4863 = vmatprep.mubr.f32.mxu0 0.0
    %4864 = vmatmul.mubr.f32.gmra.mxu0 %v4664
    %v4865 = vpop.f32.mrf.mxu0
    %v4866 = vadd.f32 0.0, %v4865
    %v4867 = vpop.f32.mrf.mxu0
    %4868 = vmatprep.mubr.f32.mxu0 0.0
    %4869 = vmatmul.mubr.f32.gmra.mxu0 %v4666
    %v4870 = vpop.f32.mrf.mxu0
    %v4871 = vadd.f32 0.0, %v4870
    %v4872 = vpop.f32.mrf.mxu0
    %4873 = vmatprep.mubr.f32.mxu0 0.0
    %4874 = vmatmul.mubr.f32.gmra.mxu0 %v4668
    %v4875 = vpop.f32.mrf.mxu0
    %v4876 = vadd.f32 0.0, %v4875
    %v4877 = vpop.f32.mrf.mxu0
    %4878 = vmatprep.mubr.f32.mxu0 0.0
    %4879 = vmatmul.mubr.f32.gmra.mxu0 %v4670
    %v4880 = vpop.f32.mrf.mxu0
    %v4881 = vadd.f32 0.0, %v4880
    %v4882 = vpop.f32.mrf.mxu0
    %4883 = vmatprep.mubr.f32.mxu0 0.0
    %4884 = vmatmul.mubr.f32.gmra.mxu0 %v4672
    %v4885 = vpop.f32.mrf.mxu0
    %v4886 = vadd.f32 0.0, %v4885
    %v4887 = vpop.f32.mrf.mxu0
    %4888 = vmatprep.mubr.f32.mxu0 0.0
    %4889 = vmatmul.mubr.f32.gmra.mxu0 %v4674
    %v4890 = vpop.f32.mrf.mxu0
    %v4891 = vadd.f32 0.0, %v4890
    %v4892 = vpop.f32.mrf.mxu0
    %4893 = vdwg.mxu0
    %v4894 = vadd.f32 %v4620, %v4856
    %v4895 = vadd.f32 %v4621, %v4861
    %v4896 = vadd.f32 %v4622, %v4866
    %v4897 = vadd.f32 %v4623, %v4871
    %v4898 = vadd.f32 %v4624, %v4876
    %v4899 = vadd.f32 %v4625, %v4881
    %v4900 = vadd.f32 %v4626, %v4886
    %v4901 = vadd.f32 %v4627, %v4891
    %v4902 = vmax.f32 %v1334, %v1456
    %v4903 = vmax.f32 %v1335, %v1457
    %v4904 = vmax.f32 %v1336, %v1458
    %v4905 = vmax.f32 %v1337, %v1459
    %v4906 = vmax.f32 %v1338, %v1460
    %v4907 = vmax.f32 %v1339, %v1461
    %v4908 = vmax.f32 %v1340, %v1462
    %v4909 = vmax.f32 %v1341, %v1463
    %v4910 = vmax.f32 %v2489, %v2602
    %v4911 = vmax.f32 %v2490, %v2603
    %v4912 = vmax.f32 %v2491, %v2604
    %v4913 = vmax.f32 %v2492, %v2605
    %v4914 = vmax.f32 %v2493, %v2606
    %v4915 = vmax.f32 %v2494, %v2607
    %v4916 = vmax.f32 %v2495, %v2608
    %v4917 = vmax.f32 %v2496, %v2609
    %v4918 = vmax.f32 %v4902, %v4910
    %v4919 = vmax.f32 %v4903, %v4911
    %v4920 = vmax.f32 %v4904, %v4912
    %v4921 = vmax.f32 %v4905, %v4913
    %v4922 = vmax.f32 %v4906, %v4914
    %v4923 = vmax.f32 %v4907, %v4915
    %v4924 = vmax.f32 %v4908, %v4916
    %v4925 = vmax.f32 %v4909, %v4917
    %v4926 = vld [vmem:[%s3] sm:$0x1]
    %v4928 = vlaneseq
    %v4929 = vshrl.u32 %v4928, 7
    %v4930 = vsub.s32 0, %v4929
    %v4931 = vrot.slane %v4926, %v4930
    %v4933 = vadd.f32 %v4918, %v4931
    %v4934 = vadd.f32 %v4919, %v4931
    %v4935 = vadd.f32 %v4920, %v4931
    %v4936 = vadd.f32 %v4921, %v4931
    %v4937 = vadd.f32 %v4922, %v4931
    %v4938 = vadd.f32 %v4923, %v4931
    %v4939 = vadd.f32 %v4924, %v4931
    %v4940 = vadd.f32 %v4925, %v4931
    %v4941 = vmax.f32 %v4933, 0.0
    %v4942 = vmax.f32 %v4934, 0.0
    %v4943 = vmax.f32 %v4935, 0.0
    %v4944 = vmax.f32 %v4936, 0.0
    %v4945 = vmax.f32 %v4937, 0.0
    %v4946 = vmax.f32 %v4938, 0.0
    %v4947 = vmax.f32 %v4939, 0.0
    %v4948 = vmax.f32 %v4940, 0.0
    %v4949 = vmax.f32 %v3635, %v3748
    %v4950 = vmax.f32 %v3636, %v3749
    %v4951 = vmax.f32 %v3637, %v3750
    %v4952 = vmax.f32 %v3638, %v3751
    %v4953 = vmax.f32 %v3639, %v3752
    %v4954 = vmax.f32 %v3640, %v3753
    %v4955 = vmax.f32 %v3641, %v3754
    %v4956 = vmax.f32 %v3642, %v3755
    %v4957 = vmax.f32 %v4781, %v4894
    %v4958 = vmax.f32 %v4782, %v4895
    %v4959 = vmax.f32 %v4783, %v4896
    %v4960 = vmax.f32 %v4784, %v4897
    %v4961 = vmax.f32 %v4785, %v4898
    %v4962 = vmax.f32 %v4786, %v4899
    %v4963 = vmax.f32 %v4787, %v4900
    %v4964 = vmax.f32 %v4788, %v4901
    %v4965 = vmax.f32 %v4949, %v4957
    %v4966 = vmax.f32 %v4950, %v4958
    %v4967 = vmax.f32 %v4951, %v4959
    %v4968 = vmax.f32 %v4952, %v4960
    %v4969 = vmax.f32 %v4953, %v4961
    %v4970 = vmax.f32 %v4954, %v4962
    %v4971 = vmax.f32 %v4955, %v4963
    %v4972 = vmax.f32 %v4956, %v4964
    %v4973 = vadd.f32 %v4965, %v4931
    %v4974 = vadd.f32 %v4966, %v4931
    %v4975 = vadd.f32 %v4967, %v4931
    %v4976 = vadd.f32 %v4968, %v4931
    %v4977 = vadd.f32 %v4969, %v4931
    %v4978 = vadd.f32 %v4970, %v4931
    %v4979 = vadd.f32 %v4971, %v4931
    %v4980 = vadd.f32 %v4972, %v4931
    %v4981 = vmax.f32 %v4973, 0.0
    %v4982 = vmax.f32 %v4974, 0.0
    %v4983 = vmax.f32 %v4975, 0.0
    %v4984 = vmax.f32 %v4976, 0.0
    %v4985 = vmax.f32 %v4977, 0.0
    %v4986 = vmax.f32 %v4978, 0.0
    %v4987 = vmax.f32 %v4979, 0.0
    %v4988 = vmax.f32 %v4980, 0.0
    %v4989 = vld [vmem:[#allocation2] sm:$0xff]
    %v4990 = vld [vmem:[#allocation2 + $0x8] sm:$0xff]
    %v4991 = vld [vmem:[#allocation2 + $0x10] sm:$0xff]
    %v4992 = vld [vmem:[#allocation2 + $0x18] sm:$0xff]
    %v4993 = vld [vmem:[#allocation2 + $0x20] sm:$0xff]
    %v4994 = vld [vmem:[#allocation2 + $0x28] sm:$0xff]
    %v4995 = vld [vmem:[#allocation2 + $0x30] sm:$0xff]
    %v4996 = vld [vmem:[#allocation2 + $0x38] sm:$0xff]
    %v4997 = vld [vmem:[#allocation2 + $0x40] sm:$0xff]
    %v4998 = vld [vmem:[#allocation2 + $0x48] sm:$0xff]
    %v4999 = vld [vmem:[#allocation2 + $0x50] sm:$0xff]
    %v5000 = vld [vmem:[#allocation2 + $0x58] sm:$0xff]
    %v5001 = vld [vmem:[#allocation2 + $0x60] sm:$0xff]
    %v5002 = vld [vmem:[#allocation2 + $0x68] sm:$0xff]
    %s5003 = scalar_lea.vmem [#allocation2], 112
    %v5004 = vld [vmem:[%s5003] sm:$0xff]
    %v5005 = vld [vmem:[%s5003 + $0x8] sm:$0xff]
    %v5006 = vld [vmem:[%s5003 + $0x10] sm:$0xff]
    %v5007 = vld [vmem:[%s5003 + $0x18] sm:$0xff]
    %v5008 = vld [vmem:[%s5003 + $0x20] sm:$0xff]
    %v5009 = vld [vmem:[%s5003 + $0x28] sm:$0xff]
    %v5010 = vld [vmem:[%s5003 + $0x30] sm:$0xff]
    %v5011 = vld [vmem:[%s5003 + $0x38] sm:$0xff]
    %v5012 = vld [vmem:[%s5003 + $0x40] sm:$0xff]
    %v5013 = vld [vmem:[%s5003 + $0x48] sm:$0xff]
    %v5014 = vld [vmem:[%s5003 + $0x50] sm:$0xff]
    %v5015 = vld [vmem:[%s5003 + $0x58] sm:$0xff]
    %v5016 = vld [vmem:[%s5003 + $0x60] sm:$0xff]
    %v5017 = vld [vmem:[%s5003 + $0x68] sm:$0xff]
    %s5018 = scalar_lea.vmem [#allocation2], 224
    %v5019 = vld [vmem:[%s5018] sm:$0xff]
    %v5020 = vld [vmem:[%s5018 + $0x8] sm:$0xff]
    %v5021 = vld [vmem:[%s5018 + $0x10] sm:$0xff]
    %v5022 = vld [vmem:[%s5018 + $0x18] sm:$0xff]
    %v5023 = vld [vmem:[%s5018 + $0x20] sm:$0xff]
    %v5024 = vld [vmem:[%s5018 + $0x28] sm:$0xff]
    %v5025 = vld [vmem:[%s5018 + $0x30] sm:$0xff]
    %v5026 = vld [vmem:[%s5018 + $0x38] sm:$0xff]
    %v5027 = vld [vmem:[%s5018 + $0x40] sm:$0xff]
    %v5028 = vld [vmem:[%s5018 + $0x48] sm:$0xff]
    %v5029 = vld [vmem:[%s5018 + $0x50] sm:$0xff]
    %v5030 = vld [vmem:[%s5018 + $0x58] sm:$0xff]
    %v5031 = vld [vmem:[%s5018 + $0x60] sm:$0xff]
    %v5032 = vld [vmem:[%s5018 + $0x68] sm:$0xff]
    %vm5033 = vcmask 916480
    %v5035 = vsel %vm5033, %v4981, 0
    %v5038 = vsel %vm5033, %v4982, 0
    %v5041 = vsel %vm5033, %v4983, 0
    %v5044 = vsel %vm5033, %v4984, 0
    %v5047 = vsel %vm5033, %v4985, 0
    %v5050 = vsel %vm5033, %v4986, 0
    %v5053 = vsel %vm5033, %v4987, 0
    %v5056 = vsel %vm5033, %v4988, 0
    %5058 = vmatprep.subr.mxu0 0.0
    %5059 = vmatpush1.msra.mxu0 0.0
    %5060 = vmatprep.subr.mxu0 0.0
    %5061 = vmatpush1.msra.mxu0 0.0
    %5062 = vmatprep.subr.mxu0 0.0
    %5063 = vmatpush1.msra.mxu0 %v5032
    %5064 = vmatprep.subr.mxu0 0.0
    %5065 = vmatpush1.msra.mxu0 %v5031
    %5066 = vmatprep.subr.mxu0 0.0
    %5067 = vmatpush1.msra.mxu0 %v5030
    %5068 = vmatprep.subr.mxu0 0.0
    %5069 = vmatpush1.msra.mxu0 %v5029
    %5070 = vmatprep.subr.mxu0 0.0
    %5071 = vmatpush1.msra.mxu0 %v5028
    %5072 = vmatprep.subr.mxu0 0.0
    %5073 = vmatpush1.msra.mxu0 %v5027
    %5074 = vmatprep.subr.mxu0 0.0
    %5075 = vmatpush1.msra.mxu0 %v5026
    %5076 = vmatprep.subr.mxu0 0.0
    %5077 = vmatpush1.msra.mxu0 %v5025
    %5078 = vmatprep.subr.mxu0 0.0
    %5079 = vmatpush1.msra.mxu0 %v5024
    %5080 = vmatprep.subr.mxu0 0.0
    %5081 = vmatpush1.msra.mxu0 %v5023
    %5082 = vmatprep.subr.mxu0 0.0
    %5083 = vmatpush1.msra.mxu0 %v5022
    %5084 = vmatprep.subr.mxu0 0.0
    %5085 = vmatpush1.msra.mxu0 %v5021
    %5086 = vmatprep.subr.mxu0 0.0
    %5087 = vmatpush1.msra.mxu0 %v5020
    %5088 = vmatprep.subr.mxu0 0.0
    %5089 = vmatpush1.msra.mxu0 %v5019
    %5090 = vmatprep.subr.mxu0 0.0
    %5091 = vmatpush2.msra.mxu0 0.0
    %5092 = vmatprep.subr.mxu0 0.0
    %5093 = vmatpush2.msra.mxu0 0.0
    %5094 = vmatprep.subr.mxu0 0.0
    %5095 = vmatpush2.msra.mxu0 0.0
    %5096 = vmatprep.subr.mxu0 0.0
    %5097 = vmatpush2.msra.mxu0 0.0
    %5098 = vmatprep.subr.mxu0 0.0
    %5099 = vmatpush2.msra.mxu0 0.0
    %5100 = vmatprep.subr.mxu0 0.0
    %5101 = vmatpush2.msra.mxu0 0.0
    %5102 = vmatprep.subr.mxu0 0.0
    %5103 = vmatpush2.msra.mxu0 0.0
    %5104 = vmatprep.subr.mxu0 0.0
    %5105 = vmatpush2.msra.mxu0 0.0
    %5106 = vmatprep.subr.mxu0 0.0
    %5107 = vmatpush2.msra.mxu0 0.0
    %5108 = vmatprep.subr.mxu0 0.0
    %5109 = vmatpush2.msra.mxu0 0.0
    %5110 = vmatprep.subr.mxu0 0.0
    %5111 = vmatpush2.msra.mxu0 0.0
    %5112 = vmatprep.subr.mxu0 0.0
    %5113 = vmatpush2.msra.mxu0 0.0
    %5114 = vmatprep.subr.mxu0 0.0
    %5115 = vmatpush2.msra.mxu0 0.0
    %5116 = vmatprep.subr.mxu0 0.0
    %5117 = vmatpush2.msra.mxu0 0.0
    %5118 = vmatprep.subr.mxu0 0.0
    %5119 = vmatpush2.msra.mxu0 0.0
    %5120 = vmatprep.subr.mxu0 0.0
    %5121 = vmatpush2.msra.mxu0 0.0
    %5122 = vmatprep.mubr.f32.mxu0 0.0
    %5123 = vmatmul.mubr.f32.gmra.mxu0 %v5035
    %v5124 = vpop.f32.mrf.mxu0
    %v5125 = vadd.f32 0.0, %v5124
    %v5126 = vpop.f32.mrf.mxu0
    %5127 = vmatprep.mubr.f32.mxu0 0.0
    %5128 = vmatmul.mubr.f32.gmra.mxu0 %v5038
    %v5129 = vpop.f32.mrf.mxu0
    %v5130 = vadd.f32 0.0, %v5129
    %v5131 = vpop.f32.mrf.mxu0
    %5132 = vmatprep.mubr.f32.mxu0 0.0
    %5133 = vmatmul.mubr.f32.gmra.mxu0 %v5041
    %v5134 = vpop.f32.mrf.mxu0
    %v5135 = vadd.f32 0.0, %v5134
    %v5136 = vpop.f32.mrf.mxu0
    %5137 = vmatprep.mubr.f32.mxu0 0.0
    %5138 = vmatmul.mubr.f32.gmra.mxu0 %v5044
    %v5139 = vpop.f32.mrf.mxu0
    %v5140 = vadd.f32 0.0, %v5139
    %v5141 = vpop.f32.mrf.mxu0
    %5142 = vmatprep.mubr.f32.mxu0 0.0
    %5143 = vmatmul.mubr.f32.gmra.mxu0 %v5047
    %v5144 = vpop.f32.mrf.mxu0
    %v5145 = vadd.f32 0.0, %v5144
    %v5146 = vpop.f32.mrf.mxu0
    %5147 = vmatprep.mubr.f32.mxu0 0.0
    %5148 = vmatmul.mubr.f32.gmra.mxu0 %v5050
    %v5149 = vpop.f32.mrf.mxu0
    %v5150 = vadd.f32 0.0, %v5149
    %v5151 = vpop.f32.mrf.mxu0
    %5152 = vmatprep.mubr.f32.mxu0 0.0
    %5153 = vmatmul.mubr.f32.gmra.mxu0 %v5053
    %v5154 = vpop.f32.mrf.mxu0
    %v5155 = vadd.f32 0.0, %v5154
    %v5156 = vpop.f32.mrf.mxu0
    %5157 = vmatprep.mubr.f32.mxu0 0.0
    %5158 = vmatmul.mubr.f32.gmra.mxu0 %v5056
    %v5159 = vpop.f32.mrf.mxu0
    %v5160 = vadd.f32 0.0, %v5159
    %v5161 = vpop.f32.mrf.mxu0
    %5162 = vdwg.mxu0
    %v5164 = vsel %vm5033, %v4941, 0
    %v5167 = vsel %vm5033, %v4942, 0
    %v5170 = vsel %vm5033, %v4943, 0
    %v5173 = vsel %vm5033, %v4944, 0
    %v5176 = vsel %vm5033, %v4945, 0
    %v5179 = vsel %vm5033, %v4946, 0
    %v5182 = vsel %vm5033, %v4947, 0
    %v5185 = vsel %vm5033, %v4948, 0
    %5187 = vmatprep.subr.mxu0 0.0
    %5188 = vmatpush1.msra.mxu0 0.0
    %5189 = vmatprep.subr.mxu0 0.0
    %5190 = vmatpush1.msra.mxu0 0.0
    %5191 = vmatprep.subr.mxu0 0.0
    %5192 = vmatpush1.msra.mxu0 %v5002
    %5193 = vmatprep.subr.mxu0 0.0
    %5194 = vmatpush1.msra.mxu0 %v5001
    %5195 = vmatprep.subr.mxu0 0.0
    %5196 = vmatpush1.msra.mxu0 %v5000
    %5197 = vmatprep.subr.mxu0 0.0
    %5198 = vmatpush1.msra.mxu0 %v4999
    %5199 = vmatprep.subr.mxu0 0.0
    %5200 = vmatpush1.msra.mxu0 %v4998
    %5201 = vmatprep.subr.mxu0 0.0
    %5202 = vmatpush1.msra.mxu0 %v4997
    %5203 = vmatprep.subr.mxu0 0.0
    %5204 = vmatpush1.msra.mxu0 %v4996
    %5205 = vmatprep.subr.mxu0 0.0
    %5206 = vmatpush1.msra.mxu0 %v4995
    %5207 = vmatprep.subr.mxu0 0.0
    %5208 = vmatpush1.msra.mxu0 %v4994
    %5209 = vmatprep.subr.mxu0 0.0
    %5210 = vmatpush1.msra.mxu0 %v4993
    %5211 = vmatprep.subr.mxu0 0.0
    %5212 = vmatpush1.msra.mxu0 %v4992
    %5213 = vmatprep.subr.mxu0 0.0
    %5214 = vmatpush1.msra.mxu0 %v4991
    %5215 = vmatprep.subr.mxu0 0.0
    %5216 = vmatpush1.msra.mxu0 %v4990
    %5217 = vmatprep.subr.mxu0 0.0
    %5218 = vmatpush1.msra.mxu0 %v4989
    %5219 = vmatprep.subr.mxu0 0.0
    %5220 = vmatpush2.msra.mxu0 0.0
    %5221 = vmatprep.subr.mxu0 0.0
    %5222 = vmatpush2.msra.mxu0 0.0
    %5223 = vmatprep.subr.mxu0 0.0
    %5224 = vmatpush2.msra.mxu0 0.0
    %5225 = vmatprep.subr.mxu0 0.0
    %5226 = vmatpush2.msra.mxu0 0.0
    %5227 = vmatprep.subr.mxu0 0.0
    %5228 = vmatpush2.msra.mxu0 0.0
    %5229 = vmatprep.subr.mxu0 0.0
    %5230 = vmatpush2.msra.mxu0 0.0
    %5231 = vmatprep.subr.mxu0 0.0
    %5232 = vmatpush2.msra.mxu0 0.0
    %5233 = vmatprep.subr.mxu0 0.0
    %5234 = vmatpush2.msra.mxu0 0.0
    %5235 = vmatprep.subr.mxu0 0.0
    %5236 = vmatpush2.msra.mxu0 0.0
    %5237 = vmatprep.subr.mxu0 0.0
    %5238 = vmatpush2.msra.mxu0 0.0
    %5239 = vmatprep.subr.mxu0 0.0
    %5240 = vmatpush2.msra.mxu0 0.0
    %5241 = vmatprep.subr.mxu0 0.0
    %5242 = vmatpush2.msra.mxu0 0.0
    %5243 = vmatprep.subr.mxu0 0.0
    %5244 = vmatpush2.msra.mxu0 0.0
    %5245 = vmatprep.subr.mxu0 0.0
    %5246 = vmatpush2.msra.mxu0 0.0
    %5247 = vmatprep.subr.mxu0 0.0
    %5248 = vmatpush2.msra.mxu0 0.0
    %5249 = vmatprep.subr.mxu0 0.0
    %5250 = vmatpush2.msra.mxu0 0.0
    %5251 = vmatprep.mubr.f32.mxu0 0.0
    %5252 = vmatmul.mubr.f32.gmra.mxu0 %v5164
    %v5253 = vpop.f32.mrf.mxu0
    %v5254 = vadd.f32 %v5125, %v5253
    %v5255 = vpop.f32.mrf.mxu0
    %5256 = vmatprep.mubr.f32.mxu0 0.0
    %5257 = vmatmul.mubr.f32.gmra.mxu0 %v5167
    %v5258 = vpop.f32.mrf.mxu0
    %v5259 = vadd.f32 %v5130, %v5258
    %v5260 = vpop.f32.mrf.mxu0
    %5261 = vmatprep.mubr.f32.mxu0 0.0
    %5262 = vmatmul.mubr.f32.gmra.mxu0 %v5170
    %v5263 = vpop.f32.mrf.mxu0
    %v5264 = vadd.f32 %v5135, %v5263
    %v5265 = vpop.f32.mrf.mxu0
    %5266 = vmatprep.mubr.f32.mxu0 0.0
    %5267 = vmatmul.mubr.f32.gmra.mxu0 %v5173
    %v5268 = vpop.f32.mrf.mxu0
    %v5269 = vadd.f32 %v5140, %v5268
    %v5270 = vpop.f32.mrf.mxu0
    %5271 = vmatprep.mubr.f32.mxu0 0.0
    %5272 = vmatmul.mubr.f32.gmra.mxu0 %v5176
    %v5273 = vpop.f32.mrf.mxu0
    %v5274 = vadd.f32 %v5145, %v5273
    %v5275 = vpop.f32.mrf.mxu0
    %5276 = vmatprep.mubr.f32.mxu0 0.0
    %5277 = vmatmul.mubr.f32.gmra.mxu0 %v5179
    %v5278 = vpop.f32.mrf.mxu0
    %v5279 = vadd.f32 %v5150, %v5278
    %v5280 = vpop.f32.mrf.mxu0
    %5281 = vmatprep.mubr.f32.mxu0 0.0
    %5282 = vmatmul.mubr.f32.gmra.mxu0 %v5182
    %v5283 = vpop.f32.mrf.mxu0
    %v5284 = vadd.f32 %v5155, %v5283
    %v5285 = vpop.f32.mrf.mxu0
    %5286 = vmatprep.mubr.f32.mxu0 0.0
    %5287 = vmatmul.mubr.f32.gmra.mxu0 %v5185
    %v5288 = vpop.f32.mrf.mxu0
    %v5289 = vadd.f32 %v5160, %v5288
    %v5290 = vpop.f32.mrf.mxu0
    %5291 = vdwg.mxu0
    %s5292 = scalar_lea.vmem [#allocation2], 336
    %v5293 = vld [vmem:[%s5292] sm:$0xff]
    %v5294 = vld [vmem:[%s5292 + $0x8] sm:$0xff]
    %v5295 = vld [vmem:[%s5292 + $0x10] sm:$0xff]
    %v5296 = vld [vmem:[%s5292 + $0x18] sm:$0xff]
    %v5297 = vld [vmem:[%s5292 + $0x20] sm:$0xff]
    %v5298 = vld [vmem:[%s5292 + $0x28] sm:$0xff]
    %v5299 = vld [vmem:[%s5292 + $0x30] sm:$0xff]
    %v5300 = vld [vmem:[%s5292 + $0x38] sm:$0xff]
    %v5301 = vld [vmem:[%s5292 + $0x40] sm:$0xff]
    %v5302 = vld [vmem:[%s5292 + $0x48] sm:$0xff]
    %v5303 = vld [vmem:[%s5292 + $0x50] sm:$0xff]
    %v5304 = vld [vmem:[%s5292 + $0x58] sm:$0xff]
    %v5305 = vld [vmem:[%s5292 + $0x60] sm:$0xff]
    %v5306 = vld [vmem:[%s5292 + $0x68] sm:$0xff]
    %5307 = vmatprep.subr.mxu0 0.0
    %5308 = vmatpush1.msra.mxu0 0.0
    %5309 = vmatprep.subr.mxu0 0.0
    %5310 = vmatpush1.msra.mxu0 0.0
    %5311 = vmatprep.subr.mxu0 0.0
    %5312 = vmatpush1.msra.mxu0 %v5306
    %5313 = vmatprep.subr.mxu0 0.0
    %5314 = vmatpush1.msra.mxu0 %v5305
    %5315 = vmatprep.subr.mxu0 0.0
    %5316 = vmatpush1.msra.mxu0 %v5304
    %5317 = vmatprep.subr.mxu0 0.0
    %5318 = vmatpush1.msra.mxu0 %v5303
    %5319 = vmatprep.subr.mxu0 0.0
    %5320 = vmatpush1.msra.mxu0 %v5302
    %5321 = vmatprep.subr.mxu0 0.0
    %5322 = vmatpush1.msra.mxu0 %v5301
    %5323 = vmatprep.subr.mxu0 0.0
    %5324 = vmatpush1.msra.mxu0 %v5300
    %5325 = vmatprep.subr.mxu0 0.0
    %5326 = vmatpush1.msra.mxu0 %v5299
    %5327 = vmatprep.subr.mxu0 0.0
    %5328 = vmatpush1.msra.mxu0 %v5298
    %5329 = vmatprep.subr.mxu0 0.0
    %5330 = vmatpush1.msra.mxu0 %v5297
    %5331 = vmatprep.subr.mxu0 0.0
    %5332 = vmatpush1.msra.mxu0 %v5296
    %5333 = vmatprep.subr.mxu0 0.0
    %5334 = vmatpush1.msra.mxu0 %v5295
    %5335 = vmatprep.subr.mxu0 0.0
    %5336 = vmatpush1.msra.mxu0 %v5294
    %5337 = vmatprep.subr.mxu0 0.0
    %5338 = vmatpush1.msra.mxu0 %v5293
    %5339 = vmatprep.subr.mxu0 0.0
    %5340 = vmatpush2.msra.mxu0 0.0
    %5341 = vmatprep.subr.mxu0 0.0
    %5342 = vmatpush2.msra.mxu0 0.0
    %5343 = vmatprep.subr.mxu0 0.0
    %5344 = vmatpush2.msra.mxu0 0.0
    %5345 = vmatprep.subr.mxu0 0.0
    %5346 = vmatpush2.msra.mxu0 0.0
    %5347 = vmatprep.subr.mxu0 0.0
    %5348 = vmatpush2.msra.mxu0 0.0
    %5349 = vmatprep.subr.mxu0 0.0
    %5350 = vmatpush2.msra.mxu0 0.0
    %5351 = vmatprep.subr.mxu0 0.0
    %5352 = vmatpush2.msra.mxu0 0.0
    %5353 = vmatprep.subr.mxu0 0.0
    %5354 = vmatpush2.msra.mxu0 0.0
    %5355 = vmatprep.subr.mxu0 0.0
    %5356 = vmatpush2.msra.mxu0 0.0
    %5357 = vmatprep.subr.mxu0 0.0
    %5358 = vmatpush2.msra.mxu0 0.0
    %5359 = vmatprep.subr.mxu0 0.0
    %5360 = vmatpush2.msra.mxu0 0.0
    %5361 = vmatprep.subr.mxu0 0.0
    %5362 = vmatpush2.msra.mxu0 0.0
    %5363 = vmatprep.subr.mxu0 0.0
    %5364 = vmatpush2.msra.mxu0 0.0
    %5365 = vmatprep.subr.mxu0 0.0
    %5366 = vmatpush2.msra.mxu0 0.0
    %5367 = vmatprep.subr.mxu0 0.0
    %5368 = vmatpush2.msra.mxu0 0.0
    %5369 = vmatprep.subr.mxu0 0.0
    %5370 = vmatpush2.msra.mxu0 0.0
    %5371 = vmatprep.mubr.f32.mxu0 0.0
    %5372 = vmatmul.mubr.f32.gmra.mxu0 %v5035
    %v5373 = vpop.f32.mrf.mxu0
    %v5374 = vadd.f32 0.0, %v5373
    %v5375 = vpop.f32.mrf.mxu0
    %5376 = vmatprep.mubr.f32.mxu0 0.0
    %5377 = vmatmul.mubr.f32.gmra.mxu0 %v5038
    %v5378 = vpop.f32.mrf.mxu0
    %v5379 = vadd.f32 0.0, %v5378
    %v5380 = vpop.f32.mrf.mxu0
    %5381 = vmatprep.mubr.f32.mxu0 0.0
    %5382 = vmatmul.mubr.f32.gmra.mxu0 %v5041
    %v5383 = vpop.f32.mrf.mxu0
    %v5384 = vadd.f32 0.0, %v5383
    %v5385 = vpop.f32.mrf.mxu0
    %5386 = vmatprep.mubr.f32.mxu0 0.0
    %5387 = vmatmul.mubr.f32.gmra.mxu0 %v5044
    %v5388 = vpop.f32.mrf.mxu0
    %v5389 = vadd.f32 0.0, %v5388
    %v5390 = vpop.f32.mrf.mxu0
    %5391 = vmatprep.mubr.f32.mxu0 0.0
    %5392 = vmatmul.mubr.f32.gmra.mxu0 %v5047
    %v5393 = vpop.f32.mrf.mxu0
    %v5394 = vadd.f32 0.0, %v5393
    %v5395 = vpop.f32.mrf.mxu0
    %5396 = vmatprep.mubr.f32.mxu0 0.0
    %5397 = vmatmul.mubr.f32.gmra.mxu0 %v5050
    %v5398 = vpop.f32.mrf.mxu0
    %v5399 = vadd.f32 0.0, %v5398
    %v5400 = vpop.f32.mrf.mxu0
    %5401 = vmatprep.mubr.f32.mxu0 0.0
    %5402 = vmatmul.mubr.f32.gmra.mxu0 %v5053
    %v5403 = vpop.f32.mrf.mxu0
    %v5404 = vadd.f32 0.0, %v5403
    %v5405 = vpop.f32.mrf.mxu0
    %5406 = vmatprep.mubr.f32.mxu0 0.0
    %5407 = vmatmul.mubr.f32.gmra.mxu0 %v5056
    %v5408 = vpop.f32.mrf.mxu0
    %v5409 = vadd.f32 0.0, %v5408
    %v5410 = vpop.f32.mrf.mxu0
    %5411 = vdwg.mxu0
    %5412 = vmatprep.subr.mxu0 0.0
    %5413 = vmatpush1.msra.mxu0 0.0
    %5414 = vmatprep.subr.mxu0 0.0
    %5415 = vmatpush1.msra.mxu0 0.0
    %5416 = vmatprep.subr.mxu0 0.0
    %5417 = vmatpush1.msra.mxu0 %v5017
    %5418 = vmatprep.subr.mxu0 0.0
    %5419 = vmatpush1.msra.mxu0 %v5016
    %5420 = vmatprep.subr.mxu0 0.0
    %5421 = vmatpush1.msra.mxu0 %v5015
    %5422 = vmatprep.subr.mxu0 0.0
    %5423 = vmatpush1.msra.mxu0 %v5014
    %5424 = vmatprep.subr.mxu0 0.0
    %5425 = vmatpush1.msra.mxu0 %v5013
    %5426 = vmatprep.subr.mxu0 0.0
    %5427 = vmatpush1.msra.mxu0 %v5012
    %5428 = vmatprep.subr.mxu0 0.0
    %5429 = vmatpush1.msra.mxu0 %v5011
    %5430 = vmatprep.subr.mxu0 0.0
    %5431 = vmatpush1.msra.mxu0 %v5010
    %5432 = vmatprep.subr.mxu0 0.0
    %5433 = vmatpush1.msra.mxu0 %v5009
    %5434 = vmatprep.subr.mxu0 0.0
    %5435 = vmatpush1.msra.mxu0 %v5008
    %5436 = vmatprep.subr.mxu0 0.0
    %5437 = vmatpush1.msra.mxu0 %v5007
    %5438 = vmatprep.subr.mxu0 0.0
    %5439 = vmatpush1.msra.mxu0 %v5006
    %5440 = vmatprep.subr.mxu0 0.0
    %5441 = vmatpush1.msra.mxu0 %v5005
    %5442 = vmatprep.subr.mxu0 0.0
    %5443 = vmatpush1.msra.mxu0 %v5004
    %5444 = vmatprep.subr.mxu0 0.0
    %5445 = vmatpush2.msra.mxu0 0.0
    %5446 = vmatprep.subr.mxu0 0.0
    %5447 = vmatpush2.msra.mxu0 0.0
    %5448 = vmatprep.subr.mxu0 0.0
    %5449 = vmatpush2.msra.mxu0 0.0
    %5450 = vmatprep.subr.mxu0 0.0
    %5451 = vmatpush2.msra.mxu0 0.0
    %5452 = vmatprep.subr.mxu0 0.0
    %5453 = vmatpush2.msra.mxu0 0.0
    %5454 = vmatprep.subr.mxu0 0.0
    %5455 = vmatpush2.msra.mxu0 0.0
    %5456 = vmatprep.subr.mxu0 0.0
    %5457 = vmatpush2.msra.mxu0 0.0
    %5458 = vmatprep.subr.mxu0 0.0
    %5459 = vmatpush2.msra.mxu0 0.0
    %5460 = vmatprep.subr.mxu0 0.0
    %5461 = vmatpush2.msra.mxu0 0.0
    %5462 = vmatprep.subr.mxu0 0.0
    %5463 = vmatpush2.msra.mxu0 0.0
    %5464 = vmatprep.subr.mxu0 0.0
    %5465 = vmatpush2.msra.mxu0 0.0
    %5466 = vmatprep.subr.mxu0 0.0
    %5467 = vmatpush2.msra.mxu0 0.0
    %5468 = vmatprep.subr.mxu0 0.0
    %5469 = vmatpush2.msra.mxu0 0.0
    %5470 = vmatprep.subr.mxu0 0.0
    %5471 = vmatpush2.msra.mxu0 0.0
    %5472 = vmatprep.subr.mxu0 0.0
    %5473 = vmatpush2.msra.mxu0 0.0
    %5474 = vmatprep.subr.mxu0 0.0
    %5475 = vmatpush2.msra.mxu0 0.0
    %5476 = vmatprep.mubr.f32.mxu0 0.0
    %5477 = vmatmul.mubr.f32.gmra.mxu0 %v5164
    %v5478 = vpop.f32.mrf.mxu0
    %v5479 = vadd.f32 %v5374, %v5478
    %v5480 = vpop.f32.mrf.mxu0
    %5481 = vmatprep.mubr.f32.mxu0 0.0
    %5482 = vmatmul.mubr.f32.gmra.mxu0 %v5167
    %v5483 = vpop.f32.mrf.mxu0
    %v5484 = vadd.f32 %v5379, %v5483
    %v5485 = vpop.f32.mrf.mxu0
    %5486 = vmatprep.mubr.f32.mxu0 0.0
    %5487 = vmatmul.mubr.f32.gmra.mxu0 %v5170
    %v5488 = vpop.f32.mrf.mxu0
    %v5489 = vadd.f32 %v5384, %v5488
    %v5490 = vpop.f32.mrf.mxu0
    %5491 = vmatprep.mubr.f32.mxu0 0.0
    %5492 = vmatmul.mubr.f32.gmra.mxu0 %v5173
    %v5493 = vpop.f32.mrf.mxu0
    %v5494 = vadd.f32 %v5389, %v5493
    %v5495 = vpop.f32.mrf.mxu0
    %5496 = vmatprep.mubr.f32.mxu0 0.0
    %5497 = vmatmul.mubr.f32.gmra.mxu0 %v5176
    %v5498 = vpop.f32.mrf.mxu0
    %v5499 = vadd.f32 %v5394, %v5498
    %v5500 = vpop.f32.mrf.mxu0
    %5501 = vmatprep.mubr.f32.mxu0 0.0
    %5502 = vmatmul.mubr.f32.gmra.mxu0 %v5179
    %v5503 = vpop.f32.mrf.mxu0
    %v5504 = vadd.f32 %v5399, %v5503
    %v5505 = vpop.f32.mrf.mxu0
    %5506 = vmatprep.mubr.f32.mxu0 0.0
    %5507 = vmatmul.mubr.f32.gmra.mxu0 %v5182
    %v5508 = vpop.f32.mrf.mxu0
    %v5509 = vadd.f32 %v5404, %v5508
    %v5510 = vpop.f32.mrf.mxu0
    %5511 = vmatprep.mubr.f32.mxu0 0.0
    %5512 = vmatmul.mubr.f32.gmra.mxu0 %v5185
    %v5513 = vpop.f32.mrf.mxu0
    %v5514 = vadd.f32 %v5409, %v5513
    %v5515 = vpop.f32.mrf.mxu0
    %5516 = vdwg.mxu0
    %v5518 = vrot.slane %v4941, 1
    %v5519 = vrot.slane 0.0, 1
    %v5520 = vsel %vm1179, %v5518, %v5519
    %v5521 = vrot.slane %v4942, 1
    %v5522 = vsel %vm1179, %v5521, %v5519
    %v5523 = vrot.slane %v4943, 1
    %v5524 = vsel %vm1179, %v5523, %v5519
    %v5525 = vrot.slane %v4944, 1
    %v5526 = vsel %vm1179, %v5525, %v5519
    %v5527 = vrot.slane %v4945, 1
    %v5528 = vsel %vm1179, %v5527, %v5519
    %v5529 = vrot.slane %v4946, 1
    %v5530 = vsel %vm1179, %v5529, %v5519
    %v5531 = vrot.slane %v4947, 1
    %v5532 = vsel %vm1179, %v5531, %v5519
    %v5533 = vrot.slane %v4948, 1
    %v5534 = vsel %vm1179, %v5533, %v5519
    %s5535 = scalar_lea.vmem [#allocation2], 448
    %v5536 = vld [vmem:[%s5535] sm:$0xff]
    %v5537 = vld [vmem:[%s5535 + $0x8] sm:$0xff]
    %v5538 = vld [vmem:[%s5535 + $0x10] sm:$0xff]
    %v5539 = vld [vmem:[%s5535 + $0x18] sm:$0xff]
    %v5540 = vld [vmem:[%s5535 + $0x20] sm:$0xff]
    %v5541 = vld [vmem:[%s5535 + $0x28] sm:$0xff]
    %v5542 = vld [vmem:[%s5535 + $0x30] sm:$0xff]
    %v5543 = vld [vmem:[%s5535 + $0x38] sm:$0xff]
    %v5544 = vld [vmem:[%s5535 + $0x40] sm:$0xff]
    %v5545 = vld [vmem:[%s5535 + $0x48] sm:$0xff]
    %v5546 = vld [vmem:[%s5535 + $0x50] sm:$0xff]
    %v5547 = vld [vmem:[%s5535 + $0x58] sm:$0xff]
    %v5548 = vld [vmem:[%s5535 + $0x60] sm:$0xff]
    %v5549 = vld [vmem:[%s5535 + $0x68] sm:$0xff]
    %v5550 = vsel %vm5033, %v5520, 0
    %v5552 = vsel %vm5033, %v5522, 0
    %v5554 = vsel %vm5033, %v5524, 0
    %v5556 = vsel %vm5033, %v5526, 0
    %v5558 = vsel %vm5033, %v5528, 0
    %v5560 = vsel %vm5033, %v5530, 0
    %v5562 = vsel %vm5033, %v5532, 0
    %v5564 = vsel %vm5033, %v5534, 0
    %5566 = vmatprep.subr.mxu0 0.0
    %5567 = vmatpush1.msra.mxu0 0.0
    %5568 = vmatprep.subr.mxu0 0.0
    %5569 = vmatpush1.msra.mxu0 0.0
    %5570 = vmatprep.subr.mxu0 0.0
    %5571 = vmatpush1.msra.mxu0 %v5549
    %5572 = vmatprep.subr.mxu0 0.0
    %5573 = vmatpush1.msra.mxu0 %v5548
    %5574 = vmatprep.subr.mxu0 0.0
    %5575 = vmatpush1.msra.mxu0 %v5547
    %5576 = vmatprep.subr.mxu0 0.0
    %5577 = vmatpush1.msra.mxu0 %v5546
    %5578 = vmatprep.subr.mxu0 0.0
    %5579 = vmatpush1.msra.mxu0 %v5545
    %5580 = vmatprep.subr.mxu0 0.0
    %5581 = vmatpush1.msra.mxu0 %v5544
    %5582 = vmatprep.subr.mxu0 0.0
    %5583 = vmatpush1.msra.mxu0 %v5543
    %5584 = vmatprep.subr.mxu0 0.0
    %5585 = vmatpush1.msra.mxu0 %v5542
    %5586 = vmatprep.subr.mxu0 0.0
    %5587 = vmatpush1.msra.mxu0 %v5541
    %5588 = vmatprep.subr.mxu0 0.0
    %5589 = vmatpush1.msra.mxu0 %v5540
    %5590 = vmatprep.subr.mxu0 0.0
    %5591 = vmatpush1.msra.mxu0 %v5539
    %5592 = vmatprep.subr.mxu0 0.0
    %5593 = vmatpush1.msra.mxu0 %v5538
    %5594 = vmatprep.subr.mxu0 0.0
    %5595 = vmatpush1.msra.mxu0 %v5537
    %5596 = vmatprep.subr.mxu0 0.0
    %5597 = vmatpush1.msra.mxu0 %v5536
    %5598 = vmatprep.subr.mxu0 0.0
    %5599 = vmatpush2.msra.mxu0 0.0
    %5600 = vmatprep.subr.mxu0 0.0
    %5601 = vmatpush2.msra.mxu0 0.0
    %5602 = vmatprep.subr.mxu0 0.0
    %5603 = vmatpush2.msra.mxu0 0.0
    %5604 = vmatprep.subr.mxu0 0.0
    %5605 = vmatpush2.msra.mxu0 0.0
    %5606 = vmatprep.subr.mxu0 0.0
    %5607 = vmatpush2.msra.mxu0 0.0
    %5608 = vmatprep.subr.mxu0 0.0
    %5609 = vmatpush2.msra.mxu0 0.0
    %5610 = vmatprep.subr.mxu0 0.0
    %5611 = vmatpush2.msra.mxu0 0.0
    %5612 = vmatprep.subr.mxu0 0.0
    %5613 = vmatpush2.msra.mxu0 0.0
    %5614 = vmatprep.subr.mxu0 0.0
    %5615 = vmatpush2.msra.mxu0 0.0
    %5616 = vmatprep.subr.mxu0 0.0
    %5617 = vmatpush2.msra.mxu0 0.0
    %5618 = vmatprep.subr.mxu0 0.0
    %5619 = vmatpush2.msra.mxu0 0.0
    %5620 = vmatprep.subr.mxu0 0.0
    %5621 = vmatpush2.msra.mxu0 0.0
    %5622 = vmatprep.subr.mxu0 0.0
    %5623 = vmatpush2.msra.mxu0 0.0
    %5624 = vmatprep.subr.mxu0 0.0
    %5625 = vmatpush2.msra.mxu0 0.0
    %5626 = vmatprep.subr.mxu0 0.0
    %5627 = vmatpush2.msra.mxu0 0.0
    %5628 = vmatprep.subr.mxu0 0.0
    %5629 = vmatpush2.msra.mxu0 0.0
    %5630 = vmatprep.mubr.f32.mxu0 0.0
    %5631 = vmatmul.mubr.f32.gmra.mxu0 %v5550
    %v5632 = vpop.f32.mrf.mxu0
    %v5633 = vadd.f32 0.0, %v5632
    %v5634 = vpop.f32.mrf.mxu0
    %5635 = vmatprep.mubr.f32.mxu0 0.0
    %5636 = vmatmul.mubr.f32.gmra.mxu0 %v5552
    %v5637 = vpop.f32.mrf.mxu0
    %v5638 = vadd.f32 0.0, %v5637
    %v5639 = vpop.f32.mrf.mxu0
    %5640 = vmatprep.mubr.f32.mxu0 0.0
    %5641 = vmatmul.mubr.f32.gmra.mxu0 %v5554
    %v5642 = vpop.f32.mrf.mxu0
    %v5643 = vadd.f32 0.0, %v5642
    %v5644 = vpop.f32.mrf.mxu0
    %5645 = vmatprep.mubr.f32.mxu0 0.0
    %5646 = vmatmul.mubr.f32.gmra.mxu0 %v5556
    %v5647 = vpop.f32.mrf.mxu0
    %v5648 = vadd.f32 0.0, %v5647
    %v5649 = vpop.f32.mrf.mxu0
    %5650 = vmatprep.mubr.f32.mxu0 0.0
    %5651 = vmatmul.mubr.f32.gmra.mxu0 %v5558
    %v5652 = vpop.f32.mrf.mxu0
    %v5653 = vadd.f32 0.0, %v5652
    %v5654 = vpop.f32.mrf.mxu0
    %5655 = vmatprep.mubr.f32.mxu0 0.0
    %5656 = vmatmul.mubr.f32.gmra.mxu0 %v5560
    %v5657 = vpop.f32.mrf.mxu0
    %v5658 = vadd.f32 0.0, %v5657
    %v5659 = vpop.f32.mrf.mxu0
    %5660 = vmatprep.mubr.f32.mxu0 0.0
    %5661 = vmatmul.mubr.f32.gmra.mxu0 %v5562
    %v5662 = vpop.f32.mrf.mxu0
    %v5663 = vadd.f32 0.0, %v5662
    %v5664 = vpop.f32.mrf.mxu0
    %5665 = vmatprep.mubr.f32.mxu0 0.0
    %5666 = vmatmul.mubr.f32.gmra.mxu0 %v5564
    %v5667 = vpop.f32.mrf.mxu0
    %v5668 = vadd.f32 0.0, %v5667
    %v5669 = vpop.f32.mrf.mxu0
    %5670 = vdwg.mxu0
    %v5671 = vadd.f32 %v5254, %v5633
    %v5672 = vadd.f32 %v5259, %v5638
    %v5673 = vadd.f32 %v5264, %v5643
    %v5674 = vadd.f32 %v5269, %v5648
    %v5675 = vadd.f32 %v5274, %v5653
    %v5676 = vadd.f32 %v5279, %v5658
    %v5677 = vadd.f32 %v5284, %v5663
    %v5678 = vadd.f32 %v5289, %v5668
    %s5679 = scalar_lea.vmem [#allocation2], 560
    %v5680 = vld [vmem:[%s5679] sm:$0xff]
    %v5681 = vld [vmem:[%s5679 + $0x8] sm:$0xff]
    %v5682 = vld [vmem:[%s5679 + $0x10] sm:$0xff]
    %v5683 = vld [vmem:[%s5679 + $0x18] sm:$0xff]
    %v5684 = vld [vmem:[%s5679 + $0x20] sm:$0xff]
    %v5685 = vld [vmem:[%s5679 + $0x28] sm:$0xff]
    %v5686 = vld [vmem:[%s5679 + $0x30] sm:$0xff]
    %v5687 = vld [vmem:[%s5679 + $0x38] sm:$0xff]
    %v5688 = vld [vmem:[%s5679 + $0x40] sm:$0xff]
    %v5689 = vld [vmem:[%s5679 + $0x48] sm:$0xff]
    %v5690 = vld [vmem:[%s5679 + $0x50] sm:$0xff]
    %v5691 = vld [vmem:[%s5679 + $0x58] sm:$0xff]
    %v5692 = vld [vmem:[%s5679 + $0x60] sm:$0xff]
    %v5693 = vld [vmem:[%s5679 + $0x68] sm:$0xff]
    %5694 = vmatprep.subr.mxu0 0.0
    %5695 = vmatpush1.msra.mxu0 0.0
    %5696 = vmatprep.subr.mxu0 0.0
    %5697 = vmatpush1.msra.mxu0 0.0
    %5698 = vmatprep.subr.mxu0 0.0
    %5699 = vmatpush1.msra.mxu0 %v5693
    %5700 = vmatprep.subr.mxu0 0.0
    %5701 = vmatpush1.msra.mxu0 %v5692
    %5702 = vmatprep.subr.mxu0 0.0
    %5703 = vmatpush1.msra.mxu0 %v5691
    %5704 = vmatprep.subr.mxu0 0.0
    %5705 = vmatpush1.msra.mxu0 %v5690
    %5706 = vmatprep.subr.mxu0 0.0
    %5707 = vmatpush1.msra.mxu0 %v5689
    %5708 = vmatprep.subr.mxu0 0.0
    %5709 = vmatpush1.msra.mxu0 %v5688
    %5710 = vmatprep.subr.mxu0 0.0
    %5711 = vmatpush1.msra.mxu0 %v5687
    %5712 = vmatprep.subr.mxu0 0.0
    %5713 = vmatpush1.msra.mxu0 %v5686
    %5714 = vmatprep.subr.mxu0 0.0
    %5715 = vmatpush1.msra.mxu0 %v5685
    %5716 = vmatprep.subr.mxu0 0.0
    %5717 = vmatpush1.msra.mxu0 %v5684
    %5718 = vmatprep.subr.mxu0 0.0
    %5719 = vmatpush1.msra.mxu0 %v5683
    %5720 = vmatprep.subr.mxu0 0.0
    %5721 = vmatpush1.msra.mxu0 %v5682
    %5722 = vmatprep.subr.mxu0 0.0
    %5723 = vmatpush1.msra.mxu0 %v5681
    %5724 = vmatprep.subr.mxu0 0.0
    %5725 = vmatpush1.msra.mxu0 %v5680
    %5726 = vmatprep.subr.mxu0 0.0
    %5727 = vmatpush2.msra.mxu0 0.0
    %5728 = vmatprep.subr.mxu0 0.0
    %5729 = vmatpush2.msra.mxu0 0.0
    %5730 = vmatprep.subr.mxu0 0.0
    %5731 = vmatpush2.msra.mxu0 0.0
    %5732 = vmatprep.subr.mxu0 0.0
    %5733 = vmatpush2.msra.mxu0 0.0
    %5734 = vmatprep.subr.mxu0 0.0
    %5735 = vmatpush2.msra.mxu0 0.0
    %5736 = vmatprep.subr.mxu0 0.0
    %5737 = vmatpush2.msra.mxu0 0.0
    %5738 = vmatprep.subr.mxu0 0.0
    %5739 = vmatpush2.msra.mxu0 0.0
    %5740 = vmatprep.subr.mxu0 0.0
    %5741 = vmatpush2.msra.mxu0 0.0
    %5742 = vmatprep.subr.mxu0 0.0
    %5743 = vmatpush2.msra.mxu0 0.0
    %5744 = vmatprep.subr.mxu0 0.0
    %5745 = vmatpush2.msra.mxu0 0.0
    %5746 = vmatprep.subr.mxu0 0.0
    %5747 = vmatpush2.msra.mxu0 0.0
    %5748 = vmatprep.subr.mxu0 0.0
    %5749 = vmatpush2.msra.mxu0 0.0
    %5750 = vmatprep.subr.mxu0 0.0
    %5751 = vmatpush2.msra.mxu0 0.0
    %5752 = vmatprep.subr.mxu0 0.0
    %5753 = vmatpush2.msra.mxu0 0.0
    %5754 = vmatprep.subr.mxu0 0.0
    %5755 = vmatpush2.msra.mxu0 0.0
    %5756 = vmatprep.subr.mxu0 0.0
    %5757 = vmatpush2.msra.mxu0 0.0
    %5758 = vmatprep.mubr.f32.mxu0 0.0
    %5759 = vmatmul.mubr.f32.gmra.mxu0 %v5550
    %v5760 = vpop.f32.mrf.mxu0
    %v5761 = vadd.f32 0.0, %v5760
    %v5762 = vpop.f32.mrf.mxu0
    %5763 = vmatprep.mubr.f32.mxu0 0.0
    %5764 = vmatmul.mubr.f32.gmra.mxu0 %v5552
    %v5765 = vpop.f32.mrf.mxu0
    %v5766 = vadd.f32 0.0, %v5765
    %v5767 = vpop.f32.mrf.mxu0
    %5768 = vmatprep.mubr.f32.mxu0 0.0
    %5769 = vmatmul.mubr.f32.gmra.mxu0 %v5554
    %v5770 = vpop.f32.mrf.mxu0
    %v5771 = vadd.f32 0.0, %v5770
    %v5772 = vpop.f32.mrf.mxu0
    %5773 = vmatprep.mubr.f32.mxu0 0.0
    %5774 = vmatmul.mubr.f32.gmra.mxu0 %v5556
    %v5775 = vpop.f32.mrf.mxu0
    %v5776 = vadd.f32 0.0, %v5775
    %v5777 = vpop.f32.mrf.mxu0
    %5778 = vmatprep.mubr.f32.mxu0 0.0
    %5779 = vmatmul.mubr.f32.gmra.mxu0 %v5558
    %v5780 = vpop.f32.mrf.mxu0
    %v5781 = vadd.f32 0.0, %v5780
    %v5782 = vpop.f32.mrf.mxu0
    %5783 = vmatprep.mubr.f32.mxu0 0.0
    %5784 = vmatmul.mubr.f32.gmra.mxu0 %v5560
    %v5785 = vpop.f32.mrf.mxu0
    %v5786 = vadd.f32 0.0, %v5785
    %v5787 = vpop.f32.mrf.mxu0
    %5788 = vmatprep.mubr.f32.mxu0 0.0
    %5789 = vmatmul.mubr.f32.gmra.mxu0 %v5562
    %v5790 = vpop.f32.mrf.mxu0
    %v5791 = vadd.f32 0.0, %v5790
    %v5792 = vpop.f32.mrf.mxu0
    %5793 = vmatprep.mubr.f32.mxu0 0.0
    %5794 = vmatmul.mubr.f32.gmra.mxu0 %v5564
    %v5795 = vpop.f32.mrf.mxu0
    %v5796 = vadd.f32 0.0, %v5795
    %v5797 = vpop.f32.mrf.mxu0
    %5798 = vdwg.mxu0
    %v5799 = vadd.f32 %v5479, %v5761
    %v5800 = vadd.f32 %v5484, %v5766
    %v5801 = vadd.f32 %v5489, %v5771
    %v5802 = vadd.f32 %v5494, %v5776
    %v5803 = vadd.f32 %v5499, %v5781
    %v5804 = vadd.f32 %v5504, %v5786
    %v5805 = vadd.f32 %v5509, %v5791
    %v5806 = vadd.f32 %v5514, %v5796
    %v5807 = vrot.slane %v4981, 1
    %v5808 = vsel %vm1179, %v5807, %v5519
    %v5809 = vrot.slane %v4982, 1
    %v5810 = vsel %vm1179, %v5809, %v5519
    %v5811 = vrot.slane %v4983, 1
    %v5812 = vsel %vm1179, %v5811, %v5519
    %v5813 = vrot.slane %v4984, 1
    %v5814 = vsel %vm1179, %v5813, %v5519
    %v5815 = vrot.slane %v4985, 1
    %v5816 = vsel %vm1179, %v5815, %v5519
    %v5817 = vrot.slane %v4986, 1
    %v5818 = vsel %vm1179, %v5817, %v5519
    %v5819 = vrot.slane %v4987, 1
    %v5820 = vsel %vm1179, %v5819, %v5519
    %v5821 = vrot.slane %v4988, 1
    %v5822 = vsel %vm1179, %v5821, %v5519
    %s5823 = scalar_lea.vmem [#allocation2], 672
    %v5824 = vld [vmem:[%s5823] sm:$0xff]
    %v5825 = vld [vmem:[%s5823 + $0x8] sm:$0xff]
    %v5826 = vld [vmem:[%s5823 + $0x10] sm:$0xff]
    %v5827 = vld [vmem:[%s5823 + $0x18] sm:$0xff]
    %v5828 = vld [vmem:[%s5823 + $0x20] sm:$0xff]
    %v5829 = vld [vmem:[%s5823 + $0x28] sm:$0xff]
    %v5830 = vld [vmem:[%s5823 + $0x30] sm:$0xff]
    %v5831 = vld [vmem:[%s5823 + $0x38] sm:$0xff]
    %v5832 = vld [vmem:[%s5823 + $0x40] sm:$0xff]
    %v5833 = vld [vmem:[%s5823 + $0x48] sm:$0xff]
    %v5834 = vld [vmem:[%s5823 + $0x50] sm:$0xff]
    %v5835 = vld [vmem:[%s5823 + $0x58] sm:$0xff]
    %v5836 = vld [vmem:[%s5823 + $0x60] sm:$0xff]
    %v5837 = vld [vmem:[%s5823 + $0x68] sm:$0xff]
    %v5838 = vsel %vm5033, %v5808, 0
    %v5840 = vsel %vm5033, %v5810, 0
    %v5842 = vsel %vm5033, %v5812, 0
    %v5844 = vsel %vm5033, %v5814, 0
    %v5846 = vsel %vm5033, %v5816, 0
    %v5848 = vsel %vm5033, %v5818, 0
    %v5850 = vsel %vm5033, %v5820, 0
    %v5852 = vsel %vm5033, %v5822, 0
    %5854 = vmatprep.subr.mxu0 0.0
    %5855 = vmatpush1.msra.mxu0 0.0
    %5856 = vmatprep.subr.mxu0 0.0
    %5857 = vmatpush1.msra.mxu0 0.0
    %5858 = vmatprep.subr.mxu0 0.0
    %5859 = vmatpush1.msra.mxu0 %v5837
    %5860 = vmatprep.subr.mxu0 0.0
    %5861 = vmatpush1.msra.mxu0 %v5836
    %5862 = vmatprep.subr.mxu0 0.0
    %5863 = vmatpush1.msra.mxu0 %v5835
    %5864 = vmatprep.subr.mxu0 0.0
    %5865 = vmatpush1.msra.mxu0 %v5834
    %5866 = vmatprep.subr.mxu0 0.0
    %5867 = vmatpush1.msra.mxu0 %v5833
    %5868 = vmatprep.subr.mxu0 0.0
    %5869 = vmatpush1.msra.mxu0 %v5832
    %5870 = vmatprep.subr.mxu0 0.0
    %5871 = vmatpush1.msra.mxu0 %v5831
    %5872 = vmatprep.subr.mxu0 0.0
    %5873 = vmatpush1.msra.mxu0 %v5830
    %5874 = vmatprep.subr.mxu0 0.0
    %5875 = vmatpush1.msra.mxu0 %v5829
    %5876 = vmatprep.subr.mxu0 0.0
    %5877 = vmatpush1.msra.mxu0 %v5828
    %5878 = vmatprep.subr.mxu0 0.0
    %5879 = vmatpush1.msra.mxu0 %v5827
    %5880 = vmatprep.subr.mxu0 0.0
    %5881 = vmatpush1.msra.mxu0 %v5826
    %5882 = vmatprep.subr.mxu0 0.0
    %5883 = vmatpush1.msra.mxu0 %v5825
    %5884 = vmatprep.subr.mxu0 0.0
    %5885 = vmatpush1.msra.mxu0 %v5824
    %5886 = vmatprep.subr.mxu0 0.0
    %5887 = vmatpush2.msra.mxu0 0.0
    %5888 = vmatprep.subr.mxu0 0.0
    %5889 = vmatpush2.msra.mxu0 0.0
    %5890 = vmatprep.subr.mxu0 0.0
    %5891 = vmatpush2.msra.mxu0 0.0
    %5892 = vmatprep.subr.mxu0 0.0
    %5893 = vmatpush2.msra.mxu0 0.0
    %5894 = vmatprep.subr.mxu0 0.0
    %5895 = vmatpush2.msra.mxu0 0.0
    %5896 = vmatprep.subr.mxu0 0.0
    %5897 = vmatpush2.msra.mxu0 0.0
    %5898 = vmatprep.subr.mxu0 0.0
    %5899 = vmatpush2.msra.mxu0 0.0
    %5900 = vmatprep.subr.mxu0 0.0
    %5901 = vmatpush2.msra.mxu0 0.0
    %5902 = vmatprep.subr.mxu0 0.0
    %5903 = vmatpush2.msra.mxu0 0.0
    %5904 = vmatprep.subr.mxu0 0.0
    %5905 = vmatpush2.msra.mxu0 0.0
    %5906 = vmatprep.subr.mxu0 0.0
    %5907 = vmatpush2.msra.mxu0 0.0
    %5908 = vmatprep.subr.mxu0 0.0
    %5909 = vmatpush2.msra.mxu0 0.0
    %5910 = vmatprep.subr.mxu0 0.0
    %5911 = vmatpush2.msra.mxu0 0.0
    %5912 = vmatprep.subr.mxu0 0.0
    %5913 = vmatpush2.msra.mxu0 0.0
    %5914 = vmatprep.subr.mxu0 0.0
    %5915 = vmatpush2.msra.mxu0 0.0
    %5916 = vmatprep.subr.mxu0 0.0
    %5917 = vmatpush2.msra.mxu0 0.0
    %5918 = vmatprep.mubr.f32.mxu0 0.0
    %5919 = vmatmul.mubr.f32.gmra.mxu0 %v5838
    %v5920 = vpop.f32.mrf.mxu0
    %v5921 = vadd.f32 0.0, %v5920
    %v5922 = vpop.f32.mrf.mxu0
    %5923 = vmatprep.mubr.f32.mxu0 0.0
    %5924 = vmatmul.mubr.f32.gmra.mxu0 %v5840
    %v5925 = vpop.f32.mrf.mxu0
    %v5926 = vadd.f32 0.0, %v5925
    %v5927 = vpop.f32.mrf.mxu0
    %5928 = vmatprep.mubr.f32.mxu0 0.0
    %5929 = vmatmul.mubr.f32.gmra.mxu0 %v5842
    %v5930 = vpop.f32.mrf.mxu0
    %v5931 = vadd.f32 0.0, %v5930
    %v5932 = vpop.f32.mrf.mxu0
    %5933 = vmatprep.mubr.f32.mxu0 0.0
    %5934 = vmatmul.mubr.f32.gmra.mxu0 %v5844
    %v5935 = vpop.f32.mrf.mxu0
    %v5936 = vadd.f32 0.0, %v5935
    %v5937 = vpop.f32.mrf.mxu0
    %5938 = vmatprep.mubr.f32.mxu0 0.0
    %5939 = vmatmul.mubr.f32.gmra.mxu0 %v5846
    %v5940 = vpop.f32.mrf.mxu0
    %v5941 = vadd.f32 0.0, %v5940
    %v5942 = vpop.f32.mrf.mxu0
    %5943 = vmatprep.mubr.f32.mxu0 0.0
    %5944 = vmatmul.mubr.f32.gmra.mxu0 %v5848
    %v5945 = vpop.f32.mrf.mxu0
    %v5946 = vadd.f32 0.0, %v5945
    %v5947 = vpop.f32.mrf.mxu0
    %5948 = vmatprep.mubr.f32.mxu0 0.0
    %5949 = vmatmul.mubr.f32.gmra.mxu0 %v5850
    %v5950 = vpop.f32.mrf.mxu0
    %v5951 = vadd.f32 0.0, %v5950
    %v5952 = vpop.f32.mrf.mxu0
    %5953 = vmatprep.mubr.f32.mxu0 0.0
    %5954 = vmatmul.mubr.f32.gmra.mxu0 %v5852
    %v5955 = vpop.f32.mrf.mxu0
    %v5956 = vadd.f32 0.0, %v5955
    %v5957 = vpop.f32.mrf.mxu0
    %5958 = vdwg.mxu0
    %v5959 = vadd.f32 %v5671, %v5921
    %v5960 = vadd.f32 %v5672, %v5926
    %v5961 = vadd.f32 %v5673, %v5931
    %v5962 = vadd.f32 %v5674, %v5936
    %v5963 = vadd.f32 %v5675, %v5941
    %v5964 = vadd.f32 %v5676, %v5946
    %v5965 = vadd.f32 %v5677, %v5951
    %v5966 = vadd.f32 %v5678, %v5956
    %s5967 = scalar_lea.vmem [#allocation2], 784
    %v5968 = vld [vmem:[%s5967] sm:$0xff]
    %v5969 = vld [vmem:[%s5967 + $0x8] sm:$0xff]
    %v5970 = vld [vmem:[%s5967 + $0x10] sm:$0xff]
    %v5971 = vld [vmem:[%s5967 + $0x18] sm:$0xff]
    %v5972 = vld [vmem:[%s5967 + $0x20] sm:$0xff]
    %v5973 = vld [vmem:[%s5967 + $0x28] sm:$0xff]
    %v5974 = vld [vmem:[%s5967 + $0x30] sm:$0xff]
    %v5975 = vld [vmem:[%s5967 + $0x38] sm:$0xff]
    %v5976 = vld [vmem:[%s5967 + $0x40] sm:$0xff]
    %v5977 = vld [vmem:[%s5967 + $0x48] sm:$0xff]
    %v5978 = vld [vmem:[%s5967 + $0x50] sm:$0xff]
    %v5979 = vld [vmem:[%s5967 + $0x58] sm:$0xff]
    %v5980 = vld [vmem:[%s5967 + $0x60] sm:$0xff]
    %v5981 = vld [vmem:[%s5967 + $0x68] sm:$0xff]
    %5982 = vmatprep.subr.mxu0 0.0
    %5983 = vmatpush1.msra.mxu0 0.0
    %5984 = vmatprep.subr.mxu0 0.0
    %5985 = vmatpush1.msra.mxu0 0.0
    %5986 = vmatprep.subr.mxu0 0.0
    %5987 = vmatpush1.msra.mxu0 %v5981
    %5988 = vmatprep.subr.mxu0 0.0
    %5989 = vmatpush1.msra.mxu0 %v5980
    %5990 = vmatprep.subr.mxu0 0.0
    %5991 = vmatpush1.msra.mxu0 %v5979
    %5992 = vmatprep.subr.mxu0 0.0
    %5993 = vmatpush1.msra.mxu0 %v5978
    %5994 = vmatprep.subr.mxu0 0.0
    %5995 = vmatpush1.msra.mxu0 %v5977
    %5996 = vmatprep.subr.mxu0 0.0
    %5997 = vmatpush1.msra.mxu0 %v5976
    %5998 = vmatprep.subr.mxu0 0.0
    %5999 = vmatpush1.msra.mxu0 %v5975
    %6000 = vmatprep.subr.mxu0 0.0
    %6001 = vmatpush1.msra.mxu0 %v5974
    %6002 = vmatprep.subr.mxu0 0.0
    %6003 = vmatpush1.msra.mxu0 %v5973
    %6004 = vmatprep.subr.mxu0 0.0
    %6005 = vmatpush1.msra.mxu0 %v5972
    %6006 = vmatprep.subr.mxu0 0.0
    %6007 = vmatpush1.msra.mxu0 %v5971
    %6008 = vmatprep.subr.mxu0 0.0
    %6009 = vmatpush1.msra.mxu0 %v5970
    %6010 = vmatprep.subr.mxu0 0.0
    %6011 = vmatpush1.msra.mxu0 %v5969
    %6012 = vmatprep.subr.mxu0 0.0
    %6013 = vmatpush1.msra.mxu0 %v5968
    %6014 = vmatprep.subr.mxu0 0.0
    %6015 = vmatpush2.msra.mxu0 0.0
    %6016 = vmatprep.subr.mxu0 0.0
    %6017 = vmatpush2.msra.mxu0 0.0
    %6018 = vmatprep.subr.mxu0 0.0
    %6019 = vmatpush2.msra.mxu0 0.0
    %6020 = vmatprep.subr.mxu0 0.0
    %6021 = vmatpush2.msra.mxu0 0.0
    %6022 = vmatprep.subr.mxu0 0.0
    %6023 = vmatpush2.msra.mxu0 0.0
    %6024 = vmatprep.subr.mxu0 0.0
    %6025 = vmatpush2.msra.mxu0 0.0
    %6026 = vmatprep.subr.mxu0 0.0
    %6027 = vmatpush2.msra.mxu0 0.0
    %6028 = vmatprep.subr.mxu0 0.0
    %6029 = vmatpush2.msra.mxu0 0.0
    %6030 = vmatprep.subr.mxu0 0.0
    %6031 = vmatpush2.msra.mxu0 0.0
    %6032 = vmatprep.subr.mxu0 0.0
    %6033 = vmatpush2.msra.mxu0 0.0
    %6034 = vmatprep.subr.mxu0 0.0
    %6035 = vmatpush2.msra.mxu0 0.0
    %6036 = vmatprep.subr.mxu0 0.0
    %6037 = vmatpush2.msra.mxu0 0.0
    %6038 = vmatprep.subr.mxu0 0.0
    %6039 = vmatpush2.msra.mxu0 0.0
    %6040 = vmatprep.subr.mxu0 0.0
    %6041 = vmatpush2.msra.mxu0 0.0
    %6042 = vmatprep.subr.mxu0 0.0
    %6043 = vmatpush2.msra.mxu0 0.0
    %6044 = vmatprep.subr.mxu0 0.0
    %6045 = vmatpush2.msra.mxu0 0.0
    %6046 = vmatprep.mubr.f32.mxu0 0.0
    %6047 = vmatmul.mubr.f32.gmra.mxu0 %v5838
    %v6048 = vpop.f32.mrf.mxu0
    %v6049 = vadd.f32 0.0, %v6048
    %v6050 = vpop.f32.mrf.mxu0
    %6051 = vmatprep.mubr.f32.mxu0 0.0
    %6052 = vmatmul.mubr.f32.gmra.mxu0 %v5840
    %v6053 = vpop.f32.mrf.mxu0
    %v6054 = vadd.f32 0.0, %v6053
    %v6055 = vpop.f32.mrf.mxu0
    %6056 = vmatprep.mubr.f32.mxu0 0.0
    %6057 = vmatmul.mubr.f32.gmra.mxu0 %v5842
    %v6058 = vpop.f32.mrf.mxu0
    %v6059 = vadd.f32 0.0, %v6058
    %v6060 = vpop.f32.mrf.mxu0
    %6061 = vmatprep.mubr.f32.mxu0 0.0
    %6062 = vmatmul.mubr.f32.gmra.mxu0 %v5844
    %v6063 = vpop.f32.mrf.mxu0
    %v6064 = vadd.f32 0.0, %v6063
    %v6065 = vpop.f32.mrf.mxu0
    %6066 = vmatprep.mubr.f32.mxu0 0.0
    %6067 = vmatmul.mubr.f32.gmra.mxu0 %v5846
    %v6068 = vpop.f32.mrf.mxu0
    %v6069 = vadd.f32 0.0, %v6068
    %v6070 = vpop.f32.mrf.mxu0
    %6071 = vmatprep.mubr.f32.mxu0 0.0
    %6072 = vmatmul.mubr.f32.gmra.mxu0 %v5848
    %v6073 = vpop.f32.mrf.mxu0
    %v6074 = vadd.f32 0.0, %v6073
    %v6075 = vpop.f32.mrf.mxu0
    %6076 = vmatprep.mubr.f32.mxu0 0.0
    %6077 = vmatmul.mubr.f32.gmra.mxu0 %v5850
    %v6078 = vpop.f32.mrf.mxu0
    %v6079 = vadd.f32 0.0, %v6078
    %v6080 = vpop.f32.mrf.mxu0
    %6081 = vmatprep.mubr.f32.mxu0 0.0
    %6082 = vmatmul.mubr.f32.gmra.mxu0 %v5852
    %v6083 = vpop.f32.mrf.mxu0
    %v6084 = vadd.f32 0.0, %v6083
    %v6085 = vpop.f32.mrf.mxu0
    %6086 = vdwg.mxu0
    %v6087 = vadd.f32 %v5799, %v6049
    %v6088 = vadd.f32 %v5800, %v6054
    %v6089 = vadd.f32 %v5801, %v6059
    %v6090 = vadd.f32 %v5802, %v6064
    %v6091 = vadd.f32 %v5803, %v6069
    %v6092 = vadd.f32 %v5804, %v6074
    %v6093 = vadd.f32 %v5805, %v6079
    %v6094 = vadd.f32 %v5806, %v6084
    %vm6095 = vcmask 1045504
    %v6096 = vrot.slane %v4941, 2
    %v6097 = vrot.slane 0.0, 2
    %v6098 = vsel %vm6095, %v6096, %v6097
    %v6099 = vrot.slane %v4942, 2
    %v6100 = vsel %vm6095, %v6099, %v6097
    %v6101 = vrot.slane %v4943, 2
    %v6102 = vsel %vm6095, %v6101, %v6097
    %v6103 = vrot.slane %v4944, 2
    %v6104 = vsel %vm6095, %v6103, %v6097
    %v6105 = vrot.slane %v4945, 2
    %v6106 = vsel %vm6095, %v6105, %v6097
    %v6107 = vrot.slane %v4946, 2
    %v6108 = vsel %vm6095, %v6107, %v6097
    %v6109 = vrot.slane %v4947, 2
    %v6110 = vsel %vm6095, %v6109, %v6097
    %v6111 = vrot.slane %v4948, 2
    %v6112 = vsel %vm6095, %v6111, %v6097
    %s6113 = scalar_lea.vmem [#allocation2], 896
    %v6114 = vld [vmem:[%s6113] sm:$0xff]
    %v6115 = vld [vmem:[%s6113 + $0x8] sm:$0xff]
    %v6116 = vld [vmem:[%s6113 + $0x10] sm:$0xff]
    %v6117 = vld [vmem:[%s6113 + $0x18] sm:$0xff]
    %v6118 = vld [vmem:[%s6113 + $0x20] sm:$0xff]
    %v6119 = vld [vmem:[%s6113 + $0x28] sm:$0xff]
    %v6120 = vld [vmem:[%s6113 + $0x30] sm:$0xff]
    %v6121 = vld [vmem:[%s6113 + $0x38] sm:$0xff]
    %v6122 = vld [vmem:[%s6113 + $0x40] sm:$0xff]
    %v6123 = vld [vmem:[%s6113 + $0x48] sm:$0xff]
    %v6124 = vld [vmem:[%s6113 + $0x50] sm:$0xff]
    %v6125 = vld [vmem:[%s6113 + $0x58] sm:$0xff]
    %v6126 = vld [vmem:[%s6113 + $0x60] sm:$0xff]
    %v6127 = vld [vmem:[%s6113 + $0x68] sm:$0xff]
    %v6128 = vsel %vm5033, %v6098, 0
    %v6130 = vsel %vm5033, %v6100, 0
    %v6132 = vsel %vm5033, %v6102, 0
    %v6134 = vsel %vm5033, %v6104, 0
    %v6136 = vsel %vm5033, %v6106, 0
    %v6138 = vsel %vm5033, %v6108, 0
    %v6140 = vsel %vm5033, %v6110, 0
    %v6142 = vsel %vm5033, %v6112, 0
    %6144 = vmatprep.subr.mxu0 0.0
    %6145 = vmatpush1.msra.mxu0 0.0
    %6146 = vmatprep.subr.mxu0 0.0
    %6147 = vmatpush1.msra.mxu0 0.0
    %6148 = vmatprep.subr.mxu0 0.0
    %6149 = vmatpush1.msra.mxu0 %v6127
    %6150 = vmatprep.subr.mxu0 0.0
    %6151 = vmatpush1.msra.mxu0 %v6126
    %6152 = vmatprep.subr.mxu0 0.0
    %6153 = vmatpush1.msra.mxu0 %v6125
    %6154 = vmatprep.subr.mxu0 0.0
    %6155 = vmatpush1.msra.mxu0 %v6124
    %6156 = vmatprep.subr.mxu0 0.0
    %6157 = vmatpush1.msra.mxu0 %v6123
    %6158 = vmatprep.subr.mxu0 0.0
    %6159 = vmatpush1.msra.mxu0 %v6122
    %6160 = vmatprep.subr.mxu0 0.0
    %6161 = vmatpush1.msra.mxu0 %v6121
    %6162 = vmatprep.subr.mxu0 0.0
    %6163 = vmatpush1.msra.mxu0 %v6120
    %6164 = vmatprep.subr.mxu0 0.0
    %6165 = vmatpush1.msra.mxu0 %v6119
    %6166 = vmatprep.subr.mxu0 0.0
    %6167 = vmatpush1.msra.mxu0 %v6118
    %6168 = vmatprep.subr.mxu0 0.0
    %6169 = vmatpush1.msra.mxu0 %v6117
    %6170 = vmatprep.subr.mxu0 0.0
    %6171 = vmatpush1.msra.mxu0 %v6116
    %6172 = vmatprep.subr.mxu0 0.0
    %6173 = vmatpush1.msra.mxu0 %v6115
    %6174 = vmatprep.subr.mxu0 0.0
    %6175 = vmatpush1.msra.mxu0 %v6114
    %6176 = vmatprep.subr.mxu0 0.0
    %6177 = vmatpush2.msra.mxu0 0.0
    %6178 = vmatprep.subr.mxu0 0.0
    %6179 = vmatpush2.msra.mxu0 0.0
    %6180 = vmatprep.subr.mxu0 0.0
    %6181 = vmatpush2.msra.mxu0 0.0
    %6182 = vmatprep.subr.mxu0 0.0
    %6183 = vmatpush2.msra.mxu0 0.0
    %6184 = vmatprep.subr.mxu0 0.0
    %6185 = vmatpush2.msra.mxu0 0.0
    %6186 = vmatprep.subr.mxu0 0.0
    %6187 = vmatpush2.msra.mxu0 0.0
    %6188 = vmatprep.subr.mxu0 0.0
    %6189 = vmatpush2.msra.mxu0 0.0
    %6190 = vmatprep.subr.mxu0 0.0
    %6191 = vmatpush2.msra.mxu0 0.0
    %6192 = vmatprep.subr.mxu0 0.0
    %6193 = vmatpush2.msra.mxu0 0.0
    %6194 = vmatprep.subr.mxu0 0.0
    %6195 = vmatpush2.msra.mxu0 0.0
    %6196 = vmatprep.subr.mxu0 0.0
    %6197 = vmatpush2.msra.mxu0 0.0
    %6198 = vmatprep.subr.mxu0 0.0
    %6199 = vmatpush2.msra.mxu0 0.0
    %6200 = vmatprep.subr.mxu0 0.0
    %6201 = vmatpush2.msra.mxu0 0.0
    %6202 = vmatprep.subr.mxu0 0.0
    %6203 = vmatpush2.msra.mxu0 0.0
    %6204 = vmatprep.subr.mxu0 0.0
    %6205 = vmatpush2.msra.mxu0 0.0
    %6206 = vmatprep.subr.mxu0 0.0
    %6207 = vmatpush2.msra.mxu0 0.0
    %6208 = vmatprep.mubr.f32.mxu0 0.0
    %6209 = vmatmul.mubr.f32.gmra.mxu0 %v6128
    %v6210 = vpop.f32.mrf.mxu0
    %v6211 = vadd.f32 0.0, %v6210
    %v6212 = vpop.f32.mrf.mxu0
    %6213 = vmatprep.mubr.f32.mxu0 0.0
    %6214 = vmatmul.mubr.f32.gmra.mxu0 %v6130
    %v6215 = vpop.f32.mrf.mxu0
    %v6216 = vadd.f32 0.0, %v6215
    %v6217 = vpop.f32.mrf.mxu0
    %6218 = vmatprep.mubr.f32.mxu0 0.0
    %6219 = vmatmul.mubr.f32.gmra.mxu0 %v6132
    %v6220 = vpop.f32.mrf.mxu0
    %v6221 = vadd.f32 0.0, %v6220
    %v6222 = vpop.f32.mrf.mxu0
    %6223 = vmatprep.mubr.f32.mxu0 0.0
    %6224 = vmatmul.mubr.f32.gmra.mxu0 %v6134
    %v6225 = vpop.f32.mrf.mxu0
    %v6226 = vadd.f32 0.0, %v6225
    %v6227 = vpop.f32.mrf.mxu0
    %6228 = vmatprep.mubr.f32.mxu0 0.0
    %6229 = vmatmul.mubr.f32.gmra.mxu0 %v6136
    %v6230 = vpop.f32.mrf.mxu0
    %v6231 = vadd.f32 0.0, %v6230
    %v6232 = vpop.f32.mrf.mxu0
    %6233 = vmatprep.mubr.f32.mxu0 0.0
    %6234 = vmatmul.mubr.f32.gmra.mxu0 %v6138
    %v6235 = vpop.f32.mrf.mxu0
    %v6236 = vadd.f32 0.0, %v6235
    %v6237 = vpop.f32.mrf.mxu0
    %6238 = vmatprep.mubr.f32.mxu0 0.0
    %6239 = vmatmul.mubr.f32.gmra.mxu0 %v6140
    %v6240 = vpop.f32.mrf.mxu0
    %v6241 = vadd.f32 0.0, %v6240
    %v6242 = vpop.f32.mrf.mxu0
    %6243 = vmatprep.mubr.f32.mxu0 0.0
    %6244 = vmatmul.mubr.f32.gmra.mxu0 %v6142
    %v6245 = vpop.f32.mrf.mxu0
    %v6246 = vadd.f32 0.0, %v6245
    %v6247 = vpop.f32.mrf.mxu0
    %6248 = vdwg.mxu0
    %v6249 = vadd.f32 %v5959, %v6211
    %v6250 = vadd.f32 %v5960, %v6216
    %v6251 = vadd.f32 %v5961, %v6221
    %v6252 = vadd.f32 %v5962, %v6226
    %v6253 = vadd.f32 %v5963, %v6231
    %v6254 = vadd.f32 %v5964, %v6236
    %v6255 = vadd.f32 %v5965, %v6241
    %v6256 = vadd.f32 %v5966, %v6246
    %s6257 = scalar_lea.vmem [#allocation2], 1008
    %v6258 = vld [vmem:[%s6257] sm:$0xff]
    %v6259 = vld [vmem:[%s6257 + $0x8] sm:$0xff]
    %v6260 = vld [vmem:[%s6257 + $0x10] sm:$0xff]
    %v6261 = vld [vmem:[%s6257 + $0x18] sm:$0xff]
    %v6262 = vld [vmem:[%s6257 + $0x20] sm:$0xff]
    %v6263 = vld [vmem:[%s6257 + $0x28] sm:$0xff]
    %v6264 = vld [vmem:[%s6257 + $0x30] sm:$0xff]
    %v6265 = vld [vmem:[%s6257 + $0x38] sm:$0xff]
    %v6266 = vld [vmem:[%s6257 + $0x40] sm:$0xff]
    %v6267 = vld [vmem:[%s6257 + $0x48] sm:$0xff]
    %v6268 = vld [vmem:[%s6257 + $0x50] sm:$0xff]
    %v6269 = vld [vmem:[%s6257 + $0x58] sm:$0xff]
    %v6270 = vld [vmem:[%s6257 + $0x60] sm:$0xff]
    %v6271 = vld [vmem:[%s6257 + $0x68] sm:$0xff]
    %6272 = vmatprep.subr.mxu0 0.0
    %6273 = vmatpush1.msra.mxu0 0.0
    %6274 = vmatprep.subr.mxu0 0.0
    %6275 = vmatpush1.msra.mxu0 0.0
    %6276 = vmatprep.subr.mxu0 0.0
    %6277 = vmatpush1.msra.mxu0 %v6271
    %6278 = vmatprep.subr.mxu0 0.0
    %6279 = vmatpush1.msra.mxu0 %v6270
    %6280 = vmatprep.subr.mxu0 0.0
    %6281 = vmatpush1.msra.mxu0 %v6269
    %6282 = vmatprep.subr.mxu0 0.0
    %6283 = vmatpush1.msra.mxu0 %v6268
    %6284 = vmatprep.subr.mxu0 0.0
    %6285 = vmatpush1.msra.mxu0 %v6267
    %6286 = vmatprep.subr.mxu0 0.0
    %6287 = vmatpush1.msra.mxu0 %v6266
    %6288 = vmatprep.subr.mxu0 0.0
    %6289 = vmatpush1.msra.mxu0 %v6265
    %6290 = vmatprep.subr.mxu0 0.0
    %6291 = vmatpush1.msra.mxu0 %v6264
    %6292 = vmatprep.subr.mxu0 0.0
    %6293 = vmatpush1.msra.mxu0 %v6263
    %6294 = vmatprep.subr.mxu0 0.0
    %6295 = vmatpush1.msra.mxu0 %v6262
    %6296 = vmatprep.subr.mxu0 0.0
    %6297 = vmatpush1.msra.mxu0 %v6261
    %6298 = vmatprep.subr.mxu0 0.0
    %6299 = vmatpush1.msra.mxu0 %v6260
    %6300 = vmatprep.subr.mxu0 0.0
    %6301 = vmatpush1.msra.mxu0 %v6259
    %6302 = vmatprep.subr.mxu0 0.0
    %6303 = vmatpush1.msra.mxu0 %v6258
    %6304 = vmatprep.subr.mxu0 0.0
    %6305 = vmatpush2.msra.mxu0 0.0
    %6306 = vmatprep.subr.mxu0 0.0
    %6307 = vmatpush2.msra.mxu0 0.0
    %6308 = vmatprep.subr.mxu0 0.0
    %6309 = vmatpush2.msra.mxu0 0.0
    %6310 = vmatprep.subr.mxu0 0.0
    %6311 = vmatpush2.msra.mxu0 0.0
    %6312 = vmatprep.subr.mxu0 0.0
    %6313 = vmatpush2.msra.mxu0 0.0
    %6314 = vmatprep.subr.mxu0 0.0
    %6315 = vmatpush2.msra.mxu0 0.0
    %6316 = vmatprep.subr.mxu0 0.0
    %6317 = vmatpush2.msra.mxu0 0.0
    %6318 = vmatprep.subr.mxu0 0.0
    %6319 = vmatpush2.msra.mxu0 0.0
    %6320 = vmatprep.subr.mxu0 0.0
    %6321 = vmatpush2.msra.mxu0 0.0
    %6322 = vmatprep.subr.mxu0 0.0
    %6323 = vmatpush2.msra.mxu0 0.0
    %6324 = vmatprep.subr.mxu0 0.0
    %6325 = vmatpush2.msra.mxu0 0.0
    %6326 = vmatprep.subr.mxu0 0.0
    %6327 = vmatpush2.msra.mxu0 0.0
    %6328 = vmatprep.subr.mxu0 0.0
    %6329 = vmatpush2.msra.mxu0 0.0
    %6330 = vmatprep.subr.mxu0 0.0
    %6331 = vmatpush2.msra.mxu0 0.0
    %6332 = vmatprep.subr.mxu0 0.0
    %6333 = vmatpush2.msra.mxu0 0.0
    %6334 = vmatprep.subr.mxu0 0.0
    %6335 = vmatpush2.msra.mxu0 0.0
    %6336 = vmatprep.mubr.f32.mxu0 0.0
    %6337 = vmatmul.mubr.f32.gmra.mxu0 %v6128
    %v6338 = vpop.f32.mrf.mxu0
    %v6339 = vadd.f32 0.0, %v6338
    %v6340 = vpop.f32.mrf.mxu0
    %6341 = vmatprep.mubr.f32.mxu0 0.0
    %6342 = vmatmul.mubr.f32.gmra.mxu0 %v6130
    %v6343 = vpop.f32.mrf.mxu0
    %v6344 = vadd.f32 0.0, %v6343
    %v6345 = vpop.f32.mrf.mxu0
    %6346 = vmatprep.mubr.f32.mxu0 0.0
    %6347 = vmatmul.mubr.f32.gmra.mxu0 %v6132
    %v6348 = vpop.f32.mrf.mxu0
    %v6349 = vadd.f32 0.0, %v6348
    %v6350 = vpop.f32.mrf.mxu0
    %6351 = vmatprep.mubr.f32.mxu0 0.0
    %6352 = vmatmul.mubr.f32.gmra.mxu0 %v6134
    %v6353 = vpop.f32.mrf.mxu0
    %v6354 = vadd.f32 0.0, %v6353
    %v6355 = vpop.f32.mrf.mxu0
    %6356 = vmatprep.mubr.f32.mxu0 0.0
    %6357 = vmatmul.mubr.f32.gmra.mxu0 %v6136
    %v6358 = vpop.f32.mrf.mxu0
    %v6359 = vadd.f32 0.0, %v6358
    %v6360 = vpop.f32.mrf.mxu0
    %6361 = vmatprep.mubr.f32.mxu0 0.0
    %6362 = vmatmul.mubr.f32.gmra.mxu0 %v6138
    %v6363 = vpop.f32.mrf.mxu0
    %v6364 = vadd.f32 0.0, %v6363
    %v6365 = vpop.f32.mrf.mxu0
    %6366 = vmatprep.mubr.f32.mxu0 0.0
    %6367 = vmatmul.mubr.f32.gmra.mxu0 %v6140
    %v6368 = vpop.f32.mrf.mxu0
    %v6369 = vadd.f32 0.0, %v6368
    %v6370 = vpop.f32.mrf.mxu0
    %6371 = vmatprep.mubr.f32.mxu0 0.0
    %6372 = vmatmul.mubr.f32.gmra.mxu0 %v6142
    %v6373 = vpop.f32.mrf.mxu0
    %v6374 = vadd.f32 0.0, %v6373
    %v6375 = vpop.f32.mrf.mxu0
    %6376 = vdwg.mxu0
    %v6377 = vadd.f32 %v6087, %v6339
    %v6378 = vadd.f32 %v6088, %v6344
    %v6379 = vadd.f32 %v6089, %v6349
    %v6380 = vadd.f32 %v6090, %v6354
    %v6381 = vadd.f32 %v6091, %v6359
    %v6382 = vadd.f32 %v6092, %v6364
    %v6383 = vadd.f32 %v6093, %v6369
    %v6384 = vadd.f32 %v6094, %v6374
    %6385 = vmatprep.subr.mxu0 0.0
    %6386 = vmatpush1.msra.mxu0 0.0
    %6387 = vmatprep.subr.mxu0 0.0
    %6388 = vmatpush1.msra.mxu0 0.0
    %6389 = vmatprep.subr.mxu0 0.0
    %6390 = vmatpush1.msra.mxu0 %v5032
    %6391 = vmatprep.subr.mxu0 0.0
    %6392 = vmatpush1.msra.mxu0 %v5031
    %6393 = vmatprep.subr.mxu0 0.0
    %6394 = vmatpush1.msra.mxu0 %v5030
    %6395 = vmatprep.subr.mxu0 0.0
    %6396 = vmatpush1.msra.mxu0 %v5029
    %6397 = vmatprep.subr.mxu0 0.0
    %6398 = vmatpush1.msra.mxu0 %v5028
    %6399 = vmatprep.subr.mxu0 0.0
    %6400 = vmatpush1.msra.mxu0 %v5027
    %6401 = vmatprep.subr.mxu0 0.0
    %6402 = vmatpush1.msra.mxu0 %v5026
    %6403 = vmatprep.subr.mxu0 0.0
    %6404 = vmatpush1.msra.mxu0 %v5025
    %6405 = vmatprep.subr.mxu0 0.0
    %6406 = vmatpush1.msra.mxu0 %v5024
    %6407 = vmatprep.subr.mxu0 0.0
    %6408 = vmatpush1.msra.mxu0 %v5023
    %6409 = vmatprep.subr.mxu0 0.0
    %6410 = vmatpush1.msra.mxu0 %v5022
    %6411 = vmatprep.subr.mxu0 0.0
    %6412 = vmatpush1.msra.mxu0 %v5021
    %6413 = vmatprep.subr.mxu0 0.0
    %6414 = vmatpush1.msra.mxu0 %v5020
    %6415 = vmatprep.subr.mxu0 0.0
    %6416 = vmatpush1.msra.mxu0 %v5019
    %6417 = vmatprep.subr.mxu0 0.0
    %6418 = vmatpush2.msra.mxu0 0.0
    %6419 = vmatprep.subr.mxu0 0.0
    %6420 = vmatpush2.msra.mxu0 0.0
    %6421 = vmatprep.subr.mxu0 0.0
    %6422 = vmatpush2.msra.mxu0 0.0
    %6423 = vmatprep.subr.mxu0 0.0
    %6424 = vmatpush2.msra.mxu0 0.0
    %6425 = vmatprep.subr.mxu0 0.0
    %6426 = vmatpush2.msra.mxu0 0.0
    %6427 = vmatprep.subr.mxu0 0.0
    %6428 = vmatpush2.msra.mxu0 0.0
    %6429 = vmatprep.subr.mxu0 0.0
    %6430 = vmatpush2.msra.mxu0 0.0
    %6431 = vmatprep.subr.mxu0 0.0
    %6432 = vmatpush2.msra.mxu0 0.0
    %6433 = vmatprep.subr.mxu0 0.0
    %6434 = vmatpush2.msra.mxu0 0.0
    %6435 = vmatprep.subr.mxu0 0.0
    %6436 = vmatpush2.msra.mxu0 0.0
    %6437 = vmatprep.subr.mxu0 0.0
    %6438 = vmatpush2.msra.mxu0 0.0
    %6439 = vmatprep.subr.mxu0 0.0
    %6440 = vmatpush2.msra.mxu0 0.0
    %6441 = vmatprep.subr.mxu0 0.0
    %6442 = vmatpush2.msra.mxu0 0.0
    %6443 = vmatprep.subr.mxu0 0.0
    %6444 = vmatpush2.msra.mxu0 0.0
    %6445 = vmatprep.subr.mxu0 0.0
    %6446 = vmatpush2.msra.mxu0 0.0
    %6447 = vmatprep.subr.mxu0 0.0
    %6448 = vmatpush2.msra.mxu0 0.0
    %6449 = vmatprep.mubr.f32.mxu0 0.0
    %6450 = vmatmul.mubr.f32.gmra.mxu0 %v5550
    %v6451 = vpop.f32.mrf.mxu0
    %v6452 = vadd.f32 0.0, %v6451
    %v6453 = vpop.f32.mrf.mxu0
    %6454 = vmatprep.mubr.f32.mxu0 0.0
    %6455 = vmatmul.mubr.f32.gmra.mxu0 %v5552
    %v6456 = vpop.f32.mrf.mxu0
    %v6457 = vadd.f32 0.0, %v6456
    %v6458 = vpop.f32.mrf.mxu0
    %6459 = vmatprep.mubr.f32.mxu0 0.0
    %6460 = vmatmul.mubr.f32.gmra.mxu0 %v5554
    %v6461 = vpop.f32.mrf.mxu0
    %v6462 = vadd.f32 0.0, %v6461
    %v6463 = vpop.f32.mrf.mxu0
    %6464 = vmatprep.mubr.f32.mxu0 0.0
    %6465 = vmatmul.mubr.f32.gmra.mxu0 %v5556
    %v6466 = vpop.f32.mrf.mxu0
    %v6467 = vadd.f32 0.0, %v6466
    %v6468 = vpop.f32.mrf.mxu0
    %6469 = vmatprep.mubr.f32.mxu0 0.0
    %6470 = vmatmul.mubr.f32.gmra.mxu0 %v5558
    %v6471 = vpop.f32.mrf.mxu0
    %v6472 = vadd.f32 0.0, %v6471
    %v6473 = vpop.f32.mrf.mxu0
    %6474 = vmatprep.mubr.f32.mxu0 0.0
    %6475 = vmatmul.mubr.f32.gmra.mxu0 %v5560
    %v6476 = vpop.f32.mrf.mxu0
    %v6477 = vadd.f32 0.0, %v6476
    %v6478 = vpop.f32.mrf.mxu0
    %6479 = vmatprep.mubr.f32.mxu0 0.0
    %6480 = vmatmul.mubr.f32.gmra.mxu0 %v5562
    %v6481 = vpop.f32.mrf.mxu0
    %v6482 = vadd.f32 0.0, %v6481
    %v6483 = vpop.f32.mrf.mxu0
    %6484 = vmatprep.mubr.f32.mxu0 0.0
    %6485 = vmatmul.mubr.f32.gmra.mxu0 %v5564
    %v6486 = vpop.f32.mrf.mxu0
    %v6487 = vadd.f32 0.0, %v6486
    %v6488 = vpop.f32.mrf.mxu0
    %6489 = vdwg.mxu0
    %6490 = vmatprep.subr.mxu0 0.0
    %6491 = vmatpush1.msra.mxu0 0.0
    %6492 = vmatprep.subr.mxu0 0.0
    %6493 = vmatpush1.msra.mxu0 0.0
    %6494 = vmatprep.subr.mxu0 0.0
    %6495 = vmatpush1.msra.mxu0 %v5002
    %6496 = vmatprep.subr.mxu0 0.0
    %6497 = vmatpush1.msra.mxu0 %v5001
    %6498 = vmatprep.subr.mxu0 0.0
    %6499 = vmatpush1.msra.mxu0 %v5000
    %6500 = vmatprep.subr.mxu0 0.0
    %6501 = vmatpush1.msra.mxu0 %v4999
    %6502 = vmatprep.subr.mxu0 0.0
    %6503 = vmatpush1.msra.mxu0 %v4998
    %6504 = vmatprep.subr.mxu0 0.0
    %6505 = vmatpush1.msra.mxu0 %v4997
    %6506 = vmatprep.subr.mxu0 0.0
    %6507 = vmatpush1.msra.mxu0 %v4996
    %6508 = vmatprep.subr.mxu0 0.0
    %6509 = vmatpush1.msra.mxu0 %v4995
    %6510 = vmatprep.subr.mxu0 0.0
    %6511 = vmatpush1.msra.mxu0 %v4994
    %6512 = vmatprep.subr.mxu0 0.0
    %6513 = vmatpush1.msra.mxu0 %v4993
    %6514 = vmatprep.subr.mxu0 0.0
    %6515 = vmatpush1.msra.mxu0 %v4992
    %6516 = vmatprep.subr.mxu0 0.0
    %6517 = vmatpush1.msra.mxu0 %v4991
    %6518 = vmatprep.subr.mxu0 0.0
    %6519 = vmatpush1.msra.mxu0 %v4990
    %6520 = vmatprep.subr.mxu0 0.0
    %6521 = vmatpush1.msra.mxu0 %v4989
    %6522 = vmatprep.subr.mxu0 0.0
    %6523 = vmatpush2.msra.mxu0 0.0
    %6524 = vmatprep.subr.mxu0 0.0
    %6525 = vmatpush2.msra.mxu0 0.0
    %6526 = vmatprep.subr.mxu0 0.0
    %6527 = vmatpush2.msra.mxu0 0.0
    %6528 = vmatprep.subr.mxu0 0.0
    %6529 = vmatpush2.msra.mxu0 0.0
    %6530 = vmatprep.subr.mxu0 0.0
    %6531 = vmatpush2.msra.mxu0 0.0
    %6532 = vmatprep.subr.mxu0 0.0
    %6533 = vmatpush2.msra.mxu0 0.0
    %6534 = vmatprep.subr.mxu0 0.0
    %6535 = vmatpush2.msra.mxu0 0.0
    %6536 = vmatprep.subr.mxu0 0.0
    %6537 = vmatpush2.msra.mxu0 0.0
    %6538 = vmatprep.subr.mxu0 0.0
    %6539 = vmatpush2.msra.mxu0 0.0
    %6540 = vmatprep.subr.mxu0 0.0
    %6541 = vmatpush2.msra.mxu0 0.0
    %6542 = vmatprep.subr.mxu0 0.0
    %6543 = vmatpush2.msra.mxu0 0.0
    %6544 = vmatprep.subr.mxu0 0.0
    %6545 = vmatpush2.msra.mxu0 0.0
    %6546 = vmatprep.subr.mxu0 0.0
    %6547 = vmatpush2.msra.mxu0 0.0
    %6548 = vmatprep.subr.mxu0 0.0
    %6549 = vmatpush2.msra.mxu0 0.0
    %6550 = vmatprep.subr.mxu0 0.0
    %6551 = vmatpush2.msra.mxu0 0.0
    %6552 = vmatprep.subr.mxu0 0.0
    %6553 = vmatpush2.msra.mxu0 0.0
    %6554 = vmatprep.mubr.f32.mxu0 0.0
    %6555 = vmatmul.mubr.f32.gmra.mxu0 %v5035
    %v6556 = vpop.f32.mrf.mxu0
    %v6557 = vadd.f32 %v6452, %v6556
    %v6558 = vpop.f32.mrf.mxu0
    %6559 = vmatprep.mubr.f32.mxu0 0.0
    %6560 = vmatmul.mubr.f32.gmra.mxu0 %v5038
    %v6561 = vpop.f32.mrf.mxu0
    %v6562 = vadd.f32 %v6457, %v6561
    %v6563 = vpop.f32.mrf.mxu0
    %6564 = vmatprep.mubr.f32.mxu0 0.0
    %6565 = vmatmul.mubr.f32.gmra.mxu0 %v5041
    %v6566 = vpop.f32.mrf.mxu0
    %v6567 = vadd.f32 %v6462, %v6566
    %v6568 = vpop.f32.mrf.mxu0
    %6569 = vmatprep.mubr.f32.mxu0 0.0
    %6570 = vmatmul.mubr.f32.gmra.mxu0 %v5044
    %v6571 = vpop.f32.mrf.mxu0
    %v6572 = vadd.f32 %v6467, %v6571
    %v6573 = vpop.f32.mrf.mxu0
    %6574 = vmatprep.mubr.f32.mxu0 0.0
    %6575 = vmatmul.mubr.f32.gmra.mxu0 %v5047
    %v6576 = vpop.f32.mrf.mxu0
    %v6577 = vadd.f32 %v6472, %v6576
    %v6578 = vpop.f32.mrf.mxu0
    %6579 = vmatprep.mubr.f32.mxu0 0.0
    %6580 = vmatmul.mubr.f32.gmra.mxu0 %v5050
    %v6581 = vpop.f32.mrf.mxu0
    %v6582 = vadd.f32 %v6477, %v6581
    %v6583 = vpop.f32.mrf.mxu0
    %6584 = vmatprep.mubr.f32.mxu0 0.0
    %6585 = vmatmul.mubr.f32.gmra.mxu0 %v5053
    %v6586 = vpop.f32.mrf.mxu0
    %v6587 = vadd.f32 %v6482, %v6586
    %v6588 = vpop.f32.mrf.mxu0
    %6589 = vmatprep.mubr.f32.mxu0 0.0
    %6590 = vmatmul.mubr.f32.gmra.mxu0 %v5056
    %v6591 = vpop.f32.mrf.mxu0
    %v6592 = vadd.f32 %v6487, %v6591
    %v6593 = vpop.f32.mrf.mxu0
    %6594 = vdwg.mxu0
    %6595 = vmatprep.subr.mxu0 0.0
    %6596 = vmatpush1.msra.mxu0 0.0
    %6597 = vmatprep.subr.mxu0 0.0
    %6598 = vmatpush1.msra.mxu0 0.0
    %6599 = vmatprep.subr.mxu0 0.0
    %6600 = vmatpush1.msra.mxu0 %v5306
    %6601 = vmatprep.subr.mxu0 0.0
    %6602 = vmatpush1.msra.mxu0 %v5305
    %6603 = vmatprep.subr.mxu0 0.0
    %6604 = vmatpush1.msra.mxu0 %v5304
    %6605 = vmatprep.subr.mxu0 0.0
    %6606 = vmatpush1.msra.mxu0 %v5303
    %6607 = vmatprep.subr.mxu0 0.0
    %6608 = vmatpush1.msra.mxu0 %v5302
    %6609 = vmatprep.subr.mxu0 0.0
    %6610 = vmatpush1.msra.mxu0 %v5301
    %6611 = vmatprep.subr.mxu0 0.0
    %6612 = vmatpush1.msra.mxu0 %v5300
    %6613 = vmatprep.subr.mxu0 0.0
    %6614 = vmatpush1.msra.mxu0 %v5299
    %6615 = vmatprep.subr.mxu0 0.0
    %6616 = vmatpush1.msra.mxu0 %v5298
    %6617 = vmatprep.subr.mxu0 0.0
    %6618 = vmatpush1.msra.mxu0 %v5297
    %6619 = vmatprep.subr.mxu0 0.0
    %6620 = vmatpush1.msra.mxu0 %v5296
    %6621 = vmatprep.subr.mxu0 0.0
    %6622 = vmatpush1.msra.mxu0 %v5295
    %6623 = vmatprep.subr.mxu0 0.0
    %6624 = vmatpush1.msra.mxu0 %v5294
    %6625 = vmatprep.subr.mxu0 0.0
    %6626 = vmatpush1.msra.mxu0 %v5293
    %6627 = vmatprep.subr.mxu0 0.0
    %6628 = vmatpush2.msra.mxu0 0.0
    %6629 = vmatprep.subr.mxu0 0.0
    %6630 = vmatpush2.msra.mxu0 0.0
    %6631 = vmatprep.subr.mxu0 0.0
    %6632 = vmatpush2.msra.mxu0 0.0
    %6633 = vmatprep.subr.mxu0 0.0
    %6634 = vmatpush2.msra.mxu0 0.0
    %6635 = vmatprep.subr.mxu0 0.0
    %6636 = vmatpush2.msra.mxu0 0.0
    %6637 = vmatprep.subr.mxu0 0.0
    %6638 = vmatpush2.msra.mxu0 0.0
    %6639 = vmatprep.subr.mxu0 0.0
    %6640 = vmatpush2.msra.mxu0 0.0
    %6641 = vmatprep.subr.mxu0 0.0
    %6642 = vmatpush2.msra.mxu0 0.0
    %6643 = vmatprep.subr.mxu0 0.0
    %6644 = vmatpush2.msra.mxu0 0.0
    %6645 = vmatprep.subr.mxu0 0.0
    %6646 = vmatpush2.msra.mxu0 0.0
    %6647 = vmatprep.subr.mxu0 0.0
    %6648 = vmatpush2.msra.mxu0 0.0
    %6649 = vmatprep.subr.mxu0 0.0
    %6650 = vmatpush2.msra.mxu0 0.0
    %6651 = vmatprep.subr.mxu0 0.0
    %6652 = vmatpush2.msra.mxu0 0.0
    %6653 = vmatprep.subr.mxu0 0.0
    %6654 = vmatpush2.msra.mxu0 0.0
    %6655 = vmatprep.subr.mxu0 0.0
    %6656 = vmatpush2.msra.mxu0 0.0
    %6657 = vmatprep.subr.mxu0 0.0
    %6658 = vmatpush2.msra.mxu0 0.0
    %6659 = vmatprep.mubr.f32.mxu0 0.0
    %6660 = vmatmul.mubr.f32.gmra.mxu0 %v5550
    %v6661 = vpop.f32.mrf.mxu0
    %v6662 = vadd.f32 0.0, %v6661
    %v6663 = vpop.f32.mrf.mxu0
    %6664 = vmatprep.mubr.f32.mxu0 0.0
    %6665 = vmatmul.mubr.f32.gmra.mxu0 %v5552
    %v6666 = vpop.f32.mrf.mxu0
    %v6667 = vadd.f32 0.0, %v6666
    %v6668 = vpop.f32.mrf.mxu0
    %6669 = vmatprep.mubr.f32.mxu0 0.0
    %6670 = vmatmul.mubr.f32.gmra.mxu0 %v5554
    %v6671 = vpop.f32.mrf.mxu0
    %v6672 = vadd.f32 0.0, %v6671
    %v6673 = vpop.f32.mrf.mxu0
    %6674 = vmatprep.mubr.f32.mxu0 0.0
    %6675 = vmatmul.mubr.f32.gmra.mxu0 %v5556
    %v6676 = vpop.f32.mrf.mxu0
    %v6677 = vadd.f32 0.0, %v6676
    %v6678 = vpop.f32.mrf.mxu0
    %6679 = vmatprep.mubr.f32.mxu0 0.0
    %6680 = vmatmul.mubr.f32.gmra.mxu0 %v5558
    %v6681 = vpop.f32.mrf.mxu0
    %v6682 = vadd.f32 0.0, %v6681
    %v6683 = vpop.f32.mrf.mxu0
    %6684 = vmatprep.mubr.f32.mxu0 0.0
    %6685 = vmatmul.mubr.f32.gmra.mxu0 %v5560
    %v6686 = vpop.f32.mrf.mxu0
    %v6687 = vadd.f32 0.0, %v6686
    %v6688 = vpop.f32.mrf.mxu0
    %6689 = vmatprep.mubr.f32.mxu0 0.0
    %6690 = vmatmul.mubr.f32.gmra.mxu0 %v5562
    %v6691 = vpop.f32.mrf.mxu0
    %v6692 = vadd.f32 0.0, %v6691
    %v6693 = vpop.f32.mrf.mxu0
    %6694 = vmatprep.mubr.f32.mxu0 0.0
    %6695 = vmatmul.mubr.f32.gmra.mxu0 %v5564
    %v6696 = vpop.f32.mrf.mxu0
    %v6697 = vadd.f32 0.0, %v6696
    %v6698 = vpop.f32.mrf.mxu0
    %6699 = vdwg.mxu0
    %6700 = vmatprep.subr.mxu0 0.0
    %6701 = vmatpush1.msra.mxu0 0.0
    %6702 = vmatprep.subr.mxu0 0.0
    %6703 = vmatpush1.msra.mxu0 0.0
    %6704 = vmatprep.subr.mxu0 0.0
    %6705 = vmatpush1.msra.mxu0 %v5017
    %6706 = vmatprep.subr.mxu0 0.0
    %6707 = vmatpush1.msra.mxu0 %v5016
    %6708 = vmatprep.subr.mxu0 0.0
    %6709 = vmatpush1.msra.mxu0 %v5015
    %6710 = vmatprep.subr.mxu0 0.0
    %6711 = vmatpush1.msra.mxu0 %v5014
    %6712 = vmatprep.subr.mxu0 0.0
    %6713 = vmatpush1.msra.mxu0 %v5013
    %6714 = vmatprep.subr.mxu0 0.0
    %6715 = vmatpush1.msra.mxu0 %v5012
    %6716 = vmatprep.subr.mxu0 0.0
    %6717 = vmatpush1.msra.mxu0 %v5011
    %6718 = vmatprep.subr.mxu0 0.0
    %6719 = vmatpush1.msra.mxu0 %v5010
    %6720 = vmatprep.subr.mxu0 0.0
    %6721 = vmatpush1.msra.mxu0 %v5009
    %6722 = vmatprep.subr.mxu0 0.0
    %6723 = vmatpush1.msra.mxu0 %v5008
    %6724 = vmatprep.subr.mxu0 0.0
    %6725 = vmatpush1.msra.mxu0 %v5007
    %6726 = vmatprep.subr.mxu0 0.0
    %6727 = vmatpush1.msra.mxu0 %v5006
    %6728 = vmatprep.subr.mxu0 0.0
    %6729 = vmatpush1.msra.mxu0 %v5005
    %6730 = vmatprep.subr.mxu0 0.0
    %6731 = vmatpush1.msra.mxu0 %v5004
    %6732 = vmatprep.subr.mxu0 0.0
    %6733 = vmatpush2.msra.mxu0 0.0
    %6734 = vmatprep.subr.mxu0 0.0
    %6735 = vmatpush2.msra.mxu0 0.0
    %6736 = vmatprep.subr.mxu0 0.0
    %6737 = vmatpush2.msra.mxu0 0.0
    %6738 = vmatprep.subr.mxu0 0.0
    %6739 = vmatpush2.msra.mxu0 0.0
    %6740 = vmatprep.subr.mxu0 0.0
    %6741 = vmatpush2.msra.mxu0 0.0
    %6742 = vmatprep.subr.mxu0 0.0
    %6743 = vmatpush2.msra.mxu0 0.0
    %6744 = vmatprep.subr.mxu0 0.0
    %6745 = vmatpush2.msra.mxu0 0.0
    %6746 = vmatprep.subr.mxu0 0.0
    %6747 = vmatpush2.msra.mxu0 0.0
    %6748 = vmatprep.subr.mxu0 0.0
    %6749 = vmatpush2.msra.mxu0 0.0
    %6750 = vmatprep.subr.mxu0 0.0
    %6751 = vmatpush2.msra.mxu0 0.0
    %6752 = vmatprep.subr.mxu0 0.0
    %6753 = vmatpush2.msra.mxu0 0.0
    %6754 = vmatprep.subr.mxu0 0.0
    %6755 = vmatpush2.msra.mxu0 0.0
    %6756 = vmatprep.subr.mxu0 0.0
    %6757 = vmatpush2.msra.mxu0 0.0
    %6758 = vmatprep.subr.mxu0 0.0
    %6759 = vmatpush2.msra.mxu0 0.0
    %6760 = vmatprep.subr.mxu0 0.0
    %6761 = vmatpush2.msra.mxu0 0.0
    %6762 = vmatprep.subr.mxu0 0.0
    %6763 = vmatpush2.msra.mxu0 0.0
    %6764 = vmatprep.mubr.f32.mxu0 0.0
    %6765 = vmatmul.mubr.f32.gmra.mxu0 %v5035
    %v6766 = vpop.f32.mrf.mxu0
    %v6767 = vadd.f32 %v6662, %v6766
    %v6768 = vpop.f32.mrf.mxu0
    %6769 = vmatprep.mubr.f32.mxu0 0.0
    %6770 = vmatmul.mubr.f32.gmra.mxu0 %v5038
    %v6771 = vpop.f32.mrf.mxu0
    %v6772 = vadd.f32 %v6667, %v6771
    %v6773 = vpop.f32.mrf.mxu0
    %6774 = vmatprep.mubr.f32.mxu0 0.0
    %6775 = vmatmul.mubr.f32.gmra.mxu0 %v5041
    %v6776 = vpop.f32.mrf.mxu0
    %v6777 = vadd.f32 %v6672, %v6776
    %v6778 = vpop.f32.mrf.mxu0
    %6779 = vmatprep.mubr.f32.mxu0 0.0
    %6780 = vmatmul.mubr.f32.gmra.mxu0 %v5044
    %v6781 = vpop.f32.mrf.mxu0
    %v6782 = vadd.f32 %v6677, %v6781
    %v6783 = vpop.f32.mrf.mxu0
    %6784 = vmatprep.mubr.f32.mxu0 0.0
    %6785 = vmatmul.mubr.f32.gmra.mxu0 %v5047
    %v6786 = vpop.f32.mrf.mxu0
    %v6787 = vadd.f32 %v6682, %v6786
    %v6788 = vpop.f32.mrf.mxu0
    %6789 = vmatprep.mubr.f32.mxu0 0.0
    %6790 = vmatmul.mubr.f32.gmra.mxu0 %v5050
    %v6791 = vpop.f32.mrf.mxu0
    %v6792 = vadd.f32 %v6687, %v6791
    %v6793 = vpop.f32.mrf.mxu0
    %6794 = vmatprep.mubr.f32.mxu0 0.0
    %6795 = vmatmul.mubr.f32.gmra.mxu0 %v5053
    %v6796 = vpop.f32.mrf.mxu0
    %v6797 = vadd.f32 %v6692, %v6796
    %v6798 = vpop.f32.mrf.mxu0
    %6799 = vmatprep.mubr.f32.mxu0 0.0
    %6800 = vmatmul.mubr.f32.gmra.mxu0 %v5056
    %v6801 = vpop.f32.mrf.mxu0
    %v6802 = vadd.f32 %v6697, %v6801
    %v6803 = vpop.f32.mrf.mxu0
    %6804 = vdwg.mxu0
    %6805 = vmatprep.subr.mxu0 0.0
    %6806 = vmatpush1.msra.mxu0 0.0
    %6807 = vmatprep.subr.mxu0 0.0
    %6808 = vmatpush1.msra.mxu0 0.0
    %6809 = vmatprep.subr.mxu0 0.0
    %6810 = vmatpush1.msra.mxu0 %v5549
    %6811 = vmatprep.subr.mxu0 0.0
    %6812 = vmatpush1.msra.mxu0 %v5548
    %6813 = vmatprep.subr.mxu0 0.0
    %6814 = vmatpush1.msra.mxu0 %v5547
    %6815 = vmatprep.subr.mxu0 0.0
    %6816 = vmatpush1.msra.mxu0 %v5546
    %6817 = vmatprep.subr.mxu0 0.0
    %6818 = vmatpush1.msra.mxu0 %v5545
    %6819 = vmatprep.subr.mxu0 0.0
    %6820 = vmatpush1.msra.mxu0 %v5544
    %6821 = vmatprep.subr.mxu0 0.0
    %6822 = vmatpush1.msra.mxu0 %v5543
    %6823 = vmatprep.subr.mxu0 0.0
    %6824 = vmatpush1.msra.mxu0 %v5542
    %6825 = vmatprep.subr.mxu0 0.0
    %6826 = vmatpush1.msra.mxu0 %v5541
    %6827 = vmatprep.subr.mxu0 0.0
    %6828 = vmatpush1.msra.mxu0 %v5540
    %6829 = vmatprep.subr.mxu0 0.0
    %6830 = vmatpush1.msra.mxu0 %v5539
    %6831 = vmatprep.subr.mxu0 0.0
    %6832 = vmatpush1.msra.mxu0 %v5538
    %6833 = vmatprep.subr.mxu0 0.0
    %6834 = vmatpush1.msra.mxu0 %v5537
    %6835 = vmatprep.subr.mxu0 0.0
    %6836 = vmatpush1.msra.mxu0 %v5536
    %6837 = vmatprep.subr.mxu0 0.0
    %6838 = vmatpush2.msra.mxu0 0.0
    %6839 = vmatprep.subr.mxu0 0.0
    %6840 = vmatpush2.msra.mxu0 0.0
    %6841 = vmatprep.subr.mxu0 0.0
    %6842 = vmatpush2.msra.mxu0 0.0
    %6843 = vmatprep.subr.mxu0 0.0
    %6844 = vmatpush2.msra.mxu0 0.0
    %6845 = vmatprep.subr.mxu0 0.0
    %6846 = vmatpush2.msra.mxu0 0.0
    %6847 = vmatprep.subr.mxu0 0.0
    %6848 = vmatpush2.msra.mxu0 0.0
    %6849 = vmatprep.subr.mxu0 0.0
    %6850 = vmatpush2.msra.mxu0 0.0
    %6851 = vmatprep.subr.mxu0 0.0
    %6852 = vmatpush2.msra.mxu0 0.0
    %6853 = vmatprep.subr.mxu0 0.0
    %6854 = vmatpush2.msra.mxu0 0.0
    %6855 = vmatprep.subr.mxu0 0.0
    %6856 = vmatpush2.msra.mxu0 0.0
    %6857 = vmatprep.subr.mxu0 0.0
    %6858 = vmatpush2.msra.mxu0 0.0
    %6859 = vmatprep.subr.mxu0 0.0
    %6860 = vmatpush2.msra.mxu0 0.0
    %6861 = vmatprep.subr.mxu0 0.0
    %6862 = vmatpush2.msra.mxu0 0.0
    %6863 = vmatprep.subr.mxu0 0.0
    %6864 = vmatpush2.msra.mxu0 0.0
    %6865 = vmatprep.subr.mxu0 0.0
    %6866 = vmatpush2.msra.mxu0 0.0
    %6867 = vmatprep.subr.mxu0 0.0
    %6868 = vmatpush2.msra.mxu0 0.0
    %6869 = vmatprep.mubr.f32.mxu0 0.0
    %6870 = vmatmul.mubr.f32.gmra.mxu0 %v5838
    %v6871 = vpop.f32.mrf.mxu0
    %v6872 = vadd.f32 0.0, %v6871
    %v6873 = vpop.f32.mrf.mxu0
    %6874 = vmatprep.mubr.f32.mxu0 0.0
    %6875 = vmatmul.mubr.f32.gmra.mxu0 %v5840
    %v6876 = vpop.f32.mrf.mxu0
    %v6877 = vadd.f32 0.0, %v6876
    %v6878 = vpop.f32.mrf.mxu0
    %6879 = vmatprep.mubr.f32.mxu0 0.0
    %6880 = vmatmul.mubr.f32.gmra.mxu0 %v5842
    %v6881 = vpop.f32.mrf.mxu0
    %v6882 = vadd.f32 0.0, %v6881
    %v6883 = vpop.f32.mrf.mxu0
    %6884 = vmatprep.mubr.f32.mxu0 0.0
    %6885 = vmatmul.mubr.f32.gmra.mxu0 %v5844
    %v6886 = vpop.f32.mrf.mxu0
    %v6887 = vadd.f32 0.0, %v6886
    %v6888 = vpop.f32.mrf.mxu0
    %6889 = vmatprep.mubr.f32.mxu0 0.0
    %6890 = vmatmul.mubr.f32.gmra.mxu0 %v5846
    %v6891 = vpop.f32.mrf.mxu0
    %v6892 = vadd.f32 0.0, %v6891
    %v6893 = vpop.f32.mrf.mxu0
    %6894 = vmatprep.mubr.f32.mxu0 0.0
    %6895 = vmatmul.mubr.f32.gmra.mxu0 %v5848
    %v6896 = vpop.f32.mrf.mxu0
    %v6897 = vadd.f32 0.0, %v6896
    %v6898 = vpop.f32.mrf.mxu0
    %6899 = vmatprep.mubr.f32.mxu0 0.0
    %6900 = vmatmul.mubr.f32.gmra.mxu0 %v5850
    %v6901 = vpop.f32.mrf.mxu0
    %v6902 = vadd.f32 0.0, %v6901
    %v6903 = vpop.f32.mrf.mxu0
    %6904 = vmatprep.mubr.f32.mxu0 0.0
    %6905 = vmatmul.mubr.f32.gmra.mxu0 %v5852
    %v6906 = vpop.f32.mrf.mxu0
    %v6907 = vadd.f32 0.0, %v6906
    %v6908 = vpop.f32.mrf.mxu0
    %6909 = vdwg.mxu0
    %v6910 = vadd.f32 %v6557, %v6872
    %v6911 = vadd.f32 %v6562, %v6877
    %v6912 = vadd.f32 %v6567, %v6882
    %v6913 = vadd.f32 %v6572, %v6887
    %v6914 = vadd.f32 %v6577, %v6892
    %v6915 = vadd.f32 %v6582, %v6897
    %v6916 = vadd.f32 %v6587, %v6902
    %v6917 = vadd.f32 %v6592, %v6907
    %6918 = vmatprep.subr.mxu0 0.0
    %6919 = vmatpush1.msra.mxu0 0.0
    %6920 = vmatprep.subr.mxu0 0.0
    %6921 = vmatpush1.msra.mxu0 0.0
    %6922 = vmatprep.subr.mxu0 0.0
    %6923 = vmatpush1.msra.mxu0 %v5693
    %6924 = vmatprep.subr.mxu0 0.0
    %6925 = vmatpush1.msra.mxu0 %v5692
    %6926 = vmatprep.subr.mxu0 0.0
    %6927 = vmatpush1.msra.mxu0 %v5691
    %6928 = vmatprep.subr.mxu0 0.0
    %6929 = vmatpush1.msra.mxu0 %v5690
    %6930 = vmatprep.subr.mxu0 0.0
    %6931 = vmatpush1.msra.mxu0 %v5689
    %6932 = vmatprep.subr.mxu0 0.0
    %6933 = vmatpush1.msra.mxu0 %v5688
    %6934 = vmatprep.subr.mxu0 0.0
    %6935 = vmatpush1.msra.mxu0 %v5687
    %6936 = vmatprep.subr.mxu0 0.0
    %6937 = vmatpush1.msra.mxu0 %v5686
    %6938 = vmatprep.subr.mxu0 0.0
    %6939 = vmatpush1.msra.mxu0 %v5685
    %6940 = vmatprep.subr.mxu0 0.0
    %6941 = vmatpush1.msra.mxu0 %v5684
    %6942 = vmatprep.subr.mxu0 0.0
    %6943 = vmatpush1.msra.mxu0 %v5683
    %6944 = vmatprep.subr.mxu0 0.0
    %6945 = vmatpush1.msra.mxu0 %v5682
    %6946 = vmatprep.subr.mxu0 0.0
    %6947 = vmatpush1.msra.mxu0 %v5681
    %6948 = vmatprep.subr.mxu0 0.0
    %6949 = vmatpush1.msra.mxu0 %v5680
    %6950 = vmatprep.subr.mxu0 0.0
    %6951 = vmatpush2.msra.mxu0 0.0
    %6952 = vmatprep.subr.mxu0 0.0
    %6953 = vmatpush2.msra.mxu0 0.0
    %6954 = vmatprep.subr.mxu0 0.0
    %6955 = vmatpush2.msra.mxu0 0.0
    %6956 = vmatprep.subr.mxu0 0.0
    %6957 = vmatpush2.msra.mxu0 0.0
    %6958 = vmatprep.subr.mxu0 0.0
    %6959 = vmatpush2.msra.mxu0 0.0
    %6960 = vmatprep.subr.mxu0 0.0
    %6961 = vmatpush2.msra.mxu0 0.0
    %6962 = vmatprep.subr.mxu0 0.0
    %6963 = vmatpush2.msra.mxu0 0.0
    %6964 = vmatprep.subr.mxu0 0.0
    %6965 = vmatpush2.msra.mxu0 0.0
    %6966 = vmatprep.subr.mxu0 0.0
    %6967 = vmatpush2.msra.mxu0 0.0
    %6968 = vmatprep.subr.mxu0 0.0
    %6969 = vmatpush2.msra.mxu0 0.0
    %6970 = vmatprep.subr.mxu0 0.0
    %6971 = vmatpush2.msra.mxu0 0.0
    %6972 = vmatprep.subr.mxu0 0.0
    %6973 = vmatpush2.msra.mxu0 0.0
    %6974 = vmatprep.subr.mxu0 0.0
    %6975 = vmatpush2.msra.mxu0 0.0
    %6976 = vmatprep.subr.mxu0 0.0
    %6977 = vmatpush2.msra.mxu0 0.0
    %6978 = vmatprep.subr.mxu0 0.0
    %6979 = vmatpush2.msra.mxu0 0.0
    %6980 = vmatprep.subr.mxu0 0.0
    %6981 = vmatpush2.msra.mxu0 0.0
    %6982 = vmatprep.mubr.f32.mxu0 0.0
    %6983 = vmatmul.mubr.f32.gmra.mxu0 %v5838
    %v6984 = vpop.f32.mrf.mxu0
    %v6985 = vadd.f32 0.0, %v6984
    %v6986 = vpop.f32.mrf.mxu0
    %6987 = vmatprep.mubr.f32.mxu0 0.0
    %6988 = vmatmul.mubr.f32.gmra.mxu0 %v5840
    %v6989 = vpop.f32.mrf.mxu0
    %v6990 = vadd.f32 0.0, %v6989
    %v6991 = vpop.f32.mrf.mxu0
    %6992 = vmatprep.mubr.f32.mxu0 0.0
    %6993 = vmatmul.mubr.f32.gmra.mxu0 %v5842
    %v6994 = vpop.f32.mrf.mxu0
    %v6995 = vadd.f32 0.0, %v6994
    %v6996 = vpop.f32.mrf.mxu0
    %6997 = vmatprep.mubr.f32.mxu0 0.0
    %6998 = vmatmul.mubr.f32.gmra.mxu0 %v5844
    %v6999 = vpop.f32.mrf.mxu0
    %v7000 = vadd.f32 0.0, %v6999
    %v7001 = vpop.f32.mrf.mxu0
    %7002 = vmatprep.mubr.f32.mxu0 0.0
    %7003 = vmatmul.mubr.f32.gmra.mxu0 %v5846
    %v7004 = vpop.f32.mrf.mxu0
    %v7005 = vadd.f32 0.0, %v7004
    %v7006 = vpop.f32.mrf.mxu0
    %7007 = vmatprep.mubr.f32.mxu0 0.0
    %7008 = vmatmul.mubr.f32.gmra.mxu0 %v5848
    %v7009 = vpop.f32.mrf.mxu0
    %v7010 = vadd.f32 0.0, %v7009
    %v7011 = vpop.f32.mrf.mxu0
    %7012 = vmatprep.mubr.f32.mxu0 0.0
    %7013 = vmatmul.mubr.f32.gmra.mxu0 %v5850
    %v7014 = vpop.f32.mrf.mxu0
    %v7015 = vadd.f32 0.0, %v7014
    %v7016 = vpop.f32.mrf.mxu0
    %7017 = vmatprep.mubr.f32.mxu0 0.0
    %7018 = vmatmul.mubr.f32.gmra.mxu0 %v5852
    %v7019 = vpop.f32.mrf.mxu0
    %v7020 = vadd.f32 0.0, %v7019
    %v7021 = vpop.f32.mrf.mxu0
    %7022 = vdwg.mxu0
    %v7023 = vadd.f32 %v6767, %v6985
    %v7024 = vadd.f32 %v6772, %v6990
    %v7025 = vadd.f32 %v6777, %v6995
    %v7026 = vadd.f32 %v6782, %v7000
    %v7027 = vadd.f32 %v6787, %v7005
    %v7028 = vadd.f32 %v6792, %v7010
    %v7029 = vadd.f32 %v6797, %v7015
    %v7030 = vadd.f32 %v6802, %v7020
    %7031 = vmatprep.subr.mxu0 0.0
    %7032 = vmatpush1.msra.mxu0 0.0
    %7033 = vmatprep.subr.mxu0 0.0
    %7034 = vmatpush1.msra.mxu0 0.0
    %7035 = vmatprep.subr.mxu0 0.0
    %7036 = vmatpush1.msra.mxu0 %v5837
    %7037 = vmatprep.subr.mxu0 0.0
    %7038 = vmatpush1.msra.mxu0 %v5836
    %7039 = vmatprep.subr.mxu0 0.0
    %7040 = vmatpush1.msra.mxu0 %v5835
    %7041 = vmatprep.subr.mxu0 0.0
    %7042 = vmatpush1.msra.mxu0 %v5834
    %7043 = vmatprep.subr.mxu0 0.0
    %7044 = vmatpush1.msra.mxu0 %v5833
    %7045 = vmatprep.subr.mxu0 0.0
    %7046 = vmatpush1.msra.mxu0 %v5832
    %7047 = vmatprep.subr.mxu0 0.0
    %7048 = vmatpush1.msra.mxu0 %v5831
    %7049 = vmatprep.subr.mxu0 0.0
    %7050 = vmatpush1.msra.mxu0 %v5830
    %7051 = vmatprep.subr.mxu0 0.0
    %7052 = vmatpush1.msra.mxu0 %v5829
    %7053 = vmatprep.subr.mxu0 0.0
    %7054 = vmatpush1.msra.mxu0 %v5828
    %7055 = vmatprep.subr.mxu0 0.0
    %7056 = vmatpush1.msra.mxu0 %v5827
    %7057 = vmatprep.subr.mxu0 0.0
    %7058 = vmatpush1.msra.mxu0 %v5826
    %7059 = vmatprep.subr.mxu0 0.0
    %7060 = vmatpush1.msra.mxu0 %v5825
    %7061 = vmatprep.subr.mxu0 0.0
    %7062 = vmatpush1.msra.mxu0 %v5824
    %7063 = vmatprep.subr.mxu0 0.0
    %7064 = vmatpush2.msra.mxu0 0.0
    %7065 = vmatprep.subr.mxu0 0.0
    %7066 = vmatpush2.msra.mxu0 0.0
    %7067 = vmatprep.subr.mxu0 0.0
    %7068 = vmatpush2.msra.mxu0 0.0
    %7069 = vmatprep.subr.mxu0 0.0
    %7070 = vmatpush2.msra.mxu0 0.0
    %7071 = vmatprep.subr.mxu0 0.0
    %7072 = vmatpush2.msra.mxu0 0.0
    %7073 = vmatprep.subr.mxu0 0.0
    %7074 = vmatpush2.msra.mxu0 0.0
    %7075 = vmatprep.subr.mxu0 0.0
    %7076 = vmatpush2.msra.mxu0 0.0
    %7077 = vmatprep.subr.mxu0 0.0
    %7078 = vmatpush2.msra.mxu0 0.0
    %7079 = vmatprep.subr.mxu0 0.0
    %7080 = vmatpush2.msra.mxu0 0.0
    %7081 = vmatprep.subr.mxu0 0.0
    %7082 = vmatpush2.msra.mxu0 0.0
    %7083 = vmatprep.subr.mxu0 0.0
    %7084 = vmatpush2.msra.mxu0 0.0
    %7085 = vmatprep.subr.mxu0 0.0
    %7086 = vmatpush2.msra.mxu0 0.0
    %7087 = vmatprep.subr.mxu0 0.0
    %7088 = vmatpush2.msra.mxu0 0.0
    %7089 = vmatprep.subr.mxu0 0.0
    %7090 = vmatpush2.msra.mxu0 0.0
    %7091 = vmatprep.subr.mxu0 0.0
    %7092 = vmatpush2.msra.mxu0 0.0
    %7093 = vmatprep.subr.mxu0 0.0
    %7094 = vmatpush2.msra.mxu0 0.0
    %7095 = vmatprep.mubr.f32.mxu0 0.0
    %7096 = vmatmul.mubr.f32.gmra.mxu0 %v6128
    %v7097 = vpop.f32.mrf.mxu0
    %v7098 = vadd.f32 0.0, %v7097
    %v7099 = vpop.f32.mrf.mxu0
    %7100 = vmatprep.mubr.f32.mxu0 0.0
    %7101 = vmatmul.mubr.f32.gmra.mxu0 %v6130
    %v7102 = vpop.f32.mrf.mxu0
    %v7103 = vadd.f32 0.0, %v7102
    %v7104 = vpop.f32.mrf.mxu0
    %7105 = vmatprep.mubr.f32.mxu0 0.0
    %7106 = vmatmul.mubr.f32.gmra.mxu0 %v6132
    %v7107 = vpop.f32.mrf.mxu0
    %v7108 = vadd.f32 0.0, %v7107
    %v7109 = vpop.f32.mrf.mxu0
    %7110 = vmatprep.mubr.f32.mxu0 0.0
    %7111 = vmatmul.mubr.f32.gmra.mxu0 %v6134
    %v7112 = vpop.f32.mrf.mxu0
    %v7113 = vadd.f32 0.0, %v7112
    %v7114 = vpop.f32.mrf.mxu0
    %7115 = vmatprep.mubr.f32.mxu0 0.0
    %7116 = vmatmul.mubr.f32.gmra.mxu0 %v6136
    %v7117 = vpop.f32.mrf.mxu0
    %v7118 = vadd.f32 0.0, %v7117
    %v7119 = vpop.f32.mrf.mxu0
    %7120 = vmatprep.mubr.f32.mxu0 0.0
    %7121 = vmatmul.mubr.f32.gmra.mxu0 %v6138
    %v7122 = vpop.f32.mrf.mxu0
    %v7123 = vadd.f32 0.0, %v7122
    %v7124 = vpop.f32.mrf.mxu0
    %7125 = vmatprep.mubr.f32.mxu0 0.0
    %7126 = vmatmul.mubr.f32.gmra.mxu0 %v6140
    %v7127 = vpop.f32.mrf.mxu0
    %v7128 = vadd.f32 0.0, %v7127
    %v7129 = vpop.f32.mrf.mxu0
    %7130 = vmatprep.mubr.f32.mxu0 0.0
    %7131 = vmatmul.mubr.f32.gmra.mxu0 %v6142
    %v7132 = vpop.f32.mrf.mxu0
    %v7133 = vadd.f32 0.0, %v7132
    %v7134 = vpop.f32.mrf.mxu0
    %7135 = vdwg.mxu0
    %v7136 = vadd.f32 %v6910, %v7098
    %v7137 = vadd.f32 %v6911, %v7103
    %v7138 = vadd.f32 %v6912, %v7108
    %v7139 = vadd.f32 %v6913, %v7113
    %v7140 = vadd.f32 %v6914, %v7118
    %v7141 = vadd.f32 %v6915, %v7123
    %v7142 = vadd.f32 %v6916, %v7128
    %v7143 = vadd.f32 %v6917, %v7133
    %7144 = vmatprep.subr.mxu0 0.0
    %7145 = vmatpush1.msra.mxu0 0.0
    %7146 = vmatprep.subr.mxu0 0.0
    %7147 = vmatpush1.msra.mxu0 0.0
    %7148 = vmatprep.subr.mxu0 0.0
    %7149 = vmatpush1.msra.mxu0 %v5981
    %7150 = vmatprep.subr.mxu0 0.0
    %7151 = vmatpush1.msra.mxu0 %v5980
    %7152 = vmatprep.subr.mxu0 0.0
    %7153 = vmatpush1.msra.mxu0 %v5979
    %7154 = vmatprep.subr.mxu0 0.0
    %7155 = vmatpush1.msra.mxu0 %v5978
    %7156 = vmatprep.subr.mxu0 0.0
    %7157 = vmatpush1.msra.mxu0 %v5977
    %7158 = vmatprep.subr.mxu0 0.0
    %7159 = vmatpush1.msra.mxu0 %v5976
    %7160 = vmatprep.subr.mxu0 0.0
    %7161 = vmatpush1.msra.mxu0 %v5975
    %7162 = vmatprep.subr.mxu0 0.0
    %7163 = vmatpush1.msra.mxu0 %v5974
    %7164 = vmatprep.subr.mxu0 0.0
    %7165 = vmatpush1.msra.mxu0 %v5973
    %7166 = vmatprep.subr.mxu0 0.0
    %7167 = vmatpush1.msra.mxu0 %v5972
    %7168 = vmatprep.subr.mxu0 0.0
    %7169 = vmatpush1.msra.mxu0 %v5971
    %7170 = vmatprep.subr.mxu0 0.0
    %7171 = vmatpush1.msra.mxu0 %v5970
    %7172 = vmatprep.subr.mxu0 0.0
    %7173 = vmatpush1.msra.mxu0 %v5969
    %7174 = vmatprep.subr.mxu0 0.0
    %7175 = vmatpush1.msra.mxu0 %v5968
    %7176 = vmatprep.subr.mxu0 0.0
    %7177 = vmatpush2.msra.mxu0 0.0
    %7178 = vmatprep.subr.mxu0 0.0
    %7179 = vmatpush2.msra.mxu0 0.0
    %7180 = vmatprep.subr.mxu0 0.0
    %7181 = vmatpush2.msra.mxu0 0.0
    %7182 = vmatprep.subr.mxu0 0.0
    %7183 = vmatpush2.msra.mxu0 0.0
    %7184 = vmatprep.subr.mxu0 0.0
    %7185 = vmatpush2.msra.mxu0 0.0
    %7186 = vmatprep.subr.mxu0 0.0
    %7187 = vmatpush2.msra.mxu0 0.0
    %7188 = vmatprep.subr.mxu0 0.0
    %7189 = vmatpush2.msra.mxu0 0.0
    %7190 = vmatprep.subr.mxu0 0.0
    %7191 = vmatpush2.msra.mxu0 0.0
    %7192 = vmatprep.subr.mxu0 0.0
    %7193 = vmatpush2.msra.mxu0 0.0
    %7194 = vmatprep.subr.mxu0 0.0
    %7195 = vmatpush2.msra.mxu0 0.0
    %7196 = vmatprep.subr.mxu0 0.0
    %7197 = vmatpush2.msra.mxu0 0.0
    %7198 = vmatprep.subr.mxu0 0.0
    %7199 = vmatpush2.msra.mxu0 0.0
    %7200 = vmatprep.subr.mxu0 0.0
    %7201 = vmatpush2.msra.mxu0 0.0
    %7202 = vmatprep.subr.mxu0 0.0
    %7203 = vmatpush2.msra.mxu0 0.0
    %7204 = vmatprep.subr.mxu0 0.0
    %7205 = vmatpush2.msra.mxu0 0.0
    %7206 = vmatprep.subr.mxu0 0.0
    %7207 = vmatpush2.msra.mxu0 0.0
    %7208 = vmatprep.mubr.f32.mxu0 0.0
    %7209 = vmatmul.mubr.f32.gmra.mxu0 %v6128
    %v7210 = vpop.f32.mrf.mxu0
    %v7211 = vadd.f32 0.0, %v7210
    %v7212 = vpop.f32.mrf.mxu0
    %7213 = vmatprep.mubr.f32.mxu0 0.0
    %7214 = vmatmul.mubr.f32.gmra.mxu0 %v6130
    %v7215 = vpop.f32.mrf.mxu0
    %v7216 = vadd.f32 0.0, %v7215
    %v7217 = vpop.f32.mrf.mxu0
    %7218 = vmatprep.mubr.f32.mxu0 0.0
    %7219 = vmatmul.mubr.f32.gmra.mxu0 %v6132
    %v7220 = vpop.f32.mrf.mxu0
    %v7221 = vadd.f32 0.0, %v7220
    %v7222 = vpop.f32.mrf.mxu0
    %7223 = vmatprep.mubr.f32.mxu0 0.0
    %7224 = vmatmul.mubr.f32.gmra.mxu0 %v6134
    %v7225 = vpop.f32.mrf.mxu0
    %v7226 = vadd.f32 0.0, %v7225
    %v7227 = vpop.f32.mrf.mxu0
    %7228 = vmatprep.mubr.f32.mxu0 0.0
    %7229 = vmatmul.mubr.f32.gmra.mxu0 %v6136
    %v7230 = vpop.f32.mrf.mxu0
    %v7231 = vadd.f32 0.0, %v7230
    %v7232 = vpop.f32.mrf.mxu0
    %7233 = vmatprep.mubr.f32.mxu0 0.0
    %7234 = vmatmul.mubr.f32.gmra.mxu0 %v6138
    %v7235 = vpop.f32.mrf.mxu0
    %v7236 = vadd.f32 0.0, %v7235
    %v7237 = vpop.f32.mrf.mxu0
    %7238 = vmatprep.mubr.f32.mxu0 0.0
    %7239 = vmatmul.mubr.f32.gmra.mxu0 %v6140
    %v7240 = vpop.f32.mrf.mxu0
    %v7241 = vadd.f32 0.0, %v7240
    %v7242 = vpop.f32.mrf.mxu0
    %7243 = vmatprep.mubr.f32.mxu0 0.0
    %7244 = vmatmul.mubr.f32.gmra.mxu0 %v6142
    %v7245 = vpop.f32.mrf.mxu0
    %v7246 = vadd.f32 0.0, %v7245
    %v7247 = vpop.f32.mrf.mxu0
    %7248 = vdwg.mxu0
    %v7249 = vadd.f32 %v7023, %v7211
    %v7250 = vadd.f32 %v7024, %v7216
    %v7251 = vadd.f32 %v7025, %v7221
    %v7252 = vadd.f32 %v7026, %v7226
    %v7253 = vadd.f32 %v7027, %v7231
    %v7254 = vadd.f32 %v7028, %v7236
    %v7255 = vadd.f32 %v7029, %v7241
    %v7256 = vadd.f32 %v7030, %v7246
    %v7257 = vrot.slane %v4981, 2
    %v7258 = vsel %vm6095, %v7257, %v6097
    %v7259 = vrot.slane %v4982, 2
    %v7260 = vsel %vm6095, %v7259, %v6097
    %v7261 = vrot.slane %v4983, 2
    %v7262 = vsel %vm6095, %v7261, %v6097
    %v7263 = vrot.slane %v4984, 2
    %v7264 = vsel %vm6095, %v7263, %v6097
    %v7265 = vrot.slane %v4985, 2
    %v7266 = vsel %vm6095, %v7265, %v6097
    %v7267 = vrot.slane %v4986, 2
    %v7268 = vsel %vm6095, %v7267, %v6097
    %v7269 = vrot.slane %v4987, 2
    %v7270 = vsel %vm6095, %v7269, %v6097
    %v7271 = vrot.slane %v4988, 2
    %v7272 = vsel %vm6095, %v7271, %v6097
    %v7273 = vsel %vm5033, %v7258, 0
    %v7275 = vsel %vm5033, %v7260, 0
    %v7277 = vsel %vm5033, %v7262, 0
    %v7279 = vsel %vm5033, %v7264, 0
    %v7281 = vsel %vm5033, %v7266, 0
    %v7283 = vsel %vm5033, %v7268, 0
    %v7285 = vsel %vm5033, %v7270, 0
    %v7287 = vsel %vm5033, %v7272, 0
    %7289 = vmatprep.subr.mxu0 0.0
    %7290 = vmatpush1.msra.mxu0 0.0
    %7291 = vmatprep.subr.mxu0 0.0
    %7292 = vmatpush1.msra.mxu0 0.0
    %7293 = vmatprep.subr.mxu0 0.0
    %7294 = vmatpush1.msra.mxu0 %v6127
    %7295 = vmatprep.subr.mxu0 0.0
    %7296 = vmatpush1.msra.mxu0 %v6126
    %7297 = vmatprep.subr.mxu0 0.0
    %7298 = vmatpush1.msra.mxu0 %v6125
    %7299 = vmatprep.subr.mxu0 0.0
    %7300 = vmatpush1.msra.mxu0 %v6124
    %7301 = vmatprep.subr.mxu0 0.0
    %7302 = vmatpush1.msra.mxu0 %v6123
    %7303 = vmatprep.subr.mxu0 0.0
    %7304 = vmatpush1.msra.mxu0 %v6122
    %7305 = vmatprep.subr.mxu0 0.0
    %7306 = vmatpush1.msra.mxu0 %v6121
    %7307 = vmatprep.subr.mxu0 0.0
    %7308 = vmatpush1.msra.mxu0 %v6120
    %7309 = vmatprep.subr.mxu0 0.0
    %7310 = vmatpush1.msra.mxu0 %v6119
    %7311 = vmatprep.subr.mxu0 0.0
    %7312 = vmatpush1.msra.mxu0 %v6118
    %7313 = vmatprep.subr.mxu0 0.0
    %7314 = vmatpush1.msra.mxu0 %v6117
    %7315 = vmatprep.subr.mxu0 0.0
    %7316 = vmatpush1.msra.mxu0 %v6116
    %7317 = vmatprep.subr.mxu0 0.0
    %7318 = vmatpush1.msra.mxu0 %v6115
    %7319 = vmatprep.subr.mxu0 0.0
    %7320 = vmatpush1.msra.mxu0 %v6114
    %7321 = vmatprep.subr.mxu0 0.0
    %7322 = vmatpush2.msra.mxu0 0.0
    %7323 = vmatprep.subr.mxu0 0.0
    %7324 = vmatpush2.msra.mxu0 0.0
    %7325 = vmatprep.subr.mxu0 0.0
    %7326 = vmatpush2.msra.mxu0 0.0
    %7327 = vmatprep.subr.mxu0 0.0
    %7328 = vmatpush2.msra.mxu0 0.0
    %7329 = vmatprep.subr.mxu0 0.0
    %7330 = vmatpush2.msra.mxu0 0.0
    %7331 = vmatprep.subr.mxu0 0.0
    %7332 = vmatpush2.msra.mxu0 0.0
    %7333 = vmatprep.subr.mxu0 0.0
    %7334 = vmatpush2.msra.mxu0 0.0
    %7335 = vmatprep.subr.mxu0 0.0
    %7336 = vmatpush2.msra.mxu0 0.0
    %7337 = vmatprep.subr.mxu0 0.0
    %7338 = vmatpush2.msra.mxu0 0.0
    %7339 = vmatprep.subr.mxu0 0.0
    %7340 = vmatpush2.msra.mxu0 0.0
    %7341 = vmatprep.subr.mxu0 0.0
    %7342 = vmatpush2.msra.mxu0 0.0
    %7343 = vmatprep.subr.mxu0 0.0
    %7344 = vmatpush2.msra.mxu0 0.0
    %7345 = vmatprep.subr.mxu0 0.0
    %7346 = vmatpush2.msra.mxu0 0.0
    %7347 = vmatprep.subr.mxu0 0.0
    %7348 = vmatpush2.msra.mxu0 0.0
    %7349 = vmatprep.subr.mxu0 0.0
    %7350 = vmatpush2.msra.mxu0 0.0
    %7351 = vmatprep.subr.mxu0 0.0
    %7352 = vmatpush2.msra.mxu0 0.0
    %7353 = vmatprep.mubr.f32.mxu0 0.0
    %7354 = vmatmul.mubr.f32.gmra.mxu0 %v7273
    %v7355 = vpop.f32.mrf.mxu0
    %v7356 = vadd.f32 0.0, %v7355
    %v7357 = vpop.f32.mrf.mxu0
    %7358 = vmatprep.mubr.f32.mxu0 0.0
    %7359 = vmatmul.mubr.f32.gmra.mxu0 %v7275
    %v7360 = vpop.f32.mrf.mxu0
    %v7361 = vadd.f32 0.0, %v7360
    %v7362 = vpop.f32.mrf.mxu0
    %7363 = vmatprep.mubr.f32.mxu0 0.0
    %7364 = vmatmul.mubr.f32.gmra.mxu0 %v7277
    %v7365 = vpop.f32.mrf.mxu0
    %v7366 = vadd.f32 0.0, %v7365
    %v7367 = vpop.f32.mrf.mxu0
    %7368 = vmatprep.mubr.f32.mxu0 0.0
    %7369 = vmatmul.mubr.f32.gmra.mxu0 %v7279
    %v7370 = vpop.f32.mrf.mxu0
    %v7371 = vadd.f32 0.0, %v7370
    %v7372 = vpop.f32.mrf.mxu0
    %7373 = vmatprep.mubr.f32.mxu0 0.0
    %7374 = vmatmul.mubr.f32.gmra.mxu0 %v7281
    %v7375 = vpop.f32.mrf.mxu0
    %v7376 = vadd.f32 0.0, %v7375
    %v7377 = vpop.f32.mrf.mxu0
    %7378 = vmatprep.mubr.f32.mxu0 0.0
    %7379 = vmatmul.mubr.f32.gmra.mxu0 %v7283
    %v7380 = vpop.f32.mrf.mxu0
    %v7381 = vadd.f32 0.0, %v7380
    %v7382 = vpop.f32.mrf.mxu0
    %7383 = vmatprep.mubr.f32.mxu0 0.0
    %7384 = vmatmul.mubr.f32.gmra.mxu0 %v7285
    %v7385 = vpop.f32.mrf.mxu0
    %v7386 = vadd.f32 0.0, %v7385
    %v7387 = vpop.f32.mrf.mxu0
    %7388 = vmatprep.mubr.f32.mxu0 0.0
    %7389 = vmatmul.mubr.f32.gmra.mxu0 %v7287
    %v7390 = vpop.f32.mrf.mxu0
    %v7391 = vadd.f32 0.0, %v7390
    %v7392 = vpop.f32.mrf.mxu0
    %7393 = vdwg.mxu0
    %v7394 = vadd.f32 %v7136, %v7356
    %v7395 = vadd.f32 %v7137, %v7361
    %v7396 = vadd.f32 %v7138, %v7366
    %v7397 = vadd.f32 %v7139, %v7371
    %v7398 = vadd.f32 %v7140, %v7376
    %v7399 = vadd.f32 %v7141, %v7381
    %v7400 = vadd.f32 %v7142, %v7386
    %v7401 = vadd.f32 %v7143, %v7391
    %7402 = vmatprep.subr.mxu0 0.0
    %7403 = vmatpush1.msra.mxu0 0.0
    %7404 = vmatprep.subr.mxu0 0.0
    %7405 = vmatpush1.msra.mxu0 0.0
    %7406 = vmatprep.subr.mxu0 0.0
    %7407 = vmatpush1.msra.mxu0 %v6271
    %7408 = vmatprep.subr.mxu0 0.0
    %7409 = vmatpush1.msra.mxu0 %v6270
    %7410 = vmatprep.subr.mxu0 0.0
    %7411 = vmatpush1.msra.mxu0 %v6269
    %7412 = vmatprep.subr.mxu0 0.0
    %7413 = vmatpush1.msra.mxu0 %v6268
    %7414 = vmatprep.subr.mxu0 0.0
    %7415 = vmatpush1.msra.mxu0 %v6267
    %7416 = vmatprep.subr.mxu0 0.0
    %7417 = vmatpush1.msra.mxu0 %v6266
    %7418 = vmatprep.subr.mxu0 0.0
    %7419 = vmatpush1.msra.mxu0 %v6265
    %7420 = vmatprep.subr.mxu0 0.0
    %7421 = vmatpush1.msra.mxu0 %v6264
    %7422 = vmatprep.subr.mxu0 0.0
    %7423 = vmatpush1.msra.mxu0 %v6263
    %7424 = vmatprep.subr.mxu0 0.0
    %7425 = vmatpush1.msra.mxu0 %v6262
    %7426 = vmatprep.subr.mxu0 0.0
    %7427 = vmatpush1.msra.mxu0 %v6261
    %7428 = vmatprep.subr.mxu0 0.0
    %7429 = vmatpush1.msra.mxu0 %v6260
    %7430 = vmatprep.subr.mxu0 0.0
    %7431 = vmatpush1.msra.mxu0 %v6259
    %7432 = vmatprep.subr.mxu0 0.0
    %7433 = vmatpush1.msra.mxu0 %v6258
    %7434 = vmatprep.subr.mxu0 0.0
    %7435 = vmatpush2.msra.mxu0 0.0
    %7436 = vmatprep.subr.mxu0 0.0
    %7437 = vmatpush2.msra.mxu0 0.0
    %7438 = vmatprep.subr.mxu0 0.0
    %7439 = vmatpush2.msra.mxu0 0.0
    %7440 = vmatprep.subr.mxu0 0.0
    %7441 = vmatpush2.msra.mxu0 0.0
    %7442 = vmatprep.subr.mxu0 0.0
    %7443 = vmatpush2.msra.mxu0 0.0
    %7444 = vmatprep.subr.mxu0 0.0
    %7445 = vmatpush2.msra.mxu0 0.0
    %7446 = vmatprep.subr.mxu0 0.0
    %7447 = vmatpush2.msra.mxu0 0.0
    %7448 = vmatprep.subr.mxu0 0.0
    %7449 = vmatpush2.msra.mxu0 0.0
    %7450 = vmatprep.subr.mxu0 0.0
    %7451 = vmatpush2.msra.mxu0 0.0
    %7452 = vmatprep.subr.mxu0 0.0
    %7453 = vmatpush2.msra.mxu0 0.0
    %7454 = vmatprep.subr.mxu0 0.0
    %7455 = vmatpush2.msra.mxu0 0.0
    %7456 = vmatprep.subr.mxu0 0.0
    %7457 = vmatpush2.msra.mxu0 0.0
    %7458 = vmatprep.subr.mxu0 0.0
    %7459 = vmatpush2.msra.mxu0 0.0
    %7460 = vmatprep.subr.mxu0 0.0
    %7461 = vmatpush2.msra.mxu0 0.0
    %7462 = vmatprep.subr.mxu0 0.0
    %7463 = vmatpush2.msra.mxu0 0.0
    %7464 = vmatprep.subr.mxu0 0.0
    %7465 = vmatpush2.msra.mxu0 0.0
    %7466 = vmatprep.mubr.f32.mxu0 0.0
    %7467 = vmatmul.mubr.f32.gmra.mxu0 %v7273
    %v7468 = vpop.f32.mrf.mxu0
    %v7469 = vadd.f32 0.0, %v7468
    %v7470 = vpop.f32.mrf.mxu0
    %7471 = vmatprep.mubr.f32.mxu0 0.0
    %7472 = vmatmul.mubr.f32.gmra.mxu0 %v7275
    %v7473 = vpop.f32.mrf.mxu0
    %v7474 = vadd.f32 0.0, %v7473
    %v7475 = vpop.f32.mrf.mxu0
    %7476 = vmatprep.mubr.f32.mxu0 0.0
    %7477 = vmatmul.mubr.f32.gmra.mxu0 %v7277
    %v7478 = vpop.f32.mrf.mxu0
    %v7479 = vadd.f32 0.0, %v7478
    %v7480 = vpop.f32.mrf.mxu0
    %7481 = vmatprep.mubr.f32.mxu0 0.0
    %7482 = vmatmul.mubr.f32.gmra.mxu0 %v7279
    %v7483 = vpop.f32.mrf.mxu0
    %v7484 = vadd.f32 0.0, %v7483
    %v7485 = vpop.f32.mrf.mxu0
    %7486 = vmatprep.mubr.f32.mxu0 0.0
    %7487 = vmatmul.mubr.f32.gmra.mxu0 %v7281
    %v7488 = vpop.f32.mrf.mxu0
    %v7489 = vadd.f32 0.0, %v7488
    %v7490 = vpop.f32.mrf.mxu0
    %7491 = vmatprep.mubr.f32.mxu0 0.0
    %7492 = vmatmul.mubr.f32.gmra.mxu0 %v7283
    %v7493 = vpop.f32.mrf.mxu0
    %v7494 = vadd.f32 0.0, %v7493
    %v7495 = vpop.f32.mrf.mxu0
    %7496 = vmatprep.mubr.f32.mxu0 0.0
    %7497 = vmatmul.mubr.f32.gmra.mxu0 %v7285
    %v7498 = vpop.f32.mrf.mxu0
    %v7499 = vadd.f32 0.0, %v7498
    %v7500 = vpop.f32.mrf.mxu0
    %7501 = vmatprep.mubr.f32.mxu0 0.0
    %7502 = vmatmul.mubr.f32.gmra.mxu0 %v7287
    %v7503 = vpop.f32.mrf.mxu0
    %v7504 = vadd.f32 0.0, %v7503
    %v7505 = vpop.f32.mrf.mxu0
    %7506 = vdwg.mxu0
    %v7507 = vadd.f32 %v7249, %v7469
    %v7508 = vadd.f32 %v7250, %v7474
    %v7509 = vadd.f32 %v7251, %v7479
    %v7510 = vadd.f32 %v7252, %v7484
    %v7511 = vadd.f32 %v7253, %v7489
    %v7512 = vadd.f32 %v7254, %v7494
    %v7513 = vadd.f32 %v7255, %v7499
    %v7514 = vadd.f32 %v7256, %v7504
    %v7515 = vmax.f32 %v6249, %v6377
    %v7516 = vmax.f32 %v6250, %v6378
    %v7517 = vmax.f32 %v6251, %v6379
    %v7518 = vmax.f32 %v6252, %v6380
    %v7519 = vmax.f32 %v6253, %v6381
    %v7520 = vmax.f32 %v6254, %v6382
    %v7521 = vmax.f32 %v6255, %v6383
    %v7522 = vmax.f32 %v6256, %v6384
    %v7523 = vmax.f32 %v7394, %v7507
    %v7524 = vmax.f32 %v7395, %v7508
    %v7525 = vmax.f32 %v7396, %v7509
    %v7526 = vmax.f32 %v7397, %v7510
    %v7527 = vmax.f32 %v7398, %v7511
    %v7528 = vmax.f32 %v7399, %v7512
    %v7529 = vmax.f32 %v7400, %v7513
    %v7530 = vmax.f32 %v7401, %v7514
    %v7531 = vmax.f32 %v7515, %v7523
    %v7532 = vmax.f32 %v7516, %v7524
    %v7533 = vmax.f32 %v7517, %v7525
    %v7534 = vmax.f32 %v7518, %v7526
    %v7535 = vmax.f32 %v7519, %v7527
    %v7536 = vmax.f32 %v7520, %v7528
    %v7537 = vmax.f32 %v7521, %v7529
    %v7538 = vmax.f32 %v7522, %v7530
    %v7539 = vld [vmem:[%s4] sm:$0x1]
    %v7541 = vlaneseq
    %v7542 = vshrl.u32 %v7541, 7
    %v7543 = vsub.s32 0, %v7542
    %v7544 = vrot.slane %v7539, %v7543
    %v7546 = vadd.f32 %v7531, %v7544
    %v7547 = vadd.f32 %v7532, %v7544
    %v7548 = vadd.f32 %v7533, %v7544
    %v7549 = vadd.f32 %v7534, %v7544
    %v7550 = vadd.f32 %v7535, %v7544
    %v7551 = vadd.f32 %v7536, %v7544
    %v7552 = vadd.f32 %v7537, %v7544
    %v7553 = vadd.f32 %v7538, %v7544
    %v7554 = vmax.f32 %v7546, 0.0
    %v7555 = vmax.f32 %v7547, 0.0
    %v7556 = vmax.f32 %v7548, 0.0
    %v7557 = vmax.f32 %v7549, 0.0
    %v7558 = vmax.f32 %v7550, 0.0
    %v7559 = vmax.f32 %v7551, 0.0
    %v7560 = vmax.f32 %v7552, 0.0
    %v7561 = vmax.f32 %v7553, 0.0
    %v7562 = vld [vmem:[%s5] sm:$0xff]
    %v7563 = vld [vmem:[%s5 + $0x8] sm:$0xff]
    %v7564 = vld [vmem:[%s5 + $0x10] sm:$0xff]
    %v7565 = vld [vmem:[%s5 + $0x18] sm:$0xff]
    %v7566 = vld [vmem:[%s5 + $0x20] sm:$0xff]
    %v7567 = vld [vmem:[%s5 + $0x28] sm:$0xff]
    %v7568 = vld [vmem:[%s5 + $0x30] sm:$0xff]
    %v7569 = vld [vmem:[%s5 + $0x38] sm:$0xff]
    %v7570 = vld [vmem:[%s5 + $0x40] sm:$0xff]
    %v7571 = vld [vmem:[%s5 + $0x48] sm:$0xff]
    %s7572 = scalar_lea.vmem %s5, 80
    %v7573 = vld [vmem:[%s7572] sm:$0xff]
    %v7574 = vld [vmem:[%s7572 + $0x8] sm:$0xff]
    %v7575 = vld [vmem:[%s7572 + $0x10] sm:$0xff]
    %v7576 = vld [vmem:[%s7572 + $0x18] sm:$0xff]
    %v7577 = vld [vmem:[%s7572 + $0x20] sm:$0xff]
    %v7578 = vld [vmem:[%s7572 + $0x28] sm:$0xff]
    %v7579 = vld [vmem:[%s7572 + $0x30] sm:$0xff]
    %v7580 = vld [vmem:[%s7572 + $0x38] sm:$0xff]
    %v7581 = vld [vmem:[%s7572 + $0x40] sm:$0xff]
    %v7582 = vld [vmem:[%s7572 + $0x48] sm:$0xff]
    %v7591 = vrot.slane %v7554, 1
    %vm7592 = vcmask 1041409
    %v7593 = vsel %vm7592, %v7555, %v7591
    %v7594 = vrot.slane %v7556, 7
    %vm7595 = vcmask 1042434
    %v7596 = vsel %vm7595, %v7594, %v7593
    %v7597 = vrot.slane %v7557, 6
    %vm7598 = vcmask 1043459
    %v7599 = vsel %vm7598, %v7597, %v7596
    %v7600 = vrot.slane %v7558, 5
    %vm7601 = vcmask 1044484
    %v7602 = vsel %vm7601, %v7600, %v7599
    %v7603 = vrot.slane %v7559, 4
    %vm7604 = vcmask 1045509
    %v7605 = vsel %vm7604, %v7603, %v7602
    %v7606 = vrot.slane %v7560, 3
    %vm7607 = vcmask 1046534
    %v7608 = vsel %vm7607, %v7606, %v7605
    %v7609 = vrot.slane %v7561, 2
    %vm7610 = vcmask 1047559
    %v7611 = vsel %vm7610, %v7609, %v7608
    %vm7612 = vcmask 654336
    %v7613 = vsel %vm7612, %v7611, 0
    %7615 = vmatprep.subr.mxu0 0.0
    %7616 = vmatpush1.msra.mxu0 0.0
    %7617 = vmatprep.subr.mxu0 0.0
    %7618 = vmatpush1.msra.mxu0 0.0
    %7619 = vmatprep.subr.mxu0 0.0
    %7620 = vmatpush1.msra.mxu0 0.0
    %7621 = vmatprep.subr.mxu0 0.0
    %7622 = vmatpush1.msra.mxu0 0.0
    %7623 = vmatprep.subr.mxu0 0.0
    %7624 = vmatpush1.msra.mxu0 0.0
    %7625 = vmatprep.subr.mxu0 0.0
    %7626 = vmatpush1.msra.mxu0 0.0
    %7627 = vmatprep.subr.mxu0 0.0
    %7628 = vmatpush1.msra.mxu0 %v7582
    %7629 = vmatprep.subr.mxu0 0.0
    %7630 = vmatpush1.msra.mxu0 %v7581
    %7631 = vmatprep.subr.mxu0 0.0
    %7632 = vmatpush1.msra.mxu0 %v7580
    %7633 = vmatprep.subr.mxu0 0.0
    %7634 = vmatpush1.msra.mxu0 %v7579
    %7635 = vmatprep.subr.mxu0 0.0
    %7636 = vmatpush1.msra.mxu0 %v7578
    %7637 = vmatprep.subr.mxu0 0.0
    %7638 = vmatpush1.msra.mxu0 %v7577
    %7639 = vmatprep.subr.mxu0 0.0
    %7640 = vmatpush1.msra.mxu0 %v7576
    %7641 = vmatprep.subr.mxu0 0.0
    %7642 = vmatpush1.msra.mxu0 %v7575
    %7643 = vmatprep.subr.mxu0 0.0
    %7644 = vmatpush1.msra.mxu0 %v7574
    %7645 = vmatprep.subr.mxu0 0.0
    %7646 = vmatpush1.msra.mxu0 %v7573
    %7647 = vmatprep.subr.mxu0 0.0
    %7648 = vmatpush2.msra.mxu0 0.0
    %7649 = vmatprep.subr.mxu0 0.0
    %7650 = vmatpush2.msra.mxu0 0.0
    %7651 = vmatprep.subr.mxu0 0.0
    %7652 = vmatpush2.msra.mxu0 0.0
    %7653 = vmatprep.subr.mxu0 0.0
    %7654 = vmatpush2.msra.mxu0 0.0
    %7655 = vmatprep.subr.mxu0 0.0
    %7656 = vmatpush2.msra.mxu0 0.0
    %7657 = vmatprep.subr.mxu0 0.0
    %7658 = vmatpush2.msra.mxu0 0.0
    %7659 = vmatprep.subr.mxu0 0.0
    %7660 = vmatpush2.msra.mxu0 0.0
    %7661 = vmatprep.subr.mxu0 0.0
    %7662 = vmatpush2.msra.mxu0 0.0
    %7663 = vmatprep.subr.mxu0 0.0
    %7664 = vmatpush2.msra.mxu0 0.0
    %7665 = vmatprep.subr.mxu0 0.0
    %7666 = vmatpush2.msra.mxu0 0.0
    %7667 = vmatprep.subr.mxu0 0.0
    %7668 = vmatpush2.msra.mxu0 0.0
    %7669 = vmatprep.subr.mxu0 0.0
    %7670 = vmatpush2.msra.mxu0 0.0
    %7671 = vmatprep.subr.mxu0 0.0
    %7672 = vmatpush2.msra.mxu0 0.0
    %7673 = vmatprep.subr.mxu0 0.0
    %7674 = vmatpush2.msra.mxu0 0.0
    %7675 = vmatprep.subr.mxu0 0.0
    %7676 = vmatpush2.msra.mxu0 0.0
    %7677 = vmatprep.subr.mxu0 0.0
    %7678 = vmatpush2.msra.mxu0 0.0
    %7679 = vmatprep.mubr.f32.mxu0 0.0
    %7680 = vmatmul.mubr.f32.gmra.mxu0 %v7613
    %v7681 = vpop.f32.mrf.mxu0
    %v7682 = vadd.f32 0.0, %v7681
    %v7683 = vpop.f32.mrf.mxu0
    %7684 = vdwg.mxu0
    %v7685 = vrot.slane %v7555, 7
    %v7686 = vsel %vm7592, %v7685, %v7554
    %v7687 = vrot.slane %v7556, 6
    %v7688 = vsel %vm7595, %v7687, %v7686
    %v7689 = vrot.slane %v7557, 5
    %v7690 = vsel %vm7598, %v7689, %v7688
    %v7691 = vrot.slane %v7558, 4
    %v7692 = vsel %vm7601, %v7691, %v7690
    %v7693 = vrot.slane %v7559, 3
    %v7694 = vsel %vm7604, %v7693, %v7692
    %v7695 = vrot.slane %v7560, 2
    %v7696 = vsel %vm7607, %v7695, %v7694
    %v7697 = vrot.slane %v7561, 1
    %v7698 = vsel %vm7610, %v7697, %v7696
    %v7699 = vsel %vm7612, %v7698, 0
    %7701 = vmatprep.subr.mxu0 0.0
    %7702 = vmatpush1.msra.mxu0 0.0
    %7703 = vmatprep.subr.mxu0 0.0
    %7704 = vmatpush1.msra.mxu0 0.0
    %7705 = vmatprep.subr.mxu0 0.0
    %7706 = vmatpush1.msra.mxu0 0.0
    %7707 = vmatprep.subr.mxu0 0.0
    %7708 = vmatpush1.msra.mxu0 0.0
    %7709 = vmatprep.subr.mxu0 0.0
    %7710 = vmatpush1.msra.mxu0 0.0
    %7711 = vmatprep.subr.mxu0 0.0
    %7712 = vmatpush1.msra.mxu0 0.0
    %7713 = vmatprep.subr.mxu0 0.0
    %7714 = vmatpush1.msra.mxu0 %v7571
    %7715 = vmatprep.subr.mxu0 0.0
    %7716 = vmatpush1.msra.mxu0 %v7570
    %7717 = vmatprep.subr.mxu0 0.0
    %7718 = vmatpush1.msra.mxu0 %v7569
    %7719 = vmatprep.subr.mxu0 0.0
    %7720 = vmatpush1.msra.mxu0 %v7568
    %7721 = vmatprep.subr.mxu0 0.0
    %7722 = vmatpush1.msra.mxu0 %v7567
    %7723 = vmatprep.subr.mxu0 0.0
    %7724 = vmatpush1.msra.mxu0 %v7566
    %7725 = vmatprep.subr.mxu0 0.0
    %7726 = vmatpush1.msra.mxu0 %v7565
    %7727 = vmatprep.subr.mxu0 0.0
    %7728 = vmatpush1.msra.mxu0 %v7564
    %7729 = vmatprep.subr.mxu0 0.0
    %7730 = vmatpush1.msra.mxu0 %v7563
    %7731 = vmatprep.subr.mxu0 0.0
    %7732 = vmatpush1.msra.mxu0 %v7562
    %7733 = vmatprep.subr.mxu0 0.0
    %7734 = vmatpush2.msra.mxu0 0.0
    %7735 = vmatprep.subr.mxu0 0.0
    %7736 = vmatpush2.msra.mxu0 0.0
    %7737 = vmatprep.subr.mxu0 0.0
    %7738 = vmatpush2.msra.mxu0 0.0
    %7739 = vmatprep.subr.mxu0 0.0
    %7740 = vmatpush2.msra.mxu0 0.0
    %7741 = vmatprep.subr.mxu0 0.0
    %7742 = vmatpush2.msra.mxu0 0.0
    %7743 = vmatprep.subr.mxu0 0.0
    %7744 = vmatpush2.msra.mxu0 0.0
    %7745 = vmatprep.subr.mxu0 0.0
    %7746 = vmatpush2.msra.mxu0 0.0
    %7747 = vmatprep.subr.mxu0 0.0
    %7748 = vmatpush2.msra.mxu0 0.0
    %7749 = vmatprep.subr.mxu0 0.0
    %7750 = vmatpush2.msra.mxu0 0.0
    %7751 = vmatprep.subr.mxu0 0.0
    %7752 = vmatpush2.msra.mxu0 0.0
    %7753 = vmatprep.subr.mxu0 0.0
    %7754 = vmatpush2.msra.mxu0 0.0
    %7755 = vmatprep.subr.mxu0 0.0
    %7756 = vmatpush2.msra.mxu0 0.0
    %7757 = vmatprep.subr.mxu0 0.0
    %7758 = vmatpush2.msra.mxu0 0.0
    %7759 = vmatprep.subr.mxu0 0.0
    %7760 = vmatpush2.msra.mxu0 0.0
    %7761 = vmatprep.subr.mxu0 0.0
    %7762 = vmatpush2.msra.mxu0 0.0
    %7763 = vmatprep.subr.mxu0 0.0
    %7764 = vmatpush2.msra.mxu0 0.0
    %7765 = vmatprep.mubr.f32.mxu0 0.0
    %7766 = vmatmul.mubr.f32.gmra.mxu0 %v7699
    %v7767 = vpop.f32.mrf.mxu0
    %v7768 = vadd.f32 %v7682, %v7767
    %v7769 = vpop.f32.mrf.mxu0
    %7770 = vdwg.mxu0
    %s7771 = scalar_lea.vmem %s5, 160
    %v7772 = vld [vmem:[%s7771] sm:$0xff]
    %v7773 = vld [vmem:[%s7771 + $0x8] sm:$0xff]
    %v7774 = vld [vmem:[%s7771 + $0x10] sm:$0xff]
    %v7775 = vld [vmem:[%s7771 + $0x18] sm:$0xff]
    %v7776 = vld [vmem:[%s7771 + $0x20] sm:$0xff]
    %v7777 = vld [vmem:[%s7771 + $0x28] sm:$0xff]
    %v7778 = vld [vmem:[%s7771 + $0x30] sm:$0xff]
    %v7779 = vld [vmem:[%s7771 + $0x38] sm:$0xff]
    %v7780 = vld [vmem:[%s7771 + $0x40] sm:$0xff]
    %v7781 = vld [vmem:[%s7771 + $0x48] sm:$0xff]
    %v7782 = vrot.slane %v7554, 2
    %v7783 = vrot.slane %v7555, 1
    %v7784 = vsel %vm7592, %v7783, %v7782
    %v7785 = vsel %vm7595, %v7556, %v7784
    %v7786 = vrot.slane %v7557, 7
    %v7787 = vsel %vm7598, %v7786, %v7785
    %v7788 = vrot.slane %v7558, 6
    %v7789 = vsel %vm7601, %v7788, %v7787
    %v7790 = vrot.slane %v7559, 5
    %v7791 = vsel %vm7604, %v7790, %v7789
    %v7792 = vrot.slane %v7560, 4
    %v7793 = vsel %vm7607, %v7792, %v7791
    %v7794 = vrot.slane %v7561, 3
    %v7795 = vsel %vm7610, %v7794, %v7793
    %v7796 = vsel %vm7612, %v7795, 0
    %7798 = vmatprep.subr.mxu0 0.0
    %7799 = vmatpush1.msra.mxu0 0.0
    %7800 = vmatprep.subr.mxu0 0.0
    %7801 = vmatpush1.msra.mxu0 0.0
    %7802 = vmatprep.subr.mxu0 0.0
    %7803 = vmatpush1.msra.mxu0 0.0
    %7804 = vmatprep.subr.mxu0 0.0
    %7805 = vmatpush1.msra.mxu0 0.0
    %7806 = vmatprep.subr.mxu0 0.0
    %7807 = vmatpush1.msra.mxu0 0.0
    %7808 = vmatprep.subr.mxu0 0.0
    %7809 = vmatpush1.msra.mxu0 0.0
    %7810 = vmatprep.subr.mxu0 0.0
    %7811 = vmatpush1.msra.mxu0 %v7781
    %7812 = vmatprep.subr.mxu0 0.0
    %7813 = vmatpush1.msra.mxu0 %v7780
    %7814 = vmatprep.subr.mxu0 0.0
    %7815 = vmatpush1.msra.mxu0 %v7779
    %7816 = vmatprep.subr.mxu0 0.0
    %7817 = vmatpush1.msra.mxu0 %v7778
    %7818 = vmatprep.subr.mxu0 0.0
    %7819 = vmatpush1.msra.mxu0 %v7777
    %7820 = vmatprep.subr.mxu0 0.0
    %7821 = vmatpush1.msra.mxu0 %v7776
    %7822 = vmatprep.subr.mxu0 0.0
    %7823 = vmatpush1.msra.mxu0 %v7775
    %7824 = vmatprep.subr.mxu0 0.0
    %7825 = vmatpush1.msra.mxu0 %v7774
    %7826 = vmatprep.subr.mxu0 0.0
    %7827 = vmatpush1.msra.mxu0 %v7773
    %7828 = vmatprep.subr.mxu0 0.0
    %7829 = vmatpush1.msra.mxu0 %v7772
    %7830 = vmatprep.subr.mxu0 0.0
    %7831 = vmatpush2.msra.mxu0 0.0
    %7832 = vmatprep.subr.mxu0 0.0
    %7833 = vmatpush2.msra.mxu0 0.0
    %7834 = vmatprep.subr.mxu0 0.0
    %7835 = vmatpush2.msra.mxu0 0.0
    %7836 = vmatprep.subr.mxu0 0.0
    %7837 = vmatpush2.msra.mxu0 0.0
    %7838 = vmatprep.subr.mxu0 0.0
    %7839 = vmatpush2.msra.mxu0 0.0
    %7840 = vmatprep.subr.mxu0 0.0
    %7841 = vmatpush2.msra.mxu0 0.0
    %7842 = vmatprep.subr.mxu0 0.0
    %7843 = vmatpush2.msra.mxu0 0.0
    %7844 = vmatprep.subr.mxu0 0.0
    %7845 = vmatpush2.msra.mxu0 0.0
    %7846 = vmatprep.subr.mxu0 0.0
    %7847 = vmatpush2.msra.mxu0 0.0
    %7848 = vmatprep.subr.mxu0 0.0
    %7849 = vmatpush2.msra.mxu0 0.0
    %7850 = vmatprep.subr.mxu0 0.0
    %7851 = vmatpush2.msra.mxu0 0.0
    %7852 = vmatprep.subr.mxu0 0.0
    %7853 = vmatpush2.msra.mxu0 0.0
    %7854 = vmatprep.subr.mxu0 0.0
    %7855 = vmatpush2.msra.mxu0 0.0
    %7856 = vmatprep.subr.mxu0 0.0
    %7857 = vmatpush2.msra.mxu0 0.0
    %7858 = vmatprep.subr.mxu0 0.0
    %7859 = vmatpush2.msra.mxu0 0.0
    %7860 = vmatprep.subr.mxu0 0.0
    %7861 = vmatpush2.msra.mxu0 0.0
    %7862 = vmatprep.mubr.f32.mxu0 0.0
    %7863 = vmatmul.mubr.f32.gmra.mxu0 %v7796
    %v7864 = vpop.f32.mrf.mxu0
    %v7865 = vadd.f32 0.0, %v7864
    %v7866 = vpop.f32.mrf.mxu0
    %7867 = vdwg.mxu0
    %v7868 = vadd.f32 %v7768, %v7865
    %s7869 = scalar_lea.vmem %s5, 240
    %v7870 = vld [vmem:[%s7869] sm:$0xff]
    %v7871 = vld [vmem:[%s7869 + $0x8] sm:$0xff]
    %v7872 = vld [vmem:[%s7869 + $0x10] sm:$0xff]
    %v7873 = vld [vmem:[%s7869 + $0x18] sm:$0xff]
    %v7874 = vld [vmem:[%s7869 + $0x20] sm:$0xff]
    %v7875 = vld [vmem:[%s7869 + $0x28] sm:$0xff]
    %v7876 = vld [vmem:[%s7869 + $0x30] sm:$0xff]
    %v7877 = vld [vmem:[%s7869 + $0x38] sm:$0xff]
    %v7878 = vld [vmem:[%s7869 + $0x40] sm:$0xff]
    %v7879 = vld [vmem:[%s7869 + $0x48] sm:$0xff]
    %v7880 = vrot.slane %v7554, 3
    %v7881 = vrot.slane %v7555, 2
    %v7882 = vsel %vm7592, %v7881, %v7880
    %v7883 = vrot.slane %v7556, 1
    %v7884 = vsel %vm7595, %v7883, %v7882
    %v7885 = vsel %vm7598, %v7557, %v7884
    %v7886 = vrot.slane %v7558, 7
    %v7887 = vsel %vm7601, %v7886, %v7885
    %v7888 = vrot.slane %v7559, 6
    %v7889 = vsel %vm7604, %v7888, %v7887
    %v7890 = vrot.slane %v7560, 5
    %v7891 = vsel %vm7607, %v7890, %v7889
    %v7892 = vrot.slane %v7561, 4
    %v7893 = vsel %vm7610, %v7892, %v7891
    %v7894 = vsel %vm7612, %v7893, 0
    %7896 = vmatprep.subr.mxu0 0.0
    %7897 = vmatpush1.msra.mxu0 0.0
    %7898 = vmatprep.subr.mxu0 0.0
    %7899 = vmatpush1.msra.mxu0 0.0
    %7900 = vmatprep.subr.mxu0 0.0
    %7901 = vmatpush1.msra.mxu0 0.0
    %7902 = vmatprep.subr.mxu0 0.0
    %7903 = vmatpush1.msra.mxu0 0.0
    %7904 = vmatprep.subr.mxu0 0.0
    %7905 = vmatpush1.msra.mxu0 0.0
    %7906 = vmatprep.subr.mxu0 0.0
    %7907 = vmatpush1.msra.mxu0 0.0
    %7908 = vmatprep.subr.mxu0 0.0
    %7909 = vmatpush1.msra.mxu0 %v7879
    %7910 = vmatprep.subr.mxu0 0.0
    %7911 = vmatpush1.msra.mxu0 %v7878
    %7912 = vmatprep.subr.mxu0 0.0
    %7913 = vmatpush1.msra.mxu0 %v7877
    %7914 = vmatprep.subr.mxu0 0.0
    %7915 = vmatpush1.msra.mxu0 %v7876
    %7916 = vmatprep.subr.mxu0 0.0
    %7917 = vmatpush1.msra.mxu0 %v7875
    %7918 = vmatprep.subr.mxu0 0.0
    %7919 = vmatpush1.msra.mxu0 %v7874
    %7920 = vmatprep.subr.mxu0 0.0
    %7921 = vmatpush1.msra.mxu0 %v7873
    %7922 = vmatprep.subr.mxu0 0.0
    %7923 = vmatpush1.msra.mxu0 %v7872
    %7924 = vmatprep.subr.mxu0 0.0
    %7925 = vmatpush1.msra.mxu0 %v7871
    %7926 = vmatprep.subr.mxu0 0.0
    %7927 = vmatpush1.msra.mxu0 %v7870
    %7928 = vmatprep.subr.mxu0 0.0
    %7929 = vmatpush2.msra.mxu0 0.0
    %7930 = vmatprep.subr.mxu0 0.0
    %7931 = vmatpush2.msra.mxu0 0.0
    %7932 = vmatprep.subr.mxu0 0.0
    %7933 = vmatpush2.msra.mxu0 0.0
    %7934 = vmatprep.subr.mxu0 0.0
    %7935 = vmatpush2.msra.mxu0 0.0
    %7936 = vmatprep.subr.mxu0 0.0
    %7937 = vmatpush2.msra.mxu0 0.0
    %7938 = vmatprep.subr.mxu0 0.0
    %7939 = vmatpush2.msra.mxu0 0.0
    %7940 = vmatprep.subr.mxu0 0.0
    %7941 = vmatpush2.msra.mxu0 0.0
    %7942 = vmatprep.subr.mxu0 0.0
    %7943 = vmatpush2.msra.mxu0 0.0
    %7944 = vmatprep.subr.mxu0 0.0
    %7945 = vmatpush2.msra.mxu0 0.0
    %7946 = vmatprep.subr.mxu0 0.0
    %7947 = vmatpush2.msra.mxu0 0.0
    %7948 = vmatprep.subr.mxu0 0.0
    %7949 = vmatpush2.msra.mxu0 0.0
    %7950 = vmatprep.subr.mxu0 0.0
    %7951 = vmatpush2.msra.mxu0 0.0
    %7952 = vmatprep.subr.mxu0 0.0
    %7953 = vmatpush2.msra.mxu0 0.0
    %7954 = vmatprep.subr.mxu0 0.0
    %7955 = vmatpush2.msra.mxu0 0.0
    %7956 = vmatprep.subr.mxu0 0.0
    %7957 = vmatpush2.msra.mxu0 0.0
    %7958 = vmatprep.subr.mxu0 0.0
    %7959 = vmatpush2.msra.mxu0 0.0
    %7960 = vmatprep.mubr.f32.mxu0 0.0
    %7961 = vmatmul.mubr.f32.gmra.mxu0 %v7894
    %v7962 = vpop.f32.mrf.mxu0
    %v7963 = vadd.f32 0.0, %v7962
    %v7964 = vpop.f32.mrf.mxu0
    %7965 = vdwg.mxu0
    %v7966 = vadd.f32 %v7868, %v7963
    %s7967 = scalar_lea.vmem %s5, 320
    %v7968 = vld [vmem:[%s7967] sm:$0xff]
    %v7969 = vld [vmem:[%s7967 + $0x8] sm:$0xff]
    %v7970 = vld [vmem:[%s7967 + $0x10] sm:$0xff]
    %v7971 = vld [vmem:[%s7967 + $0x18] sm:$0xff]
    %v7972 = vld [vmem:[%s7967 + $0x20] sm:$0xff]
    %v7973 = vld [vmem:[%s7967 + $0x28] sm:$0xff]
    %v7974 = vld [vmem:[%s7967 + $0x30] sm:$0xff]
    %v7975 = vld [vmem:[%s7967 + $0x38] sm:$0xff]
    %v7976 = vld [vmem:[%s7967 + $0x40] sm:$0xff]
    %v7977 = vld [vmem:[%s7967 + $0x48] sm:$0xff]
    %v7978 = vrot.slane %v7554, 4
    %v7979 = vrot.slane %v7555, 3
    %v7980 = vsel %vm7592, %v7979, %v7978
    %v7981 = vrot.slane %v7556, 2
    %v7982 = vsel %vm7595, %v7981, %v7980
    %v7983 = vrot.slane %v7557, 1
    %v7984 = vsel %vm7598, %v7983, %v7982
    %v7985 = vsel %vm7601, %v7558, %v7984
    %v7986 = vrot.slane %v7559, 7
    %v7987 = vsel %vm7604, %v7986, %v7985
    %v7988 = vrot.slane %v7560, 6
    %v7989 = vsel %vm7607, %v7988, %v7987
    %v7990 = vrot.slane %v7561, 5
    %v7991 = vsel %vm7610, %v7990, %v7989
    %v7992 = vsel %vm7612, %v7991, 0
    %7994 = vmatprep.subr.mxu0 0.0
    %7995 = vmatpush1.msra.mxu0 0.0
    %7996 = vmatprep.subr.mxu0 0.0
    %7997 = vmatpush1.msra.mxu0 0.0
    %7998 = vmatprep.subr.mxu0 0.0
    %7999 = vmatpush1.msra.mxu0 0.0
    %8000 = vmatprep.subr.mxu0 0.0
    %8001 = vmatpush1.msra.mxu0 0.0
    %8002 = vmatprep.subr.mxu0 0.0
    %8003 = vmatpush1.msra.mxu0 0.0
    %8004 = vmatprep.subr.mxu0 0.0
    %8005 = vmatpush1.msra.mxu0 0.0
    %8006 = vmatprep.subr.mxu0 0.0
    %8007 = vmatpush1.msra.mxu0 %v7977
    %8008 = vmatprep.subr.mxu0 0.0
    %8009 = vmatpush1.msra.mxu0 %v7976
    %8010 = vmatprep.subr.mxu0 0.0
    %8011 = vmatpush1.msra.mxu0 %v7975
    %8012 = vmatprep.subr.mxu0 0.0
    %8013 = vmatpush1.msra.mxu0 %v7974
    %8014 = vmatprep.subr.mxu0 0.0
    %8015 = vmatpush1.msra.mxu0 %v7973
    %8016 = vmatprep.subr.mxu0 0.0
    %8017 = vmatpush1.msra.mxu0 %v7972
    %8018 = vmatprep.subr.mxu0 0.0
    %8019 = vmatpush1.msra.mxu0 %v7971
    %8020 = vmatprep.subr.mxu0 0.0
    %8021 = vmatpush1.msra.mxu0 %v7970
    %8022 = vmatprep.subr.mxu0 0.0
    %8023 = vmatpush1.msra.mxu0 %v7969
    %8024 = vmatprep.subr.mxu0 0.0
    %8025 = vmatpush1.msra.mxu0 %v7968
    %8026 = vmatprep.subr.mxu0 0.0
    %8027 = vmatpush2.msra.mxu0 0.0
    %8028 = vmatprep.subr.mxu0 0.0
    %8029 = vmatpush2.msra.mxu0 0.0
    %8030 = vmatprep.subr.mxu0 0.0
    %8031 = vmatpush2.msra.mxu0 0.0
    %8032 = vmatprep.subr.mxu0 0.0
    %8033 = vmatpush2.msra.mxu0 0.0
    %8034 = vmatprep.subr.mxu0 0.0
    %8035 = vmatpush2.msra.mxu0 0.0
    %8036 = vmatprep.subr.mxu0 0.0
    %8037 = vmatpush2.msra.mxu0 0.0
    %8038 = vmatprep.subr.mxu0 0.0
    %8039 = vmatpush2.msra.mxu0 0.0
    %8040 = vmatprep.subr.mxu0 0.0
    %8041 = vmatpush2.msra.mxu0 0.0
    %8042 = vmatprep.subr.mxu0 0.0
    %8043 = vmatpush2.msra.mxu0 0.0
    %8044 = vmatprep.subr.mxu0 0.0
    %8045 = vmatpush2.msra.mxu0 0.0
    %8046 = vmatprep.subr.mxu0 0.0
    %8047 = vmatpush2.msra.mxu0 0.0
    %8048 = vmatprep.subr.mxu0 0.0
    %8049 = vmatpush2.msra.mxu0 0.0
    %8050 = vmatprep.subr.mxu0 0.0
    %8051 = vmatpush2.msra.mxu0 0.0
    %8052 = vmatprep.subr.mxu0 0.0
    %8053 = vmatpush2.msra.mxu0 0.0
    %8054 = vmatprep.subr.mxu0 0.0
    %8055 = vmatpush2.msra.mxu0 0.0
    %8056 = vmatprep.subr.mxu0 0.0
    %8057 = vmatpush2.msra.mxu0 0.0
    %8058 = vmatprep.mubr.f32.mxu0 0.0
    %8059 = vmatmul.mubr.f32.gmra.mxu0 %v7992
    %v8060 = vpop.f32.mrf.mxu0
    %v8061 = vadd.f32 0.0, %v8060
    %v8062 = vpop.f32.mrf.mxu0
    %8063 = vdwg.mxu0
    %v8064 = vadd.f32 %v7966, %v8061
    %v8065 = vld [vmem:[%s6] sm:$0x1]
    %v8067 = vlaneseq
    %v8068 = vshrl.u32 %v8067, 7
    %v8069 = vsub.s32 0, %v8068
    %v8070 = vrot.slane %v8065, %v8069
    %v8072 = vadd.f32 %v8064, %v8070
    %v8073 = vmax.f32 %v8072, 0.0
    %v8074 = vld [vmem:[%s7] sm:$0xff]
    %v8075 = vld [vmem:[%s7 + $0x8] sm:$0xff]
    %v8076 = vld [vmem:[%s7 + $0x10] sm:$0xff]
    %v8077 = vld [vmem:[%s7 + $0x18] sm:$0xff]
    %v8078 = vld [vmem:[%s7 + $0x20] sm:$0xff]
    %v8079 = vld [vmem:[%s7 + $0x28] sm:$0xff]
    %v8080 = vld [vmem:[%s7 + $0x30] sm:$0xff]
    %v8081 = vld [vmem:[%s7 + $0x38] sm:$0xff]
    %v8082 = vld [vmem:[%s7 + $0x40] sm:$0xff]
    %v8083 = vld [vmem:[%s7 + $0x48] sm:$0xff]
    %v8084 = vld [vmem:[%s7 + $0x50] sm:$0xff]
    %v8085 = vld [vmem:[%s7 + $0x58] sm:$0xff]
    %v8086 = vld [vmem:[%s7 + $0x60] sm:$0xff]
    %v8087 = vld [vmem:[%s7 + $0x68] sm:$0xff]
    %v8088 = vld [vmem:[%s7 + $0x70] sm:$0xff]
    %v8089 = vld [vmem:[%s7 + $0x78] sm:$0xff]
    %v8090 = vld [vmem:[%s8] sm:$0x1]
    %v8092 = vlaneseq
    %v8093 = vshrl.u32 %v8092, 7
    %v8094 = vsub.s32 0, %v8093
    %v8095 = vrot.slane %v8090, %v8094
    %8097 = vmatprep.subr.mxu0 0.0
    %8098 = vmatpush1.msra.mxu0 %v8089
    %8099 = vmatprep.subr.mxu0 0.0
    %8100 = vmatpush1.msra.mxu0 %v8088
    %8101 = vmatprep.subr.mxu0 0.0
    %8102 = vmatpush1.msra.mxu0 %v8087
    %8103 = vmatprep.subr.mxu0 0.0
    %8104 = vmatpush1.msra.mxu0 %v8086
    %8105 = vmatprep.subr.mxu0 0.0
    %8106 = vmatpush1.msra.mxu0 %v8085
    %8107 = vmatprep.subr.mxu0 0.0
    %8108 = vmatpush1.msra.mxu0 %v8084
    %8109 = vmatprep.subr.mxu0 0.0
    %8110 = vmatpush1.msra.mxu0 %v8083
    %8111 = vmatprep.subr.mxu0 0.0
    %8112 = vmatpush1.msra.mxu0 %v8082
    %8113 = vmatprep.subr.mxu0 0.0
    %8114 = vmatpush1.msra.mxu0 %v8081
    %8115 = vmatprep.subr.mxu0 0.0
    %8116 = vmatpush1.msra.mxu0 %v8080
    %8117 = vmatprep.subr.mxu0 0.0
    %8118 = vmatpush1.msra.mxu0 %v8079
    %8119 = vmatprep.subr.mxu0 0.0
    %8120 = vmatpush1.msra.mxu0 %v8078
    %8121 = vmatprep.subr.mxu0 0.0
    %8122 = vmatpush1.msra.mxu0 %v8077
    %8123 = vmatprep.subr.mxu0 0.0
    %8124 = vmatpush1.msra.mxu0 %v8076
    %8125 = vmatprep.subr.mxu0 0.0
    %8126 = vmatpush1.msra.mxu0 %v8075
    %8127 = vmatprep.subr.mxu0 0.0
    %8128 = vmatpush1.msra.mxu0 %v8074
    %8129 = vmatprep.subr.mxu0 0.0
    %8130 = vmatpush2.msra.mxu0 0.0
    %8131 = vmatprep.subr.mxu0 0.0
    %8132 = vmatpush2.msra.mxu0 0.0
    %8133 = vmatprep.subr.mxu0 0.0
    %8134 = vmatpush2.msra.mxu0 0.0
    %8135 = vmatprep.subr.mxu0 0.0
    %8136 = vmatpush2.msra.mxu0 0.0
    %8137 = vmatprep.subr.mxu0 0.0
    %8138 = vmatpush2.msra.mxu0 0.0
    %8139 = vmatprep.subr.mxu0 0.0
    %8140 = vmatpush2.msra.mxu0 0.0
    %8141 = vmatprep.subr.mxu0 0.0
    %8142 = vmatpush2.msra.mxu0 0.0
    %8143 = vmatprep.subr.mxu0 0.0
    %8144 = vmatpush2.msra.mxu0 0.0
    %8145 = vmatprep.subr.mxu0 0.0
    %8146 = vmatpush2.msra.mxu0 0.0
    %8147 = vmatprep.subr.mxu0 0.0
    %8148 = vmatpush2.msra.mxu0 0.0
    %8149 = vmatprep.subr.mxu0 0.0
    %8150 = vmatpush2.msra.mxu0 0.0
    %8151 = vmatprep.subr.mxu0 0.0
    %8152 = vmatpush2.msra.mxu0 0.0
    %8153 = vmatprep.subr.mxu0 0.0
    %8154 = vmatpush2.msra.mxu0 0.0
    %8155 = vmatprep.subr.mxu0 0.0
    %8156 = vmatpush2.msra.mxu0 0.0
    %8157 = vmatprep.subr.mxu0 0.0
    %8158 = vmatpush2.msra.mxu0 0.0
    %8159 = vmatprep.subr.mxu0 0.0
    %8160 = vmatpush2.msra.mxu0 0.0
    %8161 = vmatprep.mubr.f32.mxu0 0.0
    %8162 = vmatmul.mubr.f32.gmra.mxu0 %v8073
    %v8163 = vpop.f32.mrf.mxu0
    %v8164 = vadd.f32 %v8095, %v8163
    %v8165 = vpop.f32.mrf.mxu0
    %8166 = vdwg.mxu0
    %v8167 = vmax.f32 %v8164, 0.0
    %v8168 = vld [vmem:[#allocation4] sm:$0xff]
    %v8169 = vld [vmem:[#allocation4 + $0x8] sm:$0xff]
    %v8170 = vld [vmem:[#allocation4 + $0x10] sm:$0xff]
    %v8171 = vld [vmem:[#allocation4 + $0x18] sm:$0xff]
    %v8172 = vld [vmem:[#allocation4 + $0x20] sm:$0xff]
    %v8173 = vld [vmem:[#allocation4 + $0x28] sm:$0xff]
    %v8174 = vld [vmem:[#allocation4 + $0x30] sm:$0xff]
    %v8175 = vld [vmem:[#allocation4 + $0x38] sm:$0xff]
    %v8176 = vld [vmem:[#allocation4 + $0x40] sm:$0xff]
    %v8177 = vld [vmem:[#allocation4 + $0x48] sm:$0xff]
    %v8178 = vld [vmem:[#allocation4 + $0x50] sm:$0xff]
    %v8179 = vld [vmem:[#allocation4 + $0x58] sm:$0xff]
    %v8180 = vld [vmem:[#allocation4 + $0x60] sm:$0xff]
    %v8181 = vld [vmem:[#allocation4 + $0x68] sm:$0xff]
    %v8182 = vld [vmem:[#allocation4 + $0x70] sm:$0xff]
    %v8183 = vld [vmem:[#allocation4 + $0x78] sm:$0xff]
    %v8184 = vld [vmem:[%s10] sm:$0x1]
    %v8186 = vlaneseq
    %v8187 = vshrl.u32 %v8186, 7
    %v8188 = vsub.s32 0, %v8187
    %v8189 = vrot.slane %v8184, %v8188
    %8191 = vmatprep.subr.mxu0 0.0
    %8192 = vmatpush1.msra.mxu0 %v8183
    %8193 = vmatprep.subr.mxu0 0.0
    %8194 = vmatpush1.msra.mxu0 %v8182
    %8195 = vmatprep.subr.mxu0 0.0
    %8196 = vmatpush1.msra.mxu0 %v8181
    %8197 = vmatprep.subr.mxu0 0.0
    %8198 = vmatpush1.msra.mxu0 %v8180
    %8199 = vmatprep.subr.mxu0 0.0
    %8200 = vmatpush1.msra.mxu0 %v8179
    %8201 = vmatprep.subr.mxu0 0.0
    %8202 = vmatpush1.msra.mxu0 %v8178
    %8203 = vmatprep.subr.mxu0 0.0
    %8204 = vmatpush1.msra.mxu0 %v8177
    %8205 = vmatprep.subr.mxu0 0.0
    %8206 = vmatpush1.msra.mxu0 %v8176
    %8207 = vmatprep.subr.mxu0 0.0
    %8208 = vmatpush1.msra.mxu0 %v8175
    %8209 = vmatprep.subr.mxu0 0.0
    %8210 = vmatpush1.msra.mxu0 %v8174
    %8211 = vmatprep.subr.mxu0 0.0
    %8212 = vmatpush1.msra.mxu0 %v8173
    %8213 = vmatprep.subr.mxu0 0.0
    %8214 = vmatpush1.msra.mxu0 %v8172
    %8215 = vmatprep.subr.mxu0 0.0
    %8216 = vmatpush1.msra.mxu0 %v8171
    %8217 = vmatprep.subr.mxu0 0.0
    %8218 = vmatpush1.msra.mxu0 %v8170
    %8219 = vmatprep.subr.mxu0 0.0
    %8220 = vmatpush1.msra.mxu0 %v8169
    %8221 = vmatprep.subr.mxu0 0.0
    %8222 = vmatpush1.msra.mxu0 %v8168
    %8223 = vmatprep.subr.mxu0 0.0
    %8224 = vmatpush2.msra.mxu0 0.0
    %8225 = vmatprep.subr.mxu0 0.0
    %8226 = vmatpush2.msra.mxu0 0.0
    %8227 = vmatprep.subr.mxu0 0.0
    %8228 = vmatpush2.msra.mxu0 0.0
    %8229 = vmatprep.subr.mxu0 0.0
    %8230 = vmatpush2.msra.mxu0 0.0
    %8231 = vmatprep.subr.mxu0 0.0
    %8232 = vmatpush2.msra.mxu0 0.0
    %8233 = vmatprep.subr.mxu0 0.0
    %8234 = vmatpush2.msra.mxu0 0.0
    %8235 = vmatprep.subr.mxu0 0.0
    %8236 = vmatpush2.msra.mxu0 0.0
    %8237 = vmatprep.subr.mxu0 0.0
    %8238 = vmatpush2.msra.mxu0 0.0
    %8239 = vmatprep.subr.mxu0 0.0
    %8240 = vmatpush2.msra.mxu0 0.0
    %8241 = vmatprep.subr.mxu0 0.0
    %8242 = vmatpush2.msra.mxu0 0.0
    %8243 = vmatprep.subr.mxu0 0.0
    %8244 = vmatpush2.msra.mxu0 0.0
    %8245 = vmatprep.subr.mxu0 0.0
    %8246 = vmatpush2.msra.mxu0 0.0
    %8247 = vmatprep.subr.mxu0 0.0
    %8248 = vmatpush2.msra.mxu0 0.0
    %8249 = vmatprep.subr.mxu0 0.0
    %8250 = vmatpush2.msra.mxu0 0.0
    %8251 = vmatprep.subr.mxu0 0.0
    %8252 = vmatpush2.msra.mxu0 0.0
    %8253 = vmatprep.subr.mxu0 0.0
    %8254 = vmatpush2.msra.mxu0 0.0
    %8255 = vmatprep.mubr.f32.mxu0 0.0
    %8256 = vmatmul.mubr.f32.gmra.mxu0 %v8167
    %v8257 = vpop.f32.mrf.mxu0
    %v8258 = vadd.f32 %v8189, %v8257
    %v8259 = vpop.f32.mrf.mxu0
    %8260 = vdwg.mxu0
    %8261 = vst [vmem:[%s11] sm:$0xff] %v8258
    // Predicated region
    $region54: #{cnn_forward.1} parent=1 // pred_check
      _
    $region55: #{cnn_forward.1} parent=1 // pred_check_branch
      %8263 = sbr.rel (0) target = $region57
    $region56: #{cnn_forward.1} parent=1 // pred_region
      _
    $region57: #{cnn_forward.1} parent=1 // pred_fallthru
      _
    // Predicated region
    $region58: #{cnn_forward.1} parent=1 // pred_check
      _
    $region59: #{cnn_forward.1} parent=1 // pred_check_branch
      %8265 = sbr.rel (0) target = $region61
    $region60: #{cnn_forward.1} parent=1 // pred_region
      _
    $region61: #{cnn_forward.1} parent=1 // pred_fallthru
      _
    %8266 = vsyncpa [#allocation3], 1
    %8267 = vsyncpa [#allocation5], 1

</llo_original>
